<compile_context>
chip_gen: v5e
topology: v5e:2x2
jax: 0.10.0
libtpu: 0.0.40
codegen_flags: <defaults>
</compile_context>

<pallas_src>
import functools

import jax
import jax.numpy as jnp
from jax.experimental import pallas as pl
from jax.experimental.pallas import tpu as pltpu


# ----------------------------- Pallas kernel ------------------------------- #

def _sppf_kernel(x_ref, w1_ref, b1_ref, w2_ref, b2_ref, rid_ref, o_ref, pbuf,
                 *, H, W):
    HW = H * W
    bf16 = jnp.bfloat16
    neg_inf = jnp.float32(-jnp.inf)

    # cv1: 1x1 conv == channel matmul (bf16 operands, f32 accumulate) + SiLU.
    z = jnp.dot(x_ref[0].astype(bf16), w1_ref[...],
                preferred_element_type=jnp.float32) + b1_ref[...]
    z = z * jax.nn.sigmoid(z)                            # f32, (HW, c_)

    # W-direction boundary masks, hoisted out of the three chained pools.
    # rid holds the image-row id of every flat position; a rolled position is
    # a valid 1x5-window neighbour iff its source stays on the same row.
    # Using the same roll on rid and on the data makes this independent of
    # the roll direction convention (shift set {+-1, +-2} is symmetric).
    rid = rid_ref[...]
    w_shifts = tuple(s for s in (1, 2, HW - 1, HW - 2) if 0 < s < HW)
    w_masks = tuple(pltpu.roll(rid, s, 0) == rid for s in w_shifts)

    def maxpool5(a):                                     # (HW, c_) -> (HW, c_)
        # 5x1 along H: row offsets +-W, +-2W via clamped partial maxima on the
        # scratch (outer-offset slices, no padded copy).
        pbuf[...] = a
        for d in (W, 2 * W):
            if d < HW:
                pbuf[pl.ds(0, HW - d), :] = jnp.maximum(
                    pbuf[pl.ds(0, HW - d), :], a[d:, :])
                pbuf[pl.ds(d, HW - d), :] = jnp.maximum(
                    pbuf[pl.ds(d, HW - d), :], a[:HW - d, :])
        h = pbuf[...]
        # 1x5 along W: sublane rotations (XLU) + same-row masks.
        out = h
        for s, m in zip(w_shifts, w_masks):
            out = jnp.maximum(out, jnp.where(m, pltpu.roll(h, s, 0), neg_inf))
        return out

    # cv2 accumulated level-by-level (no channel concat): each pyramid level
    # feeds its own bf16 matmul against the matching (c_, C2) slice of w2.
    acc = jnp.dot(z.astype(bf16), w2_ref[0], preferred_element_type=jnp.float32)
    y = z
    for k in range(1, 4):
        y = maxpool5(y)                                  # y1, y2, y3 in turn
        acc = acc + jnp.dot(y.astype(bf16), w2_ref[k],
                            preferred_element_type=jnp.float32)

    out = acc + b2_ref[...]
    out = out * jax.nn.sigmoid(out)                      # SiLU
    o_ref[0] = out.astype(o_ref.dtype)


def _vmem_limit_bytes(HW, C1, c_, C2, io_itemsize):
    """Scoped-VMEM request sized from the working set, capped below the
    physical per-core VMEM (v7x: 64 MiB/core; v5e/v6e: 128 MiB)."""
    f32, bf16, i32 = 4, 2, 4
    io = 2 * HW * (C1 + C2) * io_itemsize                         # dbl-buffered I/O
    const = (C1 * c_ + 4 * c_ * C2) * bf16 + (c_ + C2) * f32 + HW * c_ * i32
    live = (4 * HW * c_ + 2 * HW * C2) * f32                      # z/h/y/scratch, acc/out
    need = io + 2 * const + 2 * live
    try:
        cap = int(pltpu.get_tpu_info().vmem_capacity_bytes * 0.8)
    except Exception:
        cap = int((64 << 20) * 0.8)       # conservative default = v7x 64 MiB/core
    return int(min(max(2 * need, 32 << 20), cap))


def sppf_pallas(x_nhwc, w1, b1, w2, b2):
    """x_nhwc: (N, H, W, C1); w1: (C1, C_) f32; b1: (1, C_) f32;
    w2: (4, C_, C2) f32 (cv2 weight split per pyramid level); b2: (1, C2) f32."""
    N, H, W, C1 = x_nhwc.shape
    c_ = w1.shape[1]
    C2 = w2.shape[2]
    HW = H * W

    # Flat channels-last view (free in HBM) and one-time bf16 weight staging.
    x_flat = x_nhwc.reshape(N, HW, C1)
    w1_bf = w1.astype(jnp.bfloat16)
    w2_bf = w2.astype(jnp.bfloat16)
    row_id = jnp.broadcast_to(
        (jnp.arange(HW, dtype=jnp.int32) // W)[:, None], (HW, c_))

    flops = N * (2 * HW * (C1 * c_ + 4 * c_ * C2)     # cv1 + 4x cv2 matmuls
                 + 24 * HW * c_                        # 3 chained 5x5 max pools
                 + 2 * HW * (c_ + C2))                 # SiLU multiplies
    transcendentals = N * HW * (c_ + C2)
    bytes_accessed = (x_flat.size * x_flat.dtype.itemsize
                      + N * HW * C2 * x_nhwc.dtype.itemsize
                      + w1_bf.size * 2 + w2_bf.size * 2
                      + (c_ + C2) * 4 + row_id.size * 4)

    out_flat = pl.pallas_call(
        functools.partial(_sppf_kernel, H=H, W=W),
        out_shape=jax.ShapeDtypeStruct((N, HW, C2), x_nhwc.dtype),
        grid_spec=pltpu.PrefetchScalarGridSpec(
            num_scalar_prefetch=0,
            grid=(N,),
            in_specs=[
                pl.BlockSpec((1, HW, C1), lambda n: (n, 0, 0)),
                pl.BlockSpec((C1, c_), lambda n: (0, 0)),
                pl.BlockSpec((1, c_), lambda n: (0, 0)),
                pl.BlockSpec((4, c_, C2), lambda n: (0, 0, 0)),
                pl.BlockSpec((1, C2), lambda n: (0, 0)),
                pl.BlockSpec((HW, c_), lambda n: (0, 0)),
            ],
            out_specs=pl.BlockSpec((1, HW, C2), lambda n: (n, 0, 0)),
            scratch_shapes=[pltpu.VMEM((HW, c_), jnp.float32)],
        ),
        compiler_params=pltpu.CompilerParams(
            dimension_semantics=("parallel",),
            vmem_limit_bytes=_vmem_limit_bytes(HW, C1, c_, C2,
                                               x_nhwc.dtype.itemsize),
        ),
        cost_estimate=pl.CostEstimate(flops=int(flops),
                                      transcendentals=int(transcendentals),
                                      bytes_accessed=int(bytes_accessed)),
    )(x_flat, w1_bf, b1, w2_bf, b2, row_id)
    return out_flat.reshape(N, H, W, C2)


# --------------------- parameter setup / reference (glue) ------------------ #

def fold_bn_into_pointwise(w, gamma, beta, mean, var, eps=1e-5):
    """w: (Cin, Cout) 1x1-conv weight (no bias). Returns (w_eff, b_eff)."""
    scale = gamma / jnp.sqrt(var + eps)              # (Cout,)
    w_eff = w * scale[None, :]
    b_eff = beta - mean * scale
    return w_eff, b_eff[None, :]


def ref_forward(x_nhwc, w1, b1, w2_flat, b2):
    """Pure-JAX reference using the same bf16 MXU staging as the kernel
    (quantization of the matmul operands is therefore identical)."""
    bf16 = jnp.bfloat16
    z = jnp.einsum("nhwc,cd->nhwd", x_nhwc.astype(bf16), w1.astype(bf16),
                   preferred_element_type=jnp.float32) + b1[None]
    z = z * jax.nn.sigmoid(z)

    def pool(a):
        return jax.lax.reduce_window(
            a, -jnp.inf, jax.lax.max,
            window_dimensions=(1, 5, 5, 1), window_strides=(1, 1, 1, 1),
            padding=((0, 0), (2, 2), (2, 2), (0, 0)))

    y1 = pool(z)
    y2 = pool(y1)
    y3 = pool(y2)
    cat = jnp.concatenate([z, y1, y2, y3], axis=-1)
    out = jnp.einsum("nhwc,cd->nhwd", cat.astype(bf16), w2_flat.astype(bf16),
                     preferred_element_type=jnp.float32) + b2[None]
    return out * jax.nn.sigmoid(out)


if __name__ == "__main__":
    # Small shapes consistent with SPPF(c1=8, c2=8, k=5):
    #   x (PyTorch NCHW): (2, 8, 16, 16)   ->   NHWC: (2, 16, 16, 8)
    N, C1, H, W = 2, 8, 16, 16
    C2 = 8
    C_ = C1 // 2  # hidden channels of cv1

    key = jax.random.PRNGKey(0)
    kx, kw1, kw2, kg1, kb1, km1, kv1, kg2, kb2, km2, kv2 = jax.random.split(key, 11)

    x_nchw = jax.random.normal(kx, (N, C1, H, W), dtype=jnp.float32)
    x_nhwc = jnp.transpose(x_nchw, (0, 2, 3, 1))

    # Deterministic synthetic parameters (cv1: c1 -> c_, cv2: 4*c_ -> c2).
    w1_raw = 0.3 * jax.random.normal(kw1, (C1, C_), dtype=jnp.float32)
    g1 = 1.0 + 0.1 * jax.random.normal(kg1, (C_,), dtype=jnp.float32)
    be1 = 0.1 * jax.random.normal(kb1, (C_,), dtype=jnp.float32)
    mu1 = 0.1 * jax.random.normal(km1, (C_,), dtype=jnp.float32)
    va1 = 1.0 + 0.1 * jnp.abs(jax.random.normal(kv1, (C_,), dtype=jnp.float32))

    w2_raw = 0.3 * jax.random.normal(kw2, (4 * C_, C2), dtype=jnp.float32)
    g2 = 1.0 + 0.1 * jax.random.normal(kg2, (C2,), dtype=jnp.float32)
    be2 = 0.1 * jax.random.normal(kb2, (C2,), dtype=jnp.float32)
    mu2 = 0.1 * jax.random.normal(km2, (C2,), dtype=jnp.float32)
    va2 = 1.0 + 0.1 * jnp.abs(jax.random.normal(kv2, (C2,), dtype=jnp.float32))

    w1, b1 = fold_bn_into_pointwise(w1_raw, g1, be1, mu1, va1)
    w2_flat, b2 = fold_bn_into_pointwise(w2_raw, g2, be2, mu2, va2)
    w2_split = w2_flat.reshape(4, C_, C2)   # per-pyramid-level cv2 weight blocks

    out = sppf_pallas(x_nhwc, w1, b1, w2_split, b2)
    out = jax.block_until_ready(out)

    ref = ref_forward(x_nhwc, w1, b1, w2_flat, b2)
    assert out.shape == (N, H, W, C2), out.shape
    # bf16 MXU staging: compare against the matching bf16-staged reference
    # (residual diff is only f32 accumulation order / elementwise rounding).
    assert jnp.allclose(out, ref, atol=2e-3, rtol=2e-3), \
        float(jnp.max(jnp.abs(out - ref)))

    print("KERNEL_OK")
</pallas_src>

<mosaic_0001>
module attributes {stable_mosaic.version = 11 : i64} {
  func.func @_sppf_kernel(%arg0: i32, %arg1: memref<1x256x8xf32, #tpu.memory_space<vmem>>, %arg2: memref<8x4xbf16, #tpu.memory_space<vmem>>, %arg3: memref<1x4xf32, #tpu.memory_space<vmem>>, %arg4: memref<4x4x8xbf16, #tpu.memory_space<vmem>>, %arg5: memref<1x8xf32, #tpu.memory_space<vmem>>, %arg6: memref<256x4xi32, #tpu.memory_space<vmem>>, %arg7: memref<1x256x8xf32, #tpu.memory_space<vmem>>, %arg8: memref<256x4xf32, #tpu.memory_space<vmem>>) attributes {dimension_semantics = [#tpu.dimension_semantics<parallel>], iteration_bounds = array<i64: 2>, scalar_prefetch = 0 : i64, scratch_operands = 1 : i64, tpu.core_type = #tpu.core_type<tc>, window_params = [{transform_indices = @transform_0, window_bounds = array<i64: 1, 256, 8>}, {pipeline_mode = #tpu.pipeline_mode<synchronous>, transform_indices = @transform_1, window_bounds = array<i64: 8, 4>}, {pipeline_mode = #tpu.pipeline_mode<synchronous>, transform_indices = @transform_2, window_bounds = array<i64: 1, 4>}, {pipeline_mode = #tpu.pipeline_mode<synchronous>, transform_indices = @transform_3, window_bounds = array<i64: 4, 4, 8>}, {pipeline_mode = #tpu.pipeline_mode<synchronous>, transform_indices = @transform_4, window_bounds = array<i64: 1, 8>}, {pipeline_mode = #tpu.pipeline_mode<synchronous>, transform_indices = @transform_5, window_bounds = array<i64: 256, 4>}, {transform_indices = @transform_6, window_bounds = array<i64: 1, 256, 8>}]} {
    %c0 = arith.constant 0 : index
    %c0_0 = arith.constant 0 : index
    %c0_1 = arith.constant 0 : index
    %0 = vector.load %arg1[%c0, %c0_0, %c0_1] : memref<1x256x8xf32, #tpu.memory_space<vmem>>, vector<1x256x8xf32>
    %1 = vector.shape_cast %0 : vector<1x256x8xf32> to vector<256x8xf32>
    %2 = arith.truncf %1 : vector<256x8xf32> to vector<256x8xbf16>
    %c0_2 = arith.constant 0 : index
    %c0_3 = arith.constant 0 : index
    %3 = vector.load %arg2[%c0_2, %c0_3] : memref<8x4xbf16, #tpu.memory_space<vmem>>, vector<8x4xbf16>
    %cst = arith.constant dense<0.000000e+00> : vector<256x4xf32>
    %4 = tpu.matmul %2, %3, %cst {dimension_numbers = #tpu.dot_dimension_numbers<[1], [0], [0], [1], [0, 0, 1, 1], [], []>} : vector<256x8xbf16>, vector<8x4xbf16>, vector<256x4xf32> -> vector<256x4xf32>
    %c0_4 = arith.constant 0 : index
    %c0_5 = arith.constant 0 : index
    %5 = vector.load %arg3[%c0_4, %c0_5] : memref<1x4xf32, #tpu.memory_space<vmem>>, vector<1x4xf32>
    %6 = vector.broadcast %5 : vector<1x4xf32> to vector<256x4xf32>
    %7 = arith.addf %4, %6 : vector<256x4xf32>
    %8 = arith.negf %7 : vector<256x4xf32>
    %9 = math.exp %8 : vector<256x4xf32>
    %cst_6 = arith.constant 1.000000e+00 : f32
    %10 = vector.broadcast %cst_6 : f32 to vector<256x4xf32>
    %11 = arith.addf %10, %9 : vector<256x4xf32>
    %12 = arith.divf %10, %11 : vector<256x4xf32>
    %13 = arith.mulf %7, %12 : vector<256x4xf32>
    %c0_7 = arith.constant 0 : index
    %c0_8 = arith.constant 0 : index
    %14 = vector.load %arg6[%c0_7, %c0_8] : memref<256x4xi32, #tpu.memory_space<vmem>>, vector<256x4xi32>
    %c1_i32 = arith.constant 1 : i32
    %15 = tpu.dynamic_rotate %14 by %c1_i32 dim 0 : vector<256x4xi32>, i32 -> vector<256x4xi32>
    %16 = arith.cmpi eq, %15, %14 : vector<256x4xi32>
    %c2_i32 = arith.constant 2 : i32
    %17 = tpu.dynamic_rotate %14 by %c2_i32 dim 0 : vector<256x4xi32>, i32 -> vector<256x4xi32>
    %18 = arith.cmpi eq, %17, %14 : vector<256x4xi32>
    %c255_i32 = arith.constant 255 : i32
    %19 = tpu.dynamic_rotate %14 by %c255_i32 dim 0 : vector<256x4xi32>, i32 -> vector<256x4xi32>
    %20 = arith.cmpi eq, %19, %14 : vector<256x4xi32>
    %c254_i32 = arith.constant 254 : i32
    %21 = tpu.dynamic_rotate %14 by %c254_i32 dim 0 : vector<256x4xi32>, i32 -> vector<256x4xi32>
    %22 = arith.cmpi eq, %21, %14 : vector<256x4xi32>
    %23 = arith.truncf %13 : vector<256x4xf32> to vector<256x4xbf16>
    %c0_9 = arith.constant 0 : index
    %c0_10 = arith.constant 0 : index
    %c0_11 = arith.constant 0 : index
    %24 = vector.load %arg4[%c0_9, %c0_10, %c0_11] : memref<4x4x8xbf16, #tpu.memory_space<vmem>>, vector<1x4x8xbf16>
    %25 = vector.shape_cast %24 : vector<1x4x8xbf16> to vector<4x8xbf16>
    %cst_12 = arith.constant dense<0.000000e+00> : vector<256x8xf32>
    %26 = tpu.matmul %23, %25, %cst_12 {dimension_numbers = #tpu.dot_dimension_numbers<[1], [0], [0], [1], [0, 0, 1, 1], [], []>} : vector<256x4xbf16>, vector<4x8xbf16>, vector<256x8xf32> -> vector<256x8xf32>
    %c0_13 = arith.constant 0 : index
    %c0_14 = arith.constant 0 : index
    %27 = vector.load %arg8[%c0_13, %c0_14] : memref<256x4xf32, #tpu.memory_space<vmem>>, vector<256x4xf32>
    tpu.vector_store %arg8[%c0_13, %c0_14], %13 {strides = array<i32>} : memref<256x4xf32, #tpu.memory_space<vmem>>, vector<256x4xf32>,
    %c0_15 = arith.constant 0 : index
    %c0_16 = arith.constant 0 : index
    %28 = vector.load %arg8[%c0_15, %c0_16] : memref<256x4xf32, #tpu.memory_space<vmem>>, vector<240x4xf32>
    %29 = vector.extract_strided_slice %13 {offsets = [16, 0], sizes = [240, 4], strides = [1, 1]} : vector<256x4xf32> to vector<240x4xf32>
    %30 = arith.maximumf %28, %29 : vector<240x4xf32>
    %c0_17 = arith.constant 0 : index
    %c0_18 = arith.constant 0 : index
    %31 = vector.load %arg8[%c0_17, %c0_18] : memref<256x4xf32, #tpu.memory_space<vmem>>, vector<240x4xf32>
    tpu.vector_store %arg8[%c0_17, %c0_18], %30 {strides = array<i32>} : memref<256x4xf32, #tpu.memory_space<vmem>>, vector<240x4xf32>,
    %c16 = arith.constant 16 : index
    %c0_19 = arith.constant 0 : index
    %32 = vector.load %arg8[%c16, %c0_19] : memref<256x4xf32, #tpu.memory_space<vmem>>, vector<240x4xf32>
    %33 = vector.extract_strided_slice %13 {offsets = [0, 0], sizes = [240, 4], strides = [1, 1]} : vector<256x4xf32> to vector<240x4xf32>
    %34 = arith.maximumf %32, %33 : vector<240x4xf32>
    %c16_20 = arith.constant 16 : index
    %c0_21 = arith.constant 0 : index
    %35 = vector.load %arg8[%c16_20, %c0_21] : memref<256x4xf32, #tpu.memory_space<vmem>>, vector<240x4xf32>
    tpu.vector_store %arg8[%c16_20, %c0_21], %34 {strides = array<i32>} : memref<256x4xf32, #tpu.memory_space<vmem>>, vector<240x4xf32>,
    %c0_22 = arith.constant 0 : index
    %c0_23 = arith.constant 0 : index
    %36 = vector.load %arg8[%c0_22, %c0_23] : memref<256x4xf32, #tpu.memory_space<vmem>>, vector<224x4xf32>
    %37 = vector.extract_strided_slice %13 {offsets = [32, 0], sizes = [224, 4], strides = [1, 1]} : vector<256x4xf32> to vector<224x4xf32>
    %38 = arith.maximumf %36, %37 : vector<224x4xf32>
    %c0_24 = arith.constant 0 : index
    %c0_25 = arith.constant 0 : index
    %39 = vector.load %arg8[%c0_24, %c0_25] : memref<256x4xf32, #tpu.memory_space<vmem>>, vector<224x4xf32>
    tpu.vector_store %arg8[%c0_24, %c0_25], %38 {strides = array<i32>} : memref<256x4xf32, #tpu.memory_space<vmem>>, vector<224x4xf32>,
    %c32 = arith.constant 32 : index
    %c0_26 = arith.constant 0 : index
    %40 = vector.load %arg8[%c32, %c0_26] : memref<256x4xf32, #tpu.memory_space<vmem>>, vector<224x4xf32>
    %41 = vector.extract_strided_slice %13 {offsets = [0, 0], sizes = [224, 4], strides = [1, 1]} : vector<256x4xf32> to vector<224x4xf32>
    %42 = arith.maximumf %40, %41 : vector<224x4xf32>
    %c32_27 = arith.constant 32 : index
    %c0_28 = arith.constant 0 : index
    %43 = vector.load %arg8[%c32_27, %c0_28] : memref<256x4xf32, #tpu.memory_space<vmem>>, vector<224x4xf32>
    tpu.vector_store %arg8[%c32_27, %c0_28], %42 {strides = array<i32>} : memref<256x4xf32, #tpu.memory_space<vmem>>, vector<224x4xf32>,
    %c0_29 = arith.constant 0 : index
    %c0_30 = arith.constant 0 : index
    %44 = vector.load %arg8[%c0_29, %c0_30] : memref<256x4xf32, #tpu.memory_space<vmem>>, vector<256x4xf32>
    %c1_i32_31 = arith.constant 1 : i32
    %45 = tpu.dynamic_rotate %44 by %c1_i32_31 dim 0 : vector<256x4xf32>, i32 -> vector<256x4xf32>
    %cst_32 = arith.constant 0xFF800000 : f32
    %46 = vector.broadcast %cst_32 : f32 to vector<256x4xf32>
    %47 = arith.select %16, %45, %46 : vector<256x4xi1>, vector<256x4xf32>
    %48 = arith.maximumf %44, %47 : vector<256x4xf32>
    %c2_i32_33 = arith.constant 2 : i32
    %49 = tpu.dynamic_rotate %44 by %c2_i32_33 dim 0 : vector<256x4xf32>, i32 -> vector<256x4xf32>
    %cst_34 = arith.constant 0xFF800000 : f32
    %50 = vector.broadcast %cst_34 : f32 to vector<256x4xf32>
    %51 = arith.select %18, %49, %50 : vector<256x4xi1>, vector<256x4xf32>
    %52 = arith.maximumf %48, %51 : vector<256x4xf32>
    %c255_i32_35 = arith.constant 255 : i32
    %53 = tpu.dynamic_rotate %44 by %c255_i32_35 dim 0 : vector<256x4xf32>, i32 -> vector<256x4xf32>
    %cst_36 = arith.constant 0xFF800000 : f32
    %54 = vector.broadcast %cst_36 : f32 to vector<256x4xf32>
    %55 = arith.select %20, %53, %54 : vector<256x4xi1>, vector<256x4xf32>
    %56 = arith.maximumf %52, %55 : vector<256x4xf32>
    %c254_i32_37 = arith.constant 254 : i32
    %57 = tpu.dynamic_rotate %44 by %c254_i32_37 dim 0 : vector<256x4xf32>, i32 -> vector<256x4xf32>
    %cst_38 = arith.constant 0xFF800000 : f32
    %58 = vector.broadcast %cst_38 : f32 to vector<256x4xf32>
    %59 = arith.select %22, %57, %58 : vector<256x4xi1>, vector<256x4xf32>
    %60 = arith.maximumf %56, %59 : vector<256x4xf32>
    %61 = arith.truncf %60 : vector<256x4xf32> to vector<256x4xbf16>
    %c1 = arith.constant 1 : index
    %c0_39 = arith.constant 0 : index
    %c0_40 = arith.constant 0 : index
    %62 = vector.load %arg4[%c1, %c0_39, %c0_40] : memref<4x4x8xbf16, #tpu.memory_space<vmem>>, vector<1x4x8xbf16>
    %63 = vector.shape_cast %62 : vector<1x4x8xbf16> to vector<4x8xbf16>
    %cst_41 = arith.constant dense<0.000000e+00> : vector<256x8xf32>
    %64 = tpu.matmul %61, %63, %cst_41 {dimension_numbers = #tpu.dot_dimension_numbers<[1], [0], [0], [1], [0, 0, 1, 1], [], []>} : vector<256x4xbf16>, vector<4x8xbf16>, vector<256x8xf32> -> vector<256x8xf32>
    %65 = arith.addf %26, %64 : vector<256x8xf32>
    %c0_42 = arith.constant 0 : index
    %c0_43 = arith.constant 0 : index
    %66 = vector.load %arg8[%c0_42, %c0_43] : memref<256x4xf32, #tpu.memory_space<vmem>>, vector<256x4xf32>
    tpu.vector_store %arg8[%c0_42, %c0_43], %60 {strides = array<i32>} : memref<256x4xf32, #tpu.memory_space<vmem>>, vector<256x4xf32>,
    %c0_44 = arith.constant 0 : index
    %c0_45 = arith.constant 0 : index
    %67 = vector.load %arg8[%c0_44, %c0_45] : memref<256x4xf32, #tpu.memory_space<vmem>>, vector<240x4xf32>
    %68 = vector.extract_strided_slice %60 {offsets = [16, 0], sizes = [240, 4], strides = [1, 1]} : vector<256x4xf32> to vector<240x4xf32>
    %69 = arith.maximumf %67, %68 : vector<240x4xf32>
    %c0_46 = arith.constant 0 : index
    %c0_47 = arith.constant 0 : index
    %70 = vector.load %arg8[%c0_46, %c0_47] : memref<256x4xf32, #tpu.memory_space<vmem>>, vector<240x4xf32>
    tpu.vector_store %arg8[%c0_46, %c0_47], %69 {strides = array<i32>} : memref<256x4xf32, #tpu.memory_space<vmem>>, vector<240x4xf32>,
    %c16_48 = arith.constant 16 : index
    %c0_49 = arith.constant 0 : index
    %71 = vector.load %arg8[%c16_48, %c0_49] : memref<256x4xf32, #tpu.memory_space<vmem>>, vector<240x4xf32>
    %72 = vector.extract_strided_slice %60 {offsets = [0, 0], sizes = [240, 4], strides = [1, 1]} : vector<256x4xf32> to vector<240x4xf32>
    %73 = arith.maximumf %71, %72 : vector<240x4xf32>
    %c16_50 = arith.constant 16 : index
    %c0_51 = arith.constant 0 : index
    %74 = vector.load %arg8[%c16_50, %c0_51] : memref<256x4xf32, #tpu.memory_space<vmem>>, vector<240x4xf32>
    tpu.vector_store %arg8[%c16_50, %c0_51], %73 {strides = array<i32>} : memref<256x4xf32, #tpu.memory_space<vmem>>, vector<240x4xf32>,
    %c0_52 = arith.constant 0 : index
    %c0_53 = arith.constant 0 : index
    %75 = vector.load %arg8[%c0_52, %c0_53] : memref<256x4xf32, #tpu.memory_space<vmem>>, vector<224x4xf32>
    %76 = vector.extract_strided_slice %60 {offsets = [32, 0], sizes = [224, 4], strides = [1, 1]} : vector<256x4xf32> to vector<224x4xf32>
    %77 = arith.maximumf %75, %76 : vector<224x4xf32>
    %c0_54 = arith.constant 0 : index
    %c0_55 = arith.constant 0 : index
    %78 = vector.load %arg8[%c0_54, %c0_55] : memref<256x4xf32, #tpu.memory_space<vmem>>, vector<224x4xf32>
    tpu.vector_store %arg8[%c0_54, %c0_55], %77 {strides = array<i32>} : memref<256x4xf32, #tpu.memory_space<vmem>>, vector<224x4xf32>,
    %c32_56 = arith.constant 32 : index
    %c0_57 = arith.constant 0 : index
    %79 = vector.load %arg8[%c32_56, %c0_57] : memref<256x4xf32, #tpu.memory_space<vmem>>, vector<224x4xf32>
    %80 = vector.extract_strided_slice %60 {offsets = [0, 0], sizes = [224, 4], strides = [1, 1]} : vector<256x4xf32> to vector<224x4xf32>
    %81 = arith.maximumf %79, %80 : vector<224x4xf32>
    %c32_58 = arith.constant 32 : index
    %c0_59 = arith.constant 0 : index
    %82 = vector.load %arg8[%c32_58, %c0_59] : memref<256x4xf32, #tpu.memory_space<vmem>>, vector<224x4xf32>
    tpu.vector_store %arg8[%c32_58, %c0_59], %81 {strides = array<i32>} : memref<256x4xf32, #tpu.memory_space<vmem>>, vector<224x4xf32>,
    %c0_60 = arith.constant 0 : index
    %c0_61 = arith.constant 0 : index
    %83 = vector.load %arg8[%c0_60, %c0_61] : memref<256x4xf32, #tpu.memory_space<vmem>>, vector<256x4xf32>
    %c1_i32_62 = arith.constant 1 : i32
    %84 = tpu.dynamic_rotate %83 by %c1_i32_62 dim 0 : vector<256x4xf32>, i32 -> vector<256x4xf32>
    %cst_63 = arith.constant 0xFF800000 : f32
    %85 = vector.broadcast %cst_63 : f32 to vector<256x4xf32>
    %86 = arith.select %16, %84, %85 : vector<256x4xi1>, vector<256x4xf32>
    %87 = arith.maximumf %83, %86 : vector<256x4xf32>
    %c2_i32_64 = arith.constant 2 : i32
    %88 = tpu.dynamic_rotate %83 by %c2_i32_64 dim 0 : vector<256x4xf32>, i32 -> vector<256x4xf32>
    %cst_65 = arith.constant 0xFF800000 : f32
    %89 = vector.broadcast %cst_65 : f32 to vector<256x4xf32>
    %90 = arith.select %18, %88, %89 : vector<256x4xi1>, vector<256x4xf32>
    %91 = arith.maximumf %87, %90 : vector<256x4xf32>
    %c255_i32_66 = arith.constant 255 : i32
    %92 = tpu.dynamic_rotate %83 by %c255_i32_66 dim 0 : vector<256x4xf32>, i32 -> vector<256x4xf32>
    %cst_67 = arith.constant 0xFF800000 : f32
    %93 = vector.broadcast %cst_67 : f32 to vector<256x4xf32>
    %94 = arith.select %20, %92, %93 : vector<256x4xi1>, vector<256x4xf32>
    %95 = arith.maximumf %91, %94 : vector<256x4xf32>
    %c254_i32_68 = arith.constant 254 : i32
    %96 = tpu.dynamic_rotate %83 by %c254_i32_68 dim 0 : vector<256x4xf32>, i32 -> vector<256x4xf32>
    %cst_69 = arith.constant 0xFF800000 : f32
    %97 = vector.broadcast %cst_69 : f32 to vector<256x4xf32>
    %98 = arith.select %22, %96, %97 : vector<256x4xi1>, vector<256x4xf32>
    %99 = arith.maximumf %95, %98 : vector<256x4xf32>
    %100 = arith.truncf %99 : vector<256x4xf32> to vector<256x4xbf16>
    %c2 = arith.constant 2 : index
    %c0_70 = arith.constant 0 : index
    %c0_71 = arith.constant 0 : index
    %101 = vector.load %arg4[%c2, %c0_70, %c0_71] : memref<4x4x8xbf16, #tpu.memory_space<vmem>>, vector<1x4x8xbf16>
    %102 = vector.shape_cast %101 : vector<1x4x8xbf16> to vector<4x8xbf16>
    %cst_72 = arith.constant dense<0.000000e+00> : vector<256x8xf32>
    %103 = tpu.matmul %100, %102, %cst_72 {dimension_numbers = #tpu.dot_dimension_numbers<[1], [0], [0], [1], [0, 0, 1, 1], [], []>} : vector<256x4xbf16>, vector<4x8xbf16>, vector<256x8xf32> -> vector<256x8xf32>
    %104 = arith.addf %65, %103 : vector<256x8xf32>
    %c0_73 = arith.constant 0 : index
    %c0_74 = arith.constant 0 : index
    %105 = vector.load %arg8[%c0_73, %c0_74] : memref<256x4xf32, #tpu.memory_space<vmem>>, vector<256x4xf32>
    tpu.vector_store %arg8[%c0_73, %c0_74], %99 {strides = array<i32>} : memref<256x4xf32, #tpu.memory_space<vmem>>, vector<256x4xf32>,
    %c0_75 = arith.constant 0 : index
    %c0_76 = arith.constant 0 : index
    %106 = vector.load %arg8[%c0_75, %c0_76] : memref<256x4xf32, #tpu.memory_space<vmem>>, vector<240x4xf32>
    %107 = vector.extract_strided_slice %99 {offsets = [16, 0], sizes = [240, 4], strides = [1, 1]} : vector<256x4xf32> to vector<240x4xf32>
    %108 = arith.maximumf %106, %107 : vector<240x4xf32>
    %c0_77 = arith.constant 0 : index
    %c0_78 = arith.constant 0 : index
    %109 = vector.load %arg8[%c0_77, %c0_78] : memref<256x4xf32, #tpu.memory_space<vmem>>, vector<240x4xf32>
    tpu.vector_store %arg8[%c0_77, %c0_78], %108 {strides = array<i32>} : memref<256x4xf32, #tpu.memory_space<vmem>>, vector<240x4xf32>,
    %c16_79 = arith.constant 16 : index
    %c0_80 = arith.constant 0 : index
    %110 = vector.load %arg8[%c16_79, %c0_80] : memref<256x4xf32, #tpu.memory_space<vmem>>, vector<240x4xf32>
    %111 = vector.extract_strided_slice %99 {offsets = [0, 0], sizes = [240, 4], strides = [1, 1]} : vector<256x4xf32> to vector<240x4xf32>
    %112 = arith.maximumf %110, %111 : vector<240x4xf32>
    %c16_81 = arith.constant 16 : index
    %c0_82 = arith.constant 0 : index
    %113 = vector.load %arg8[%c16_81, %c0_82] : memref<256x4xf32, #tpu.memory_space<vmem>>, vector<240x4xf32>
    tpu.vector_store %arg8[%c16_81, %c0_82], %112 {strides = array<i32>} : memref<256x4xf32, #tpu.memory_space<vmem>>, vector<240x4xf32>,
    %c0_83 = arith.constant 0 : index
    %c0_84 = arith.constant 0 : index
    %114 = vector.load %arg8[%c0_83, %c0_84] : memref<256x4xf32, #tpu.memory_space<vmem>>, vector<224x4xf32>
    %115 = vector.extract_strided_slice %99 {offsets = [32, 0], sizes = [224, 4], strides = [1, 1]} : vector<256x4xf32> to vector<224x4xf32>
    %116 = arith.maximumf %114, %115 : vector<224x4xf32>
    %c0_85 = arith.constant 0 : index
    %c0_86 = arith.constant 0 : index
    %117 = vector.load %arg8[%c0_85, %c0_86] : memref<256x4xf32, #tpu.memory_space<vmem>>, vector<224x4xf32>
    tpu.vector_store %arg8[%c0_85, %c0_86], %116 {strides = array<i32>} : memref<256x4xf32, #tpu.memory_space<vmem>>, vector<224x4xf32>,
    %c32_87 = arith.constant 32 : index
    %c0_88 = arith.constant 0 : index
    %118 = vector.load %arg8[%c32_87, %c0_88] : memref<256x4xf32, #tpu.memory_space<vmem>>, vector<224x4xf32>
    %119 = vector.extract_strided_slice %99 {offsets = [0, 0], sizes = [224, 4], strides = [1, 1]} : vector<256x4xf32> to vector<224x4xf32>
    %120 = arith.maximumf %118, %119 : vector<224x4xf32>
    %c32_89 = arith.constant 32 : index
    %c0_90 = arith.constant 0 : index
    %121 = vector.load %arg8[%c32_89, %c0_90] : memref<256x4xf32, #tpu.memory_space<vmem>>, vector<224x4xf32>
    tpu.vector_store %arg8[%c32_89, %c0_90], %120 {strides = array<i32>} : memref<256x4xf32, #tpu.memory_space<vmem>>, vector<224x4xf32>,
    %c0_91 = arith.constant 0 : index
    %c0_92 = arith.constant 0 : index
    %122 = vector.load %arg8[%c0_91, %c0_92] : memref<256x4xf32, #tpu.memory_space<vmem>>, vector<256x4xf32>
    %c1_i32_93 = arith.constant 1 : i32
    %123 = tpu.dynamic_rotate %122 by %c1_i32_93 dim 0 : vector<256x4xf32>, i32 -> vector<256x4xf32>
    %cst_94 = arith.constant 0xFF800000 : f32
    %124 = vector.broadcast %cst_94 : f32 to vector<256x4xf32>
    %125 = arith.select %16, %123, %124 : vector<256x4xi1>, vector<256x4xf32>
    %126 = arith.maximumf %122, %125 : vector<256x4xf32>
    %c2_i32_95 = arith.constant 2 : i32
    %127 = tpu.dynamic_rotate %122 by %c2_i32_95 dim 0 : vector<256x4xf32>, i32 -> vector<256x4xf32>
    %cst_96 = arith.constant 0xFF800000 : f32
    %128 = vector.broadcast %cst_96 : f32 to vector<256x4xf32>
    %129 = arith.select %18, %127, %128 : vector<256x4xi1>, vector<256x4xf32>
    %130 = arith.maximumf %126, %129 : vector<256x4xf32>
    %c255_i32_97 = arith.constant 255 : i32
    %131 = tpu.dynamic_rotate %122 by %c255_i32_97 dim 0 : vector<256x4xf32>, i32 -> vector<256x4xf32>
    %cst_98 = arith.constant 0xFF800000 : f32
    %132 = vector.broadcast %cst_98 : f32 to vector<256x4xf32>
    %133 = arith.select %20, %131, %132 : vector<256x4xi1>, vector<256x4xf32>
    %134 = arith.maximumf %130, %133 : vector<256x4xf32>
    %c254_i32_99 = arith.constant 254 : i32
    %135 = tpu.dynamic_rotate %122 by %c254_i32_99 dim 0 : vector<256x4xf32>, i32 -> vector<256x4xf32>
    %cst_100 = arith.constant 0xFF800000 : f32
    %136 = vector.broadcast %cst_100 : f32 to vector<256x4xf32>
    %137 = arith.select %22, %135, %136 : vector<256x4xi1>, vector<256x4xf32>
    %138 = arith.maximumf %134, %137 : vector<256x4xf32>
    %139 = arith.truncf %138 : vector<256x4xf32> to vector<256x4xbf16>
    %c3 = arith.constant 3 : index
    %c0_101 = arith.constant 0 : index
    %c0_102 = arith.constant 0 : index
    %140 = vector.load %arg4[%c3, %c0_101, %c0_102] : memref<4x4x8xbf16, #tpu.memory_space<vmem>>, vector<1x4x8xbf16>
    %141 = vector.shape_cast %140 : vector<1x4x8xbf16> to vector<4x8xbf16>
    %cst_103 = arith.constant dense<0.000000e+00> : vector<256x8xf32>
    %142 = tpu.matmul %139, %141, %cst_103 {dimension_numbers = #tpu.dot_dimension_numbers<[1], [0], [0], [1], [0, 0, 1, 1], [], []>} : vector<256x4xbf16>, vector<4x8xbf16>, vector<256x8xf32> -> vector<256x8xf32>
    %143 = arith.addf %104, %142 : vector<256x8xf32>
    %c0_104 = arith.constant 0 : index
    %c0_105 = arith.constant 0 : index
    %144 = vector.load %arg5[%c0_104, %c0_105] : memref<1x8xf32, #tpu.memory_space<vmem>>, vector<1x8xf32>
    %145 = vector.broadcast %144 : vector<1x8xf32> to vector<256x8xf32>
    %146 = arith.addf %143, %145 : vector<256x8xf32>
    %147 = arith.negf %146 : vector<256x8xf32>
    %148 = math.exp %147 : vector<256x8xf32>
    %cst_106 = arith.constant 1.000000e+00 : f32
    %149 = vector.broadcast %cst_106 : f32 to vector<256x8xf32>
    %150 = arith.addf %149, %148 : vector<256x8xf32>
    %151 = arith.divf %149, %150 : vector<256x8xf32>
    %152 = arith.mulf %146, %151 : vector<256x8xf32>
    %c0_107 = arith.constant 0 : index
    %c0_108 = arith.constant 0 : index
    %c0_109 = arith.constant 0 : index
    %153 = vector.load %arg7[%c0_107, %c0_108, %c0_109] : memref<1x256x8xf32, #tpu.memory_space<vmem>>, vector<1x256x8xf32>
    %154 = vector.shape_cast %153 : vector<1x256x8xf32> to vector<256x8xf32>
    %155 = vector.shape_cast %152 : vector<256x8xf32> to vector<1x256x8xf32>
    tpu.vector_store %arg7[%c0_107, %c0_108, %c0_109], %155 {strides = array<i32>} : memref<1x256x8xf32, #tpu.memory_space<vmem>>, vector<1x256x8xf32>,
    return
  }
  func.func @transform_0(%arg0: i32) -> (i32, i32, i32) {
    %c0_i32 = arith.constant 0 : i32
    %c0_i32_0 = arith.constant 0 : i32
    %c0_i32_1 = arith.constant 0 : i32
    return %arg0, %c0_i32, %c0_i32_0 : i32, i32, i32
  }
  func.func @transform_1(%arg0: i32) -> (i32, i32) {
    %c0_i32 = arith.constant 0 : i32
    %c0_i32_0 = arith.constant 0 : i32
    %c0_i32_1 = arith.constant 0 : i32
    return %c0_i32, %c0_i32_0 : i32, i32
  }
  func.func @transform_2(%arg0: i32) -> (i32, i32) {
    %c0_i32 = arith.constant 0 : i32
    %c0_i32_0 = arith.constant 0 : i32
    %c0_i32_1 = arith.constant 0 : i32
    return %c0_i32, %c0_i32_0 : i32, i32
  }
  func.func @transform_3(%arg0: i32) -> (i32, i32, i32) {
    %c0_i32 = arith.constant 0 : i32
    %c0_i32_0 = arith.constant 0 : i32
    %c0_i32_1 = arith.constant 0 : i32
    %c0_i32_2 = arith.constant 0 : i32
    return %c0_i32, %c0_i32_0, %c0_i32_1 : i32, i32, i32
  }
  func.func @transform_4(%arg0: i32) -> (i32, i32) {
    %c0_i32 = arith.constant 0 : i32
    %c0_i32_0 = arith.constant 0 : i32
    %c0_i32_1 = arith.constant 0 : i32
    return %c0_i32, %c0_i32_0 : i32, i32
  }
  func.func @transform_5(%arg0: i32) -> (i32, i32) {
    %c0_i32 = arith.constant 0 : i32
    %c0_i32_0 = arith.constant 0 : i32
    %c0_i32_1 = arith.constant 0 : i32
    return %c0_i32, %c0_i32_0 : i32, i32
  }
  func.func @transform_6(%arg0: i32) -> (i32, i32, i32) {
    %c0_i32 = arith.constant 0 : i32
    %c0_i32_0 = arith.constant 0 : i32
    %c0_i32_1 = arith.constant 0 : i32
    return %arg0, %c0_i32, %c0_i32_0 : i32, i32, i32
  }
}

</mosaic_0001>

<llo_original>
// kernel: tpu_custom_call.1
$region0: #{tpu_custom_call.1}
  #allocation0 [shape = 'u32[]', space=smem, size = 0x4, offset = 0x4, fixed_abs, tag = 'smem constant byte address 0x4 - core index']
  #allocation1 [shape = 'u32[72,128]{1,0:T(1,128)}', space=vmem, size = 0x9000, scoped, tag = 'internal scratch']
  #allocation2 [shape = 'f32[256,4]{1,0:T(8,128)}', space=vmem, size = 0x20000, scoped, tag = 'scratch operand']
  %s0 = inlined_call_operand.vmem [shape: f32[2,256,8], index: 0, kind: input, shape index: {}]
  %s1 = inlined_call_operand.vmem [shape: bf16[8,4], index: 1, kind: input, shape index: {}]
  %s2 = inlined_call_operand.vmem [shape: f32[1,4], index: 2, kind: input, shape index: {}]
  %s3 = inlined_call_operand.vmem [shape: bf16[4,4,8], index: 3, kind: input, shape index: {}]
  %s4 = inlined_call_operand.vmem [shape: f32[1,8], index: 4, kind: input, shape index: {}]
  %s5 = inlined_call_operand.vmem [shape: s32[256,4], index: 5, kind: input, shape index: {}]
  %s6 = inlined_call_operand.vmem [shape: f32[2,256,8], index: 6, kind: output, shape index: {}]
  %s7 = sld [smem:[#allocation0]]
  $region57: #{tpu_custom_call.1} parent=0
    _
  %s9 = ssub.s32 1, %s7
  %s10 = scalar_select 0, %s9, %s7
  loop: start=0, step=1, limit=4
  $region2: #{tpu_custom_call.1} parent=0 // loop_pre_header
    _
  $region3: #{tpu_custom_call.1} parent=0 // loop_header
    %s12 = sphi 0, %s16
    %p13 = scmp.ge.s32.totalorder %s12, 4
    %s22 = sphi 0, %s24
    %s25 = sphi 0, %s22
    %s26 = sphi 0, %s25
    %s42 = sphi 0, %s26
    %s46 = sphi 0, %s46
    %s48 = sphi 0, %s46
    %s49 = sphi 0, %s48
    %s63 = sphi 0, %s49
    %s67 = sphi 0, %s67
    %s69 = sphi 0, %s67
    %s70 = sphi 0, %s69
    %s84 = sphi 0, %s70
    %s88 = sphi 0, %s88
    %s90 = sphi 0, %s88
    %s91 = sphi 0, %s90
    %s105 = sphi 0, %s91
    %s109 = sphi 0, %s109
    %s111 = sphi 0, %s109
    %s112 = sphi 0, %s111
    %s126 = sphi 0, %s112
    %s130 = sphi 0, %s130
    %s132 = sphi 0, %s130
    %s133 = sphi 0, %s132
    %s147 = sphi 0, %s133
    %s153 = sphi 0, %s155
    %s156 = sphi 0, %s153
    %s157 = sphi 0, %s156
    %s173 = sphi 0, %s157
  $region4: #{tpu_custom_call.1} parent=0 // loop_header_branch
    %15 = sbr.rel (%p13) target = $region8
  $region5: #{tpu_custom_call.1} parent=0 // loop_body
    %s17 = ssub.s32 %s12, 1
    %s18 = ssub.s32 %s12, 2
    %s19 = sadd.s32 %s12, 1
    %s20 = ssub.s32 %s12, %s19
    %p21 = scmp.eq.s32.totalorder %s20, 0
    %s23 = sadd.s32 %s22, 1
    %s24 = scalar_select %p21, %s22, %s23
    %p27 = pneg %p21
    %p28 = scmp.eq.s32.totalorder %s12, 1
    %p29 = por %p27, %p28
    %p30 = scmp.ne.s32.totalorder %s22, %s25
    %p31 = scmp.eq.s32.totalorder %s12, 0
    %p32 = por %p30, %p31
    %p33 = scmp.ne.s32.totalorder %s22, %s25
    %p34 = scmp.eq.s32.totalorder %s17, 1
    %p35 = por %p33, %p34
    %p36 = scmp.ne.s32.totalorder %s25, %s26
    %p37 = scmp.eq.s32.totalorder %s17, 0
    %p38 = por %p36, %p37
    %p39 = scmp.ne.s32.totalorder %s25, %s26
    %p40 = scmp.eq.s32.totalorder %s18, 1
    %p41 = por %p39, %p40
    %p43 = scmp.ne.s32.totalorder %s26, %s42
    %p44 = scmp.eq.s32.totalorder %s18, 0
    %p45 = por %p43, %p44
    %s47 = sadd.s32 %s46, 1
    %p50 = scmp.eq.s32.totalorder %s12, 1
    %p51 = scmp.ne.s32.totalorder %s46, %s48
    %p52 = scmp.eq.s32.totalorder %s12, 0
    %p53 = por %p51, %p52
    %p54 = scmp.ne.s32.totalorder %s46, %s48
    %p55 = scmp.eq.s32.totalorder %s17, 1
    %p56 = por %p54, %p55
    %p57 = scmp.ne.s32.totalorder %s48, %s49
    %p58 = scmp.eq.s32.totalorder %s17, 0
    %p59 = por %p57, %p58
    %p60 = scmp.ne.s32.totalorder %s48, %s49
    %p61 = scmp.eq.s32.totalorder %s18, 1
    %p62 = por %p60, %p61
    %p64 = scmp.ne.s32.totalorder %s49, %s63
    %p65 = scmp.eq.s32.totalorder %s18, 0
    %p66 = por %p64, %p65
    %s68 = sadd.s32 %s67, 1
    %p71 = scmp.eq.s32.totalorder %s12, 1
    %p72 = scmp.ne.s32.totalorder %s67, %s69
    %p73 = scmp.eq.s32.totalorder %s12, 0
    %p74 = por %p72, %p73
    %p75 = scmp.ne.s32.totalorder %s67, %s69
    %p76 = scmp.eq.s32.totalorder %s17, 1
    %p77 = por %p75, %p76
    %p78 = scmp.ne.s32.totalorder %s69, %s70
    %p79 = scmp.eq.s32.totalorder %s17, 0
    %p80 = por %p78, %p79
    %p81 = scmp.ne.s32.totalorder %s69, %s70
    %p82 = scmp.eq.s32.totalorder %s18, 1
    %p83 = por %p81, %p82
    %p85 = scmp.ne.s32.totalorder %s70, %s84
    %p86 = scmp.eq.s32.totalorder %s18, 0
    %p87 = por %p85, %p86
    %s89 = sadd.s32 %s88, 1
    %p92 = scmp.eq.s32.totalorder %s12, 1
    %p93 = scmp.ne.s32.totalorder %s88, %s90
    %p94 = scmp.eq.s32.totalorder %s12, 0
    %p95 = por %p93, %p94
    %p96 = scmp.ne.s32.totalorder %s88, %s90
    %p97 = scmp.eq.s32.totalorder %s17, 1
    %p98 = por %p96, %p97
    %p99 = scmp.ne.s32.totalorder %s90, %s91
    %p100 = scmp.eq.s32.totalorder %s17, 0
    %p101 = por %p99, %p100
    %p102 = scmp.ne.s32.totalorder %s90, %s91
    %p103 = scmp.eq.s32.totalorder %s18, 1
    %p104 = por %p102, %p103
    %p106 = scmp.ne.s32.totalorder %s91, %s105
    %p107 = scmp.eq.s32.totalorder %s18, 0
    %p108 = por %p106, %p107
    %s110 = sadd.s32 %s109, 1
    %p113 = scmp.eq.s32.totalorder %s12, 1
    %p114 = scmp.ne.s32.totalorder %s109, %s111
    %p115 = scmp.eq.s32.totalorder %s12, 0
    %p116 = por %p114, %p115
    %p117 = scmp.ne.s32.totalorder %s109, %s111
    %p118 = scmp.eq.s32.totalorder %s17, 1
    %p119 = por %p117, %p118
    %p120 = scmp.ne.s32.totalorder %s111, %s112
    %p121 = scmp.eq.s32.totalorder %s17, 0
    %p122 = por %p120, %p121
    %p123 = scmp.ne.s32.totalorder %s111, %s112
    %p124 = scmp.eq.s32.totalorder %s18, 1
    %p125 = por %p123, %p124
    %p127 = scmp.ne.s32.totalorder %s112, %s126
    %p128 = scmp.eq.s32.totalorder %s18, 0
    %p129 = por %p127, %p128
    %s131 = sadd.s32 %s130, 1
    %p134 = scmp.eq.s32.totalorder %s12, 1
    %p135 = scmp.ne.s32.totalorder %s130, %s132
    %p136 = scmp.eq.s32.totalorder %s12, 0
    %p137 = por %p135, %p136
    %p138 = scmp.ne.s32.totalorder %s130, %s132
    %p139 = scmp.eq.s32.totalorder %s17, 1
    %p140 = por %p138, %p139
    %p141 = scmp.ne.s32.totalorder %s132, %s133
    %p142 = scmp.eq.s32.totalorder %s17, 0
    %p143 = por %p141, %p142
    %p144 = scmp.ne.s32.totalorder %s132, %s133
    %p145 = scmp.eq.s32.totalorder %s18, 1
    %p146 = por %p144, %p145
    %p148 = scmp.ne.s32.totalorder %s133, %s147
    %p149 = scmp.eq.s32.totalorder %s18, 0
    %p150 = por %p148, %p149
    %s151 = ssub.s32 %s12, %s19
    %p152 = scmp.eq.s32.totalorder %s151, 0
    %s154 = sadd.s32 %s153, 1
    %s155 = scalar_select %p152, %s153, %s154
    %p158 = pneg %p152
    %p159 = scmp.eq.s32.totalorder %s12, 1
    %p160 = por %p158, %p159
    %p161 = scmp.ne.s32.totalorder %s153, %s156
    %p162 = scmp.eq.s32.totalorder %s12, 0
    %p163 = por %p161, %p162
    %p164 = scmp.ne.s32.totalorder %s153, %s156
    %p165 = scmp.eq.s32.totalorder %s17, 1
    %p166 = por %p164, %p165
    %p167 = scmp.ne.s32.totalorder %s156, %s157
    %p168 = scmp.eq.s32.totalorder %s17, 0
    %p169 = por %p167, %p168
    %p170 = scmp.ne.s32.totalorder %s156, %s157
    %p171 = scmp.eq.s32.totalorder %s18, 1
    %p172 = por %p170, %p171
    %p174 = scmp.ne.s32.totalorder %s157, %s173
    %p175 = scmp.eq.s32.totalorder %s18, 0
    %p176 = por %p174, %p175
    %p177 = scmp.le.s32.totalorder 1, %s12
    %p178 = scmp.lt.s32.totalorder %s12, 3
    %p179 = pnand %p177, %p178
    %p180 = pneg %p179
    // Predicated region
    $region9: #{tpu_custom_call.1} parent=5 // pred_check
      _
    $region10: #{tpu_custom_call.1} parent=5 // pred_check_branch
      %182 = sbr.rel (%p179) target = $region12
    $region11: #{tpu_custom_call.1} parent=5 // pred_region
      %s183 = ssub.s32 %s12, 1
      // Predicated region
      $region13: #{tpu_custom_call.1} parent=11 // pred_check
        %p184 = pneg %p59
      $region14: #{tpu_custom_call.1} parent=11 // pred_check_branch
        %186 = sbr.rel (%p184) target = $region16
      $region15: #{tpu_custom_call.1} parent=11 // pred_region
        _
      $region16: #{tpu_custom_call.1} parent=11 // pred_fallthru
        _
      // Predicated region
      $region17: #{tpu_custom_call.1} parent=11 // pred_check
        %p187 = pneg %p80
      $region18: #{tpu_custom_call.1} parent=11 // pred_check_branch
        %189 = sbr.rel (%p187) target = $region20
      $region19: #{tpu_custom_call.1} parent=11 // pred_region
        _
      $region20: #{tpu_custom_call.1} parent=11 // pred_fallthru
        _
      // Predicated region
      $region21: #{tpu_custom_call.1} parent=11 // pred_check
        %p190 = pneg %p101
      $region22: #{tpu_custom_call.1} parent=11 // pred_check_branch
        %192 = sbr.rel (%p190) target = $region24
      $region23: #{tpu_custom_call.1} parent=11 // pred_region
        _
      $region24: #{tpu_custom_call.1} parent=11 // pred_fallthru
        _
      // Predicated region
      $region25: #{tpu_custom_call.1} parent=11 // pred_check
        %p193 = pneg %p122
      $region26: #{tpu_custom_call.1} parent=11 // pred_check_branch
        %195 = sbr.rel (%p193) target = $region28
      $region27: #{tpu_custom_call.1} parent=11 // pred_region
        _
      $region28: #{tpu_custom_call.1} parent=11 // pred_fallthru
        _
      // Predicated region
      $region29: #{tpu_custom_call.1} parent=11 // pred_check
        %p196 = pneg %p143
      $region30: #{tpu_custom_call.1} parent=11 // pred_check_branch
        %198 = sbr.rel (%p196) target = $region32
      $region31: #{tpu_custom_call.1} parent=11 // pred_region
        _
      $region32: #{tpu_custom_call.1} parent=11 // pred_fallthru
        _
    $region12: #{tpu_custom_call.1} parent=5 // pred_fallthru
      _
    %p199 = scmp.lt.s32.totalorder %s12, 2
    // Predicated region
    $region33: #{tpu_custom_call.1} parent=5 // pred_check
      %p200 = pneg %p199
    $region34: #{tpu_custom_call.1} parent=5 // pred_check_branch
      %202 = sbr.rel (%p200) target = $region36
    $region35: #{tpu_custom_call.1} parent=5 // pred_region
      // Predicated region
      $region37: #{tpu_custom_call.1} parent=35 // pred_check
        %p203 = pneg %p32
      $region38: #{tpu_custom_call.1} parent=35 // pred_check_branch
        %205 = sbr.rel (%p203) target = $region40
      $region39: #{tpu_custom_call.1} parent=35 // pred_region
        %p206 = scmp.lt.s32.totalorder %s12, 1
        %s207 = scalar_select %p206, %s12, 1
        %s208 = smul.addr %s207, 32
        %s209 = smul.addr %s208, 8
        %s210 = scalar_lea.vmem %s0, %s209
      $region40: #{tpu_custom_call.1} parent=35 // pred_fallthru
        _
    $region36: #{tpu_custom_call.1} parent=5 // pred_fallthru
      _
    %p211 = scmp.le.s32.totalorder 1, %s12
    %p212 = scmp.lt.s32.totalorder %s12, 3
    %p213 = pnand %p211, %p212
    %p214 = pneg %p213
    // Predicated region
    $region41: #{tpu_custom_call.1} parent=5 // pred_check
      _
    $region42: #{tpu_custom_call.1} parent=5 // pred_check_branch
      %216 = sbr.rel (%p213) target = $region44
    $region43: #{tpu_custom_call.1} parent=5 // pred_region
      %s217 = ssub.s32 %s12, 1
      %p218 = scmp.lt.s32.totalorder %s17, 1
      %s219 = scalar_select %p218, %s17, 1
      %s220 = smul.addr %s219, 32
      %s221 = smul.addr %s220, 8
      %s222 = scalar_lea.vmem %s0, %s221
      %p223 = pneg %p38
      %p224 = pneg %p35
      %p225 = pneg %p59
      %p226 = pneg %p56
      %p227 = pneg %p80
      %p228 = pneg %p77
      %p229 = pneg %p101
      %p230 = pneg %p98
      %p231 = pneg %p122
      %p232 = pneg %p119
      %p233 = pneg %p143
      %p234 = pneg %p140
      %p235 = pneg %p169
      %p236 = pneg %p166
      %p237 = scmp.lt.s32.totalorder %s17, 1
      %s238 = scalar_select %p237, %s17, 1
      %s239 = smul.addr %s238, 32
      %s240 = smul.addr %s239, 8
      %s241 = scalar_lea.vmem %s6, %s240
      %p242 = scmp.lt.s32.totalorder %s17, 1
      %s243 = scalar_select %p242, %s17, 1
      %s244 = smul.addr %s243, 32
      %s245 = smul.addr %s244, 8
      %s246 = scalar_lea.vmem %s0, %s245
      %p247 = scmp.lt.s32.totalorder %s17, 1
      %s248 = scalar_select %p247, %s17, 1
      %s249 = smul.addr %s248, 32
      %s250 = smul.addr %s249, 8
      %s251 = scalar_lea.vmem %s6, %s250
      %v253 = vld [vmem:[%s246] sm:$0xff]
      %v254 = vld [vmem:[%s246 + $0x8] sm:$0xff]
      %v255 = vld [vmem:[%s246 + $0x10] sm:$0xff]
      %v256 = vld [vmem:[%s246 + $0x18] sm:$0xff]
      %v257 = vld [vmem:[%s246 + $0x20] sm:$0xff]
      %v258 = vld [vmem:[%s246 + $0x28] sm:$0xff]
      %v259 = vld [vmem:[%s246 + $0x30] sm:$0xff]
      %v260 = vld [vmem:[%s246 + $0x38] sm:$0xff]
      %v261 = vld [vmem:[%s246 + $0x40] sm:$0xff]
      %v262 = vld [vmem:[%s246 + $0x48] sm:$0xff]
      %v263 = vld [vmem:[%s246 + $0x50] sm:$0xff]
      %v264 = vld [vmem:[%s246 + $0x58] sm:$0xff]
      %v265 = vld [vmem:[%s246 + $0x60] sm:$0xff]
      %v266 = vld [vmem:[%s246 + $0x68] sm:$0xff]
      %v267 = vld [vmem:[%s246 + $0x70] sm:$0xff]
      %v268 = vld [vmem:[%s246 + $0x78] sm:$0xff]
      %v269 = vld [vmem:[%s246 + $0x80] sm:$0xff]
      %v270 = vld [vmem:[%s246 + $0x88] sm:$0xff]
      %v271 = vld [vmem:[%s246 + $0x90] sm:$0xff]
      %v272 = vld [vmem:[%s246 + $0x98] sm:$0xff]
      %v273 = vld [vmem:[%s246 + $0xa0] sm:$0xff]
      %v274 = vld [vmem:[%s246 + $0xa8] sm:$0xff]
      %v275 = vld [vmem:[%s246 + $0xb0] sm:$0xff]
      %v276 = vld [vmem:[%s246 + $0xb8] sm:$0xff]
      %v277 = vld [vmem:[%s246 + $0xc0] sm:$0xff]
      %v278 = vld [vmem:[%s246 + $0xc8] sm:$0xff]
      %v279 = vld [vmem:[%s246 + $0xd0] sm:$0xff]
      %v280 = vld [vmem:[%s246 + $0xd8] sm:$0xff]
      %v281 = vld [vmem:[%s246 + $0xe0] sm:$0xff]
      %v282 = vld [vmem:[%s246 + $0xe8] sm:$0xff]
      %v283 = vld [vmem:[%s246 + $0xf0] sm:$0xff]
      %v284 = vld [vmem:[%s246 + $0xf8] sm:$0xff]
      %v285 = vpack.c.bf16 %v254, %v253
      %v286 = vpack.c.bf16 %v256, %v255
      %v287 = vpack.c.bf16 %v258, %v257
      %v288 = vpack.c.bf16 %v260, %v259
      %v289 = vpack.c.bf16 %v262, %v261
      %v290 = vpack.c.bf16 %v264, %v263
      %v291 = vpack.c.bf16 %v266, %v265
      %v292 = vpack.c.bf16 %v268, %v267
      %v293 = vpack.c.bf16 %v270, %v269
      %v294 = vpack.c.bf16 %v272, %v271
      %v295 = vpack.c.bf16 %v274, %v273
      %v296 = vpack.c.bf16 %v276, %v275
      %v297 = vpack.c.bf16 %v278, %v277
      %v298 = vpack.c.bf16 %v280, %v279
      %v299 = vpack.c.bf16 %v282, %v281
      %v300 = vpack.c.bf16 %v284, %v283
      %v301 = vld [vmem:[%s1] sm:$0xf]
      %v302 = vld [vmem:[%s2] sm:$0x1]
      %v304 = vperm.slane %v302, 0
      %vm306 = vcmask 64512
      %v308 = vsel %vm306, %v285, 0
      %v311 = vsel %vm306, %v286, 0
      %v314 = vsel %vm306, %v287, 0
      %v317 = vsel %vm306, %v288, 0
      %v320 = vsel %vm306, %v289, 0
      %v323 = vsel %vm306, %v290, 0
      %v326 = vsel %vm306, %v291, 0
      %v329 = vsel %vm306, %v292, 0
      %v332 = vsel %vm306, %v293, 0
      %v335 = vsel %vm306, %v294, 0
      %v338 = vsel %vm306, %v295, 0
      %v341 = vsel %vm306, %v296, 0
      %v344 = vsel %vm306, %v297, 0
      %v347 = vsel %vm306, %v298, 0
      %v350 = vsel %vm306, %v299, 0
      %v353 = vsel %vm306, %v300, 0
      %vm355 = vcmask 1043456
      %v357 = vsel %vm355, %v301, 0
      %359 = vmatpush.bf16.msra.mxu0 0
      %360 = vmatpush.bf16.msra.mxu0 0
      %361 = vmatpush.bf16.msra.mxu0 0
      %362 = vmatpush.bf16.msra.mxu0 0
      %363 = vmatpush.bf16.msra.mxu0 0
      %364 = vmatpush.bf16.msra.mxu0 0
      %365 = vmatpush.bf16.msra.mxu0 0
      %366 = vmatpush.bf16.msra.mxu0 %v357
      %367 = vmatmul.bf16.gmra.mxu0 %v308
      %v368 = vpop.f32.mrf.mxu0
      %v369 = vadd.f32 %v304, %v368
      %v370 = vpop.f32.mrf.mxu0
      %v371 = vadd.f32 %v304, %v370
      %372 = vmatmul.bf16.gmra.mxu0 %v311
      %v373 = vpop.f32.mrf.mxu0
      %v374 = vadd.f32 %v304, %v373
      %v375 = vpop.f32.mrf.mxu0
      %v376 = vadd.f32 %v304, %v375
      %377 = vmatmul.bf16.gmra.mxu0 %v314
      %v378 = vpop.f32.mrf.mxu0
      %v379 = vadd.f32 %v304, %v378
      %v380 = vpop.f32.mrf.mxu0
      %v381 = vadd.f32 %v304, %v380
      %382 = vmatmul.bf16.gmra.mxu0 %v317
      %v383 = vpop.f32.mrf.mxu0
      %v384 = vadd.f32 %v304, %v383
      %v385 = vpop.f32.mrf.mxu0
      %v386 = vadd.f32 %v304, %v385
      %387 = vmatmul.bf16.gmra.mxu0 %v320
      %v388 = vpop.f32.mrf.mxu0
      %v389 = vadd.f32 %v304, %v388
      %v390 = vpop.f32.mrf.mxu0
      %v391 = vadd.f32 %v304, %v390
      %392 = vmatmul.bf16.gmra.mxu0 %v323
      %v393 = vpop.f32.mrf.mxu0
      %v394 = vadd.f32 %v304, %v393
      %v395 = vpop.f32.mrf.mxu0
      %v396 = vadd.f32 %v304, %v395
      %397 = vmatmul.bf16.gmra.mxu0 %v326
      %v398 = vpop.f32.mrf.mxu0
      %v399 = vadd.f32 %v304, %v398
      %v400 = vpop.f32.mrf.mxu0
      %v401 = vadd.f32 %v304, %v400
      %402 = vmatmul.bf16.gmra.mxu0 %v329
      %v403 = vpop.f32.mrf.mxu0
      %v404 = vadd.f32 %v304, %v403
      %v405 = vpop.f32.mrf.mxu0
      %v406 = vadd.f32 %v304, %v405
      %407 = vmatmul.bf16.gmra.mxu0 %v332
      %v408 = vpop.f32.mrf.mxu0
      %v409 = vadd.f32 %v304, %v408
      %v410 = vpop.f32.mrf.mxu0
      %v411 = vadd.f32 %v304, %v410
      %412 = vmatmul.bf16.gmra.mxu0 %v335
      %v413 = vpop.f32.mrf.mxu0
      %v414 = vadd.f32 %v304, %v413
      %v415 = vpop.f32.mrf.mxu0
      %v416 = vadd.f32 %v304, %v415
      %417 = vmatmul.bf16.gmra.mxu0 %v338
      %v418 = vpop.f32.mrf.mxu0
      %v419 = vadd.f32 %v304, %v418
      %v420 = vpop.f32.mrf.mxu0
      %v421 = vadd.f32 %v304, %v420
      %422 = vmatmul.bf16.gmra.mxu0 %v341
      %v423 = vpop.f32.mrf.mxu0
      %v424 = vadd.f32 %v304, %v423
      %v425 = vpop.f32.mrf.mxu0
      %v426 = vadd.f32 %v304, %v425
      %427 = vmatmul.bf16.gmra.mxu0 %v344
      %v428 = vpop.f32.mrf.mxu0
      %v429 = vadd.f32 %v304, %v428
      %v430 = vpop.f32.mrf.mxu0
      %v431 = vadd.f32 %v304, %v430
      %432 = vmatmul.bf16.gmra.mxu0 %v347
      %v433 = vpop.f32.mrf.mxu0
      %v434 = vadd.f32 %v304, %v433
      %v435 = vpop.f32.mrf.mxu0
      %v436 = vadd.f32 %v304, %v435
      %437 = vmatmul.bf16.gmra.mxu0 %v350
      %v438 = vpop.f32.mrf.mxu0
      %v439 = vadd.f32 %v304, %v438
      %v440 = vpop.f32.mrf.mxu0
      %v441 = vadd.f32 %v304, %v440
      %442 = vmatmul.bf16.gmra.mxu0 %v353
      %v443 = vpop.f32.mrf.mxu0
      %v444 = vadd.f32 %v304, %v443
      %v445 = vpop.f32.mrf.mxu0
      %v446 = vadd.f32 %v304, %v445
      %447 = vdwg.mxu0
      %v448 = vxor.u32 %v369, 2147483648
      %v449 = vxor.u32 %v371, 2147483648
      %v450 = vxor.u32 %v374, 2147483648
      %v451 = vxor.u32 %v376, 2147483648
      %v452 = vxor.u32 %v379, 2147483648
      %v453 = vxor.u32 %v381, 2147483648
      %v454 = vxor.u32 %v384, 2147483648
      %v455 = vxor.u32 %v386, 2147483648
      %v456 = vxor.u32 %v389, 2147483648
      %v457 = vxor.u32 %v391, 2147483648
      %v458 = vxor.u32 %v394, 2147483648
      %v459 = vxor.u32 %v396, 2147483648
      %v460 = vxor.u32 %v399, 2147483648
      %v461 = vxor.u32 %v401, 2147483648
      %v462 = vxor.u32 %v404, 2147483648
      %v463 = vxor.u32 %v406, 2147483648
      %v464 = vxor.u32 %v409, 2147483648
      %v465 = vxor.u32 %v411, 2147483648
      %v466 = vxor.u32 %v414, 2147483648
      %v467 = vxor.u32 %v416, 2147483648
      %v468 = vxor.u32 %v419, 2147483648
      %v469 = vxor.u32 %v421, 2147483648
      %v470 = vxor.u32 %v424, 2147483648
      %v471 = vxor.u32 %v426, 2147483648
      %v472 = vxor.u32 %v429, 2147483648
      %v473 = vxor.u32 %v431, 2147483648
      %v474 = vxor.u32 %v434, 2147483648
      %v475 = vxor.u32 %v436, 2147483648
      %v476 = vxor.u32 %v439, 2147483648
      %v477 = vxor.u32 %v441, 2147483648
      %v478 = vxor.u32 %v444, 2147483648
      %v479 = vxor.u32 %v446, 2147483648
      %v480 = vmul.f32 %v448, 1.442695
      %v481 = vpow.pop %v480
      %v482 = vmul.f32 %v449, 1.442695
      %v483 = vpow.pop %v482
      %v484 = vmul.f32 %v450, 1.442695
      %v485 = vpow.pop %v484
      %v486 = vmul.f32 %v451, 1.442695
      %v487 = vpow.pop %v486
      %v488 = vmul.f32 %v452, 1.442695
      %v489 = vpow.pop %v488
      %v490 = vmul.f32 %v453, 1.442695
      %v491 = vpow.pop %v490
      %v492 = vmul.f32 %v454, 1.442695
      %v493 = vpow.pop %v492
      %v494 = vmul.f32 %v455, 1.442695
      %v495 = vpow.pop %v494
      %v496 = vmul.f32 %v456, 1.442695
      %v497 = vpow.pop %v496
      %v498 = vmul.f32 %v457, 1.442695
      %v499 = vpow.pop %v498
      %v500 = vmul.f32 %v458, 1.442695
      %v501 = vpow.pop %v500
      %v502 = vmul.f32 %v459, 1.442695
      %v503 = vpow.pop %v502
      %v504 = vmul.f32 %v460, 1.442695
      %v505 = vpow.pop %v504
      %v506 = vmul.f32 %v461, 1.442695
      %v507 = vpow.pop %v506
      %v508 = vmul.f32 %v462, 1.442695
      %v509 = vpow.pop %v508
      %v510 = vmul.f32 %v463, 1.442695
      %v511 = vpow.pop %v510
      %v512 = vmul.f32 %v464, 1.442695
      %v513 = vpow.pop %v512
      %v514 = vmul.f32 %v465, 1.442695
      %v515 = vpow.pop %v514
      %v516 = vmul.f32 %v466, 1.442695
      %v517 = vpow.pop %v516
      %v518 = vmul.f32 %v467, 1.442695
      %v519 = vpow.pop %v518
      %v520 = vmul.f32 %v468, 1.442695
      %v521 = vpow.pop %v520
      %v522 = vmul.f32 %v469, 1.442695
      %v523 = vpow.pop %v522
      %v524 = vmul.f32 %v470, 1.442695
      %v525 = vpow.pop %v524
      %v526 = vmul.f32 %v471, 1.442695
      %v527 = vpow.pop %v526
      %v528 = vmul.f32 %v472, 1.442695
      %v529 = vpow.pop %v528
      %v530 = vmul.f32 %v473, 1.442695
      %v531 = vpow.pop %v530
      %v532 = vmul.f32 %v474, 1.442695
      %v533 = vpow.pop %v532
      %v534 = vmul.f32 %v475, 1.442695
      %v535 = vpow.pop %v534
      %v536 = vmul.f32 %v476, 1.442695
      %v537 = vpow.pop %v536
      %v538 = vmul.f32 %v477, 1.442695
      %v539 = vpow.pop %v538
      %v540 = vmul.f32 %v478, 1.442695
      %v541 = vpow.pop %v540
      %v542 = vmul.f32 %v479, 1.442695
      %v543 = vpow.pop %v542
      %v544 = vadd.f32 %v481, 1.0
      %v545 = vadd.f32 %v483, 1.0
      %v546 = vadd.f32 %v485, 1.0
      %v547 = vadd.f32 %v487, 1.0
      %v548 = vadd.f32 %v489, 1.0
      %v549 = vadd.f32 %v491, 1.0
      %v550 = vadd.f32 %v493, 1.0
      %v551 = vadd.f32 %v495, 1.0
      %v552 = vadd.f32 %v497, 1.0
      %v553 = vadd.f32 %v499, 1.0
      %v554 = vadd.f32 %v501, 1.0
      %v555 = vadd.f32 %v503, 1.0
      %v556 = vadd.f32 %v505, 1.0
      %v557 = vadd.f32 %v507, 1.0
      %v558 = vadd.f32 %v509, 1.0
      %v559 = vadd.f32 %v511, 1.0
      %v560 = vadd.f32 %v513, 1.0
      %v561 = vadd.f32 %v515, 1.0
      %v562 = vadd.f32 %v517, 1.0
      %v563 = vadd.f32 %v519, 1.0
      %v564 = vadd.f32 %v521, 1.0
      %v565 = vadd.f32 %v523, 1.0
      %v566 = vadd.f32 %v525, 1.0
      %v567 = vadd.f32 %v527, 1.0
      %v568 = vadd.f32 %v529, 1.0
      %v569 = vadd.f32 %v531, 1.0
      %v570 = vadd.f32 %v533, 1.0
      %v571 = vadd.f32 %v535, 1.0
      %v572 = vadd.f32 %v537, 1.0
      %v573 = vadd.f32 %v539, 1.0
      %v574 = vadd.f32 %v541, 1.0
      %v575 = vadd.f32 %v543, 1.0
      %v576 = vrcp.pop %v544
      %v577 = vmul.f32 %v544, %v576
      %v578 = vsub.f32 1.0, %v577
      %v579 = vmul.f32 %v576, %v578
      %v580 = vadd.f32 %v576, %v579
      %vm581 = vweird.f32 %v544
      %vm582 = vweird.f32 %v576
      %vm583 = vmor %vm581, %vm582
      %v584 = vsel %vm583, %v576, %v580
      %v585 = vand.u32 2147483647, %v544
      %vm586 = vcmp.eq.f32.partialorder %v585, 8.507059e+37
      %v587 = vand.u32 %v544, 2147483648
      %v588 = vor.u32 1.1754944e-38, %v587
      %v589 = vsel %vm586, %v588, %v584
      %v590 = vmul.f32 1.0, %v589
      %v591 = vrcp.pop %v545
      %v592 = vmul.f32 %v545, %v591
      %v593 = vsub.f32 1.0, %v592
      %v594 = vmul.f32 %v591, %v593
      %v595 = vadd.f32 %v591, %v594
      %vm596 = vweird.f32 %v545
      %vm597 = vweird.f32 %v591
      %vm598 = vmor %vm596, %vm597
      %v599 = vsel %vm598, %v591, %v595
      %v600 = vand.u32 2147483647, %v545
      %vm601 = vcmp.eq.f32.partialorder %v600, 8.507059e+37
      %v602 = vand.u32 %v545, 2147483648
      %v603 = vor.u32 1.1754944e-38, %v602
      %v604 = vsel %vm601, %v603, %v599
      %v605 = vmul.f32 1.0, %v604
      %v606 = vrcp.pop %v546
      %v607 = vmul.f32 %v546, %v606
      %v608 = vsub.f32 1.0, %v607
      %v609 = vmul.f32 %v606, %v608
      %v610 = vadd.f32 %v606, %v609
      %vm611 = vweird.f32 %v546
      %vm612 = vweird.f32 %v606
      %vm613 = vmor %vm611, %vm612
      %v614 = vsel %vm613, %v606, %v610
      %v615 = vand.u32 2147483647, %v546
      %vm616 = vcmp.eq.f32.partialorder %v615, 8.507059e+37
      %v617 = vand.u32 %v546, 2147483648
      %v618 = vor.u32 1.1754944e-38, %v617
      %v619 = vsel %vm616, %v618, %v614
      %v620 = vmul.f32 1.0, %v619
      %v621 = vrcp.pop %v547
      %v622 = vmul.f32 %v547, %v621
      %v623 = vsub.f32 1.0, %v622
      %v624 = vmul.f32 %v621, %v623
      %v625 = vadd.f32 %v621, %v624
      %vm626 = vweird.f32 %v547
      %vm627 = vweird.f32 %v621
      %vm628 = vmor %vm626, %vm627
      %v629 = vsel %vm628, %v621, %v625
      %v630 = vand.u32 2147483647, %v547
      %vm631 = vcmp.eq.f32.partialorder %v630, 8.507059e+37
      %v632 = vand.u32 %v547, 2147483648
      %v633 = vor.u32 1.1754944e-38, %v632
      %v634 = vsel %vm631, %v633, %v629
      %v635 = vmul.f32 1.0, %v634
      %v636 = vrcp.pop %v548
      %v637 = vmul.f32 %v548, %v636
      %v638 = vsub.f32 1.0, %v637
      %v639 = vmul.f32 %v636, %v638
      %v640 = vadd.f32 %v636, %v639
      %vm641 = vweird.f32 %v548
      %vm642 = vweird.f32 %v636
      %vm643 = vmor %vm641, %vm642
      %v644 = vsel %vm643, %v636, %v640
      %v645 = vand.u32 2147483647, %v548
      %vm646 = vcmp.eq.f32.partialorder %v645, 8.507059e+37
      %v647 = vand.u32 %v548, 2147483648
      %v648 = vor.u32 1.1754944e-38, %v647
      %v649 = vsel %vm646, %v648, %v644
      %v650 = vmul.f32 1.0, %v649
      %v651 = vrcp.pop %v549
      %v652 = vmul.f32 %v549, %v651
      %v653 = vsub.f32 1.0, %v652
      %v654 = vmul.f32 %v651, %v653
      %v655 = vadd.f32 %v651, %v654
      %vm656 = vweird.f32 %v549
      %vm657 = vweird.f32 %v651
      %vm658 = vmor %vm656, %vm657
      %v659 = vsel %vm658, %v651, %v655
      %v660 = vand.u32 2147483647, %v549
      %vm661 = vcmp.eq.f32.partialorder %v660, 8.507059e+37
      %v662 = vand.u32 %v549, 2147483648
      %v663 = vor.u32 1.1754944e-38, %v662
      %v664 = vsel %vm661, %v663, %v659
      %v665 = vmul.f32 1.0, %v664
      %v666 = vrcp.pop %v550
      %v667 = vmul.f32 %v550, %v666
      %v668 = vsub.f32 1.0, %v667
      %v669 = vmul.f32 %v666, %v668
      %v670 = vadd.f32 %v666, %v669
      %vm671 = vweird.f32 %v550
      %vm672 = vweird.f32 %v666
      %vm673 = vmor %vm671, %vm672
      %v674 = vsel %vm673, %v666, %v670
      %v675 = vand.u32 2147483647, %v550
      %vm676 = vcmp.eq.f32.partialorder %v675, 8.507059e+37
      %v677 = vand.u32 %v550, 2147483648
      %v678 = vor.u32 1.1754944e-38, %v677
      %v679 = vsel %vm676, %v678, %v674
      %v680 = vmul.f32 1.0, %v679
      %v681 = vrcp.pop %v551
      %v682 = vmul.f32 %v551, %v681
      %v683 = vsub.f32 1.0, %v682
      %v684 = vmul.f32 %v681, %v683
      %v685 = vadd.f32 %v681, %v684
      %vm686 = vweird.f32 %v551
      %vm687 = vweird.f32 %v681
      %vm688 = vmor %vm686, %vm687
      %v689 = vsel %vm688, %v681, %v685
      %v690 = vand.u32 2147483647, %v551
      %vm691 = vcmp.eq.f32.partialorder %v690, 8.507059e+37
      %v692 = vand.u32 %v551, 2147483648
      %v693 = vor.u32 1.1754944e-38, %v692
      %v694 = vsel %vm691, %v693, %v689
      %v695 = vmul.f32 1.0, %v694
      %v696 = vrcp.pop %v552
      %v697 = vmul.f32 %v552, %v696
      %v698 = vsub.f32 1.0, %v697
      %v699 = vmul.f32 %v696, %v698
      %v700 = vadd.f32 %v696, %v699
      %vm701 = vweird.f32 %v552
      %vm702 = vweird.f32 %v696
      %vm703 = vmor %vm701, %vm702
      %v704 = vsel %vm703, %v696, %v700
      %v705 = vand.u32 2147483647, %v552
      %vm706 = vcmp.eq.f32.partialorder %v705, 8.507059e+37
      %v707 = vand.u32 %v552, 2147483648
      %v708 = vor.u32 1.1754944e-38, %v707
      %v709 = vsel %vm706, %v708, %v704
      %v710 = vmul.f32 1.0, %v709
      %v711 = vrcp.pop %v553
      %v712 = vmul.f32 %v553, %v711
      %v713 = vsub.f32 1.0, %v712
      %v714 = vmul.f32 %v711, %v713
      %v715 = vadd.f32 %v711, %v714
      %vm716 = vweird.f32 %v553
      %vm717 = vweird.f32 %v711
      %vm718 = vmor %vm716, %vm717
      %v719 = vsel %vm718, %v711, %v715
      %v720 = vand.u32 2147483647, %v553
      %vm721 = vcmp.eq.f32.partialorder %v720, 8.507059e+37
      %v722 = vand.u32 %v553, 2147483648
      %v723 = vor.u32 1.1754944e-38, %v722
      %v724 = vsel %vm721, %v723, %v719
      %v725 = vmul.f32 1.0, %v724
      %v726 = vrcp.pop %v554
      %v727 = vmul.f32 %v554, %v726
      %v728 = vsub.f32 1.0, %v727
      %v729 = vmul.f32 %v726, %v728
      %v730 = vadd.f32 %v726, %v729
      %vm731 = vweird.f32 %v554
      %vm732 = vweird.f32 %v726
      %vm733 = vmor %vm731, %vm732
      %v734 = vsel %vm733, %v726, %v730
      %v735 = vand.u32 2147483647, %v554
      %vm736 = vcmp.eq.f32.partialorder %v735, 8.507059e+37
      %v737 = vand.u32 %v554, 2147483648
      %v738 = vor.u32 1.1754944e-38, %v737
      %v739 = vsel %vm736, %v738, %v734
      %v740 = vmul.f32 1.0, %v739
      %v741 = vrcp.pop %v555
      %v742 = vmul.f32 %v555, %v741
      %v743 = vsub.f32 1.0, %v742
      %v744 = vmul.f32 %v741, %v743
      %v745 = vadd.f32 %v741, %v744
      %vm746 = vweird.f32 %v555
      %vm747 = vweird.f32 %v741
      %vm748 = vmor %vm746, %vm747
      %v749 = vsel %vm748, %v741, %v745
      %v750 = vand.u32 2147483647, %v555
      %vm751 = vcmp.eq.f32.partialorder %v750, 8.507059e+37
      %v752 = vand.u32 %v555, 2147483648
      %v753 = vor.u32 1.1754944e-38, %v752
      %v754 = vsel %vm751, %v753, %v749
      %v755 = vmul.f32 1.0, %v754
      %v756 = vrcp.pop %v556
      %v757 = vmul.f32 %v556, %v756
      %v758 = vsub.f32 1.0, %v757
      %v759 = vmul.f32 %v756, %v758
      %v760 = vadd.f32 %v756, %v759
      %vm761 = vweird.f32 %v556
      %vm762 = vweird.f32 %v756
      %vm763 = vmor %vm761, %vm762
      %v764 = vsel %vm763, %v756, %v760
      %v765 = vand.u32 2147483647, %v556
      %vm766 = vcmp.eq.f32.partialorder %v765, 8.507059e+37
      %v767 = vand.u32 %v556, 2147483648
      %v768 = vor.u32 1.1754944e-38, %v767
      %v769 = vsel %vm766, %v768, %v764
      %v770 = vmul.f32 1.0, %v769
      %v771 = vrcp.pop %v557
      %v772 = vmul.f32 %v557, %v771
      %v773 = vsub.f32 1.0, %v772
      %v774 = vmul.f32 %v771, %v773
      %v775 = vadd.f32 %v771, %v774
      %vm776 = vweird.f32 %v557
      %vm777 = vweird.f32 %v771
      %vm778 = vmor %vm776, %vm777
      %v779 = vsel %vm778, %v771, %v775
      %v780 = vand.u32 2147483647, %v557
      %vm781 = vcmp.eq.f32.partialorder %v780, 8.507059e+37
      %v782 = vand.u32 %v557, 2147483648
      %v783 = vor.u32 1.1754944e-38, %v782
      %v784 = vsel %vm781, %v783, %v779
      %v785 = vmul.f32 1.0, %v784
      %v786 = vrcp.pop %v558
      %v787 = vmul.f32 %v558, %v786
      %v788 = vsub.f32 1.0, %v787
      %v789 = vmul.f32 %v786, %v788
      %v790 = vadd.f32 %v786, %v789
      %vm791 = vweird.f32 %v558
      %vm792 = vweird.f32 %v786
      %vm793 = vmor %vm791, %vm792
      %v794 = vsel %vm793, %v786, %v790
      %v795 = vand.u32 2147483647, %v558
      %vm796 = vcmp.eq.f32.partialorder %v795, 8.507059e+37
      %v797 = vand.u32 %v558, 2147483648
      %v798 = vor.u32 1.1754944e-38, %v797
      %v799 = vsel %vm796, %v798, %v794
      %v800 = vmul.f32 1.0, %v799
      %v801 = vrcp.pop %v559
      %v802 = vmul.f32 %v559, %v801
      %v803 = vsub.f32 1.0, %v802
      %v804 = vmul.f32 %v801, %v803
      %v805 = vadd.f32 %v801, %v804
      %vm806 = vweird.f32 %v559
      %vm807 = vweird.f32 %v801
      %vm808 = vmor %vm806, %vm807
      %v809 = vsel %vm808, %v801, %v805
      %v810 = vand.u32 2147483647, %v559
      %vm811 = vcmp.eq.f32.partialorder %v810, 8.507059e+37
      %v812 = vand.u32 %v559, 2147483648
      %v813 = vor.u32 1.1754944e-38, %v812
      %v814 = vsel %vm811, %v813, %v809
      %v815 = vmul.f32 1.0, %v814
      %v816 = vrcp.pop %v560
      %v817 = vmul.f32 %v560, %v816
      %v818 = vsub.f32 1.0, %v817
      %v819 = vmul.f32 %v816, %v818
      %v820 = vadd.f32 %v816, %v819
      %vm821 = vweird.f32 %v560
      %vm822 = vweird.f32 %v816
      %vm823 = vmor %vm821, %vm822
      %v824 = vsel %vm823, %v816, %v820
      %v825 = vand.u32 2147483647, %v560
      %vm826 = vcmp.eq.f32.partialorder %v825, 8.507059e+37
      %v827 = vand.u32 %v560, 2147483648
      %v828 = vor.u32 1.1754944e-38, %v827
      %v829 = vsel %vm826, %v828, %v824
      %v830 = vmul.f32 1.0, %v829
      %v831 = vrcp.pop %v561
      %v832 = vmul.f32 %v561, %v831
      %v833 = vsub.f32 1.0, %v832
      %v834 = vmul.f32 %v831, %v833
      %v835 = vadd.f32 %v831, %v834
      %vm836 = vweird.f32 %v561
      %vm837 = vweird.f32 %v831
      %vm838 = vmor %vm836, %vm837
      %v839 = vsel %vm838, %v831, %v835
      %v840 = vand.u32 2147483647, %v561
      %vm841 = vcmp.eq.f32.partialorder %v840, 8.507059e+37
      %v842 = vand.u32 %v561, 2147483648
      %v843 = vor.u32 1.1754944e-38, %v842
      %v844 = vsel %vm841, %v843, %v839
      %v845 = vmul.f32 1.0, %v844
      %v846 = vrcp.pop %v562
      %v847 = vmul.f32 %v562, %v846
      %v848 = vsub.f32 1.0, %v847
      %v849 = vmul.f32 %v846, %v848
      %v850 = vadd.f32 %v846, %v849
      %vm851 = vweird.f32 %v562
      %vm852 = vweird.f32 %v846
      %vm853 = vmor %vm851, %vm852
      %v854 = vsel %vm853, %v846, %v850
      %v855 = vand.u32 2147483647, %v562
      %vm856 = vcmp.eq.f32.partialorder %v855, 8.507059e+37
      %v857 = vand.u32 %v562, 2147483648
      %v858 = vor.u32 1.1754944e-38, %v857
      %v859 = vsel %vm856, %v858, %v854
      %v860 = vmul.f32 1.0, %v859
      %v861 = vrcp.pop %v563
      %v862 = vmul.f32 %v563, %v861
      %v863 = vsub.f32 1.0, %v862
      %v864 = vmul.f32 %v861, %v863
      %v865 = vadd.f32 %v861, %v864
      %vm866 = vweird.f32 %v563
      %vm867 = vweird.f32 %v861
      %vm868 = vmor %vm866, %vm867
      %v869 = vsel %vm868, %v861, %v865
      %v870 = vand.u32 2147483647, %v563
      %vm871 = vcmp.eq.f32.partialorder %v870, 8.507059e+37
      %v872 = vand.u32 %v563, 2147483648
      %v873 = vor.u32 1.1754944e-38, %v872
      %v874 = vsel %vm871, %v873, %v869
      %v875 = vmul.f32 1.0, %v874
      %v876 = vrcp.pop %v564
      %v877 = vmul.f32 %v564, %v876
      %v878 = vsub.f32 1.0, %v877
      %v879 = vmul.f32 %v876, %v878
      %v880 = vadd.f32 %v876, %v879
      %vm881 = vweird.f32 %v564
      %vm882 = vweird.f32 %v876
      %vm883 = vmor %vm881, %vm882
      %v884 = vsel %vm883, %v876, %v880
      %v885 = vand.u32 2147483647, %v564
      %vm886 = vcmp.eq.f32.partialorder %v885, 8.507059e+37
      %v887 = vand.u32 %v564, 2147483648
      %v888 = vor.u32 1.1754944e-38, %v887
      %v889 = vsel %vm886, %v888, %v884
      %v890 = vmul.f32 1.0, %v889
      %v891 = vrcp.pop %v565
      %v892 = vmul.f32 %v565, %v891
      %v893 = vsub.f32 1.0, %v892
      %v894 = vmul.f32 %v891, %v893
      %v895 = vadd.f32 %v891, %v894
      %vm896 = vweird.f32 %v565
      %vm897 = vweird.f32 %v891
      %vm898 = vmor %vm896, %vm897
      %v899 = vsel %vm898, %v891, %v895
      %v900 = vand.u32 2147483647, %v565
      %vm901 = vcmp.eq.f32.partialorder %v900, 8.507059e+37
      %v902 = vand.u32 %v565, 2147483648
      %v903 = vor.u32 1.1754944e-38, %v902
      %v904 = vsel %vm901, %v903, %v899
      %v905 = vmul.f32 1.0, %v904
      %v906 = vrcp.pop %v566
      %v907 = vmul.f32 %v566, %v906
      %v908 = vsub.f32 1.0, %v907
      %v909 = vmul.f32 %v906, %v908
      %v910 = vadd.f32 %v906, %v909
      %vm911 = vweird.f32 %v566
      %vm912 = vweird.f32 %v906
      %vm913 = vmor %vm911, %vm912
      %v914 = vsel %vm913, %v906, %v910
      %v915 = vand.u32 2147483647, %v566
      %vm916 = vcmp.eq.f32.partialorder %v915, 8.507059e+37
      %v917 = vand.u32 %v566, 2147483648
      %v918 = vor.u32 1.1754944e-38, %v917
      %v919 = vsel %vm916, %v918, %v914
      %v920 = vmul.f32 1.0, %v919
      %v921 = vrcp.pop %v567
      %v922 = vmul.f32 %v567, %v921
      %v923 = vsub.f32 1.0, %v922
      %v924 = vmul.f32 %v921, %v923
      %v925 = vadd.f32 %v921, %v924
      %vm926 = vweird.f32 %v567
      %vm927 = vweird.f32 %v921
      %vm928 = vmor %vm926, %vm927
      %v929 = vsel %vm928, %v921, %v925
      %v930 = vand.u32 2147483647, %v567
      %vm931 = vcmp.eq.f32.partialorder %v930, 8.507059e+37
      %v932 = vand.u32 %v567, 2147483648
      %v933 = vor.u32 1.1754944e-38, %v932
      %v934 = vsel %vm931, %v933, %v929
      %v935 = vmul.f32 1.0, %v934
      %v936 = vrcp.pop %v568
      %v937 = vmul.f32 %v568, %v936
      %v938 = vsub.f32 1.0, %v937
      %v939 = vmul.f32 %v936, %v938
      %v940 = vadd.f32 %v936, %v939
      %vm941 = vweird.f32 %v568
      %vm942 = vweird.f32 %v936
      %vm943 = vmor %vm941, %vm942
      %v944 = vsel %vm943, %v936, %v940
      %v945 = vand.u32 2147483647, %v568
      %vm946 = vcmp.eq.f32.partialorder %v945, 8.507059e+37
      %v947 = vand.u32 %v568, 2147483648
      %v948 = vor.u32 1.1754944e-38, %v947
      %v949 = vsel %vm946, %v948, %v944
      %v950 = vmul.f32 1.0, %v949
      %v951 = vrcp.pop %v569
      %v952 = vmul.f32 %v569, %v951
      %v953 = vsub.f32 1.0, %v952
      %v954 = vmul.f32 %v951, %v953
      %v955 = vadd.f32 %v951, %v954
      %vm956 = vweird.f32 %v569
      %vm957 = vweird.f32 %v951
      %vm958 = vmor %vm956, %vm957
      %v959 = vsel %vm958, %v951, %v955
      %v960 = vand.u32 2147483647, %v569
      %vm961 = vcmp.eq.f32.partialorder %v960, 8.507059e+37
      %v962 = vand.u32 %v569, 2147483648
      %v963 = vor.u32 1.1754944e-38, %v962
      %v964 = vsel %vm961, %v963, %v959
      %v965 = vmul.f32 1.0, %v964
      %v966 = vrcp.pop %v570
      %v967 = vmul.f32 %v570, %v966
      %v968 = vsub.f32 1.0, %v967
      %v969 = vmul.f32 %v966, %v968
      %v970 = vadd.f32 %v966, %v969
      %vm971 = vweird.f32 %v570
      %vm972 = vweird.f32 %v966
      %vm973 = vmor %vm971, %vm972
      %v974 = vsel %vm973, %v966, %v970
      %v975 = vand.u32 2147483647, %v570
      %vm976 = vcmp.eq.f32.partialorder %v975, 8.507059e+37
      %v977 = vand.u32 %v570, 2147483648
      %v978 = vor.u32 1.1754944e-38, %v977
      %v979 = vsel %vm976, %v978, %v974
      %v980 = vmul.f32 1.0, %v979
      %v981 = vrcp.pop %v571
      %v982 = vmul.f32 %v571, %v981
      %v983 = vsub.f32 1.0, %v982
      %v984 = vmul.f32 %v981, %v983
      %v985 = vadd.f32 %v981, %v984
      %vm986 = vweird.f32 %v571
      %vm987 = vweird.f32 %v981
      %vm988 = vmor %vm986, %vm987
      %v989 = vsel %vm988, %v981, %v985
      %v990 = vand.u32 2147483647, %v571
      %vm991 = vcmp.eq.f32.partialorder %v990, 8.507059e+37
      %v992 = vand.u32 %v571, 2147483648
      %v993 = vor.u32 1.1754944e-38, %v992
      %v994 = vsel %vm991, %v993, %v989
      %v995 = vmul.f32 1.0, %v994
      %v996 = vrcp.pop %v572
      %v997 = vmul.f32 %v572, %v996
      %v998 = vsub.f32 1.0, %v997
      %v999 = vmul.f32 %v996, %v998
      %v1000 = vadd.f32 %v996, %v999
      %vm1001 = vweird.f32 %v572
      %vm1002 = vweird.f32 %v996
      %vm1003 = vmor %vm1001, %vm1002
      %v1004 = vsel %vm1003, %v996, %v1000
      %v1005 = vand.u32 2147483647, %v572
      %vm1006 = vcmp.eq.f32.partialorder %v1005, 8.507059e+37
      %v1007 = vand.u32 %v572, 2147483648
      %v1008 = vor.u32 1.1754944e-38, %v1007
      %v1009 = vsel %vm1006, %v1008, %v1004
      %v1010 = vmul.f32 1.0, %v1009
      %v1011 = vrcp.pop %v573
      %v1012 = vmul.f32 %v573, %v1011
      %v1013 = vsub.f32 1.0, %v1012
      %v1014 = vmul.f32 %v1011, %v1013
      %v1015 = vadd.f32 %v1011, %v1014
      %vm1016 = vweird.f32 %v573
      %vm1017 = vweird.f32 %v1011
      %vm1018 = vmor %vm1016, %vm1017
      %v1019 = vsel %vm1018, %v1011, %v1015
      %v1020 = vand.u32 2147483647, %v573
      %vm1021 = vcmp.eq.f32.partialorder %v1020, 8.507059e+37
      %v1022 = vand.u32 %v573, 2147483648
      %v1023 = vor.u32 1.1754944e-38, %v1022
      %v1024 = vsel %vm1021, %v1023, %v1019
      %v1025 = vmul.f32 1.0, %v1024
      %v1026 = vrcp.pop %v574
      %v1027 = vmul.f32 %v574, %v1026
      %v1028 = vsub.f32 1.0, %v1027
      %v1029 = vmul.f32 %v1026, %v1028
      %v1030 = vadd.f32 %v1026, %v1029
      %vm1031 = vweird.f32 %v574
      %vm1032 = vweird.f32 %v1026
      %vm1033 = vmor %vm1031, %vm1032
      %v1034 = vsel %vm1033, %v1026, %v1030
      %v1035 = vand.u32 2147483647, %v574
      %vm1036 = vcmp.eq.f32.partialorder %v1035, 8.507059e+37
      %v1037 = vand.u32 %v574, 2147483648
      %v1038 = vor.u32 1.1754944e-38, %v1037
      %v1039 = vsel %vm1036, %v1038, %v1034
      %v1040 = vmul.f32 1.0, %v1039
      %v1041 = vrcp.pop %v575
      %v1042 = vmul.f32 %v575, %v1041
      %v1043 = vsub.f32 1.0, %v1042
      %v1044 = vmul.f32 %v1041, %v1043
      %v1045 = vadd.f32 %v1041, %v1044
      %vm1046 = vweird.f32 %v575
      %vm1047 = vweird.f32 %v1041
      %vm1048 = vmor %vm1046, %vm1047
      %v1049 = vsel %vm1048, %v1041, %v1045
      %v1050 = vand.u32 2147483647, %v575
      %vm1051 = vcmp.eq.f32.partialorder %v1050, 8.507059e+37
      %v1052 = vand.u32 %v575, 2147483648
      %v1053 = vor.u32 1.1754944e-38, %v1052
      %v1054 = vsel %vm1051, %v1053, %v1049
      %v1055 = vmul.f32 1.0, %v1054
      %v1056 = vmul.f32 %v369, %v590
      %v1057 = vmul.f32 %v371, %v605
      %v1058 = vmul.f32 %v374, %v620
      %v1059 = vmul.f32 %v376, %v635
      %v1060 = vmul.f32 %v379, %v650
      %v1061 = vmul.f32 %v381, %v665
      %v1062 = vmul.f32 %v384, %v680
      %v1063 = vmul.f32 %v386, %v695
      %v1064 = vmul.f32 %v389, %v710
      %v1065 = vmul.f32 %v391, %v725
      %v1066 = vmul.f32 %v394, %v740
      %v1067 = vmul.f32 %v396, %v755
      %v1068 = vmul.f32 %v399, %v770
      %v1069 = vmul.f32 %v401, %v785
      %v1070 = vmul.f32 %v404, %v800
      %v1071 = vmul.f32 %v406, %v815
      %v1072 = vmul.f32 %v409, %v830
      %v1073 = vmul.f32 %v411, %v845
      %v1074 = vmul.f32 %v414, %v860
      %v1075 = vmul.f32 %v416, %v875
      %v1076 = vmul.f32 %v419, %v890
      %v1077 = vmul.f32 %v421, %v905
      %v1078 = vmul.f32 %v424, %v920
      %v1079 = vmul.f32 %v426, %v935
      %v1080 = vmul.f32 %v429, %v950
      %v1081 = vmul.f32 %v431, %v965
      %v1082 = vmul.f32 %v434, %v980
      %v1083 = vmul.f32 %v436, %v995
      %v1084 = vmul.f32 %v439, %v1010
      %v1085 = vmul.f32 %v441, %v1025
      %v1086 = vmul.f32 %v444, %v1040
      %v1087 = vmul.f32 %v446, %v1055
      %v1088 = vld [vmem:[%s5] sm:$0xff]
      %v1089 = vld [vmem:[%s5 + $0x8] sm:$0xff]
      %v1090 = vld [vmem:[%s5 + $0x10] sm:$0xff]
      %v1091 = vld [vmem:[%s5 + $0x18] sm:$0xff]
      %v1092 = vld [vmem:[%s5 + $0x20] sm:$0xff]
      %v1093 = vld [vmem:[%s5 + $0x28] sm:$0xff]
      %v1094 = vld [vmem:[%s5 + $0x30] sm:$0xff]
      %v1095 = vld [vmem:[%s5 + $0x38] sm:$0xff]
      %v1096 = vld [vmem:[%s5 + $0x40] sm:$0xff]
      %v1097 = vld [vmem:[%s5 + $0x48] sm:$0xff]
      %v1098 = vld [vmem:[%s5 + $0x50] sm:$0xff]
      %v1099 = vld [vmem:[%s5 + $0x58] sm:$0xff]
      %v1100 = vld [vmem:[%s5 + $0x60] sm:$0xff]
      %v1101 = vld [vmem:[%s5 + $0x68] sm:$0xff]
      %v1102 = vld [vmem:[%s5 + $0x70] sm:$0xff]
      %v1103 = vld [vmem:[%s5 + $0x78] sm:$0xff]
      %v1104 = vld [vmem:[%s5 + $0x80] sm:$0xff]
      %v1105 = vld [vmem:[%s5 + $0x88] sm:$0xff]
      %v1106 = vld [vmem:[%s5 + $0x90] sm:$0xff]
      %v1107 = vld [vmem:[%s5 + $0x98] sm:$0xff]
      %v1108 = vld [vmem:[%s5 + $0xa0] sm:$0xff]
      %v1109 = vld [vmem:[%s5 + $0xa8] sm:$0xff]
      %v1110 = vld [vmem:[%s5 + $0xb0] sm:$0xff]
      %v1111 = vld [vmem:[%s5 + $0xb8] sm:$0xff]
      %v1112 = vld [vmem:[%s5 + $0xc0] sm:$0xff]
      %v1113 = vld [vmem:[%s5 + $0xc8] sm:$0xff]
      %v1114 = vld [vmem:[%s5 + $0xd0] sm:$0xff]
      %v1115 = vld [vmem:[%s5 + $0xd8] sm:$0xff]
      %v1116 = vld [vmem:[%s5 + $0xe0] sm:$0xff]
      %v1117 = vld [vmem:[%s5 + $0xe8] sm:$0xff]
      %v1118 = vld [vmem:[%s5 + $0xf0] sm:$0xff]
      %v1119 = vld [vmem:[%s5 + $0xf8] sm:$0xff]
      %v1120 = vrot.slane %v1088, 7
      %v1121 = vrot.slane %v1089, 7
      %v1122 = vrot.slane %v1090, 7
      %v1123 = vrot.slane %v1091, 7
      %v1124 = vrot.slane %v1092, 7
      %v1125 = vrot.slane %v1093, 7
      %v1126 = vrot.slane %v1094, 7
      %v1127 = vrot.slane %v1095, 7
      %v1128 = vrot.slane %v1096, 7
      %v1129 = vrot.slane %v1097, 7
      %v1130 = vrot.slane %v1098, 7
      %v1131 = vrot.slane %v1099, 7
      %v1132 = vrot.slane %v1100, 7
      %v1133 = vrot.slane %v1101, 7
      %v1134 = vrot.slane %v1102, 7
      %v1135 = vrot.slane %v1103, 7
      %v1136 = vrot.slane %v1104, 7
      %v1137 = vrot.slane %v1105, 7
      %v1138 = vrot.slane %v1106, 7
      %v1139 = vrot.slane %v1107, 7
      %v1140 = vrot.slane %v1108, 7
      %v1141 = vrot.slane %v1109, 7
      %v1142 = vrot.slane %v1110, 7
      %v1143 = vrot.slane %v1111, 7
      %v1144 = vrot.slane %v1112, 7
      %v1145 = vrot.slane %v1113, 7
      %v1146 = vrot.slane %v1114, 7
      %v1147 = vrot.slane %v1115, 7
      %v1148 = vrot.slane %v1116, 7
      %v1149 = vrot.slane %v1117, 7
      %v1150 = vrot.slane %v1118, 7
      %v1151 = vrot.slane %v1119, 7
      %v1152 = vlaneseq
      %v1153 = vshrl.u32 %v1152, 7
      %vm1154 = vcmp.lt.s32.totalorder %v1153, 1
      %v1155 = vsel %vm1154, %v1150, %v1151
      %v1156 = vsel %vm1154, %v1149, %v1150
      %v1157 = vsel %vm1154, %v1148, %v1149
      %v1158 = vsel %vm1154, %v1147, %v1148
      %v1159 = vsel %vm1154, %v1146, %v1147
      %v1160 = vsel %vm1154, %v1145, %v1146
      %v1161 = vsel %vm1154, %v1144, %v1145
      %v1162 = vsel %vm1154, %v1143, %v1144
      %v1163 = vsel %vm1154, %v1142, %v1143
      %v1164 = vsel %vm1154, %v1141, %v1142
      %v1165 = vsel %vm1154, %v1140, %v1141
      %v1166 = vsel %vm1154, %v1139, %v1140
      %v1167 = vsel %vm1154, %v1138, %v1139
      %v1168 = vsel %vm1154, %v1137, %v1138
      %v1169 = vsel %vm1154, %v1136, %v1137
      %v1170 = vsel %vm1154, %v1135, %v1136
      %v1171 = vsel %vm1154, %v1134, %v1135
      %v1172 = vsel %vm1154, %v1133, %v1134
      %v1173 = vsel %vm1154, %v1132, %v1133
      %v1174 = vsel %vm1154, %v1131, %v1132
      %v1175 = vsel %vm1154, %v1130, %v1131
      %v1176 = vsel %vm1154, %v1129, %v1130
      %v1177 = vsel %vm1154, %v1128, %v1129
      %v1178 = vsel %vm1154, %v1127, %v1128
      %v1179 = vsel %vm1154, %v1126, %v1127
      %v1180 = vsel %vm1154, %v1125, %v1126
      %v1181 = vsel %vm1154, %v1124, %v1125
      %v1182 = vsel %vm1154, %v1123, %v1124
      %v1183 = vsel %vm1154, %v1122, %v1123
      %v1184 = vsel %vm1154, %v1121, %v1122
      %v1185 = vsel %vm1154, %v1120, %v1121
      %v1186 = vsel %vm1154, %v1151, %v1120
      %vm1187 = vcmp.eq.s32.totalorder %v1186, %v1088
      %vm1188 = vcmp.eq.s32.totalorder %v1185, %v1089
      %vm1189 = vcmp.eq.s32.totalorder %v1184, %v1090
      %vm1190 = vcmp.eq.s32.totalorder %v1183, %v1091
      %vm1191 = vcmp.eq.s32.totalorder %v1182, %v1092
      %vm1192 = vcmp.eq.s32.totalorder %v1181, %v1093
      %vm1193 = vcmp.eq.s32.totalorder %v1180, %v1094
      %vm1194 = vcmp.eq.s32.totalorder %v1179, %v1095
      %vm1195 = vcmp.eq.s32.totalorder %v1178, %v1096
      %vm1196 = vcmp.eq.s32.totalorder %v1177, %v1097
      %vm1197 = vcmp.eq.s32.totalorder %v1176, %v1098
      %vm1198 = vcmp.eq.s32.totalorder %v1175, %v1099
      %vm1199 = vcmp.eq.s32.totalorder %v1174, %v1100
      %vm1200 = vcmp.eq.s32.totalorder %v1173, %v1101
      %vm1201 = vcmp.eq.s32.totalorder %v1172, %v1102
      %vm1202 = vcmp.eq.s32.totalorder %v1171, %v1103
      %vm1203 = vcmp.eq.s32.totalorder %v1170, %v1104
      %vm1204 = vcmp.eq.s32.totalorder %v1169, %v1105
      %vm1205 = vcmp.eq.s32.totalorder %v1168, %v1106
      %vm1206 = vcmp.eq.s32.totalorder %v1167, %v1107
      %vm1207 = vcmp.eq.s32.totalorder %v1166, %v1108
      %vm1208 = vcmp.eq.s32.totalorder %v1165, %v1109
      %vm1209 = vcmp.eq.s32.totalorder %v1164, %v1110
      %vm1210 = vcmp.eq.s32.totalorder %v1163, %v1111
      %vm1211 = vcmp.eq.s32.totalorder %v1162, %v1112
      %vm1212 = vcmp.eq.s32.totalorder %v1161, %v1113
      %vm1213 = vcmp.eq.s32.totalorder %v1160, %v1114
      %vm1214 = vcmp.eq.s32.totalorder %v1159, %v1115
      %vm1215 = vcmp.eq.s32.totalorder %v1158, %v1116
      %vm1216 = vcmp.eq.s32.totalorder %v1157, %v1117
      %vm1217 = vcmp.eq.s32.totalorder %v1156, %v1118
      %vm1218 = vcmp.eq.s32.totalorder %v1155, %v1119
      %v1219 = vrot.slane %v1088, 6
      %v1220 = vrot.slane %v1089, 6
      %v1221 = vrot.slane %v1090, 6
      %v1222 = vrot.slane %v1091, 6
      %v1223 = vrot.slane %v1092, 6
      %v1224 = vrot.slane %v1093, 6
      %v1225 = vrot.slane %v1094, 6
      %v1226 = vrot.slane %v1095, 6
      %v1227 = vrot.slane %v1096, 6
      %v1228 = vrot.slane %v1097, 6
      %v1229 = vrot.slane %v1098, 6
      %v1230 = vrot.slane %v1099, 6
      %v1231 = vrot.slane %v1100, 6
      %v1232 = vrot.slane %v1101, 6
      %v1233 = vrot.slane %v1102, 6
      %v1234 = vrot.slane %v1103, 6
      %v1235 = vrot.slane %v1104, 6
      %v1236 = vrot.slane %v1105, 6
      %v1237 = vrot.slane %v1106, 6
      %v1238 = vrot.slane %v1107, 6
      %v1239 = vrot.slane %v1108, 6
      %v1240 = vrot.slane %v1109, 6
      %v1241 = vrot.slane %v1110, 6
      %v1242 = vrot.slane %v1111, 6
      %v1243 = vrot.slane %v1112, 6
      %v1244 = vrot.slane %v1113, 6
      %v1245 = vrot.slane %v1114, 6
      %v1246 = vrot.slane %v1115, 6
      %v1247 = vrot.slane %v1116, 6
      %v1248 = vrot.slane %v1117, 6
      %v1249 = vrot.slane %v1118, 6
      %v1250 = vrot.slane %v1119, 6
      %vm1251 = vcmp.lt.s32.totalorder %v1153, 2
      %v1252 = vsel %vm1251, %v1249, %v1250
      %v1253 = vsel %vm1251, %v1248, %v1249
      %v1254 = vsel %vm1251, %v1247, %v1248
      %v1255 = vsel %vm1251, %v1246, %v1247
      %v1256 = vsel %vm1251, %v1245, %v1246
      %v1257 = vsel %vm1251, %v1244, %v1245
      %v1258 = vsel %vm1251, %v1243, %v1244
      %v1259 = vsel %vm1251, %v1242, %v1243
      %v1260 = vsel %vm1251, %v1241, %v1242
      %v1261 = vsel %vm1251, %v1240, %v1241
      %v1262 = vsel %vm1251, %v1239, %v1240
      %v1263 = vsel %vm1251, %v1238, %v1239
      %v1264 = vsel %vm1251, %v1237, %v1238
      %v1265 = vsel %vm1251, %v1236, %v1237
      %v1266 = vsel %vm1251, %v1235, %v1236
      %v1267 = vsel %vm1251, %v1234, %v1235
      %v1268 = vsel %vm1251, %v1233, %v1234
      %v1269 = vsel %vm1251, %v1232, %v1233
      %v1270 = vsel %vm1251, %v1231, %v1232
      %v1271 = vsel %vm1251, %v1230, %v1231
      %v1272 = vsel %vm1251, %v1229, %v1230
      %v1273 = vsel %vm1251, %v1228, %v1229
      %v1274 = vsel %vm1251, %v1227, %v1228
      %v1275 = vsel %vm1251, %v1226, %v1227
      %v1276 = vsel %vm1251, %v1225, %v1226
      %v1277 = vsel %vm1251, %v1224, %v1225
      %v1278 = vsel %vm1251, %v1223, %v1224
      %v1279 = vsel %vm1251, %v1222, %v1223
      %v1280 = vsel %vm1251, %v1221, %v1222
      %v1281 = vsel %vm1251, %v1220, %v1221
      %v1282 = vsel %vm1251, %v1219, %v1220
      %v1283 = vsel %vm1251, %v1250, %v1219
      %vm1284 = vcmp.eq.s32.totalorder %v1283, %v1088
      %vm1285 = vcmp.eq.s32.totalorder %v1282, %v1089
      %vm1286 = vcmp.eq.s32.totalorder %v1281, %v1090
      %vm1287 = vcmp.eq.s32.totalorder %v1280, %v1091
      %vm1288 = vcmp.eq.s32.totalorder %v1279, %v1092
      %vm1289 = vcmp.eq.s32.totalorder %v1278, %v1093
      %vm1290 = vcmp.eq.s32.totalorder %v1277, %v1094
      %vm1291 = vcmp.eq.s32.totalorder %v1276, %v1095
      %vm1292 = vcmp.eq.s32.totalorder %v1275, %v1096
      %vm1293 = vcmp.eq.s32.totalorder %v1274, %v1097
      %vm1294 = vcmp.eq.s32.totalorder %v1273, %v1098
      %vm1295 = vcmp.eq.s32.totalorder %v1272, %v1099
      %vm1296 = vcmp.eq.s32.totalorder %v1271, %v1100
      %vm1297 = vcmp.eq.s32.totalorder %v1270, %v1101
      %vm1298 = vcmp.eq.s32.totalorder %v1269, %v1102
      %vm1299 = vcmp.eq.s32.totalorder %v1268, %v1103
      %vm1300 = vcmp.eq.s32.totalorder %v1267, %v1104
      %vm1301 = vcmp.eq.s32.totalorder %v1266, %v1105
      %vm1302 = vcmp.eq.s32.totalorder %v1265, %v1106
      %vm1303 = vcmp.eq.s32.totalorder %v1264, %v1107
      %vm1304 = vcmp.eq.s32.totalorder %v1263, %v1108
      %vm1305 = vcmp.eq.s32.totalorder %v1262, %v1109
      %vm1306 = vcmp.eq.s32.totalorder %v1261, %v1110
      %vm1307 = vcmp.eq.s32.totalorder %v1260, %v1111
      %vm1308 = vcmp.eq.s32.totalorder %v1259, %v1112
      %vm1309 = vcmp.eq.s32.totalorder %v1258, %v1113
      %vm1310 = vcmp.eq.s32.totalorder %v1257, %v1114
      %vm1311 = vcmp.eq.s32.totalorder %v1256, %v1115
      %vm1312 = vcmp.eq.s32.totalorder %v1255, %v1116
      %vm1313 = vcmp.eq.s32.totalorder %v1254, %v1117
      %vm1314 = vcmp.eq.s32.totalorder %v1253, %v1118
      %vm1315 = vcmp.eq.s32.totalorder %v1252, %v1119
      %v1316 = vrot.slane %v1088, 1
      %v1317 = vrot.slane %v1089, 1
      %v1318 = vrot.slane %v1090, 1
      %v1319 = vrot.slane %v1091, 1
      %v1320 = vrot.slane %v1092, 1
      %v1321 = vrot.slane %v1093, 1
      %v1322 = vrot.slane %v1094, 1
      %v1323 = vrot.slane %v1095, 1
      %v1324 = vrot.slane %v1096, 1
      %v1325 = vrot.slane %v1097, 1
      %v1326 = vrot.slane %v1098, 1
      %v1327 = vrot.slane %v1099, 1
      %v1328 = vrot.slane %v1100, 1
      %v1329 = vrot.slane %v1101, 1
      %v1330 = vrot.slane %v1102, 1
      %v1331 = vrot.slane %v1103, 1
      %v1332 = vrot.slane %v1104, 1
      %v1333 = vrot.slane %v1105, 1
      %v1334 = vrot.slane %v1106, 1
      %v1335 = vrot.slane %v1107, 1
      %v1336 = vrot.slane %v1108, 1
      %v1337 = vrot.slane %v1109, 1
      %v1338 = vrot.slane %v1110, 1
      %v1339 = vrot.slane %v1111, 1
      %v1340 = vrot.slane %v1112, 1
      %v1341 = vrot.slane %v1113, 1
      %v1342 = vrot.slane %v1114, 1
      %v1343 = vrot.slane %v1115, 1
      %v1344 = vrot.slane %v1116, 1
      %v1345 = vrot.slane %v1117, 1
      %v1346 = vrot.slane %v1118, 1
      %v1347 = vrot.slane %v1119, 1
      %vm1348 = vcmp.lt.s32.totalorder %v1153, 7
      %v1349 = vsel %vm1348, %v1346, %v1347
      %v1350 = vsel %vm1348, %v1345, %v1346
      %v1351 = vsel %vm1348, %v1344, %v1345
      %v1352 = vsel %vm1348, %v1343, %v1344
      %v1353 = vsel %vm1348, %v1342, %v1343
      %v1354 = vsel %vm1348, %v1341, %v1342
      %v1355 = vsel %vm1348, %v1340, %v1341
      %v1356 = vsel %vm1348, %v1339, %v1340
      %v1357 = vsel %vm1348, %v1338, %v1339
      %v1358 = vsel %vm1348, %v1337, %v1338
      %v1359 = vsel %vm1348, %v1336, %v1337
      %v1360 = vsel %vm1348, %v1335, %v1336
      %v1361 = vsel %vm1348, %v1334, %v1335
      %v1362 = vsel %vm1348, %v1333, %v1334
      %v1363 = vsel %vm1348, %v1332, %v1333
      %v1364 = vsel %vm1348, %v1331, %v1332
      %v1365 = vsel %vm1348, %v1330, %v1331
      %v1366 = vsel %vm1348, %v1329, %v1330
      %v1367 = vsel %vm1348, %v1328, %v1329
      %v1368 = vsel %vm1348, %v1327, %v1328
      %v1369 = vsel %vm1348, %v1326, %v1327
      %v1370 = vsel %vm1348, %v1325, %v1326
      %v1371 = vsel %vm1348, %v1324, %v1325
      %v1372 = vsel %vm1348, %v1323, %v1324
      %v1373 = vsel %vm1348, %v1322, %v1323
      %v1374 = vsel %vm1348, %v1321, %v1322
      %v1375 = vsel %vm1348, %v1320, %v1321
      %v1376 = vsel %vm1348, %v1319, %v1320
      %v1377 = vsel %vm1348, %v1318, %v1319
      %v1378 = vsel %vm1348, %v1317, %v1318
      %v1379 = vsel %vm1348, %v1316, %v1317
      %v1380 = vsel %vm1348, %v1347, %v1316
      %vm1381 = vcmp.eq.s32.totalorder %v1379, %v1088
      %vm1382 = vcmp.eq.s32.totalorder %v1378, %v1089
      %vm1383 = vcmp.eq.s32.totalorder %v1377, %v1090
      %vm1384 = vcmp.eq.s32.totalorder %v1376, %v1091
      %vm1385 = vcmp.eq.s32.totalorder %v1375, %v1092
      %vm1386 = vcmp.eq.s32.totalorder %v1374, %v1093
      %vm1387 = vcmp.eq.s32.totalorder %v1373, %v1094
      %vm1388 = vcmp.eq.s32.totalorder %v1372, %v1095
      %vm1389 = vcmp.eq.s32.totalorder %v1371, %v1096
      %vm1390 = vcmp.eq.s32.totalorder %v1370, %v1097
      %vm1391 = vcmp.eq.s32.totalorder %v1369, %v1098
      %vm1392 = vcmp.eq.s32.totalorder %v1368, %v1099
      %vm1393 = vcmp.eq.s32.totalorder %v1367, %v1100
      %vm1394 = vcmp.eq.s32.totalorder %v1366, %v1101
      %vm1395 = vcmp.eq.s32.totalorder %v1365, %v1102
      %vm1396 = vcmp.eq.s32.totalorder %v1364, %v1103
      %vm1397 = vcmp.eq.s32.totalorder %v1363, %v1104
      %vm1398 = vcmp.eq.s32.totalorder %v1362, %v1105
      %vm1399 = vcmp.eq.s32.totalorder %v1361, %v1106
      %vm1400 = vcmp.eq.s32.totalorder %v1360, %v1107
      %vm1401 = vcmp.eq.s32.totalorder %v1359, %v1108
      %vm1402 = vcmp.eq.s32.totalorder %v1358, %v1109
      %vm1403 = vcmp.eq.s32.totalorder %v1357, %v1110
      %vm1404 = vcmp.eq.s32.totalorder %v1356, %v1111
      %vm1405 = vcmp.eq.s32.totalorder %v1355, %v1112
      %vm1406 = vcmp.eq.s32.totalorder %v1354, %v1113
      %vm1407 = vcmp.eq.s32.totalorder %v1353, %v1114
      %vm1408 = vcmp.eq.s32.totalorder %v1352, %v1115
      %vm1409 = vcmp.eq.s32.totalorder %v1351, %v1116
      %vm1410 = vcmp.eq.s32.totalorder %v1350, %v1117
      %vm1411 = vcmp.eq.s32.totalorder %v1349, %v1118
      %vm1412 = vcmp.eq.s32.totalorder %v1380, %v1119
      %v1413 = vrot.slane %v1088, 2
      %v1414 = vrot.slane %v1089, 2
      %v1415 = vrot.slane %v1090, 2
      %v1416 = vrot.slane %v1091, 2
      %v1417 = vrot.slane %v1092, 2
      %v1418 = vrot.slane %v1093, 2
      %v1419 = vrot.slane %v1094, 2
      %v1420 = vrot.slane %v1095, 2
      %v1421 = vrot.slane %v1096, 2
      %v1422 = vrot.slane %v1097, 2
      %v1423 = vrot.slane %v1098, 2
      %v1424 = vrot.slane %v1099, 2
      %v1425 = vrot.slane %v1100, 2
      %v1426 = vrot.slane %v1101, 2
      %v1427 = vrot.slane %v1102, 2
      %v1428 = vrot.slane %v1103, 2
      %v1429 = vrot.slane %v1104, 2
      %v1430 = vrot.slane %v1105, 2
      %v1431 = vrot.slane %v1106, 2
      %v1432 = vrot.slane %v1107, 2
      %v1433 = vrot.slane %v1108, 2
      %v1434 = vrot.slane %v1109, 2
      %v1435 = vrot.slane %v1110, 2
      %v1436 = vrot.slane %v1111, 2
      %v1437 = vrot.slane %v1112, 2
      %v1438 = vrot.slane %v1113, 2
      %v1439 = vrot.slane %v1114, 2
      %v1440 = vrot.slane %v1115, 2
      %v1441 = vrot.slane %v1116, 2
      %v1442 = vrot.slane %v1117, 2
      %v1443 = vrot.slane %v1118, 2
      %v1444 = vrot.slane %v1119, 2
      %vm1445 = vcmp.lt.s32.totalorder %v1153, 6
      %v1446 = vsel %vm1445, %v1443, %v1444
      %v1447 = vsel %vm1445, %v1442, %v1443
      %v1448 = vsel %vm1445, %v1441, %v1442
      %v1449 = vsel %vm1445, %v1440, %v1441
      %v1450 = vsel %vm1445, %v1439, %v1440
      %v1451 = vsel %vm1445, %v1438, %v1439
      %v1452 = vsel %vm1445, %v1437, %v1438
      %v1453 = vsel %vm1445, %v1436, %v1437
      %v1454 = vsel %vm1445, %v1435, %v1436
      %v1455 = vsel %vm1445, %v1434, %v1435
      %v1456 = vsel %vm1445, %v1433, %v1434
      %v1457 = vsel %vm1445, %v1432, %v1433
      %v1458 = vsel %vm1445, %v1431, %v1432
      %v1459 = vsel %vm1445, %v1430, %v1431
      %v1460 = vsel %vm1445, %v1429, %v1430
      %v1461 = vsel %vm1445, %v1428, %v1429
      %v1462 = vsel %vm1445, %v1427, %v1428
      %v1463 = vsel %vm1445, %v1426, %v1427
      %v1464 = vsel %vm1445, %v1425, %v1426
      %v1465 = vsel %vm1445, %v1424, %v1425
      %v1466 = vsel %vm1445, %v1423, %v1424
      %v1467 = vsel %vm1445, %v1422, %v1423
      %v1468 = vsel %vm1445, %v1421, %v1422
      %v1469 = vsel %vm1445, %v1420, %v1421
      %v1470 = vsel %vm1445, %v1419, %v1420
      %v1471 = vsel %vm1445, %v1418, %v1419
      %v1472 = vsel %vm1445, %v1417, %v1418
      %v1473 = vsel %vm1445, %v1416, %v1417
      %v1474 = vsel %vm1445, %v1415, %v1416
      %v1475 = vsel %vm1445, %v1414, %v1415
      %v1476 = vsel %vm1445, %v1413, %v1414
      %v1477 = vsel %vm1445, %v1444, %v1413
      %vm1478 = vcmp.eq.s32.totalorder %v1476, %v1088
      %vm1479 = vcmp.eq.s32.totalorder %v1475, %v1089
      %vm1480 = vcmp.eq.s32.totalorder %v1474, %v1090
      %vm1481 = vcmp.eq.s32.totalorder %v1473, %v1091
      %vm1482 = vcmp.eq.s32.totalorder %v1472, %v1092
      %vm1483 = vcmp.eq.s32.totalorder %v1471, %v1093
      %vm1484 = vcmp.eq.s32.totalorder %v1470, %v1094
      %vm1485 = vcmp.eq.s32.totalorder %v1469, %v1095
      %vm1486 = vcmp.eq.s32.totalorder %v1468, %v1096
      %vm1487 = vcmp.eq.s32.totalorder %v1467, %v1097
      %vm1488 = vcmp.eq.s32.totalorder %v1466, %v1098
      %vm1489 = vcmp.eq.s32.totalorder %v1465, %v1099
      %vm1490 = vcmp.eq.s32.totalorder %v1464, %v1100
      %vm1491 = vcmp.eq.s32.totalorder %v1463, %v1101
      %vm1492 = vcmp.eq.s32.totalorder %v1462, %v1102
      %vm1493 = vcmp.eq.s32.totalorder %v1461, %v1103
      %vm1494 = vcmp.eq.s32.totalorder %v1460, %v1104
      %vm1495 = vcmp.eq.s32.totalorder %v1459, %v1105
      %vm1496 = vcmp.eq.s32.totalorder %v1458, %v1106
      %vm1497 = vcmp.eq.s32.totalorder %v1457, %v1107
      %vm1498 = vcmp.eq.s32.totalorder %v1456, %v1108
      %vm1499 = vcmp.eq.s32.totalorder %v1455, %v1109
      %vm1500 = vcmp.eq.s32.totalorder %v1454, %v1110
      %vm1501 = vcmp.eq.s32.totalorder %v1453, %v1111
      %vm1502 = vcmp.eq.s32.totalorder %v1452, %v1112
      %vm1503 = vcmp.eq.s32.totalorder %v1451, %v1113
      %vm1504 = vcmp.eq.s32.totalorder %v1450, %v1114
      %vm1505 = vcmp.eq.s32.totalorder %v1449, %v1115
      %vm1506 = vcmp.eq.s32.totalorder %v1448, %v1116
      %vm1507 = vcmp.eq.s32.totalorder %v1447, %v1117
      %vm1508 = vcmp.eq.s32.totalorder %v1446, %v1118
      %vm1509 = vcmp.eq.s32.totalorder %v1477, %v1119
      %v1510 = vpack.c.bf16 %v1057, %v1056
      %v1511 = vpack.c.bf16 %v1059, %v1058
      %v1512 = vpack.c.bf16 %v1061, %v1060
      %v1513 = vpack.c.bf16 %v1063, %v1062
      %v1514 = vpack.c.bf16 %v1065, %v1064
      %v1515 = vpack.c.bf16 %v1067, %v1066
      %v1516 = vpack.c.bf16 %v1069, %v1068
      %v1517 = vpack.c.bf16 %v1071, %v1070
      %v1518 = vpack.c.bf16 %v1073, %v1072
      %v1519 = vpack.c.bf16 %v1075, %v1074
      %v1520 = vpack.c.bf16 %v1077, %v1076
      %v1521 = vpack.c.bf16 %v1079, %v1078
      %v1522 = vpack.c.bf16 %v1081, %v1080
      %v1523 = vpack.c.bf16 %v1083, %v1082
      %v1524 = vpack.c.bf16 %v1085, %v1084
      %v1525 = vpack.c.bf16 %v1087, %v1086
      %v1526 = vld [vmem:[%s3] sm:$0x3]
      %vm1527 = vcmask 31744
      %1528 = vst.msk [vmem:[#allocation2] sm:$0xff] %vm1527, %v1056
      %1529 = vst.msk [vmem:[#allocation2 + $0x8] sm:$0xff] %vm1527, %v1057
      %1530 = vst.msk [vmem:[#allocation2 + $0x10] sm:$0xff] %vm1527, %v1058
      %1531 = vst.msk [vmem:[#allocation2 + $0x18] sm:$0xff] %vm1527, %v1059
      %1532 = vst.msk [vmem:[#allocation2 + $0x20] sm:$0xff] %vm1527, %v1060
      %1533 = vst.msk [vmem:[#allocation2 + $0x28] sm:$0xff] %vm1527, %v1061
      %1534 = vst.msk [vmem:[#allocation2 + $0x30] sm:$0xff] %vm1527, %v1062
      %1535 = vst.msk [vmem:[#allocation2 + $0x38] sm:$0xff] %vm1527, %v1063
      %1536 = vst.msk [vmem:[#allocation2 + $0x40] sm:$0xff] %vm1527, %v1064
      %1537 = vst.msk [vmem:[#allocation2 + $0x48] sm:$0xff] %vm1527, %v1065
      %1538 = vst.msk [vmem:[#allocation2 + $0x50] sm:$0xff] %vm1527, %v1066
      %1539 = vst.msk [vmem:[#allocation2 + $0x58] sm:$0xff] %vm1527, %v1067
      %1540 = vst.msk [vmem:[#allocation2 + $0x60] sm:$0xff] %vm1527, %v1068
      %1541 = vst.msk [vmem:[#allocation2 + $0x68] sm:$0xff] %vm1527, %v1069
      %1542 = vst.msk [vmem:[#allocation2 + $0x70] sm:$0xff] %vm1527, %v1070
      %1543 = vst.msk [vmem:[#allocation2 + $0x78] sm:$0xff] %vm1527, %v1071
      %1544 = vst.msk [vmem:[#allocation2 + $0x80] sm:$0xff] %vm1527, %v1072
      %1545 = vst.msk [vmem:[#allocation2 + $0x88] sm:$0xff] %vm1527, %v1073
      %1546 = vst.msk [vmem:[#allocation2 + $0x90] sm:$0xff] %vm1527, %v1074
      %1547 = vst.msk [vmem:[#allocation2 + $0x98] sm:$0xff] %vm1527, %v1075
      %1548 = vst.msk [vmem:[#allocation2 + $0xa0] sm:$0xff] %vm1527, %v1076
      %1549 = vst.msk [vmem:[#allocation2 + $0xa8] sm:$0xff] %vm1527, %v1077
      %1550 = vst.msk [vmem:[#allocation2 + $0xb0] sm:$0xff] %vm1527, %v1078
      %1551 = vst.msk [vmem:[#allocation2 + $0xb8] sm:$0xff] %vm1527, %v1079
      %1552 = vst.msk [vmem:[#allocation2 + $0xc0] sm:$0xff] %vm1527, %v1080
      %1553 = vst.msk [vmem:[#allocation2 + $0xc8] sm:$0xff] %vm1527, %v1081
      %1554 = vst.msk [vmem:[#allocation2 + $0xd0] sm:$0xff] %vm1527, %v1082
      %1555 = vst.msk [vmem:[#allocation2 + $0xd8] sm:$0xff] %vm1527, %v1083
      %1556 = vst.msk [vmem:[#allocation2 + $0xe0] sm:$0xff] %vm1527, %v1084
      %1557 = vst.msk [vmem:[#allocation2 + $0xe8] sm:$0xff] %vm1527, %v1085
      %1558 = vst.msk [vmem:[#allocation2 + $0xf0] sm:$0xff] %vm1527, %v1086
      %1559 = vst.msk [vmem:[#allocation2 + $0xf8] sm:$0xff] %vm1527, %v1087
      %v1560 = vld [vmem:[#allocation2] sm:$0xff]
      %v1561 = vld [vmem:[#allocation2 + $0x8] sm:$0xff]
      %v1562 = vld [vmem:[#allocation2 + $0x10] sm:$0xff]
      %v1563 = vld [vmem:[#allocation2 + $0x18] sm:$0xff]
      %v1564 = vld [vmem:[#allocation2 + $0x20] sm:$0xff]
      %v1565 = vld [vmem:[#allocation2 + $0x28] sm:$0xff]
      %v1566 = vld [vmem:[#allocation2 + $0x30] sm:$0xff]
      %v1567 = vld [vmem:[#allocation2 + $0x38] sm:$0xff]
      %v1568 = vld [vmem:[#allocation2 + $0x40] sm:$0xff]
      %v1569 = vld [vmem:[#allocation2 + $0x48] sm:$0xff]
      %v1570 = vld [vmem:[#allocation2 + $0x50] sm:$0xff]
      %v1571 = vld [vmem:[#allocation2 + $0x58] sm:$0xff]
      %v1572 = vld [vmem:[#allocation2 + $0x60] sm:$0xff]
      %v1573 = vld [vmem:[#allocation2 + $0x68] sm:$0xff]
      %v1574 = vld [vmem:[#allocation2 + $0x70] sm:$0xff]
      %v1575 = vld [vmem:[#allocation2 + $0x78] sm:$0xff]
      %v1576 = vld [vmem:[#allocation2 + $0x80] sm:$0xff]
      %v1577 = vld [vmem:[#allocation2 + $0x88] sm:$0xff]
      %v1578 = vld [vmem:[#allocation2 + $0x90] sm:$0xff]
      %v1579 = vld [vmem:[#allocation2 + $0x98] sm:$0xff]
      %v1580 = vld [vmem:[#allocation2 + $0xa0] sm:$0xff]
      %v1581 = vld [vmem:[#allocation2 + $0xa8] sm:$0xff]
      %v1582 = vld [vmem:[#allocation2 + $0xb0] sm:$0xff]
      %v1583 = vld [vmem:[#allocation2 + $0xb8] sm:$0xff]
      %v1584 = vld [vmem:[#allocation2 + $0xc0] sm:$0xff]
      %v1585 = vld [vmem:[#allocation2 + $0xc8] sm:$0xff]
      %v1586 = vld [vmem:[#allocation2 + $0xd0] sm:$0xff]
      %v1587 = vld [vmem:[#allocation2 + $0xd8] sm:$0xff]
      %v1588 = vld [vmem:[#allocation2 + $0xe0] sm:$0xff]
      %v1589 = vld [vmem:[#allocation2 + $0xe8] sm:$0xff]
      %v1590 = vmax.f32 %v1560, %v1058
      %v1591 = vmax.f32 %v1561, %v1059
      %v1592 = vmax.f32 %v1562, %v1060
      %v1593 = vmax.f32 %v1563, %v1061
      %v1594 = vmax.f32 %v1564, %v1062
      %v1595 = vmax.f32 %v1565, %v1063
      %v1596 = vmax.f32 %v1566, %v1064
      %v1597 = vmax.f32 %v1567, %v1065
      %v1598 = vmax.f32 %v1568, %v1066
      %v1599 = vmax.f32 %v1569, %v1067
      %v1600 = vmax.f32 %v1570, %v1068
      %v1601 = vmax.f32 %v1571, %v1069
      %v1602 = vmax.f32 %v1572, %v1070
      %v1603 = vmax.f32 %v1573, %v1071
      %v1604 = vmax.f32 %v1574, %v1072
      %v1605 = vmax.f32 %v1575, %v1073
      %v1606 = vmax.f32 %v1576, %v1074
      %v1607 = vmax.f32 %v1577, %v1075
      %v1608 = vmax.f32 %v1578, %v1076
      %v1609 = vmax.f32 %v1579, %v1077
      %v1610 = vmax.f32 %v1580, %v1078
      %v1611 = vmax.f32 %v1581, %v1079
      %v1612 = vmax.f32 %v1582, %v1080
      %v1613 = vmax.f32 %v1583, %v1081
      %v1614 = vmax.f32 %v1584, %v1082
      %v1615 = vmax.f32 %v1585, %v1083
      %v1616 = vmax.f32 %v1586, %v1084
      %v1617 = vmax.f32 %v1587, %v1085
      %v1618 = vmax.f32 %v1588, %v1086
      %v1619 = vmax.f32 %v1589, %v1087
      %1620 = vst.msk [vmem:[#allocation2] sm:$0xff] %vm1527, %v1590
      %1621 = vst.msk [vmem:[#allocation2 + $0x8] sm:$0xff] %vm1527, %v1591
      %1622 = vst.msk [vmem:[#allocation2 + $0x10] sm:$0xff] %vm1527, %v1592
      %1623 = vst.msk [vmem:[#allocation2 + $0x18] sm:$0xff] %vm1527, %v1593
      %1624 = vst.msk [vmem:[#allocation2 + $0x20] sm:$0xff] %vm1527, %v1594
      %1625 = vst.msk [vmem:[#allocation2 + $0x28] sm:$0xff] %vm1527, %v1595
      %1626 = vst.msk [vmem:[#allocation2 + $0x30] sm:$0xff] %vm1527, %v1596
      %1627 = vst.msk [vmem:[#allocation2 + $0x38] sm:$0xff] %vm1527, %v1597
      %1628 = vst.msk [vmem:[#allocation2 + $0x40] sm:$0xff] %vm1527, %v1598
      %1629 = vst.msk [vmem:[#allocation2 + $0x48] sm:$0xff] %vm1527, %v1599
      %1630 = vst.msk [vmem:[#allocation2 + $0x50] sm:$0xff] %vm1527, %v1600
      %1631 = vst.msk [vmem:[#allocation2 + $0x58] sm:$0xff] %vm1527, %v1601
      %1632 = vst.msk [vmem:[#allocation2 + $0x60] sm:$0xff] %vm1527, %v1602
      %1633 = vst.msk [vmem:[#allocation2 + $0x68] sm:$0xff] %vm1527, %v1603
      %1634 = vst.msk [vmem:[#allocation2 + $0x70] sm:$0xff] %vm1527, %v1604
      %1635 = vst.msk [vmem:[#allocation2 + $0x78] sm:$0xff] %vm1527, %v1605
      %1636 = vst.msk [vmem:[#allocation2 + $0x80] sm:$0xff] %vm1527, %v1606
      %1637 = vst.msk [vmem:[#allocation2 + $0x88] sm:$0xff] %vm1527, %v1607
      %1638 = vst.msk [vmem:[#allocation2 + $0x90] sm:$0xff] %vm1527, %v1608
      %1639 = vst.msk [vmem:[#allocation2 + $0x98] sm:$0xff] %vm1527, %v1609
      %1640 = vst.msk [vmem:[#allocation2 + $0xa0] sm:$0xff] %vm1527, %v1610
      %1641 = vst.msk [vmem:[#allocation2 + $0xa8] sm:$0xff] %vm1527, %v1611
      %1642 = vst.msk [vmem:[#allocation2 + $0xb0] sm:$0xff] %vm1527, %v1612
      %1643 = vst.msk [vmem:[#allocation2 + $0xb8] sm:$0xff] %vm1527, %v1613
      %1644 = vst.msk [vmem:[#allocation2 + $0xc0] sm:$0xff] %vm1527, %v1614
      %1645 = vst.msk [vmem:[#allocation2 + $0xc8] sm:$0xff] %vm1527, %v1615
      %1646 = vst.msk [vmem:[#allocation2 + $0xd0] sm:$0xff] %vm1527, %v1616
      %1647 = vst.msk [vmem:[#allocation2 + $0xd8] sm:$0xff] %vm1527, %v1617
      %1648 = vst.msk [vmem:[#allocation2 + $0xe0] sm:$0xff] %vm1527, %v1618
      %1649 = vst.msk [vmem:[#allocation2 + $0xe8] sm:$0xff] %vm1527, %v1619
      %v1650 = vld [vmem:[#allocation2 + $0x10] sm:$0xff]
      %v1651 = vld [vmem:[#allocation2 + $0x18] sm:$0xff]
      %v1652 = vld [vmem:[#allocation2 + $0x20] sm:$0xff]
      %v1653 = vld [vmem:[#allocation2 + $0x28] sm:$0xff]
      %v1654 = vld [vmem:[#allocation2 + $0x30] sm:$0xff]
      %v1655 = vld [vmem:[#allocation2 + $0x38] sm:$0xff]
      %v1656 = vld [vmem:[#allocation2 + $0x40] sm:$0xff]
      %v1657 = vld [vmem:[#allocation2 + $0x48] sm:$0xff]
      %v1658 = vld [vmem:[#allocation2 + $0x50] sm:$0xff]
      %v1659 = vld [vmem:[#allocation2 + $0x58] sm:$0xff]
      %v1660 = vld [vmem:[#allocation2 + $0x60] sm:$0xff]
      %v1661 = vld [vmem:[#allocation2 + $0x68] sm:$0xff]
      %v1662 = vld [vmem:[#allocation2 + $0x70] sm:$0xff]
      %v1663 = vld [vmem:[#allocation2 + $0x78] sm:$0xff]
      %v1664 = vld [vmem:[#allocation2 + $0x80] sm:$0xff]
      %v1665 = vld [vmem:[#allocation2 + $0x88] sm:$0xff]
      %v1666 = vld [vmem:[#allocation2 + $0x90] sm:$0xff]
      %v1667 = vld [vmem:[#allocation2 + $0x98] sm:$0xff]
      %v1668 = vld [vmem:[#allocation2 + $0xa0] sm:$0xff]
      %v1669 = vld [vmem:[#allocation2 + $0xa8] sm:$0xff]
      %v1670 = vld [vmem:[#allocation2 + $0xb0] sm:$0xff]
      %v1671 = vld [vmem:[#allocation2 + $0xb8] sm:$0xff]
      %v1672 = vld [vmem:[#allocation2 + $0xc0] sm:$0xff]
      %v1673 = vld [vmem:[#allocation2 + $0xc8] sm:$0xff]
      %v1674 = vld [vmem:[#allocation2 + $0xd0] sm:$0xff]
      %v1675 = vld [vmem:[#allocation2 + $0xd8] sm:$0xff]
      %v1676 = vld [vmem:[#allocation2 + $0xe0] sm:$0xff]
      %v1677 = vld [vmem:[#allocation2 + $0xe8] sm:$0xff]
      %v1678 = vld [vmem:[#allocation2 + $0xf0] sm:$0xff]
      %v1679 = vld [vmem:[#allocation2 + $0xf8] sm:$0xff]
      %v1680 = vmax.f32 %v1650, %v1056
      %v1681 = vmax.f32 %v1651, %v1057
      %v1682 = vmax.f32 %v1652, %v1058
      %v1683 = vmax.f32 %v1653, %v1059
      %v1684 = vmax.f32 %v1654, %v1060
      %v1685 = vmax.f32 %v1655, %v1061
      %v1686 = vmax.f32 %v1656, %v1062
      %v1687 = vmax.f32 %v1657, %v1063
      %v1688 = vmax.f32 %v1658, %v1064
      %v1689 = vmax.f32 %v1659, %v1065
      %v1690 = vmax.f32 %v1660, %v1066
      %v1691 = vmax.f32 %v1661, %v1067
      %v1692 = vmax.f32 %v1662, %v1068
      %v1693 = vmax.f32 %v1663, %v1069
      %v1694 = vmax.f32 %v1664, %v1070
      %v1695 = vmax.f32 %v1665, %v1071
      %v1696 = vmax.f32 %v1666, %v1072
      %v1697 = vmax.f32 %v1667, %v1073
      %v1698 = vmax.f32 %v1668, %v1074
      %v1699 = vmax.f32 %v1669, %v1075
      %v1700 = vmax.f32 %v1670, %v1076
      %v1701 = vmax.f32 %v1671, %v1077
      %v1702 = vmax.f32 %v1672, %v1078
      %v1703 = vmax.f32 %v1673, %v1079
      %v1704 = vmax.f32 %v1674, %v1080
      %v1705 = vmax.f32 %v1675, %v1081
      %v1706 = vmax.f32 %v1676, %v1082
      %v1707 = vmax.f32 %v1677, %v1083
      %v1708 = vmax.f32 %v1678, %v1084
      %v1709 = vmax.f32 %v1679, %v1085
      %1710 = vst.msk [vmem:[#allocation2 + $0x10] sm:$0xff] %vm1527, %v1680
      %1711 = vst.msk [vmem:[#allocation2 + $0x18] sm:$0xff] %vm1527, %v1681
      %1712 = vst.msk [vmem:[#allocation2 + $0x20] sm:$0xff] %vm1527, %v1682
      %1713 = vst.msk [vmem:[#allocation2 + $0x28] sm:$0xff] %vm1527, %v1683
      %1714 = vst.msk [vmem:[#allocation2 + $0x30] sm:$0xff] %vm1527, %v1684
      %1715 = vst.msk [vmem:[#allocation2 + $0x38] sm:$0xff] %vm1527, %v1685
      %1716 = vst.msk [vmem:[#allocation2 + $0x40] sm:$0xff] %vm1527, %v1686
      %1717 = vst.msk [vmem:[#allocation2 + $0x48] sm:$0xff] %vm1527, %v1687
      %1718 = vst.msk [vmem:[#allocation2 + $0x50] sm:$0xff] %vm1527, %v1688
      %1719 = vst.msk [vmem:[#allocation2 + $0x58] sm:$0xff] %vm1527, %v1689
      %1720 = vst.msk [vmem:[#allocation2 + $0x60] sm:$0xff] %vm1527, %v1690
      %1721 = vst.msk [vmem:[#allocation2 + $0x68] sm:$0xff] %vm1527, %v1691
      %1722 = vst.msk [vmem:[#allocation2 + $0x70] sm:$0xff] %vm1527, %v1692
      %1723 = vst.msk [vmem:[#allocation2 + $0x78] sm:$0xff] %vm1527, %v1693
      %1724 = vst.msk [vmem:[#allocation2 + $0x80] sm:$0xff] %vm1527, %v1694
      %1725 = vst.msk [vmem:[#allocation2 + $0x88] sm:$0xff] %vm1527, %v1695
      %1726 = vst.msk [vmem:[#allocation2 + $0x90] sm:$0xff] %vm1527, %v1696
      %1727 = vst.msk [vmem:[#allocation2 + $0x98] sm:$0xff] %vm1527, %v1697
      %1728 = vst.msk [vmem:[#allocation2 + $0xa0] sm:$0xff] %vm1527, %v1698
      %1729 = vst.msk [vmem:[#allocation2 + $0xa8] sm:$0xff] %vm1527, %v1699
      %1730 = vst.msk [vmem:[#allocation2 + $0xb0] sm:$0xff] %vm1527, %v1700
      %1731 = vst.msk [vmem:[#allocation2 + $0xb8] sm:$0xff] %vm1527, %v1701
      %1732 = vst.msk [vmem:[#allocation2 + $0xc0] sm:$0xff] %vm1527, %v1702
      %1733 = vst.msk [vmem:[#allocation2 + $0xc8] sm:$0xff] %vm1527, %v1703
      %1734 = vst.msk [vmem:[#allocation2 + $0xd0] sm:$0xff] %vm1527, %v1704
      %1735 = vst.msk [vmem:[#allocation2 + $0xd8] sm:$0xff] %vm1527, %v1705
      %1736 = vst.msk [vmem:[#allocation2 + $0xe0] sm:$0xff] %vm1527, %v1706
      %1737 = vst.msk [vmem:[#allocation2 + $0xe8] sm:$0xff] %vm1527, %v1707
      %1738 = vst.msk [vmem:[#allocation2 + $0xf0] sm:$0xff] %vm1527, %v1708
      %1739 = vst.msk [vmem:[#allocation2 + $0xf8] sm:$0xff] %vm1527, %v1709
      %v1740 = vld [vmem:[#allocation2] sm:$0xff]
      %v1741 = vld [vmem:[#allocation2 + $0x8] sm:$0xff]
      %v1742 = vld [vmem:[#allocation2 + $0x10] sm:$0xff]
      %v1743 = vld [vmem:[#allocation2 + $0x18] sm:$0xff]
      %v1744 = vld [vmem:[#allocation2 + $0x20] sm:$0xff]
      %v1745 = vld [vmem:[#allocation2 + $0x28] sm:$0xff]
      %v1746 = vld [vmem:[#allocation2 + $0x30] sm:$0xff]
      %v1747 = vld [vmem:[#allocation2 + $0x38] sm:$0xff]
      %v1748 = vld [vmem:[#allocation2 + $0x40] sm:$0xff]
      %v1749 = vld [vmem:[#allocation2 + $0x48] sm:$0xff]
      %v1750 = vld [vmem:[#allocation2 + $0x50] sm:$0xff]
      %v1751 = vld [vmem:[#allocation2 + $0x58] sm:$0xff]
      %v1752 = vld [vmem:[#allocation2 + $0x60] sm:$0xff]
      %v1753 = vld [vmem:[#allocation2 + $0x68] sm:$0xff]
      %v1754 = vld [vmem:[#allocation2 + $0x70] sm:$0xff]
      %v1755 = vld [vmem:[#allocation2 + $0x78] sm:$0xff]
      %v1756 = vld [vmem:[#allocation2 + $0x80] sm:$0xff]
      %v1757 = vld [vmem:[#allocation2 + $0x88] sm:$0xff]
      %v1758 = vld [vmem:[#allocation2 + $0x90] sm:$0xff]
      %v1759 = vld [vmem:[#allocation2 + $0x98] sm:$0xff]
      %v1760 = vld [vmem:[#allocation2 + $0xa0] sm:$0xff]
      %v1761 = vld [vmem:[#allocation2 + $0xa8] sm:$0xff]
      %v1762 = vld [vmem:[#allocation2 + $0xb0] sm:$0xff]
      %v1763 = vld [vmem:[#allocation2 + $0xb8] sm:$0xff]
      %v1764 = vld [vmem:[#allocation2 + $0xc0] sm:$0xff]
      %v1765 = vld [vmem:[#allocation2 + $0xc8] sm:$0xff]
      %v1766 = vld [vmem:[#allocation2 + $0xd0] sm:$0xff]
      %v1767 = vld [vmem:[#allocation2 + $0xd8] sm:$0xff]
      %v1768 = vmax.f32 %v1740, %v1060
      %v1769 = vmax.f32 %v1741, %v1061
      %v1770 = vmax.f32 %v1742, %v1062
      %v1771 = vmax.f32 %v1743, %v1063
      %v1772 = vmax.f32 %v1744, %v1064
      %v1773 = vmax.f32 %v1745, %v1065
      %v1774 = vmax.f32 %v1746, %v1066
      %v1775 = vmax.f32 %v1747, %v1067
      %v1776 = vmax.f32 %v1748, %v1068
      %v1777 = vmax.f32 %v1749, %v1069
      %v1778 = vmax.f32 %v1750, %v1070
      %v1779 = vmax.f32 %v1751, %v1071
      %v1780 = vmax.f32 %v1752, %v1072
      %v1781 = vmax.f32 %v1753, %v1073
      %v1782 = vmax.f32 %v1754, %v1074
      %v1783 = vmax.f32 %v1755, %v1075
      %v1784 = vmax.f32 %v1756, %v1076
      %v1785 = vmax.f32 %v1757, %v1077
      %v1786 = vmax.f32 %v1758, %v1078
      %v1787 = vmax.f32 %v1759, %v1079
      %v1788 = vmax.f32 %v1760, %v1080
      %v1789 = vmax.f32 %v1761, %v1081
      %v1790 = vmax.f32 %v1762, %v1082
      %v1791 = vmax.f32 %v1763, %v1083
      %v1792 = vmax.f32 %v1764, %v1084
      %v1793 = vmax.f32 %v1765, %v1085
      %v1794 = vmax.f32 %v1766, %v1086
      %v1795 = vmax.f32 %v1767, %v1087
      %1796 = vst.msk [vmem:[#allocation2] sm:$0xff] %vm1527, %v1768
      %1797 = vst.msk [vmem:[#allocation2 + $0x8] sm:$0xff] %vm1527, %v1769
      %1798 = vst.msk [vmem:[#allocation2 + $0x10] sm:$0xff] %vm1527, %v1770
      %1799 = vst.msk [vmem:[#allocation2 + $0x18] sm:$0xff] %vm1527, %v1771
      %1800 = vst.msk [vmem:[#allocation2 + $0x20] sm:$0xff] %vm1527, %v1772
      %1801 = vst.msk [vmem:[#allocation2 + $0x28] sm:$0xff] %vm1527, %v1773
      %1802 = vst.msk [vmem:[#allocation2 + $0x30] sm:$0xff] %vm1527, %v1774
      %1803 = vst.msk [vmem:[#allocation2 + $0x38] sm:$0xff] %vm1527, %v1775
      %1804 = vst.msk [vmem:[#allocation2 + $0x40] sm:$0xff] %vm1527, %v1776
      %1805 = vst.msk [vmem:[#allocation2 + $0x48] sm:$0xff] %vm1527, %v1777
      %1806 = vst.msk [vmem:[#allocation2 + $0x50] sm:$0xff] %vm1527, %v1778
      %1807 = vst.msk [vmem:[#allocation2 + $0x58] sm:$0xff] %vm1527, %v1779
      %1808 = vst.msk [vmem:[#allocation2 + $0x60] sm:$0xff] %vm1527, %v1780
      %1809 = vst.msk [vmem:[#allocation2 + $0x68] sm:$0xff] %vm1527, %v1781
      %1810 = vst.msk [vmem:[#allocation2 + $0x70] sm:$0xff] %vm1527, %v1782
      %1811 = vst.msk [vmem:[#allocation2 + $0x78] sm:$0xff] %vm1527, %v1783
      %1812 = vst.msk [vmem:[#allocation2 + $0x80] sm:$0xff] %vm1527, %v1784
      %1813 = vst.msk [vmem:[#allocation2 + $0x88] sm:$0xff] %vm1527, %v1785
      %1814 = vst.msk [vmem:[#allocation2 + $0x90] sm:$0xff] %vm1527, %v1786
      %1815 = vst.msk [vmem:[#allocation2 + $0x98] sm:$0xff] %vm1527, %v1787
      %1816 = vst.msk [vmem:[#allocation2 + $0xa0] sm:$0xff] %vm1527, %v1788
      %1817 = vst.msk [vmem:[#allocation2 + $0xa8] sm:$0xff] %vm1527, %v1789
      %1818 = vst.msk [vmem:[#allocation2 + $0xb0] sm:$0xff] %vm1527, %v1790
      %1819 = vst.msk [vmem:[#allocation2 + $0xb8] sm:$0xff] %vm1527, %v1791
      %1820 = vst.msk [vmem:[#allocation2 + $0xc0] sm:$0xff] %vm1527, %v1792
      %1821 = vst.msk [vmem:[#allocation2 + $0xc8] sm:$0xff] %vm1527, %v1793
      %1822 = vst.msk [vmem:[#allocation2 + $0xd0] sm:$0xff] %vm1527, %v1794
      %1823 = vst.msk [vmem:[#allocation2 + $0xd8] sm:$0xff] %vm1527, %v1795
      %v1824 = vld [vmem:[#allocation2 + $0x20] sm:$0xff]
      %v1825 = vld [vmem:[#allocation2 + $0x28] sm:$0xff]
      %v1826 = vld [vmem:[#allocation2 + $0x30] sm:$0xff]
      %v1827 = vld [vmem:[#allocation2 + $0x38] sm:$0xff]
      %v1828 = vld [vmem:[#allocation2 + $0x40] sm:$0xff]
      %v1829 = vld [vmem:[#allocation2 + $0x48] sm:$0xff]
      %v1830 = vld [vmem:[#allocation2 + $0x50] sm:$0xff]
      %v1831 = vld [vmem:[#allocation2 + $0x58] sm:$0xff]
      %v1832 = vld [vmem:[#allocation2 + $0x60] sm:$0xff]
      %v1833 = vld [vmem:[#allocation2 + $0x68] sm:$0xff]
      %v1834 = vld [vmem:[#allocation2 + $0x70] sm:$0xff]
      %v1835 = vld [vmem:[#allocation2 + $0x78] sm:$0xff]
      %v1836 = vld [vmem:[#allocation2 + $0x80] sm:$0xff]
      %v1837 = vld [vmem:[#allocation2 + $0x88] sm:$0xff]
      %v1838 = vld [vmem:[#allocation2 + $0x90] sm:$0xff]
      %v1839 = vld [vmem:[#allocation2 + $0x98] sm:$0xff]
      %v1840 = vld [vmem:[#allocation2 + $0xa0] sm:$0xff]
      %v1841 = vld [vmem:[#allocation2 + $0xa8] sm:$0xff]
      %v1842 = vld [vmem:[#allocation2 + $0xb0] sm:$0xff]
      %v1843 = vld [vmem:[#allocation2 + $0xb8] sm:$0xff]
      %v1844 = vld [vmem:[#allocation2 + $0xc0] sm:$0xff]
      %v1845 = vld [vmem:[#allocation2 + $0xc8] sm:$0xff]
      %v1846 = vld [vmem:[#allocation2 + $0xd0] sm:$0xff]
      %v1847 = vld [vmem:[#allocation2 + $0xd8] sm:$0xff]
      %v1848 = vld [vmem:[#allocation2 + $0xe0] sm:$0xff]
      %v1849 = vld [vmem:[#allocation2 + $0xe8] sm:$0xff]
      %v1850 = vld [vmem:[#allocation2 + $0xf0] sm:$0xff]
      %v1851 = vld [vmem:[#allocation2 + $0xf8] sm:$0xff]
      %v1852 = vmax.f32 %v1824, %v1056
      %v1853 = vmax.f32 %v1825, %v1057
      %v1854 = vmax.f32 %v1826, %v1058
      %v1855 = vmax.f32 %v1827, %v1059
      %v1856 = vmax.f32 %v1828, %v1060
      %v1857 = vmax.f32 %v1829, %v1061
      %v1858 = vmax.f32 %v1830, %v1062
      %v1859 = vmax.f32 %v1831, %v1063
      %v1860 = vmax.f32 %v1832, %v1064
      %v1861 = vmax.f32 %v1833, %v1065
      %v1862 = vmax.f32 %v1834, %v1066
      %v1863 = vmax.f32 %v1835, %v1067
      %v1864 = vmax.f32 %v1836, %v1068
      %v1865 = vmax.f32 %v1837, %v1069
      %v1866 = vmax.f32 %v1838, %v1070
      %v1867 = vmax.f32 %v1839, %v1071
      %v1868 = vmax.f32 %v1840, %v1072
      %v1869 = vmax.f32 %v1841, %v1073
      %v1870 = vmax.f32 %v1842, %v1074
      %v1871 = vmax.f32 %v1843, %v1075
      %v1872 = vmax.f32 %v1844, %v1076
      %v1873 = vmax.f32 %v1845, %v1077
      %v1874 = vmax.f32 %v1846, %v1078
      %v1875 = vmax.f32 %v1847, %v1079
      %v1876 = vmax.f32 %v1848, %v1080
      %v1877 = vmax.f32 %v1849, %v1081
      %v1878 = vmax.f32 %v1850, %v1082
      %v1879 = vmax.f32 %v1851, %v1083
      %1880 = vst.msk [vmem:[#allocation2 + $0x20] sm:$0xff] %vm1527, %v1852
      %1881 = vst.msk [vmem:[#allocation2 + $0x28] sm:$0xff] %vm1527, %v1853
      %1882 = vst.msk [vmem:[#allocation2 + $0x30] sm:$0xff] %vm1527, %v1854
      %1883 = vst.msk [vmem:[#allocation2 + $0x38] sm:$0xff] %vm1527, %v1855
      %1884 = vst.msk [vmem:[#allocation2 + $0x40] sm:$0xff] %vm1527, %v1856
      %1885 = vst.msk [vmem:[#allocation2 + $0x48] sm:$0xff] %vm1527, %v1857
      %1886 = vst.msk [vmem:[#allocation2 + $0x50] sm:$0xff] %vm1527, %v1858
      %1887 = vst.msk [vmem:[#allocation2 + $0x58] sm:$0xff] %vm1527, %v1859
      %1888 = vst.msk [vmem:[#allocation2 + $0x60] sm:$0xff] %vm1527, %v1860
      %1889 = vst.msk [vmem:[#allocation2 + $0x68] sm:$0xff] %vm1527, %v1861
      %1890 = vst.msk [vmem:[#allocation2 + $0x70] sm:$0xff] %vm1527, %v1862
      %1891 = vst.msk [vmem:[#allocation2 + $0x78] sm:$0xff] %vm1527, %v1863
      %1892 = vst.msk [vmem:[#allocation2 + $0x80] sm:$0xff] %vm1527, %v1864
      %1893 = vst.msk [vmem:[#allocation2 + $0x88] sm:$0xff] %vm1527, %v1865
      %1894 = vst.msk [vmem:[#allocation2 + $0x90] sm:$0xff] %vm1527, %v1866
      %1895 = vst.msk [vmem:[#allocation2 + $0x98] sm:$0xff] %vm1527, %v1867
      %1896 = vst.msk [vmem:[#allocation2 + $0xa0] sm:$0xff] %vm1527, %v1868
      %1897 = vst.msk [vmem:[#allocation2 + $0xa8] sm:$0xff] %vm1527, %v1869
      %1898 = vst.msk [vmem:[#allocation2 + $0xb0] sm:$0xff] %vm1527, %v1870
      %1899 = vst.msk [vmem:[#allocation2 + $0xb8] sm:$0xff] %vm1527, %v1871
      %1900 = vst.msk [vmem:[#allocation2 + $0xc0] sm:$0xff] %vm1527, %v1872
      %1901 = vst.msk [vmem:[#allocation2 + $0xc8] sm:$0xff] %vm1527, %v1873
      %1902 = vst.msk [vmem:[#allocation2 + $0xd0] sm:$0xff] %vm1527, %v1874
      %1903 = vst.msk [vmem:[#allocation2 + $0xd8] sm:$0xff] %vm1527, %v1875
      %1904 = vst.msk [vmem:[#allocation2 + $0xe0] sm:$0xff] %vm1527, %v1876
      %1905 = vst.msk [vmem:[#allocation2 + $0xe8] sm:$0xff] %vm1527, %v1877
      %1906 = vst.msk [vmem:[#allocation2 + $0xf0] sm:$0xff] %vm1527, %v1878
      %1907 = vst.msk [vmem:[#allocation2 + $0xf8] sm:$0xff] %vm1527, %v1879
      %v1908 = vld [vmem:[#allocation2] sm:$0xff]
      %v1909 = vld [vmem:[#allocation2 + $0x8] sm:$0xff]
      %v1910 = vld [vmem:[#allocation2 + $0x10] sm:$0xff]
      %v1911 = vld [vmem:[#allocation2 + $0x18] sm:$0xff]
      %v1912 = vld [vmem:[#allocation2 + $0x20] sm:$0xff]
      %v1913 = vld [vmem:[#allocation2 + $0x28] sm:$0xff]
      %v1914 = vld [vmem:[#allocation2 + $0x30] sm:$0xff]
      %v1915 = vld [vmem:[#allocation2 + $0x38] sm:$0xff]
      %v1916 = vld [vmem:[#allocation2 + $0x40] sm:$0xff]
      %v1917 = vld [vmem:[#allocation2 + $0x48] sm:$0xff]
      %v1918 = vld [vmem:[#allocation2 + $0x50] sm:$0xff]
      %v1919 = vld [vmem:[#allocation2 + $0x58] sm:$0xff]
      %v1920 = vld [vmem:[#allocation2 + $0x60] sm:$0xff]
      %v1921 = vld [vmem:[#allocation2 + $0x68] sm:$0xff]
      %v1922 = vld [vmem:[#allocation2 + $0x70] sm:$0xff]
      %v1923 = vld [vmem:[#allocation2 + $0x78] sm:$0xff]
      %v1924 = vld [vmem:[#allocation2 + $0x80] sm:$0xff]
      %v1925 = vld [vmem:[#allocation2 + $0x88] sm:$0xff]
      %v1926 = vld [vmem:[#allocation2 + $0x90] sm:$0xff]
      %v1927 = vld [vmem:[#allocation2 + $0x98] sm:$0xff]
      %v1928 = vld [vmem:[#allocation2 + $0xa0] sm:$0xff]
      %v1929 = vld [vmem:[#allocation2 + $0xa8] sm:$0xff]
      %v1930 = vld [vmem:[#allocation2 + $0xb0] sm:$0xff]
      %v1931 = vld [vmem:[#allocation2 + $0xb8] sm:$0xff]
      %v1932 = vld [vmem:[#allocation2 + $0xc0] sm:$0xff]
      %v1933 = vld [vmem:[#allocation2 + $0xc8] sm:$0xff]
      %v1934 = vld [vmem:[#allocation2 + $0xd0] sm:$0xff]
      %v1935 = vld [vmem:[#allocation2 + $0xd8] sm:$0xff]
      %v1936 = vld [vmem:[#allocation2 + $0xe0] sm:$0xff]
      %v1937 = vld [vmem:[#allocation2 + $0xe8] sm:$0xff]
      %v1938 = vld [vmem:[#allocation2 + $0xf0] sm:$0xff]
      %v1939 = vld [vmem:[#allocation2 + $0xf8] sm:$0xff]
      %v1940 = vrot.slane %v1908, 7
      %v1941 = vrot.slane %v1909, 7
      %v1942 = vrot.slane %v1910, 7
      %v1943 = vrot.slane %v1911, 7
      %v1944 = vrot.slane %v1912, 7
      %v1945 = vrot.slane %v1913, 7
      %v1946 = vrot.slane %v1914, 7
      %v1947 = vrot.slane %v1915, 7
      %v1948 = vrot.slane %v1916, 7
      %v1949 = vrot.slane %v1917, 7
      %v1950 = vrot.slane %v1918, 7
      %v1951 = vrot.slane %v1919, 7
      %v1952 = vrot.slane %v1920, 7
      %v1953 = vrot.slane %v1921, 7
      %v1954 = vrot.slane %v1922, 7
      %v1955 = vrot.slane %v1923, 7
      %v1956 = vrot.slane %v1924, 7
      %v1957 = vrot.slane %v1925, 7
      %v1958 = vrot.slane %v1926, 7
      %v1959 = vrot.slane %v1927, 7
      %v1960 = vrot.slane %v1928, 7
      %v1961 = vrot.slane %v1929, 7
      %v1962 = vrot.slane %v1930, 7
      %v1963 = vrot.slane %v1931, 7
      %v1964 = vrot.slane %v1932, 7
      %v1965 = vrot.slane %v1933, 7
      %v1966 = vrot.slane %v1934, 7
      %v1967 = vrot.slane %v1935, 7
      %v1968 = vrot.slane %v1936, 7
      %v1969 = vrot.slane %v1937, 7
      %v1970 = vrot.slane %v1938, 7
      %v1971 = vrot.slane %v1939, 7
      %v1972 = vsel %vm1154, %v1970, %v1971
      %v1973 = vsel %vm1154, %v1969, %v1970
      %v1974 = vsel %vm1154, %v1968, %v1969
      %v1975 = vsel %vm1154, %v1967, %v1968
      %v1976 = vsel %vm1154, %v1966, %v1967
      %v1977 = vsel %vm1154, %v1965, %v1966
      %v1978 = vsel %vm1154, %v1964, %v1965
      %v1979 = vsel %vm1154, %v1963, %v1964
      %v1980 = vsel %vm1154, %v1962, %v1963
      %v1981 = vsel %vm1154, %v1961, %v1962
      %v1982 = vsel %vm1154, %v1960, %v1961
      %v1983 = vsel %vm1154, %v1959, %v1960
      %v1984 = vsel %vm1154, %v1958, %v1959
      %v1985 = vsel %vm1154, %v1957, %v1958
      %v1986 = vsel %vm1154, %v1956, %v1957
      %v1987 = vsel %vm1154, %v1955, %v1956
      %v1988 = vsel %vm1154, %v1954, %v1955
      %v1989 = vsel %vm1154, %v1953, %v1954
      %v1990 = vsel %vm1154, %v1952, %v1953
      %v1991 = vsel %vm1154, %v1951, %v1952
      %v1992 = vsel %vm1154, %v1950, %v1951
      %v1993 = vsel %vm1154, %v1949, %v1950
      %v1994 = vsel %vm1154, %v1948, %v1949
      %v1995 = vsel %vm1154, %v1947, %v1948
      %v1996 = vsel %vm1154, %v1946, %v1947
      %v1997 = vsel %vm1154, %v1945, %v1946
      %v1998 = vsel %vm1154, %v1944, %v1945
      %v1999 = vsel %vm1154, %v1943, %v1944
      %v2000 = vsel %vm1154, %v1942, %v1943
      %v2001 = vsel %vm1154, %v1941, %v1942
      %v2002 = vsel %vm1154, %v1940, %v1941
      %v2003 = vsel %vm1154, %v1971, %v1940
      %v2004 = vsel %vm1187, %v2003, -inf
      %v2005 = vsel %vm1188, %v2002, -inf
      %v2006 = vsel %vm1189, %v2001, -inf
      %v2007 = vsel %vm1190, %v2000, -inf
      %v2008 = vsel %vm1191, %v1999, -inf
      %v2009 = vsel %vm1192, %v1998, -inf
      %v2010 = vsel %vm1193, %v1997, -inf
      %v2011 = vsel %vm1194, %v1996, -inf
      %v2012 = vsel %vm1195, %v1995, -inf
      %v2013 = vsel %vm1196, %v1994, -inf
      %v2014 = vsel %vm1197, %v1993, -inf
      %v2015 = vsel %vm1198, %v1992, -inf
      %v2016 = vsel %vm1199, %v1991, -inf
      %v2017 = vsel %vm1200, %v1990, -inf
      %v2018 = vsel %vm1201, %v1989, -inf
      %v2019 = vsel %vm1202, %v1988, -inf
      %v2020 = vsel %vm1203, %v1987, -inf
      %v2021 = vsel %vm1204, %v1986, -inf
      %v2022 = vsel %vm1205, %v1985, -inf
      %v2023 = vsel %vm1206, %v1984, -inf
      %v2024 = vsel %vm1207, %v1983, -inf
      %v2025 = vsel %vm1208, %v1982, -inf
      %v2026 = vsel %vm1209, %v1981, -inf
      %v2027 = vsel %vm1210, %v1980, -inf
      %v2028 = vsel %vm1211, %v1979, -inf
      %v2029 = vsel %vm1212, %v1978, -inf
      %v2030 = vsel %vm1213, %v1977, -inf
      %v2031 = vsel %vm1214, %v1976, -inf
      %v2032 = vsel %vm1215, %v1975, -inf
      %v2033 = vsel %vm1216, %v1974, -inf
      %v2034 = vsel %vm1217, %v1973, -inf
      %v2035 = vsel %vm1218, %v1972, -inf
      %v2036 = vmax.f32 %v1908, %v2004
      %v2037 = vmax.f32 %v1909, %v2005
      %v2038 = vmax.f32 %v1910, %v2006
      %v2039 = vmax.f32 %v1911, %v2007
      %v2040 = vmax.f32 %v1912, %v2008
      %v2041 = vmax.f32 %v1913, %v2009
      %v2042 = vmax.f32 %v1914, %v2010
      %v2043 = vmax.f32 %v1915, %v2011
      %v2044 = vmax.f32 %v1916, %v2012
      %v2045 = vmax.f32 %v1917, %v2013
      %v2046 = vmax.f32 %v1918, %v2014
      %v2047 = vmax.f32 %v1919, %v2015
      %v2048 = vmax.f32 %v1920, %v2016
      %v2049 = vmax.f32 %v1921, %v2017
      %v2050 = vmax.f32 %v1922, %v2018
      %v2051 = vmax.f32 %v1923, %v2019
      %v2052 = vmax.f32 %v1924, %v2020
      %v2053 = vmax.f32 %v1925, %v2021
      %v2054 = vmax.f32 %v1926, %v2022
      %v2055 = vmax.f32 %v1927, %v2023
      %v2056 = vmax.f32 %v1928, %v2024
      %v2057 = vmax.f32 %v1929, %v2025
      %v2058 = vmax.f32 %v1930, %v2026
      %v2059 = vmax.f32 %v1931, %v2027
      %v2060 = vmax.f32 %v1932, %v2028
      %v2061 = vmax.f32 %v1933, %v2029
      %v2062 = vmax.f32 %v1934, %v2030
      %v2063 = vmax.f32 %v1935, %v2031
      %v2064 = vmax.f32 %v1936, %v2032
      %v2065 = vmax.f32 %v1937, %v2033
      %v2066 = vmax.f32 %v1938, %v2034
      %v2067 = vmax.f32 %v1939, %v2035
      %v2068 = vrot.slane %v1908, 6
      %v2069 = vrot.slane %v1909, 6
      %v2070 = vrot.slane %v1910, 6
      %v2071 = vrot.slane %v1911, 6
      %v2072 = vrot.slane %v1912, 6
      %v2073 = vrot.slane %v1913, 6
      %v2074 = vrot.slane %v1914, 6
      %v2075 = vrot.slane %v1915, 6
      %v2076 = vrot.slane %v1916, 6
      %v2077 = vrot.slane %v1917, 6
      %v2078 = vrot.slane %v1918, 6
      %v2079 = vrot.slane %v1919, 6
      %v2080 = vrot.slane %v1920, 6
      %v2081 = vrot.slane %v1921, 6
      %v2082 = vrot.slane %v1922, 6
      %v2083 = vrot.slane %v1923, 6
      %v2084 = vrot.slane %v1924, 6
      %v2085 = vrot.slane %v1925, 6
      %v2086 = vrot.slane %v1926, 6
      %v2087 = vrot.slane %v1927, 6
      %v2088 = vrot.slane %v1928, 6
      %v2089 = vrot.slane %v1929, 6
      %v2090 = vrot.slane %v1930, 6
      %v2091 = vrot.slane %v1931, 6
      %v2092 = vrot.slane %v1932, 6
      %v2093 = vrot.slane %v1933, 6
      %v2094 = vrot.slane %v1934, 6
      %v2095 = vrot.slane %v1935, 6
      %v2096 = vrot.slane %v1936, 6
      %v2097 = vrot.slane %v1937, 6
      %v2098 = vrot.slane %v1938, 6
      %v2099 = vrot.slane %v1939, 6
      %v2100 = vsel %vm1251, %v2098, %v2099
      %v2101 = vsel %vm1251, %v2097, %v2098
      %v2102 = vsel %vm1251, %v2096, %v2097
      %v2103 = vsel %vm1251, %v2095, %v2096
      %v2104 = vsel %vm1251, %v2094, %v2095
      %v2105 = vsel %vm1251, %v2093, %v2094
      %v2106 = vsel %vm1251, %v2092, %v2093
      %v2107 = vsel %vm1251, %v2091, %v2092
      %v2108 = vsel %vm1251, %v2090, %v2091
      %v2109 = vsel %vm1251, %v2089, %v2090
      %v2110 = vsel %vm1251, %v2088, %v2089
      %v2111 = vsel %vm1251, %v2087, %v2088
      %v2112 = vsel %vm1251, %v2086, %v2087
      %v2113 = vsel %vm1251, %v2085, %v2086
      %v2114 = vsel %vm1251, %v2084, %v2085
      %v2115 = vsel %vm1251, %v2083, %v2084
      %v2116 = vsel %vm1251, %v2082, %v2083
      %v2117 = vsel %vm1251, %v2081, %v2082
      %v2118 = vsel %vm1251, %v2080, %v2081
      %v2119 = vsel %vm1251, %v2079, %v2080
      %v2120 = vsel %vm1251, %v2078, %v2079
      %v2121 = vsel %vm1251, %v2077, %v2078
      %v2122 = vsel %vm1251, %v2076, %v2077
      %v2123 = vsel %vm1251, %v2075, %v2076
      %v2124 = vsel %vm1251, %v2074, %v2075
      %v2125 = vsel %vm1251, %v2073, %v2074
      %v2126 = vsel %vm1251, %v2072, %v2073
      %v2127 = vsel %vm1251, %v2071, %v2072
      %v2128 = vsel %vm1251, %v2070, %v2071
      %v2129 = vsel %vm1251, %v2069, %v2070
      %v2130 = vsel %vm1251, %v2068, %v2069
      %v2131 = vsel %vm1251, %v2099, %v2068
      %v2132 = vsel %vm1284, %v2131, -inf
      %v2133 = vsel %vm1285, %v2130, -inf
      %v2134 = vsel %vm1286, %v2129, -inf
      %v2135 = vsel %vm1287, %v2128, -inf
      %v2136 = vsel %vm1288, %v2127, -inf
      %v2137 = vsel %vm1289, %v2126, -inf
      %v2138 = vsel %vm1290, %v2125, -inf
      %v2139 = vsel %vm1291, %v2124, -inf
      %v2140 = vsel %vm1292, %v2123, -inf
      %v2141 = vsel %vm1293, %v2122, -inf
      %v2142 = vsel %vm1294, %v2121, -inf
      %v2143 = vsel %vm1295, %v2120, -inf
      %v2144 = vsel %vm1296, %v2119, -inf
      %v2145 = vsel %vm1297, %v2118, -inf
      %v2146 = vsel %vm1298, %v2117, -inf
      %v2147 = vsel %vm1299, %v2116, -inf
      %v2148 = vsel %vm1300, %v2115, -inf
      %v2149 = vsel %vm1301, %v2114, -inf
      %v2150 = vsel %vm1302, %v2113, -inf
      %v2151 = vsel %vm1303, %v2112, -inf
      %v2152 = vsel %vm1304, %v2111, -inf
      %v2153 = vsel %vm1305, %v2110, -inf
      %v2154 = vsel %vm1306, %v2109, -inf
      %v2155 = vsel %vm1307, %v2108, -inf
      %v2156 = vsel %vm1308, %v2107, -inf
      %v2157 = vsel %vm1309, %v2106, -inf
      %v2158 = vsel %vm1310, %v2105, -inf
      %v2159 = vsel %vm1311, %v2104, -inf
      %v2160 = vsel %vm1312, %v2103, -inf
      %v2161 = vsel %vm1313, %v2102, -inf
      %v2162 = vsel %vm1314, %v2101, -inf
      %v2163 = vsel %vm1315, %v2100, -inf
      %v2164 = vmax.f32 %v2036, %v2132
      %v2165 = vmax.f32 %v2037, %v2133
      %v2166 = vmax.f32 %v2038, %v2134
      %v2167 = vmax.f32 %v2039, %v2135
      %v2168 = vmax.f32 %v2040, %v2136
      %v2169 = vmax.f32 %v2041, %v2137
      %v2170 = vmax.f32 %v2042, %v2138
      %v2171 = vmax.f32 %v2043, %v2139
      %v2172 = vmax.f32 %v2044, %v2140
      %v2173 = vmax.f32 %v2045, %v2141
      %v2174 = vmax.f32 %v2046, %v2142
      %v2175 = vmax.f32 %v2047, %v2143
      %v2176 = vmax.f32 %v2048, %v2144
      %v2177 = vmax.f32 %v2049, %v2145
      %v2178 = vmax.f32 %v2050, %v2146
      %v2179 = vmax.f32 %v2051, %v2147
      %v2180 = vmax.f32 %v2052, %v2148
      %v2181 = vmax.f32 %v2053, %v2149
      %v2182 = vmax.f32 %v2054, %v2150
      %v2183 = vmax.f32 %v2055, %v2151
      %v2184 = vmax.f32 %v2056, %v2152
      %v2185 = vmax.f32 %v2057, %v2153
      %v2186 = vmax.f32 %v2058, %v2154
      %v2187 = vmax.f32 %v2059, %v2155
      %v2188 = vmax.f32 %v2060, %v2156
      %v2189 = vmax.f32 %v2061, %v2157
      %v2190 = vmax.f32 %v2062, %v2158
      %v2191 = vmax.f32 %v2063, %v2159
      %v2192 = vmax.f32 %v2064, %v2160
      %v2193 = vmax.f32 %v2065, %v2161
      %v2194 = vmax.f32 %v2066, %v2162
      %v2195 = vmax.f32 %v2067, %v2163
      %v2196 = vrot.slane %v1908, 1
      %v2197 = vrot.slane %v1909, 1
      %v2198 = vrot.slane %v1910, 1
      %v2199 = vrot.slane %v1911, 1
      %v2200 = vrot.slane %v1912, 1
      %v2201 = vrot.slane %v1913, 1
      %v2202 = vrot.slane %v1914, 1
      %v2203 = vrot.slane %v1915, 1
      %v2204 = vrot.slane %v1916, 1
      %v2205 = vrot.slane %v1917, 1
      %v2206 = vrot.slane %v1918, 1
      %v2207 = vrot.slane %v1919, 1
      %v2208 = vrot.slane %v1920, 1
      %v2209 = vrot.slane %v1921, 1
      %v2210 = vrot.slane %v1922, 1
      %v2211 = vrot.slane %v1923, 1
      %v2212 = vrot.slane %v1924, 1
      %v2213 = vrot.slane %v1925, 1
      %v2214 = vrot.slane %v1926, 1
      %v2215 = vrot.slane %v1927, 1
      %v2216 = vrot.slane %v1928, 1
      %v2217 = vrot.slane %v1929, 1
      %v2218 = vrot.slane %v1930, 1
      %v2219 = vrot.slane %v1931, 1
      %v2220 = vrot.slane %v1932, 1
      %v2221 = vrot.slane %v1933, 1
      %v2222 = vrot.slane %v1934, 1
      %v2223 = vrot.slane %v1935, 1
      %v2224 = vrot.slane %v1936, 1
      %v2225 = vrot.slane %v1937, 1
      %v2226 = vrot.slane %v1938, 1
      %v2227 = vrot.slane %v1939, 1
      %v2228 = vsel %vm1348, %v2226, %v2227
      %v2229 = vsel %vm1348, %v2225, %v2226
      %v2230 = vsel %vm1348, %v2224, %v2225
      %v2231 = vsel %vm1348, %v2223, %v2224
      %v2232 = vsel %vm1348, %v2222, %v2223
      %v2233 = vsel %vm1348, %v2221, %v2222
      %v2234 = vsel %vm1348, %v2220, %v2221
      %v2235 = vsel %vm1348, %v2219, %v2220
      %v2236 = vsel %vm1348, %v2218, %v2219
      %v2237 = vsel %vm1348, %v2217, %v2218
      %v2238 = vsel %vm1348, %v2216, %v2217
      %v2239 = vsel %vm1348, %v2215, %v2216
      %v2240 = vsel %vm1348, %v2214, %v2215
      %v2241 = vsel %vm1348, %v2213, %v2214
      %v2242 = vsel %vm1348, %v2212, %v2213
      %v2243 = vsel %vm1348, %v2211, %v2212
      %v2244 = vsel %vm1348, %v2210, %v2211
      %v2245 = vsel %vm1348, %v2209, %v2210
      %v2246 = vsel %vm1348, %v2208, %v2209
      %v2247 = vsel %vm1348, %v2207, %v2208
      %v2248 = vsel %vm1348, %v2206, %v2207
      %v2249 = vsel %vm1348, %v2205, %v2206
      %v2250 = vsel %vm1348, %v2204, %v2205
      %v2251 = vsel %vm1348, %v2203, %v2204
      %v2252 = vsel %vm1348, %v2202, %v2203
      %v2253 = vsel %vm1348, %v2201, %v2202
      %v2254 = vsel %vm1348, %v2200, %v2201
      %v2255 = vsel %vm1348, %v2199, %v2200
      %v2256 = vsel %vm1348, %v2198, %v2199
      %v2257 = vsel %vm1348, %v2197, %v2198
      %v2258 = vsel %vm1348, %v2196, %v2197
      %v2259 = vsel %vm1348, %v2227, %v2196
      %v2260 = vsel %vm1381, %v2258, -inf
      %v2261 = vsel %vm1382, %v2257, -inf
      %v2262 = vsel %vm1383, %v2256, -inf
      %v2263 = vsel %vm1384, %v2255, -inf
      %v2264 = vsel %vm1385, %v2254, -inf
      %v2265 = vsel %vm1386, %v2253, -inf
      %v2266 = vsel %vm1387, %v2252, -inf
      %v2267 = vsel %vm1388, %v2251, -inf
      %v2268 = vsel %vm1389, %v2250, -inf
      %v2269 = vsel %vm1390, %v2249, -inf
      %v2270 = vsel %vm1391, %v2248, -inf
      %v2271 = vsel %vm1392, %v2247, -inf
      %v2272 = vsel %vm1393, %v2246, -inf
      %v2273 = vsel %vm1394, %v2245, -inf
      %v2274 = vsel %vm1395, %v2244, -inf
      %v2275 = vsel %vm1396, %v2243, -inf
      %v2276 = vsel %vm1397, %v2242, -inf
      %v2277 = vsel %vm1398, %v2241, -inf
      %v2278 = vsel %vm1399, %v2240, -inf
      %v2279 = vsel %vm1400, %v2239, -inf
      %v2280 = vsel %vm1401, %v2238, -inf
      %v2281 = vsel %vm1402, %v2237, -inf
      %v2282 = vsel %vm1403, %v2236, -inf
      %v2283 = vsel %vm1404, %v2235, -inf
      %v2284 = vsel %vm1405, %v2234, -inf
      %v2285 = vsel %vm1406, %v2233, -inf
      %v2286 = vsel %vm1407, %v2232, -inf
      %v2287 = vsel %vm1408, %v2231, -inf
      %v2288 = vsel %vm1409, %v2230, -inf
      %v2289 = vsel %vm1410, %v2229, -inf
      %v2290 = vsel %vm1411, %v2228, -inf
      %v2291 = vsel %vm1412, %v2259, -inf
      %v2292 = vmax.f32 %v2164, %v2260
      %v2293 = vmax.f32 %v2165, %v2261
      %v2294 = vmax.f32 %v2166, %v2262
      %v2295 = vmax.f32 %v2167, %v2263
      %v2296 = vmax.f32 %v2168, %v2264
      %v2297 = vmax.f32 %v2169, %v2265
      %v2298 = vmax.f32 %v2170, %v2266
      %v2299 = vmax.f32 %v2171, %v2267
      %v2300 = vmax.f32 %v2172, %v2268
      %v2301 = vmax.f32 %v2173, %v2269
      %v2302 = vmax.f32 %v2174, %v2270
      %v2303 = vmax.f32 %v2175, %v2271
      %v2304 = vmax.f32 %v2176, %v2272
      %v2305 = vmax.f32 %v2177, %v2273
      %v2306 = vmax.f32 %v2178, %v2274
      %v2307 = vmax.f32 %v2179, %v2275
      %v2308 = vmax.f32 %v2180, %v2276
      %v2309 = vmax.f32 %v2181, %v2277
      %v2310 = vmax.f32 %v2182, %v2278
      %v2311 = vmax.f32 %v2183, %v2279
      %v2312 = vmax.f32 %v2184, %v2280
      %v2313 = vmax.f32 %v2185, %v2281
      %v2314 = vmax.f32 %v2186, %v2282
      %v2315 = vmax.f32 %v2187, %v2283
      %v2316 = vmax.f32 %v2188, %v2284
      %v2317 = vmax.f32 %v2189, %v2285
      %v2318 = vmax.f32 %v2190, %v2286
      %v2319 = vmax.f32 %v2191, %v2287
      %v2320 = vmax.f32 %v2192, %v2288
      %v2321 = vmax.f32 %v2193, %v2289
      %v2322 = vmax.f32 %v2194, %v2290
      %v2323 = vmax.f32 %v2195, %v2291
      %v2324 = vrot.slane %v1908, 2
      %v2325 = vrot.slane %v1909, 2
      %v2326 = vrot.slane %v1910, 2
      %v2327 = vrot.slane %v1911, 2
      %v2328 = vrot.slane %v1912, 2
      %v2329 = vrot.slane %v1913, 2
      %v2330 = vrot.slane %v1914, 2
      %v2331 = vrot.slane %v1915, 2
      %v2332 = vrot.slane %v1916, 2
      %v2333 = vrot.slane %v1917, 2
      %v2334 = vrot.slane %v1918, 2
      %v2335 = vrot.slane %v1919, 2
      %v2336 = vrot.slane %v1920, 2
      %v2337 = vrot.slane %v1921, 2
      %v2338 = vrot.slane %v1922, 2
      %v2339 = vrot.slane %v1923, 2
      %v2340 = vrot.slane %v1924, 2
      %v2341 = vrot.slane %v1925, 2
      %v2342 = vrot.slane %v1926, 2
      %v2343 = vrot.slane %v1927, 2
      %v2344 = vrot.slane %v1928, 2
      %v2345 = vrot.slane %v1929, 2
      %v2346 = vrot.slane %v1930, 2
      %v2347 = vrot.slane %v1931, 2
      %v2348 = vrot.slane %v1932, 2
      %v2349 = vrot.slane %v1933, 2
      %v2350 = vrot.slane %v1934, 2
      %v2351 = vrot.slane %v1935, 2
      %v2352 = vrot.slane %v1936, 2
      %v2353 = vrot.slane %v1937, 2
      %v2354 = vrot.slane %v1938, 2
      %v2355 = vrot.slane %v1939, 2
      %v2356 = vsel %vm1445, %v2354, %v2355
      %v2357 = vsel %vm1445, %v2353, %v2354
      %v2358 = vsel %vm1445, %v2352, %v2353
      %v2359 = vsel %vm1445, %v2351, %v2352
      %v2360 = vsel %vm1445, %v2350, %v2351
      %v2361 = vsel %vm1445, %v2349, %v2350
      %v2362 = vsel %vm1445, %v2348, %v2349
      %v2363 = vsel %vm1445, %v2347, %v2348
      %v2364 = vsel %vm1445, %v2346, %v2347
      %v2365 = vsel %vm1445, %v2345, %v2346
      %v2366 = vsel %vm1445, %v2344, %v2345
      %v2367 = vsel %vm1445, %v2343, %v2344
      %v2368 = vsel %vm1445, %v2342, %v2343
      %v2369 = vsel %vm1445, %v2341, %v2342
      %v2370 = vsel %vm1445, %v2340, %v2341
      %v2371 = vsel %vm1445, %v2339, %v2340
      %v2372 = vsel %vm1445, %v2338, %v2339
      %v2373 = vsel %vm1445, %v2337, %v2338
      %v2374 = vsel %vm1445, %v2336, %v2337
      %v2375 = vsel %vm1445, %v2335, %v2336
      %v2376 = vsel %vm1445, %v2334, %v2335
      %v2377 = vsel %vm1445, %v2333, %v2334
      %v2378 = vsel %vm1445, %v2332, %v2333
      %v2379 = vsel %vm1445, %v2331, %v2332
      %v2380 = vsel %vm1445, %v2330, %v2331
      %v2381 = vsel %vm1445, %v2329, %v2330
      %v2382 = vsel %vm1445, %v2328, %v2329
      %v2383 = vsel %vm1445, %v2327, %v2328
      %v2384 = vsel %vm1445, %v2326, %v2327
      %v2385 = vsel %vm1445, %v2325, %v2326
      %v2386 = vsel %vm1445, %v2324, %v2325
      %v2387 = vsel %vm1445, %v2355, %v2324
      %v2388 = vsel %vm1478, %v2386, -inf
      %v2389 = vsel %vm1479, %v2385, -inf
      %v2390 = vsel %vm1480, %v2384, -inf
      %v2391 = vsel %vm1481, %v2383, -inf
      %v2392 = vsel %vm1482, %v2382, -inf
      %v2393 = vsel %vm1483, %v2381, -inf
      %v2394 = vsel %vm1484, %v2380, -inf
      %v2395 = vsel %vm1485, %v2379, -inf
      %v2396 = vsel %vm1486, %v2378, -inf
      %v2397 = vsel %vm1487, %v2377, -inf
      %v2398 = vsel %vm1488, %v2376, -inf
      %v2399 = vsel %vm1489, %v2375, -inf
      %v2400 = vsel %vm1490, %v2374, -inf
      %v2401 = vsel %vm1491, %v2373, -inf
      %v2402 = vsel %vm1492, %v2372, -inf
      %v2403 = vsel %vm1493, %v2371, -inf
      %v2404 = vsel %vm1494, %v2370, -inf
      %v2405 = vsel %vm1495, %v2369, -inf
      %v2406 = vsel %vm1496, %v2368, -inf
      %v2407 = vsel %vm1497, %v2367, -inf
      %v2408 = vsel %vm1498, %v2366, -inf
      %v2409 = vsel %vm1499, %v2365, -inf
      %v2410 = vsel %vm1500, %v2364, -inf
      %v2411 = vsel %vm1501, %v2363, -inf
      %v2412 = vsel %vm1502, %v2362, -inf
      %v2413 = vsel %vm1503, %v2361, -inf
      %v2414 = vsel %vm1504, %v2360, -inf
      %v2415 = vsel %vm1505, %v2359, -inf
      %v2416 = vsel %vm1506, %v2358, -inf
      %v2417 = vsel %vm1507, %v2357, -inf
      %v2418 = vsel %vm1508, %v2356, -inf
      %v2419 = vsel %vm1509, %v2387, -inf
      %v2420 = vmax.f32 %v2292, %v2388
      %v2421 = vmax.f32 %v2293, %v2389
      %v2422 = vmax.f32 %v2294, %v2390
      %v2423 = vmax.f32 %v2295, %v2391
      %v2424 = vmax.f32 %v2296, %v2392
      %v2425 = vmax.f32 %v2297, %v2393
      %v2426 = vmax.f32 %v2298, %v2394
      %v2427 = vmax.f32 %v2299, %v2395
      %v2428 = vmax.f32 %v2300, %v2396
      %v2429 = vmax.f32 %v2301, %v2397
      %v2430 = vmax.f32 %v2302, %v2398
      %v2431 = vmax.f32 %v2303, %v2399
      %v2432 = vmax.f32 %v2304, %v2400
      %v2433 = vmax.f32 %v2305, %v2401
      %v2434 = vmax.f32 %v2306, %v2402
      %v2435 = vmax.f32 %v2307, %v2403
      %v2436 = vmax.f32 %v2308, %v2404
      %v2437 = vmax.f32 %v2309, %v2405
      %v2438 = vmax.f32 %v2310, %v2406
      %v2439 = vmax.f32 %v2311, %v2407
      %v2440 = vmax.f32 %v2312, %v2408
      %v2441 = vmax.f32 %v2313, %v2409
      %v2442 = vmax.f32 %v2314, %v2410
      %v2443 = vmax.f32 %v2315, %v2411
      %v2444 = vmax.f32 %v2316, %v2412
      %v2445 = vmax.f32 %v2317, %v2413
      %v2446 = vmax.f32 %v2318, %v2414
      %v2447 = vmax.f32 %v2319, %v2415
      %v2448 = vmax.f32 %v2320, %v2416
      %v2449 = vmax.f32 %v2321, %v2417
      %v2450 = vmax.f32 %v2322, %v2418
      %v2451 = vmax.f32 %v2323, %v2419
      %v2452 = vpack.c.bf16 %v2421, %v2420
      %v2453 = vpack.c.bf16 %v2423, %v2422
      %v2454 = vpack.c.bf16 %v2425, %v2424
      %v2455 = vpack.c.bf16 %v2427, %v2426
      %v2456 = vpack.c.bf16 %v2429, %v2428
      %v2457 = vpack.c.bf16 %v2431, %v2430
      %v2458 = vpack.c.bf16 %v2433, %v2432
      %v2459 = vpack.c.bf16 %v2435, %v2434
      %v2460 = vpack.c.bf16 %v2437, %v2436
      %v2461 = vpack.c.bf16 %v2439, %v2438
      %v2462 = vpack.c.bf16 %v2441, %v2440
      %v2463 = vpack.c.bf16 %v2443, %v2442
      %v2464 = vpack.c.bf16 %v2445, %v2444
      %v2465 = vpack.c.bf16 %v2447, %v2446
      %v2466 = vpack.c.bf16 %v2449, %v2448
      %v2467 = vpack.c.bf16 %v2451, %v2450
      %s2468 = scalar_lea.vmem %s3, 2
      %v2469 = vld [vmem:[%s2468] sm:$0x3]
      %v2471 = vsel %vm1527, %v2452, 0
      %v2474 = vsel %vm1527, %v2453, 0
      %v2477 = vsel %vm1527, %v2454, 0
      %v2480 = vsel %vm1527, %v2455, 0
      %v2483 = vsel %vm1527, %v2456, 0
      %v2486 = vsel %vm1527, %v2457, 0
      %v2489 = vsel %vm1527, %v2458, 0
      %v2492 = vsel %vm1527, %v2459, 0
      %v2495 = vsel %vm1527, %v2460, 0
      %v2498 = vsel %vm1527, %v2461, 0
      %v2501 = vsel %vm1527, %v2462, 0
      %v2504 = vsel %vm1527, %v2463, 0
      %v2507 = vsel %vm1527, %v2464, 0
      %v2510 = vsel %vm1527, %v2465, 0
      %v2513 = vsel %vm1527, %v2466, 0
      %v2516 = vsel %vm1527, %v2467, 0
      %vm2518 = vcmask 1041408
      %v2520 = vsel %vm2518, %v2469, 0
      %2522 = vmatpush.bf16.msra.mxu0 0
      %2523 = vmatpush.bf16.msra.mxu0 0
      %2524 = vmatpush.bf16.msra.mxu0 0
      %2525 = vmatpush.bf16.msra.mxu0 0
      %2526 = vmatpush.bf16.msra.mxu0 0
      %2527 = vmatpush.bf16.msra.mxu0 0
      %2528 = vmatpush.bf16.msra.mxu0 0
      %2529 = vmatpush.bf16.msra.mxu0 %v2520
      %2530 = vmatmul.bf16.gmra.mxu0 %v2471
      %v2531 = vpop.f32.mrf.mxu0
      %v2532 = vadd.f32 0.0, %v2531
      %v2533 = vpop.f32.mrf.mxu0
      %v2534 = vadd.f32 0.0, %v2533
      %2535 = vmatmul.bf16.gmra.mxu0 %v2474
      %v2536 = vpop.f32.mrf.mxu0
      %v2537 = vadd.f32 0.0, %v2536
      %v2538 = vpop.f32.mrf.mxu0
      %v2539 = vadd.f32 0.0, %v2538
      %2540 = vmatmul.bf16.gmra.mxu0 %v2477
      %v2541 = vpop.f32.mrf.mxu0
      %v2542 = vadd.f32 0.0, %v2541
      %v2543 = vpop.f32.mrf.mxu0
      %v2544 = vadd.f32 0.0, %v2543
      %2545 = vmatmul.bf16.gmra.mxu0 %v2480
      %v2546 = vpop.f32.mrf.mxu0
      %v2547 = vadd.f32 0.0, %v2546
      %v2548 = vpop.f32.mrf.mxu0
      %v2549 = vadd.f32 0.0, %v2548
      %2550 = vmatmul.bf16.gmra.mxu0 %v2483
      %v2551 = vpop.f32.mrf.mxu0
      %v2552 = vadd.f32 0.0, %v2551
      %v2553 = vpop.f32.mrf.mxu0
      %v2554 = vadd.f32 0.0, %v2553
      %2555 = vmatmul.bf16.gmra.mxu0 %v2486
      %v2556 = vpop.f32.mrf.mxu0
      %v2557 = vadd.f32 0.0, %v2556
      %v2558 = vpop.f32.mrf.mxu0
      %v2559 = vadd.f32 0.0, %v2558
      %2560 = vmatmul.bf16.gmra.mxu0 %v2489
      %v2561 = vpop.f32.mrf.mxu0
      %v2562 = vadd.f32 0.0, %v2561
      %v2563 = vpop.f32.mrf.mxu0
      %v2564 = vadd.f32 0.0, %v2563
      %2565 = vmatmul.bf16.gmra.mxu0 %v2492
      %v2566 = vpop.f32.mrf.mxu0
      %v2567 = vadd.f32 0.0, %v2566
      %v2568 = vpop.f32.mrf.mxu0
      %v2569 = vadd.f32 0.0, %v2568
      %2570 = vmatmul.bf16.gmra.mxu0 %v2495
      %v2571 = vpop.f32.mrf.mxu0
      %v2572 = vadd.f32 0.0, %v2571
      %v2573 = vpop.f32.mrf.mxu0
      %v2574 = vadd.f32 0.0, %v2573
      %2575 = vmatmul.bf16.gmra.mxu0 %v2498
      %v2576 = vpop.f32.mrf.mxu0
      %v2577 = vadd.f32 0.0, %v2576
      %v2578 = vpop.f32.mrf.mxu0
      %v2579 = vadd.f32 0.0, %v2578
      %2580 = vmatmul.bf16.gmra.mxu0 %v2501
      %v2581 = vpop.f32.mrf.mxu0
      %v2582 = vadd.f32 0.0, %v2581
      %v2583 = vpop.f32.mrf.mxu0
      %v2584 = vadd.f32 0.0, %v2583
      %2585 = vmatmul.bf16.gmra.mxu0 %v2504
      %v2586 = vpop.f32.mrf.mxu0
      %v2587 = vadd.f32 0.0, %v2586
      %v2588 = vpop.f32.mrf.mxu0
      %v2589 = vadd.f32 0.0, %v2588
      %2590 = vmatmul.bf16.gmra.mxu0 %v2507
      %v2591 = vpop.f32.mrf.mxu0
      %v2592 = vadd.f32 0.0, %v2591
      %v2593 = vpop.f32.mrf.mxu0
      %v2594 = vadd.f32 0.0, %v2593
      %2595 = vmatmul.bf16.gmra.mxu0 %v2510
      %v2596 = vpop.f32.mrf.mxu0
      %v2597 = vadd.f32 0.0, %v2596
      %v2598 = vpop.f32.mrf.mxu0
      %v2599 = vadd.f32 0.0, %v2598
      %2600 = vmatmul.bf16.gmra.mxu0 %v2513
      %v2601 = vpop.f32.mrf.mxu0
      %v2602 = vadd.f32 0.0, %v2601
      %v2603 = vpop.f32.mrf.mxu0
      %v2604 = vadd.f32 0.0, %v2603
      %2605 = vmatmul.bf16.gmra.mxu0 %v2516
      %v2606 = vpop.f32.mrf.mxu0
      %v2607 = vadd.f32 0.0, %v2606
      %v2608 = vpop.f32.mrf.mxu0
      %v2609 = vadd.f32 0.0, %v2608
      %2610 = vdwg.mxu0
      %v2612 = vsel %vm1527, %v1510, 0
      %v2615 = vsel %vm1527, %v1511, 0
      %v2618 = vsel %vm1527, %v1512, 0
      %v2621 = vsel %vm1527, %v1513, 0
      %v2624 = vsel %vm1527, %v1514, 0
      %v2627 = vsel %vm1527, %v1515, 0
      %v2630 = vsel %vm1527, %v1516, 0
      %v2633 = vsel %vm1527, %v1517, 0
      %v2636 = vsel %vm1527, %v1518, 0
      %v2639 = vsel %vm1527, %v1519, 0
      %v2642 = vsel %vm1527, %v1520, 0
      %v2645 = vsel %vm1527, %v1521, 0
      %v2648 = vsel %vm1527, %v1522, 0
      %v2651 = vsel %vm1527, %v1523, 0
      %v2654 = vsel %vm1527, %v1524, 0
      %v2657 = vsel %vm1527, %v1525, 0
      %v2660 = vsel %vm2518, %v1526, 0
      %2662 = vmatpush.bf16.msra.mxu0 0
      %2663 = vmatpush.bf16.msra.mxu0 0
      %2664 = vmatpush.bf16.msra.mxu0 0
      %2665 = vmatpush.bf16.msra.mxu0 0
      %2666 = vmatpush.bf16.msra.mxu0 0
      %2667 = vmatpush.bf16.msra.mxu0 0
      %2668 = vmatpush.bf16.msra.mxu0 0
      %2669 = vmatpush.bf16.msra.mxu0 %v2660
      %2670 = vmatmul.bf16.gmra.mxu0 %v2612
      %v2671 = vpop.f32.mrf.mxu0
      %v2672 = vadd.f32 %v2532, %v2671
      %v2673 = vpop.f32.mrf.mxu0
      %v2674 = vadd.f32 %v2534, %v2673
      %2675 = vmatmul.bf16.gmra.mxu0 %v2615
      %v2676 = vpop.f32.mrf.mxu0
      %v2677 = vadd.f32 %v2537, %v2676
      %v2678 = vpop.f32.mrf.mxu0
      %v2679 = vadd.f32 %v2539, %v2678
      %2680 = vmatmul.bf16.gmra.mxu0 %v2618
      %v2681 = vpop.f32.mrf.mxu0
      %v2682 = vadd.f32 %v2542, %v2681
      %v2683 = vpop.f32.mrf.mxu0
      %v2684 = vadd.f32 %v2544, %v2683
      %2685 = vmatmul.bf16.gmra.mxu0 %v2621
      %v2686 = vpop.f32.mrf.mxu0
      %v2687 = vadd.f32 %v2547, %v2686
      %v2688 = vpop.f32.mrf.mxu0
      %v2689 = vadd.f32 %v2549, %v2688
      %2690 = vmatmul.bf16.gmra.mxu0 %v2624
      %v2691 = vpop.f32.mrf.mxu0
      %v2692 = vadd.f32 %v2552, %v2691
      %v2693 = vpop.f32.mrf.mxu0
      %v2694 = vadd.f32 %v2554, %v2693
      %2695 = vmatmul.bf16.gmra.mxu0 %v2627
      %v2696 = vpop.f32.mrf.mxu0
      %v2697 = vadd.f32 %v2557, %v2696
      %v2698 = vpop.f32.mrf.mxu0
      %v2699 = vadd.f32 %v2559, %v2698
      %2700 = vmatmul.bf16.gmra.mxu0 %v2630
      %v2701 = vpop.f32.mrf.mxu0
      %v2702 = vadd.f32 %v2562, %v2701
      %v2703 = vpop.f32.mrf.mxu0
      %v2704 = vadd.f32 %v2564, %v2703
      %2705 = vmatmul.bf16.gmra.mxu0 %v2633
      %v2706 = vpop.f32.mrf.mxu0
      %v2707 = vadd.f32 %v2567, %v2706
      %v2708 = vpop.f32.mrf.mxu0
      %v2709 = vadd.f32 %v2569, %v2708
      %2710 = vmatmul.bf16.gmra.mxu0 %v2636
      %v2711 = vpop.f32.mrf.mxu0
      %v2712 = vadd.f32 %v2572, %v2711
      %v2713 = vpop.f32.mrf.mxu0
      %v2714 = vadd.f32 %v2574, %v2713
      %2715 = vmatmul.bf16.gmra.mxu0 %v2639
      %v2716 = vpop.f32.mrf.mxu0
      %v2717 = vadd.f32 %v2577, %v2716
      %v2718 = vpop.f32.mrf.mxu0
      %v2719 = vadd.f32 %v2579, %v2718
      %2720 = vmatmul.bf16.gmra.mxu0 %v2642
      %v2721 = vpop.f32.mrf.mxu0
      %v2722 = vadd.f32 %v2582, %v2721
      %v2723 = vpop.f32.mrf.mxu0
      %v2724 = vadd.f32 %v2584, %v2723
      %2725 = vmatmul.bf16.gmra.mxu0 %v2645
      %v2726 = vpop.f32.mrf.mxu0
      %v2727 = vadd.f32 %v2587, %v2726
      %v2728 = vpop.f32.mrf.mxu0
      %v2729 = vadd.f32 %v2589, %v2728
      %2730 = vmatmul.bf16.gmra.mxu0 %v2648
      %v2731 = vpop.f32.mrf.mxu0
      %v2732 = vadd.f32 %v2592, %v2731
      %v2733 = vpop.f32.mrf.mxu0
      %v2734 = vadd.f32 %v2594, %v2733
      %2735 = vmatmul.bf16.gmra.mxu0 %v2651
      %v2736 = vpop.f32.mrf.mxu0
      %v2737 = vadd.f32 %v2597, %v2736
      %v2738 = vpop.f32.mrf.mxu0
      %v2739 = vadd.f32 %v2599, %v2738
      %2740 = vmatmul.bf16.gmra.mxu0 %v2654
      %v2741 = vpop.f32.mrf.mxu0
      %v2742 = vadd.f32 %v2602, %v2741
      %v2743 = vpop.f32.mrf.mxu0
      %v2744 = vadd.f32 %v2604, %v2743
      %2745 = vmatmul.bf16.gmra.mxu0 %v2657
      %v2746 = vpop.f32.mrf.mxu0
      %v2747 = vadd.f32 %v2607, %v2746
      %v2748 = vpop.f32.mrf.mxu0
      %v2749 = vadd.f32 %v2609, %v2748
      %2750 = vdwg.mxu0
      %2751 = vst.msk [vmem:[#allocation2] sm:$0xff] %vm1527, %v2420
      %2752 = vst.msk [vmem:[#allocation2 + $0x8] sm:$0xff] %vm1527, %v2421
      %2753 = vst.msk [vmem:[#allocation2 + $0x10] sm:$0xff] %vm1527, %v2422
      %2754 = vst.msk [vmem:[#allocation2 + $0x18] sm:$0xff] %vm1527, %v2423
      %2755 = vst.msk [vmem:[#allocation2 + $0x20] sm:$0xff] %vm1527, %v2424
      %2756 = vst.msk [vmem:[#allocation2 + $0x28] sm:$0xff] %vm1527, %v2425
      %2757 = vst.msk [vmem:[#allocation2 + $0x30] sm:$0xff] %vm1527, %v2426
      %2758 = vst.msk [vmem:[#allocation2 + $0x38] sm:$0xff] %vm1527, %v2427
      %2759 = vst.msk [vmem:[#allocation2 + $0x40] sm:$0xff] %vm1527, %v2428
      %2760 = vst.msk [vmem:[#allocation2 + $0x48] sm:$0xff] %vm1527, %v2429
      %2761 = vst.msk [vmem:[#allocation2 + $0x50] sm:$0xff] %vm1527, %v2430
      %2762 = vst.msk [vmem:[#allocation2 + $0x58] sm:$0xff] %vm1527, %v2431
      %2763 = vst.msk [vmem:[#allocation2 + $0x60] sm:$0xff] %vm1527, %v2432
      %2764 = vst.msk [vmem:[#allocation2 + $0x68] sm:$0xff] %vm1527, %v2433
      %2765 = vst.msk [vmem:[#allocation2 + $0x70] sm:$0xff] %vm1527, %v2434
      %2766 = vst.msk [vmem:[#allocation2 + $0x78] sm:$0xff] %vm1527, %v2435
      %2767 = vst.msk [vmem:[#allocation2 + $0x80] sm:$0xff] %vm1527, %v2436
      %2768 = vst.msk [vmem:[#allocation2 + $0x88] sm:$0xff] %vm1527, %v2437
      %2769 = vst.msk [vmem:[#allocation2 + $0x90] sm:$0xff] %vm1527, %v2438
      %2770 = vst.msk [vmem:[#allocation2 + $0x98] sm:$0xff] %vm1527, %v2439
      %2771 = vst.msk [vmem:[#allocation2 + $0xa0] sm:$0xff] %vm1527, %v2440
      %2772 = vst.msk [vmem:[#allocation2 + $0xa8] sm:$0xff] %vm1527, %v2441
      %2773 = vst.msk [vmem:[#allocation2 + $0xb0] sm:$0xff] %vm1527, %v2442
      %2774 = vst.msk [vmem:[#allocation2 + $0xb8] sm:$0xff] %vm1527, %v2443
      %2775 = vst.msk [vmem:[#allocation2 + $0xc0] sm:$0xff] %vm1527, %v2444
      %2776 = vst.msk [vmem:[#allocation2 + $0xc8] sm:$0xff] %vm1527, %v2445
      %2777 = vst.msk [vmem:[#allocation2 + $0xd0] sm:$0xff] %vm1527, %v2446
      %2778 = vst.msk [vmem:[#allocation2 + $0xd8] sm:$0xff] %vm1527, %v2447
      %2779 = vst.msk [vmem:[#allocation2 + $0xe0] sm:$0xff] %vm1527, %v2448
      %2780 = vst.msk [vmem:[#allocation2 + $0xe8] sm:$0xff] %vm1527, %v2449
      %2781 = vst.msk [vmem:[#allocation2 + $0xf0] sm:$0xff] %vm1527, %v2450
      %2782 = vst.msk [vmem:[#allocation2 + $0xf8] sm:$0xff] %vm1527, %v2451
      %v2783 = vld [vmem:[#allocation2] sm:$0xff]
      %v2784 = vld [vmem:[#allocation2 + $0x8] sm:$0xff]
      %v2785 = vld [vmem:[#allocation2 + $0x10] sm:$0xff]
      %v2786 = vld [vmem:[#allocation2 + $0x18] sm:$0xff]
      %v2787 = vld [vmem:[#allocation2 + $0x20] sm:$0xff]
      %v2788 = vld [vmem:[#allocation2 + $0x28] sm:$0xff]
      %v2789 = vld [vmem:[#allocation2 + $0x30] sm:$0xff]
      %v2790 = vld [vmem:[#allocation2 + $0x38] sm:$0xff]
      %v2791 = vld [vmem:[#allocation2 + $0x40] sm:$0xff]
      %v2792 = vld [vmem:[#allocation2 + $0x48] sm:$0xff]
      %v2793 = vld [vmem:[#allocation2 + $0x50] sm:$0xff]
      %v2794 = vld [vmem:[#allocation2 + $0x58] sm:$0xff]
      %v2795 = vld [vmem:[#allocation2 + $0x60] sm:$0xff]
      %v2796 = vld [vmem:[#allocation2 + $0x68] sm:$0xff]
      %v2797 = vld [vmem:[#allocation2 + $0x70] sm:$0xff]
      %v2798 = vld [vmem:[#allocation2 + $0x78] sm:$0xff]
      %v2799 = vld [vmem:[#allocation2 + $0x80] sm:$0xff]
      %v2800 = vld [vmem:[#allocation2 + $0x88] sm:$0xff]
      %v2801 = vld [vmem:[#allocation2 + $0x90] sm:$0xff]
      %v2802 = vld [vmem:[#allocation2 + $0x98] sm:$0xff]
      %v2803 = vld [vmem:[#allocation2 + $0xa0] sm:$0xff]
      %v2804 = vld [vmem:[#allocation2 + $0xa8] sm:$0xff]
      %v2805 = vld [vmem:[#allocation2 + $0xb0] sm:$0xff]
      %v2806 = vld [vmem:[#allocation2 + $0xb8] sm:$0xff]
      %v2807 = vld [vmem:[#allocation2 + $0xc0] sm:$0xff]
      %v2808 = vld [vmem:[#allocation2 + $0xc8] sm:$0xff]
      %v2809 = vld [vmem:[#allocation2 + $0xd0] sm:$0xff]
      %v2810 = vld [vmem:[#allocation2 + $0xd8] sm:$0xff]
      %v2811 = vld [vmem:[#allocation2 + $0xe0] sm:$0xff]
      %v2812 = vld [vmem:[#allocation2 + $0xe8] sm:$0xff]
      %v2813 = vmax.f32 %v2783, %v2422
      %v2814 = vmax.f32 %v2784, %v2423
      %v2815 = vmax.f32 %v2785, %v2424
      %v2816 = vmax.f32 %v2786, %v2425
      %v2817 = vmax.f32 %v2787, %v2426
      %v2818 = vmax.f32 %v2788, %v2427
      %v2819 = vmax.f32 %v2789, %v2428
      %v2820 = vmax.f32 %v2790, %v2429
      %v2821 = vmax.f32 %v2791, %v2430
      %v2822 = vmax.f32 %v2792, %v2431
      %v2823 = vmax.f32 %v2793, %v2432
      %v2824 = vmax.f32 %v2794, %v2433
      %v2825 = vmax.f32 %v2795, %v2434
      %v2826 = vmax.f32 %v2796, %v2435
      %v2827 = vmax.f32 %v2797, %v2436
      %v2828 = vmax.f32 %v2798, %v2437
      %v2829 = vmax.f32 %v2799, %v2438
      %v2830 = vmax.f32 %v2800, %v2439
      %v2831 = vmax.f32 %v2801, %v2440
      %v2832 = vmax.f32 %v2802, %v2441
      %v2833 = vmax.f32 %v2803, %v2442
      %v2834 = vmax.f32 %v2804, %v2443
      %v2835 = vmax.f32 %v2805, %v2444
      %v2836 = vmax.f32 %v2806, %v2445
      %v2837 = vmax.f32 %v2807, %v2446
      %v2838 = vmax.f32 %v2808, %v2447
      %v2839 = vmax.f32 %v2809, %v2448
      %v2840 = vmax.f32 %v2810, %v2449
      %v2841 = vmax.f32 %v2811, %v2450
      %v2842 = vmax.f32 %v2812, %v2451
      %2843 = vst.msk [vmem:[#allocation2] sm:$0xff] %vm1527, %v2813
      %2844 = vst.msk [vmem:[#allocation2 + $0x8] sm:$0xff] %vm1527, %v2814
      %2845 = vst.msk [vmem:[#allocation2 + $0x10] sm:$0xff] %vm1527, %v2815
      %2846 = vst.msk [vmem:[#allocation2 + $0x18] sm:$0xff] %vm1527, %v2816
      %2847 = vst.msk [vmem:[#allocation2 + $0x20] sm:$0xff] %vm1527, %v2817
      %2848 = vst.msk [vmem:[#allocation2 + $0x28] sm:$0xff] %vm1527, %v2818
      %2849 = vst.msk [vmem:[#allocation2 + $0x30] sm:$0xff] %vm1527, %v2819
      %2850 = vst.msk [vmem:[#allocation2 + $0x38] sm:$0xff] %vm1527, %v2820
      %2851 = vst.msk [vmem:[#allocation2 + $0x40] sm:$0xff] %vm1527, %v2821
      %2852 = vst.msk [vmem:[#allocation2 + $0x48] sm:$0xff] %vm1527, %v2822
      %2853 = vst.msk [vmem:[#allocation2 + $0x50] sm:$0xff] %vm1527, %v2823
      %2854 = vst.msk [vmem:[#allocation2 + $0x58] sm:$0xff] %vm1527, %v2824
      %2855 = vst.msk [vmem:[#allocation2 + $0x60] sm:$0xff] %vm1527, %v2825
      %2856 = vst.msk [vmem:[#allocation2 + $0x68] sm:$0xff] %vm1527, %v2826
      %2857 = vst.msk [vmem:[#allocation2 + $0x70] sm:$0xff] %vm1527, %v2827
      %2858 = vst.msk [vmem:[#allocation2 + $0x78] sm:$0xff] %vm1527, %v2828
      %2859 = vst.msk [vmem:[#allocation2 + $0x80] sm:$0xff] %vm1527, %v2829
      %2860 = vst.msk [vmem:[#allocation2 + $0x88] sm:$0xff] %vm1527, %v2830
      %2861 = vst.msk [vmem:[#allocation2 + $0x90] sm:$0xff] %vm1527, %v2831
      %2862 = vst.msk [vmem:[#allocation2 + $0x98] sm:$0xff] %vm1527, %v2832
      %2863 = vst.msk [vmem:[#allocation2 + $0xa0] sm:$0xff] %vm1527, %v2833
      %2864 = vst.msk [vmem:[#allocation2 + $0xa8] sm:$0xff] %vm1527, %v2834
      %2865 = vst.msk [vmem:[#allocation2 + $0xb0] sm:$0xff] %vm1527, %v2835
      %2866 = vst.msk [vmem:[#allocation2 + $0xb8] sm:$0xff] %vm1527, %v2836
      %2867 = vst.msk [vmem:[#allocation2 + $0xc0] sm:$0xff] %vm1527, %v2837
      %2868 = vst.msk [vmem:[#allocation2 + $0xc8] sm:$0xff] %vm1527, %v2838
      %2869 = vst.msk [vmem:[#allocation2 + $0xd0] sm:$0xff] %vm1527, %v2839
      %2870 = vst.msk [vmem:[#allocation2 + $0xd8] sm:$0xff] %vm1527, %v2840
      %2871 = vst.msk [vmem:[#allocation2 + $0xe0] sm:$0xff] %vm1527, %v2841
      %2872 = vst.msk [vmem:[#allocation2 + $0xe8] sm:$0xff] %vm1527, %v2842
      %v2873 = vld [vmem:[#allocation2 + $0x10] sm:$0xff]
      %v2874 = vld [vmem:[#allocation2 + $0x18] sm:$0xff]
      %v2875 = vld [vmem:[#allocation2 + $0x20] sm:$0xff]
      %v2876 = vld [vmem:[#allocation2 + $0x28] sm:$0xff]
      %v2877 = vld [vmem:[#allocation2 + $0x30] sm:$0xff]
      %v2878 = vld [vmem:[#allocation2 + $0x38] sm:$0xff]
      %v2879 = vld [vmem:[#allocation2 + $0x40] sm:$0xff]
      %v2880 = vld [vmem:[#allocation2 + $0x48] sm:$0xff]
      %v2881 = vld [vmem:[#allocation2 + $0x50] sm:$0xff]
      %v2882 = vld [vmem:[#allocation2 + $0x58] sm:$0xff]
      %v2883 = vld [vmem:[#allocation2 + $0x60] sm:$0xff]
      %v2884 = vld [vmem:[#allocation2 + $0x68] sm:$0xff]
      %v2885 = vld [vmem:[#allocation2 + $0x70] sm:$0xff]
      %v2886 = vld [vmem:[#allocation2 + $0x78] sm:$0xff]
      %v2887 = vld [vmem:[#allocation2 + $0x80] sm:$0xff]
      %v2888 = vld [vmem:[#allocation2 + $0x88] sm:$0xff]
      %v2889 = vld [vmem:[#allocation2 + $0x90] sm:$0xff]
      %v2890 = vld [vmem:[#allocation2 + $0x98] sm:$0xff]
      %v2891 = vld [vmem:[#allocation2 + $0xa0] sm:$0xff]
      %v2892 = vld [vmem:[#allocation2 + $0xa8] sm:$0xff]
      %v2893 = vld [vmem:[#allocation2 + $0xb0] sm:$0xff]
      %v2894 = vld [vmem:[#allocation2 + $0xb8] sm:$0xff]
      %v2895 = vld [vmem:[#allocation2 + $0xc0] sm:$0xff]
      %v2896 = vld [vmem:[#allocation2 + $0xc8] sm:$0xff]
      %v2897 = vld [vmem:[#allocation2 + $0xd0] sm:$0xff]
      %v2898 = vld [vmem:[#allocation2 + $0xd8] sm:$0xff]
      %v2899 = vld [vmem:[#allocation2 + $0xe0] sm:$0xff]
      %v2900 = vld [vmem:[#allocation2 + $0xe8] sm:$0xff]
      %v2901 = vld [vmem:[#allocation2 + $0xf0] sm:$0xff]
      %v2902 = vld [vmem:[#allocation2 + $0xf8] sm:$0xff]
      %v2903 = vmax.f32 %v2873, %v2420
      %v2904 = vmax.f32 %v2874, %v2421
      %v2905 = vmax.f32 %v2875, %v2422
      %v2906 = vmax.f32 %v2876, %v2423
      %v2907 = vmax.f32 %v2877, %v2424
      %v2908 = vmax.f32 %v2878, %v2425
      %v2909 = vmax.f32 %v2879, %v2426
      %v2910 = vmax.f32 %v2880, %v2427
      %v2911 = vmax.f32 %v2881, %v2428
      %v2912 = vmax.f32 %v2882, %v2429
      %v2913 = vmax.f32 %v2883, %v2430
      %v2914 = vmax.f32 %v2884, %v2431
      %v2915 = vmax.f32 %v2885, %v2432
      %v2916 = vmax.f32 %v2886, %v2433
      %v2917 = vmax.f32 %v2887, %v2434
      %v2918 = vmax.f32 %v2888, %v2435
      %v2919 = vmax.f32 %v2889, %v2436
      %v2920 = vmax.f32 %v2890, %v2437
      %v2921 = vmax.f32 %v2891, %v2438
      %v2922 = vmax.f32 %v2892, %v2439
      %v2923 = vmax.f32 %v2893, %v2440
      %v2924 = vmax.f32 %v2894, %v2441
      %v2925 = vmax.f32 %v2895, %v2442
      %v2926 = vmax.f32 %v2896, %v2443
      %v2927 = vmax.f32 %v2897, %v2444
      %v2928 = vmax.f32 %v2898, %v2445
      %v2929 = vmax.f32 %v2899, %v2446
      %v2930 = vmax.f32 %v2900, %v2447
      %v2931 = vmax.f32 %v2901, %v2448
      %v2932 = vmax.f32 %v2902, %v2449
      %2933 = vst.msk [vmem:[#allocation2 + $0x10] sm:$0xff] %vm1527, %v2903
      %2934 = vst.msk [vmem:[#allocation2 + $0x18] sm:$0xff] %vm1527, %v2904
      %2935 = vst.msk [vmem:[#allocation2 + $0x20] sm:$0xff] %vm1527, %v2905
      %2936 = vst.msk [vmem:[#allocation2 + $0x28] sm:$0xff] %vm1527, %v2906
      %2937 = vst.msk [vmem:[#allocation2 + $0x30] sm:$0xff] %vm1527, %v2907
      %2938 = vst.msk [vmem:[#allocation2 + $0x38] sm:$0xff] %vm1527, %v2908
      %2939 = vst.msk [vmem:[#allocation2 + $0x40] sm:$0xff] %vm1527, %v2909
      %2940 = vst.msk [vmem:[#allocation2 + $0x48] sm:$0xff] %vm1527, %v2910
      %2941 = vst.msk [vmem:[#allocation2 + $0x50] sm:$0xff] %vm1527, %v2911
      %2942 = vst.msk [vmem:[#allocation2 + $0x58] sm:$0xff] %vm1527, %v2912
      %2943 = vst.msk [vmem:[#allocation2 + $0x60] sm:$0xff] %vm1527, %v2913
      %2944 = vst.msk [vmem:[#allocation2 + $0x68] sm:$0xff] %vm1527, %v2914
      %2945 = vst.msk [vmem:[#allocation2 + $0x70] sm:$0xff] %vm1527, %v2915
      %2946 = vst.msk [vmem:[#allocation2 + $0x78] sm:$0xff] %vm1527, %v2916
      %2947 = vst.msk [vmem:[#allocation2 + $0x80] sm:$0xff] %vm1527, %v2917
      %2948 = vst.msk [vmem:[#allocation2 + $0x88] sm:$0xff] %vm1527, %v2918
      %2949 = vst.msk [vmem:[#allocation2 + $0x90] sm:$0xff] %vm1527, %v2919
      %2950 = vst.msk [vmem:[#allocation2 + $0x98] sm:$0xff] %vm1527, %v2920
      %2951 = vst.msk [vmem:[#allocation2 + $0xa0] sm:$0xff] %vm1527, %v2921
      %2952 = vst.msk [vmem:[#allocation2 + $0xa8] sm:$0xff] %vm1527, %v2922
      %2953 = vst.msk [vmem:[#allocation2 + $0xb0] sm:$0xff] %vm1527, %v2923
      %2954 = vst.msk [vmem:[#allocation2 + $0xb8] sm:$0xff] %vm1527, %v2924
      %2955 = vst.msk [vmem:[#allocation2 + $0xc0] sm:$0xff] %vm1527, %v2925
      %2956 = vst.msk [vmem:[#allocation2 + $0xc8] sm:$0xff] %vm1527, %v2926
      %2957 = vst.msk [vmem:[#allocation2 + $0xd0] sm:$0xff] %vm1527, %v2927
      %2958 = vst.msk [vmem:[#allocation2 + $0xd8] sm:$0xff] %vm1527, %v2928
      %2959 = vst.msk [vmem:[#allocation2 + $0xe0] sm:$0xff] %vm1527, %v2929
      %2960 = vst.msk [vmem:[#allocation2 + $0xe8] sm:$0xff] %vm1527, %v2930
      %2961 = vst.msk [vmem:[#allocation2 + $0xf0] sm:$0xff] %vm1527, %v2931
      %2962 = vst.msk [vmem:[#allocation2 + $0xf8] sm:$0xff] %vm1527, %v2932
      %v2963 = vld [vmem:[#allocation2] sm:$0xff]
      %v2964 = vld [vmem:[#allocation2 + $0x8] sm:$0xff]
      %v2965 = vld [vmem:[#allocation2 + $0x10] sm:$0xff]
      %v2966 = vld [vmem:[#allocation2 + $0x18] sm:$0xff]
      %v2967 = vld [vmem:[#allocation2 + $0x20] sm:$0xff]
      %v2968 = vld [vmem:[#allocation2 + $0x28] sm:$0xff]
      %v2969 = vld [vmem:[#allocation2 + $0x30] sm:$0xff]
      %v2970 = vld [vmem:[#allocation2 + $0x38] sm:$0xff]
      %v2971 = vld [vmem:[#allocation2 + $0x40] sm:$0xff]
      %v2972 = vld [vmem:[#allocation2 + $0x48] sm:$0xff]
      %v2973 = vld [vmem:[#allocation2 + $0x50] sm:$0xff]
      %v2974 = vld [vmem:[#allocation2 + $0x58] sm:$0xff]
      %v2975 = vld [vmem:[#allocation2 + $0x60] sm:$0xff]
      %v2976 = vld [vmem:[#allocation2 + $0x68] sm:$0xff]
      %v2977 = vld [vmem:[#allocation2 + $0x70] sm:$0xff]
      %v2978 = vld [vmem:[#allocation2 + $0x78] sm:$0xff]
      %v2979 = vld [vmem:[#allocation2 + $0x80] sm:$0xff]
      %v2980 = vld [vmem:[#allocation2 + $0x88] sm:$0xff]
      %v2981 = vld [vmem:[#allocation2 + $0x90] sm:$0xff]
      %v2982 = vld [vmem:[#allocation2 + $0x98] sm:$0xff]
      %v2983 = vld [vmem:[#allocation2 + $0xa0] sm:$0xff]
      %v2984 = vld [vmem:[#allocation2 + $0xa8] sm:$0xff]
      %v2985 = vld [vmem:[#allocation2 + $0xb0] sm:$0xff]
      %v2986 = vld [vmem:[#allocation2 + $0xb8] sm:$0xff]
      %v2987 = vld [vmem:[#allocation2 + $0xc0] sm:$0xff]
      %v2988 = vld [vmem:[#allocation2 + $0xc8] sm:$0xff]
      %v2989 = vld [vmem:[#allocation2 + $0xd0] sm:$0xff]
      %v2990 = vld [vmem:[#allocation2 + $0xd8] sm:$0xff]
      %v2991 = vmax.f32 %v2963, %v2424
      %v2992 = vmax.f32 %v2964, %v2425
      %v2993 = vmax.f32 %v2965, %v2426
      %v2994 = vmax.f32 %v2966, %v2427
      %v2995 = vmax.f32 %v2967, %v2428
      %v2996 = vmax.f32 %v2968, %v2429
      %v2997 = vmax.f32 %v2969, %v2430
      %v2998 = vmax.f32 %v2970, %v2431
      %v2999 = vmax.f32 %v2971, %v2432
      %v3000 = vmax.f32 %v2972, %v2433
      %v3001 = vmax.f32 %v2973, %v2434
      %v3002 = vmax.f32 %v2974, %v2435
      %v3003 = vmax.f32 %v2975, %v2436
      %v3004 = vmax.f32 %v2976, %v2437
      %v3005 = vmax.f32 %v2977, %v2438
      %v3006 = vmax.f32 %v2978, %v2439
      %v3007 = vmax.f32 %v2979, %v2440
      %v3008 = vmax.f32 %v2980, %v2441
      %v3009 = vmax.f32 %v2981, %v2442
      %v3010 = vmax.f32 %v2982, %v2443
      %v3011 = vmax.f32 %v2983, %v2444
      %v3012 = vmax.f32 %v2984, %v2445
      %v3013 = vmax.f32 %v2985, %v2446
      %v3014 = vmax.f32 %v2986, %v2447
      %v3015 = vmax.f32 %v2987, %v2448
      %v3016 = vmax.f32 %v2988, %v2449
      %v3017 = vmax.f32 %v2989, %v2450
      %v3018 = vmax.f32 %v2990, %v2451
      %3019 = vst.msk [vmem:[#allocation2] sm:$0xff] %vm1527, %v2991
      %3020 = vst.msk [vmem:[#allocation2 + $0x8] sm:$0xff] %vm1527, %v2992
      %3021 = vst.msk [vmem:[#allocation2 + $0x10] sm:$0xff] %vm1527, %v2993
      %3022 = vst.msk [vmem:[#allocation2 + $0x18] sm:$0xff] %vm1527, %v2994
      %3023 = vst.msk [vmem:[#allocation2 + $0x20] sm:$0xff] %vm1527, %v2995
      %3024 = vst.msk [vmem:[#allocation2 + $0x28] sm:$0xff] %vm1527, %v2996
      %3025 = vst.msk [vmem:[#allocation2 + $0x30] sm:$0xff] %vm1527, %v2997
      %3026 = vst.msk [vmem:[#allocation2 + $0x38] sm:$0xff] %vm1527, %v2998
      %3027 = vst.msk [vmem:[#allocation2 + $0x40] sm:$0xff] %vm1527, %v2999
      %3028 = vst.msk [vmem:[#allocation2 + $0x48] sm:$0xff] %vm1527, %v3000
      %3029 = vst.msk [vmem:[#allocation2 + $0x50] sm:$0xff] %vm1527, %v3001
      %3030 = vst.msk [vmem:[#allocation2 + $0x58] sm:$0xff] %vm1527, %v3002
      %3031 = vst.msk [vmem:[#allocation2 + $0x60] sm:$0xff] %vm1527, %v3003
      %3032 = vst.msk [vmem:[#allocation2 + $0x68] sm:$0xff] %vm1527, %v3004
      %3033 = vst.msk [vmem:[#allocation2 + $0x70] sm:$0xff] %vm1527, %v3005
      %3034 = vst.msk [vmem:[#allocation2 + $0x78] sm:$0xff] %vm1527, %v3006
      %3035 = vst.msk [vmem:[#allocation2 + $0x80] sm:$0xff] %vm1527, %v3007
      %3036 = vst.msk [vmem:[#allocation2 + $0x88] sm:$0xff] %vm1527, %v3008
      %3037 = vst.msk [vmem:[#allocation2 + $0x90] sm:$0xff] %vm1527, %v3009
      %3038 = vst.msk [vmem:[#allocation2 + $0x98] sm:$0xff] %vm1527, %v3010
      %3039 = vst.msk [vmem:[#allocation2 + $0xa0] sm:$0xff] %vm1527, %v3011
      %3040 = vst.msk [vmem:[#allocation2 + $0xa8] sm:$0xff] %vm1527, %v3012
      %3041 = vst.msk [vmem:[#allocation2 + $0xb0] sm:$0xff] %vm1527, %v3013
      %3042 = vst.msk [vmem:[#allocation2 + $0xb8] sm:$0xff] %vm1527, %v3014
      %3043 = vst.msk [vmem:[#allocation2 + $0xc0] sm:$0xff] %vm1527, %v3015
      %3044 = vst.msk [vmem:[#allocation2 + $0xc8] sm:$0xff] %vm1527, %v3016
      %3045 = vst.msk [vmem:[#allocation2 + $0xd0] sm:$0xff] %vm1527, %v3017
      %3046 = vst.msk [vmem:[#allocation2 + $0xd8] sm:$0xff] %vm1527, %v3018
      %v3047 = vld [vmem:[#allocation2 + $0x20] sm:$0xff]
      %v3048 = vld [vmem:[#allocation2 + $0x28] sm:$0xff]
      %v3049 = vld [vmem:[#allocation2 + $0x30] sm:$0xff]
      %v3050 = vld [vmem:[#allocation2 + $0x38] sm:$0xff]
      %v3051 = vld [vmem:[#allocation2 + $0x40] sm:$0xff]
      %v3052 = vld [vmem:[#allocation2 + $0x48] sm:$0xff]
      %v3053 = vld [vmem:[#allocation2 + $0x50] sm:$0xff]
      %v3054 = vld [vmem:[#allocation2 + $0x58] sm:$0xff]
      %v3055 = vld [vmem:[#allocation2 + $0x60] sm:$0xff]
      %v3056 = vld [vmem:[#allocation2 + $0x68] sm:$0xff]
      %v3057 = vld [vmem:[#allocation2 + $0x70] sm:$0xff]
      %v3058 = vld [vmem:[#allocation2 + $0x78] sm:$0xff]
      %v3059 = vld [vmem:[#allocation2 + $0x80] sm:$0xff]
      %v3060 = vld [vmem:[#allocation2 + $0x88] sm:$0xff]
      %v3061 = vld [vmem:[#allocation2 + $0x90] sm:$0xff]
      %v3062 = vld [vmem:[#allocation2 + $0x98] sm:$0xff]
      %v3063 = vld [vmem:[#allocation2 + $0xa0] sm:$0xff]
      %v3064 = vld [vmem:[#allocation2 + $0xa8] sm:$0xff]
      %v3065 = vld [vmem:[#allocation2 + $0xb0] sm:$0xff]
      %v3066 = vld [vmem:[#allocation2 + $0xb8] sm:$0xff]
      %v3067 = vld [vmem:[#allocation2 + $0xc0] sm:$0xff]
      %v3068 = vld [vmem:[#allocation2 + $0xc8] sm:$0xff]
      %v3069 = vld [vmem:[#allocation2 + $0xd0] sm:$0xff]
      %v3070 = vld [vmem:[#allocation2 + $0xd8] sm:$0xff]
      %v3071 = vld [vmem:[#allocation2 + $0xe0] sm:$0xff]
      %v3072 = vld [vmem:[#allocation2 + $0xe8] sm:$0xff]
      %v3073 = vld [vmem:[#allocation2 + $0xf0] sm:$0xff]
      %v3074 = vld [vmem:[#allocation2 + $0xf8] sm:$0xff]
      %v3075 = vmax.f32 %v3047, %v2420
      %v3076 = vmax.f32 %v3048, %v2421
      %v3077 = vmax.f32 %v3049, %v2422
      %v3078 = vmax.f32 %v3050, %v2423
      %v3079 = vmax.f32 %v3051, %v2424
      %v3080 = vmax.f32 %v3052, %v2425
      %v3081 = vmax.f32 %v3053, %v2426
      %v3082 = vmax.f32 %v3054, %v2427
      %v3083 = vmax.f32 %v3055, %v2428
      %v3084 = vmax.f32 %v3056, %v2429
      %v3085 = vmax.f32 %v3057, %v2430
      %v3086 = vmax.f32 %v3058, %v2431
      %v3087 = vmax.f32 %v3059, %v2432
      %v3088 = vmax.f32 %v3060, %v2433
      %v3089 = vmax.f32 %v3061, %v2434
      %v3090 = vmax.f32 %v3062, %v2435
      %v3091 = vmax.f32 %v3063, %v2436
      %v3092 = vmax.f32 %v3064, %v2437
      %v3093 = vmax.f32 %v3065, %v2438
      %v3094 = vmax.f32 %v3066, %v2439
      %v3095 = vmax.f32 %v3067, %v2440
      %v3096 = vmax.f32 %v3068, %v2441
      %v3097 = vmax.f32 %v3069, %v2442
      %v3098 = vmax.f32 %v3070, %v2443
      %v3099 = vmax.f32 %v3071, %v2444
      %v3100 = vmax.f32 %v3072, %v2445
      %v3101 = vmax.f32 %v3073, %v2446
      %v3102 = vmax.f32 %v3074, %v2447
      %3103 = vst.msk [vmem:[#allocation2 + $0x20] sm:$0xff] %vm1527, %v3075
      %3104 = vst.msk [vmem:[#allocation2 + $0x28] sm:$0xff] %vm1527, %v3076
      %3105 = vst.msk [vmem:[#allocation2 + $0x30] sm:$0xff] %vm1527, %v3077
      %3106 = vst.msk [vmem:[#allocation2 + $0x38] sm:$0xff] %vm1527, %v3078
      %3107 = vst.msk [vmem:[#allocation2 + $0x40] sm:$0xff] %vm1527, %v3079
      %3108 = vst.msk [vmem:[#allocation2 + $0x48] sm:$0xff] %vm1527, %v3080
      %3109 = vst.msk [vmem:[#allocation2 + $0x50] sm:$0xff] %vm1527, %v3081
      %3110 = vst.msk [vmem:[#allocation2 + $0x58] sm:$0xff] %vm1527, %v3082
      %3111 = vst.msk [vmem:[#allocation2 + $0x60] sm:$0xff] %vm1527, %v3083
      %3112 = vst.msk [vmem:[#allocation2 + $0x68] sm:$0xff] %vm1527, %v3084
      %3113 = vst.msk [vmem:[#allocation2 + $0x70] sm:$0xff] %vm1527, %v3085
      %3114 = vst.msk [vmem:[#allocation2 + $0x78] sm:$0xff] %vm1527, %v3086
      %3115 = vst.msk [vmem:[#allocation2 + $0x80] sm:$0xff] %vm1527, %v3087
      %3116 = vst.msk [vmem:[#allocation2 + $0x88] sm:$0xff] %vm1527, %v3088
      %3117 = vst.msk [vmem:[#allocation2 + $0x90] sm:$0xff] %vm1527, %v3089
      %3118 = vst.msk [vmem:[#allocation2 + $0x98] sm:$0xff] %vm1527, %v3090
      %3119 = vst.msk [vmem:[#allocation2 + $0xa0] sm:$0xff] %vm1527, %v3091
      %3120 = vst.msk [vmem:[#allocation2 + $0xa8] sm:$0xff] %vm1527, %v3092
      %3121 = vst.msk [vmem:[#allocation2 + $0xb0] sm:$0xff] %vm1527, %v3093
      %3122 = vst.msk [vmem:[#allocation2 + $0xb8] sm:$0xff] %vm1527, %v3094
      %3123 = vst.msk [vmem:[#allocation2 + $0xc0] sm:$0xff] %vm1527, %v3095
      %3124 = vst.msk [vmem:[#allocation2 + $0xc8] sm:$0xff] %vm1527, %v3096
      %3125 = vst.msk [vmem:[#allocation2 + $0xd0] sm:$0xff] %vm1527, %v3097
      %3126 = vst.msk [vmem:[#allocation2 + $0xd8] sm:$0xff] %vm1527, %v3098
      %3127 = vst.msk [vmem:[#allocation2 + $0xe0] sm:$0xff] %vm1527, %v3099
      %3128 = vst.msk [vmem:[#allocation2 + $0xe8] sm:$0xff] %vm1527, %v3100
      %3129 = vst.msk [vmem:[#allocation2 + $0xf0] sm:$0xff] %vm1527, %v3101
      %3130 = vst.msk [vmem:[#allocation2 + $0xf8] sm:$0xff] %vm1527, %v3102
      %v3131 = vld [vmem:[#allocation2] sm:$0xff]
      %v3132 = vld [vmem:[#allocation2 + $0x8] sm:$0xff]
      %v3133 = vld [vmem:[#allocation2 + $0x10] sm:$0xff]
      %v3134 = vld [vmem:[#allocation2 + $0x18] sm:$0xff]
      %v3135 = vld [vmem:[#allocation2 + $0x20] sm:$0xff]
      %v3136 = vld [vmem:[#allocation2 + $0x28] sm:$0xff]
      %v3137 = vld [vmem:[#allocation2 + $0x30] sm:$0xff]
      %v3138 = vld [vmem:[#allocation2 + $0x38] sm:$0xff]
      %v3139 = vld [vmem:[#allocation2 + $0x40] sm:$0xff]
      %v3140 = vld [vmem:[#allocation2 + $0x48] sm:$0xff]
      %v3141 = vld [vmem:[#allocation2 + $0x50] sm:$0xff]
      %v3142 = vld [vmem:[#allocation2 + $0x58] sm:$0xff]
      %v3143 = vld [vmem:[#allocation2 + $0x60] sm:$0xff]
      %v3144 = vld [vmem:[#allocation2 + $0x68] sm:$0xff]
      %v3145 = vld [vmem:[#allocation2 + $0x70] sm:$0xff]
      %v3146 = vld [vmem:[#allocation2 + $0x78] sm:$0xff]
      %v3147 = vld [vmem:[#allocation2 + $0x80] sm:$0xff]
      %v3148 = vld [vmem:[#allocation2 + $0x88] sm:$0xff]
      %v3149 = vld [vmem:[#allocation2 + $0x90] sm:$0xff]
      %v3150 = vld [vmem:[#allocation2 + $0x98] sm:$0xff]
      %v3151 = vld [vmem:[#allocation2 + $0xa0] sm:$0xff]
      %v3152 = vld [vmem:[#allocation2 + $0xa8] sm:$0xff]
      %v3153 = vld [vmem:[#allocation2 + $0xb0] sm:$0xff]
      %v3154 = vld [vmem:[#allocation2 + $0xb8] sm:$0xff]
      %v3155 = vld [vmem:[#allocation2 + $0xc0] sm:$0xff]
      %v3156 = vld [vmem:[#allocation2 + $0xc8] sm:$0xff]
      %v3157 = vld [vmem:[#allocation2 + $0xd0] sm:$0xff]
      %v3158 = vld [vmem:[#allocation2 + $0xd8] sm:$0xff]
      %v3159 = vld [vmem:[#allocation2 + $0xe0] sm:$0xff]
      %v3160 = vld [vmem:[#allocation2 + $0xe8] sm:$0xff]
      %v3161 = vld [vmem:[#allocation2 + $0xf0] sm:$0xff]
      %v3162 = vld [vmem:[#allocation2 + $0xf8] sm:$0xff]
      %v3163 = vrot.slane %v3131, 7
      %v3164 = vrot.slane %v3132, 7
      %v3165 = vrot.slane %v3133, 7
      %v3166 = vrot.slane %v3134, 7
      %v3167 = vrot.slane %v3135, 7
      %v3168 = vrot.slane %v3136, 7
      %v3169 = vrot.slane %v3137, 7
      %v3170 = vrot.slane %v3138, 7
      %v3171 = vrot.slane %v3139, 7
      %v3172 = vrot.slane %v3140, 7
      %v3173 = vrot.slane %v3141, 7
      %v3174 = vrot.slane %v3142, 7
      %v3175 = vrot.slane %v3143, 7
      %v3176 = vrot.slane %v3144, 7
      %v3177 = vrot.slane %v3145, 7
      %v3178 = vrot.slane %v3146, 7
      %v3179 = vrot.slane %v3147, 7
      %v3180 = vrot.slane %v3148, 7
      %v3181 = vrot.slane %v3149, 7
      %v3182 = vrot.slane %v3150, 7
      %v3183 = vrot.slane %v3151, 7
      %v3184 = vrot.slane %v3152, 7
      %v3185 = vrot.slane %v3153, 7
      %v3186 = vrot.slane %v3154, 7
      %v3187 = vrot.slane %v3155, 7
      %v3188 = vrot.slane %v3156, 7
      %v3189 = vrot.slane %v3157, 7
      %v3190 = vrot.slane %v3158, 7
      %v3191 = vrot.slane %v3159, 7
      %v3192 = vrot.slane %v3160, 7
      %v3193 = vrot.slane %v3161, 7
      %v3194 = vrot.slane %v3162, 7
      %v3195 = vsel %vm1154, %v3193, %v3194
      %v3196 = vsel %vm1154, %v3192, %v3193
      %v3197 = vsel %vm1154, %v3191, %v3192
      %v3198 = vsel %vm1154, %v3190, %v3191
      %v3199 = vsel %vm1154, %v3189, %v3190
      %v3200 = vsel %vm1154, %v3188, %v3189
      %v3201 = vsel %vm1154, %v3187, %v3188
      %v3202 = vsel %vm1154, %v3186, %v3187
      %v3203 = vsel %vm1154, %v3185, %v3186
      %v3204 = vsel %vm1154, %v3184, %v3185
      %v3205 = vsel %vm1154, %v3183, %v3184
      %v3206 = vsel %vm1154, %v3182, %v3183
      %v3207 = vsel %vm1154, %v3181, %v3182
      %v3208 = vsel %vm1154, %v3180, %v3181
      %v3209 = vsel %vm1154, %v3179, %v3180
      %v3210 = vsel %vm1154, %v3178, %v3179
      %v3211 = vsel %vm1154, %v3177, %v3178
      %v3212 = vsel %vm1154, %v3176, %v3177
      %v3213 = vsel %vm1154, %v3175, %v3176
      %v3214 = vsel %vm1154, %v3174, %v3175
      %v3215 = vsel %vm1154, %v3173, %v3174
      %v3216 = vsel %vm1154, %v3172, %v3173
      %v3217 = vsel %vm1154, %v3171, %v3172
      %v3218 = vsel %vm1154, %v3170, %v3171
      %v3219 = vsel %vm1154, %v3169, %v3170
      %v3220 = vsel %vm1154, %v3168, %v3169
      %v3221 = vsel %vm1154, %v3167, %v3168
      %v3222 = vsel %vm1154, %v3166, %v3167
      %v3223 = vsel %vm1154, %v3165, %v3166
      %v3224 = vsel %vm1154, %v3164, %v3165
      %v3225 = vsel %vm1154, %v3163, %v3164
      %v3226 = vsel %vm1154, %v3194, %v3163
      %v3227 = vsel %vm1187, %v3226, -inf
      %v3228 = vsel %vm1188, %v3225, -inf
      %v3229 = vsel %vm1189, %v3224, -inf
      %v3230 = vsel %vm1190, %v3223, -inf
      %v3231 = vsel %vm1191, %v3222, -inf
      %v3232 = vsel %vm1192, %v3221, -inf
      %v3233 = vsel %vm1193, %v3220, -inf
      %v3234 = vsel %vm1194, %v3219, -inf
      %v3235 = vsel %vm1195, %v3218, -inf
      %v3236 = vsel %vm1196, %v3217, -inf
      %v3237 = vsel %vm1197, %v3216, -inf
      %v3238 = vsel %vm1198, %v3215, -inf
      %v3239 = vsel %vm1199, %v3214, -inf
      %v3240 = vsel %vm1200, %v3213, -inf
      %v3241 = vsel %vm1201, %v3212, -inf
      %v3242 = vsel %vm1202, %v3211, -inf
      %v3243 = vsel %vm1203, %v3210, -inf
      %v3244 = vsel %vm1204, %v3209, -inf
      %v3245 = vsel %vm1205, %v3208, -inf
      %v3246 = vsel %vm1206, %v3207, -inf
      %v3247 = vsel %vm1207, %v3206, -inf
      %v3248 = vsel %vm1208, %v3205, -inf
      %v3249 = vsel %vm1209, %v3204, -inf
      %v3250 = vsel %vm1210, %v3203, -inf
      %v3251 = vsel %vm1211, %v3202, -inf
      %v3252 = vsel %vm1212, %v3201, -inf
      %v3253 = vsel %vm1213, %v3200, -inf
      %v3254 = vsel %vm1214, %v3199, -inf
      %v3255 = vsel %vm1215, %v3198, -inf
      %v3256 = vsel %vm1216, %v3197, -inf
      %v3257 = vsel %vm1217, %v3196, -inf
      %v3258 = vsel %vm1218, %v3195, -inf
      %v3259 = vmax.f32 %v3131, %v3227
      %v3260 = vmax.f32 %v3132, %v3228
      %v3261 = vmax.f32 %v3133, %v3229
      %v3262 = vmax.f32 %v3134, %v3230
      %v3263 = vmax.f32 %v3135, %v3231
      %v3264 = vmax.f32 %v3136, %v3232
      %v3265 = vmax.f32 %v3137, %v3233
      %v3266 = vmax.f32 %v3138, %v3234
      %v3267 = vmax.f32 %v3139, %v3235
      %v3268 = vmax.f32 %v3140, %v3236
      %v3269 = vmax.f32 %v3141, %v3237
      %v3270 = vmax.f32 %v3142, %v3238
      %v3271 = vmax.f32 %v3143, %v3239
      %v3272 = vmax.f32 %v3144, %v3240
      %v3273 = vmax.f32 %v3145, %v3241
      %v3274 = vmax.f32 %v3146, %v3242
      %v3275 = vmax.f32 %v3147, %v3243
      %v3276 = vmax.f32 %v3148, %v3244
      %v3277 = vmax.f32 %v3149, %v3245
      %v3278 = vmax.f32 %v3150, %v3246
      %v3279 = vmax.f32 %v3151, %v3247
      %v3280 = vmax.f32 %v3152, %v3248
      %v3281 = vmax.f32 %v3153, %v3249
      %v3282 = vmax.f32 %v3154, %v3250
      %v3283 = vmax.f32 %v3155, %v3251
      %v3284 = vmax.f32 %v3156, %v3252
      %v3285 = vmax.f32 %v3157, %v3253
      %v3286 = vmax.f32 %v3158, %v3254
      %v3287 = vmax.f32 %v3159, %v3255
      %v3288 = vmax.f32 %v3160, %v3256
      %v3289 = vmax.f32 %v3161, %v3257
      %v3290 = vmax.f32 %v3162, %v3258
      %v3291 = vrot.slane %v3131, 6
      %v3292 = vrot.slane %v3132, 6
      %v3293 = vrot.slane %v3133, 6
      %v3294 = vrot.slane %v3134, 6
      %v3295 = vrot.slane %v3135, 6
      %v3296 = vrot.slane %v3136, 6
      %v3297 = vrot.slane %v3137, 6
      %v3298 = vrot.slane %v3138, 6
      %v3299 = vrot.slane %v3139, 6
      %v3300 = vrot.slane %v3140, 6
      %v3301 = vrot.slane %v3141, 6
      %v3302 = vrot.slane %v3142, 6
      %v3303 = vrot.slane %v3143, 6
      %v3304 = vrot.slane %v3144, 6
      %v3305 = vrot.slane %v3145, 6
      %v3306 = vrot.slane %v3146, 6
      %v3307 = vrot.slane %v3147, 6
      %v3308 = vrot.slane %v3148, 6
      %v3309 = vrot.slane %v3149, 6
      %v3310 = vrot.slane %v3150, 6
      %v3311 = vrot.slane %v3151, 6
      %v3312 = vrot.slane %v3152, 6
      %v3313 = vrot.slane %v3153, 6
      %v3314 = vrot.slane %v3154, 6
      %v3315 = vrot.slane %v3155, 6
      %v3316 = vrot.slane %v3156, 6
      %v3317 = vrot.slane %v3157, 6
      %v3318 = vrot.slane %v3158, 6
      %v3319 = vrot.slane %v3159, 6
      %v3320 = vrot.slane %v3160, 6
      %v3321 = vrot.slane %v3161, 6
      %v3322 = vrot.slane %v3162, 6
      %v3323 = vsel %vm1251, %v3321, %v3322
      %v3324 = vsel %vm1251, %v3320, %v3321
      %v3325 = vsel %vm1251, %v3319, %v3320
      %v3326 = vsel %vm1251, %v3318, %v3319
      %v3327 = vsel %vm1251, %v3317, %v3318
      %v3328 = vsel %vm1251, %v3316, %v3317
      %v3329 = vsel %vm1251, %v3315, %v3316
      %v3330 = vsel %vm1251, %v3314, %v3315
      %v3331 = vsel %vm1251, %v3313, %v3314
      %v3332 = vsel %vm1251, %v3312, %v3313
      %v3333 = vsel %vm1251, %v3311, %v3312
      %v3334 = vsel %vm1251, %v3310, %v3311
      %v3335 = vsel %vm1251, %v3309, %v3310
      %v3336 = vsel %vm1251, %v3308, %v3309
      %v3337 = vsel %vm1251, %v3307, %v3308
      %v3338 = vsel %vm1251, %v3306, %v3307
      %v3339 = vsel %vm1251, %v3305, %v3306
      %v3340 = vsel %vm1251, %v3304, %v3305
      %v3341 = vsel %vm1251, %v3303, %v3304
      %v3342 = vsel %vm1251, %v3302, %v3303
      %v3343 = vsel %vm1251, %v3301, %v3302
      %v3344 = vsel %vm1251, %v3300, %v3301
      %v3345 = vsel %vm1251, %v3299, %v3300
      %v3346 = vsel %vm1251, %v3298, %v3299
      %v3347 = vsel %vm1251, %v3297, %v3298
      %v3348 = vsel %vm1251, %v3296, %v3297
      %v3349 = vsel %vm1251, %v3295, %v3296
      %v3350 = vsel %vm1251, %v3294, %v3295
      %v3351 = vsel %vm1251, %v3293, %v3294
      %v3352 = vsel %vm1251, %v3292, %v3293
      %v3353 = vsel %vm1251, %v3291, %v3292
      %v3354 = vsel %vm1251, %v3322, %v3291
      %v3355 = vsel %vm1284, %v3354, -inf
      %v3356 = vsel %vm1285, %v3353, -inf
      %v3357 = vsel %vm1286, %v3352, -inf
      %v3358 = vsel %vm1287, %v3351, -inf
      %v3359 = vsel %vm1288, %v3350, -inf
      %v3360 = vsel %vm1289, %v3349, -inf
      %v3361 = vsel %vm1290, %v3348, -inf
      %v3362 = vsel %vm1291, %v3347, -inf
      %v3363 = vsel %vm1292, %v3346, -inf
      %v3364 = vsel %vm1293, %v3345, -inf
      %v3365 = vsel %vm1294, %v3344, -inf
      %v3366 = vsel %vm1295, %v3343, -inf
      %v3367 = vsel %vm1296, %v3342, -inf
      %v3368 = vsel %vm1297, %v3341, -inf
      %v3369 = vsel %vm1298, %v3340, -inf
      %v3370 = vsel %vm1299, %v3339, -inf
      %v3371 = vsel %vm1300, %v3338, -inf
      %v3372 = vsel %vm1301, %v3337, -inf
      %v3373 = vsel %vm1302, %v3336, -inf
      %v3374 = vsel %vm1303, %v3335, -inf
      %v3375 = vsel %vm1304, %v3334, -inf
      %v3376 = vsel %vm1305, %v3333, -inf
      %v3377 = vsel %vm1306, %v3332, -inf
      %v3378 = vsel %vm1307, %v3331, -inf
      %v3379 = vsel %vm1308, %v3330, -inf
      %v3380 = vsel %vm1309, %v3329, -inf
      %v3381 = vsel %vm1310, %v3328, -inf
      %v3382 = vsel %vm1311, %v3327, -inf
      %v3383 = vsel %vm1312, %v3326, -inf
      %v3384 = vsel %vm1313, %v3325, -inf
      %v3385 = vsel %vm1314, %v3324, -inf
      %v3386 = vsel %vm1315, %v3323, -inf
      %v3387 = vmax.f32 %v3259, %v3355
      %v3388 = vmax.f32 %v3260, %v3356
      %v3389 = vmax.f32 %v3261, %v3357
      %v3390 = vmax.f32 %v3262, %v3358
      %v3391 = vmax.f32 %v3263, %v3359
      %v3392 = vmax.f32 %v3264, %v3360
      %v3393 = vmax.f32 %v3265, %v3361
      %v3394 = vmax.f32 %v3266, %v3362
      %v3395 = vmax.f32 %v3267, %v3363
      %v3396 = vmax.f32 %v3268, %v3364
      %v3397 = vmax.f32 %v3269, %v3365
      %v3398 = vmax.f32 %v3270, %v3366
      %v3399 = vmax.f32 %v3271, %v3367
      %v3400 = vmax.f32 %v3272, %v3368
      %v3401 = vmax.f32 %v3273, %v3369
      %v3402 = vmax.f32 %v3274, %v3370
      %v3403 = vmax.f32 %v3275, %v3371
      %v3404 = vmax.f32 %v3276, %v3372
      %v3405 = vmax.f32 %v3277, %v3373
      %v3406 = vmax.f32 %v3278, %v3374
      %v3407 = vmax.f32 %v3279, %v3375
      %v3408 = vmax.f32 %v3280, %v3376
      %v3409 = vmax.f32 %v3281, %v3377
      %v3410 = vmax.f32 %v3282, %v3378
      %v3411 = vmax.f32 %v3283, %v3379
      %v3412 = vmax.f32 %v3284, %v3380
      %v3413 = vmax.f32 %v3285, %v3381
      %v3414 = vmax.f32 %v3286, %v3382
      %v3415 = vmax.f32 %v3287, %v3383
      %v3416 = vmax.f32 %v3288, %v3384
      %v3417 = vmax.f32 %v3289, %v3385
      %v3418 = vmax.f32 %v3290, %v3386
      %v3419 = vrot.slane %v3131, 1
      %v3420 = vrot.slane %v3132, 1
      %v3421 = vrot.slane %v3133, 1
      %v3422 = vrot.slane %v3134, 1
      %v3423 = vrot.slane %v3135, 1
      %v3424 = vrot.slane %v3136, 1
      %v3425 = vrot.slane %v3137, 1
      %v3426 = vrot.slane %v3138, 1
      %v3427 = vrot.slane %v3139, 1
      %v3428 = vrot.slane %v3140, 1
      %v3429 = vrot.slane %v3141, 1
      %v3430 = vrot.slane %v3142, 1
      %v3431 = vrot.slane %v3143, 1
      %v3432 = vrot.slane %v3144, 1
      %v3433 = vrot.slane %v3145, 1
      %v3434 = vrot.slane %v3146, 1
      %v3435 = vrot.slane %v3147, 1
      %v3436 = vrot.slane %v3148, 1
      %v3437 = vrot.slane %v3149, 1
      %v3438 = vrot.slane %v3150, 1
      %v3439 = vrot.slane %v3151, 1
      %v3440 = vrot.slane %v3152, 1
      %v3441 = vrot.slane %v3153, 1
      %v3442 = vrot.slane %v3154, 1
      %v3443 = vrot.slane %v3155, 1
      %v3444 = vrot.slane %v3156, 1
      %v3445 = vrot.slane %v3157, 1
      %v3446 = vrot.slane %v3158, 1
      %v3447 = vrot.slane %v3159, 1
      %v3448 = vrot.slane %v3160, 1
      %v3449 = vrot.slane %v3161, 1
      %v3450 = vrot.slane %v3162, 1
      %v3451 = vsel %vm1348, %v3449, %v3450
      %v3452 = vsel %vm1348, %v3448, %v3449
      %v3453 = vsel %vm1348, %v3447, %v3448
      %v3454 = vsel %vm1348, %v3446, %v3447
      %v3455 = vsel %vm1348, %v3445, %v3446
      %v3456 = vsel %vm1348, %v3444, %v3445
      %v3457 = vsel %vm1348, %v3443, %v3444
      %v3458 = vsel %vm1348, %v3442, %v3443
      %v3459 = vsel %vm1348, %v3441, %v3442
      %v3460 = vsel %vm1348, %v3440, %v3441
      %v3461 = vsel %vm1348, %v3439, %v3440
      %v3462 = vsel %vm1348, %v3438, %v3439
      %v3463 = vsel %vm1348, %v3437, %v3438
      %v3464 = vsel %vm1348, %v3436, %v3437
      %v3465 = vsel %vm1348, %v3435, %v3436
      %v3466 = vsel %vm1348, %v3434, %v3435
      %v3467 = vsel %vm1348, %v3433, %v3434
      %v3468 = vsel %vm1348, %v3432, %v3433
      %v3469 = vsel %vm1348, %v3431, %v3432
      %v3470 = vsel %vm1348, %v3430, %v3431
      %v3471 = vsel %vm1348, %v3429, %v3430
      %v3472 = vsel %vm1348, %v3428, %v3429
      %v3473 = vsel %vm1348, %v3427, %v3428
      %v3474 = vsel %vm1348, %v3426, %v3427
      %v3475 = vsel %vm1348, %v3425, %v3426
      %v3476 = vsel %vm1348, %v3424, %v3425
      %v3477 = vsel %vm1348, %v3423, %v3424
      %v3478 = vsel %vm1348, %v3422, %v3423
      %v3479 = vsel %vm1348, %v3421, %v3422
      %v3480 = vsel %vm1348, %v3420, %v3421
      %v3481 = vsel %vm1348, %v3419, %v3420
      %v3482 = vsel %vm1348, %v3450, %v3419
      %v3483 = vsel %vm1381, %v3481, -inf
      %v3484 = vsel %vm1382, %v3480, -inf
      %v3485 = vsel %vm1383, %v3479, -inf
      %v3486 = vsel %vm1384, %v3478, -inf
      %v3487 = vsel %vm1385, %v3477, -inf
      %v3488 = vsel %vm1386, %v3476, -inf
      %v3489 = vsel %vm1387, %v3475, -inf
      %v3490 = vsel %vm1388, %v3474, -inf
      %v3491 = vsel %vm1389, %v3473, -inf
      %v3492 = vsel %vm1390, %v3472, -inf
      %v3493 = vsel %vm1391, %v3471, -inf
      %v3494 = vsel %vm1392, %v3470, -inf
      %v3495 = vsel %vm1393, %v3469, -inf
      %v3496 = vsel %vm1394, %v3468, -inf
      %v3497 = vsel %vm1395, %v3467, -inf
      %v3498 = vsel %vm1396, %v3466, -inf
      %v3499 = vsel %vm1397, %v3465, -inf
      %v3500 = vsel %vm1398, %v3464, -inf
      %v3501 = vsel %vm1399, %v3463, -inf
      %v3502 = vsel %vm1400, %v3462, -inf
      %v3503 = vsel %vm1401, %v3461, -inf
      %v3504 = vsel %vm1402, %v3460, -inf
      %v3505 = vsel %vm1403, %v3459, -inf
      %v3506 = vsel %vm1404, %v3458, -inf
      %v3507 = vsel %vm1405, %v3457, -inf
      %v3508 = vsel %vm1406, %v3456, -inf
      %v3509 = vsel %vm1407, %v3455, -inf
      %v3510 = vsel %vm1408, %v3454, -inf
      %v3511 = vsel %vm1409, %v3453, -inf
      %v3512 = vsel %vm1410, %v3452, -inf
      %v3513 = vsel %vm1411, %v3451, -inf
      %v3514 = vsel %vm1412, %v3482, -inf
      %v3515 = vmax.f32 %v3387, %v3483
      %v3516 = vmax.f32 %v3388, %v3484
      %v3517 = vmax.f32 %v3389, %v3485
      %v3518 = vmax.f32 %v3390, %v3486
      %v3519 = vmax.f32 %v3391, %v3487
      %v3520 = vmax.f32 %v3392, %v3488
      %v3521 = vmax.f32 %v3393, %v3489
      %v3522 = vmax.f32 %v3394, %v3490
      %v3523 = vmax.f32 %v3395, %v3491
      %v3524 = vmax.f32 %v3396, %v3492
      %v3525 = vmax.f32 %v3397, %v3493
      %v3526 = vmax.f32 %v3398, %v3494
      %v3527 = vmax.f32 %v3399, %v3495
      %v3528 = vmax.f32 %v3400, %v3496
      %v3529 = vmax.f32 %v3401, %v3497
      %v3530 = vmax.f32 %v3402, %v3498
      %v3531 = vmax.f32 %v3403, %v3499
      %v3532 = vmax.f32 %v3404, %v3500
      %v3533 = vmax.f32 %v3405, %v3501
      %v3534 = vmax.f32 %v3406, %v3502
      %v3535 = vmax.f32 %v3407, %v3503
      %v3536 = vmax.f32 %v3408, %v3504
      %v3537 = vmax.f32 %v3409, %v3505
      %v3538 = vmax.f32 %v3410, %v3506
      %v3539 = vmax.f32 %v3411, %v3507
      %v3540 = vmax.f32 %v3412, %v3508
      %v3541 = vmax.f32 %v3413, %v3509
      %v3542 = vmax.f32 %v3414, %v3510
      %v3543 = vmax.f32 %v3415, %v3511
      %v3544 = vmax.f32 %v3416, %v3512
      %v3545 = vmax.f32 %v3417, %v3513
      %v3546 = vmax.f32 %v3418, %v3514
      %v3547 = vrot.slane %v3131, 2
      %v3548 = vrot.slane %v3132, 2
      %v3549 = vrot.slane %v3133, 2
      %v3550 = vrot.slane %v3134, 2
      %v3551 = vrot.slane %v3135, 2
      %v3552 = vrot.slane %v3136, 2
      %v3553 = vrot.slane %v3137, 2
      %v3554 = vrot.slane %v3138, 2
      %v3555 = vrot.slane %v3139, 2
      %v3556 = vrot.slane %v3140, 2
      %v3557 = vrot.slane %v3141, 2
      %v3558 = vrot.slane %v3142, 2
      %v3559 = vrot.slane %v3143, 2
      %v3560 = vrot.slane %v3144, 2
      %v3561 = vrot.slane %v3145, 2
      %v3562 = vrot.slane %v3146, 2
      %v3563 = vrot.slane %v3147, 2
      %v3564 = vrot.slane %v3148, 2
      %v3565 = vrot.slane %v3149, 2
      %v3566 = vrot.slane %v3150, 2
      %v3567 = vrot.slane %v3151, 2
      %v3568 = vrot.slane %v3152, 2
      %v3569 = vrot.slane %v3153, 2
      %v3570 = vrot.slane %v3154, 2
      %v3571 = vrot.slane %v3155, 2
      %v3572 = vrot.slane %v3156, 2
      %v3573 = vrot.slane %v3157, 2
      %v3574 = vrot.slane %v3158, 2
      %v3575 = vrot.slane %v3159, 2
      %v3576 = vrot.slane %v3160, 2
      %v3577 = vrot.slane %v3161, 2
      %v3578 = vrot.slane %v3162, 2
      %v3579 = vsel %vm1445, %v3577, %v3578
      %v3580 = vsel %vm1445, %v3576, %v3577
      %v3581 = vsel %vm1445, %v3575, %v3576
      %v3582 = vsel %vm1445, %v3574, %v3575
      %v3583 = vsel %vm1445, %v3573, %v3574
      %v3584 = vsel %vm1445, %v3572, %v3573
      %v3585 = vsel %vm1445, %v3571, %v3572
      %v3586 = vsel %vm1445, %v3570, %v3571
      %v3587 = vsel %vm1445, %v3569, %v3570
      %v3588 = vsel %vm1445, %v3568, %v3569
      %v3589 = vsel %vm1445, %v3567, %v3568
      %v3590 = vsel %vm1445, %v3566, %v3567
      %v3591 = vsel %vm1445, %v3565, %v3566
      %v3592 = vsel %vm1445, %v3564, %v3565
      %v3593 = vsel %vm1445, %v3563, %v3564
      %v3594 = vsel %vm1445, %v3562, %v3563
      %v3595 = vsel %vm1445, %v3561, %v3562
      %v3596 = vsel %vm1445, %v3560, %v3561
      %v3597 = vsel %vm1445, %v3559, %v3560
      %v3598 = vsel %vm1445, %v3558, %v3559
      %v3599 = vsel %vm1445, %v3557, %v3558
      %v3600 = vsel %vm1445, %v3556, %v3557
      %v3601 = vsel %vm1445, %v3555, %v3556
      %v3602 = vsel %vm1445, %v3554, %v3555
      %v3603 = vsel %vm1445, %v3553, %v3554
      %v3604 = vsel %vm1445, %v3552, %v3553
      %v3605 = vsel %vm1445, %v3551, %v3552
      %v3606 = vsel %vm1445, %v3550, %v3551
      %v3607 = vsel %vm1445, %v3549, %v3550
      %v3608 = vsel %vm1445, %v3548, %v3549
      %v3609 = vsel %vm1445, %v3547, %v3548
      %v3610 = vsel %vm1445, %v3578, %v3547
      %v3611 = vsel %vm1478, %v3609, -inf
      %v3612 = vsel %vm1479, %v3608, -inf
      %v3613 = vsel %vm1480, %v3607, -inf
      %v3614 = vsel %vm1481, %v3606, -inf
      %v3615 = vsel %vm1482, %v3605, -inf
      %v3616 = vsel %vm1483, %v3604, -inf
      %v3617 = vsel %vm1484, %v3603, -inf
      %v3618 = vsel %vm1485, %v3602, -inf
      %v3619 = vsel %vm1486, %v3601, -inf
      %v3620 = vsel %vm1487, %v3600, -inf
      %v3621 = vsel %vm1488, %v3599, -inf
      %v3622 = vsel %vm1489, %v3598, -inf
      %v3623 = vsel %vm1490, %v3597, -inf
      %v3624 = vsel %vm1491, %v3596, -inf
      %v3625 = vsel %vm1492, %v3595, -inf
      %v3626 = vsel %vm1493, %v3594, -inf
      %v3627 = vsel %vm1494, %v3593, -inf
      %v3628 = vsel %vm1495, %v3592, -inf
      %v3629 = vsel %vm1496, %v3591, -inf
      %v3630 = vsel %vm1497, %v3590, -inf
      %v3631 = vsel %vm1498, %v3589, -inf
      %v3632 = vsel %vm1499, %v3588, -inf
      %v3633 = vsel %vm1500, %v3587, -inf
      %v3634 = vsel %vm1501, %v3586, -inf
      %v3635 = vsel %vm1502, %v3585, -inf
      %v3636 = vsel %vm1503, %v3584, -inf
      %v3637 = vsel %vm1504, %v3583, -inf
      %v3638 = vsel %vm1505, %v3582, -inf
      %v3639 = vsel %vm1506, %v3581, -inf
      %v3640 = vsel %vm1507, %v3580, -inf
      %v3641 = vsel %vm1508, %v3579, -inf
      %v3642 = vsel %vm1509, %v3610, -inf
      %v3643 = vmax.f32 %v3515, %v3611
      %v3644 = vmax.f32 %v3516, %v3612
      %v3645 = vmax.f32 %v3517, %v3613
      %v3646 = vmax.f32 %v3518, %v3614
      %v3647 = vmax.f32 %v3519, %v3615
      %v3648 = vmax.f32 %v3520, %v3616
      %v3649 = vmax.f32 %v3521, %v3617
      %v3650 = vmax.f32 %v3522, %v3618
      %v3651 = vmax.f32 %v3523, %v3619
      %v3652 = vmax.f32 %v3524, %v3620
      %v3653 = vmax.f32 %v3525, %v3621
      %v3654 = vmax.f32 %v3526, %v3622
      %v3655 = vmax.f32 %v3527, %v3623
      %v3656 = vmax.f32 %v3528, %v3624
      %v3657 = vmax.f32 %v3529, %v3625
      %v3658 = vmax.f32 %v3530, %v3626
      %v3659 = vmax.f32 %v3531, %v3627
      %v3660 = vmax.f32 %v3532, %v3628
      %v3661 = vmax.f32 %v3533, %v3629
      %v3662 = vmax.f32 %v3534, %v3630
      %v3663 = vmax.f32 %v3535, %v3631
      %v3664 = vmax.f32 %v3536, %v3632
      %v3665 = vmax.f32 %v3537, %v3633
      %v3666 = vmax.f32 %v3538, %v3634
      %v3667 = vmax.f32 %v3539, %v3635
      %v3668 = vmax.f32 %v3540, %v3636
      %v3669 = vmax.f32 %v3541, %v3637
      %v3670 = vmax.f32 %v3542, %v3638
      %v3671 = vmax.f32 %v3543, %v3639
      %v3672 = vmax.f32 %v3544, %v3640
      %v3673 = vmax.f32 %v3545, %v3641
      %v3674 = vmax.f32 %v3546, %v3642
      %v3675 = vpack.c.bf16 %v3644, %v3643
      %v3676 = vpack.c.bf16 %v3646, %v3645
      %v3677 = vpack.c.bf16 %v3648, %v3647
      %v3678 = vpack.c.bf16 %v3650, %v3649
      %v3679 = vpack.c.bf16 %v3652, %v3651
      %v3680 = vpack.c.bf16 %v3654, %v3653
      %v3681 = vpack.c.bf16 %v3656, %v3655
      %v3682 = vpack.c.bf16 %v3658, %v3657
      %v3683 = vpack.c.bf16 %v3660, %v3659
      %v3684 = vpack.c.bf16 %v3662, %v3661
      %v3685 = vpack.c.bf16 %v3664, %v3663
      %v3686 = vpack.c.bf16 %v3666, %v3665
      %v3687 = vpack.c.bf16 %v3668, %v3667
      %v3688 = vpack.c.bf16 %v3670, %v3669
      %v3689 = vpack.c.bf16 %v3672, %v3671
      %v3690 = vpack.c.bf16 %v3674, %v3673
      %s3691 = scalar_lea.vmem %s3, 4
      %v3692 = vld [vmem:[%s3691] sm:$0x3]
      %v3694 = vsel %vm1527, %v3675, 0
      %v3697 = vsel %vm1527, %v3676, 0
      %v3700 = vsel %vm1527, %v3677, 0
      %v3703 = vsel %vm1527, %v3678, 0
      %v3706 = vsel %vm1527, %v3679, 0
      %v3709 = vsel %vm1527, %v3680, 0
      %v3712 = vsel %vm1527, %v3681, 0
      %v3715 = vsel %vm1527, %v3682, 0
      %v3718 = vsel %vm1527, %v3683, 0
      %v3721 = vsel %vm1527, %v3684, 0
      %v3724 = vsel %vm1527, %v3685, 0
      %v3727 = vsel %vm1527, %v3686, 0
      %v3730 = vsel %vm1527, %v3687, 0
      %v3733 = vsel %vm1527, %v3688, 0
      %v3736 = vsel %vm1527, %v3689, 0
      %v3739 = vsel %vm1527, %v3690, 0
      %v3742 = vsel %vm2518, %v3692, 0
      %3744 = vmatpush.bf16.msra.mxu0 0
      %3745 = vmatpush.bf16.msra.mxu0 0
      %3746 = vmatpush.bf16.msra.mxu0 0
      %3747 = vmatpush.bf16.msra.mxu0 0
      %3748 = vmatpush.bf16.msra.mxu0 0
      %3749 = vmatpush.bf16.msra.mxu0 0
      %3750 = vmatpush.bf16.msra.mxu0 0
      %3751 = vmatpush.bf16.msra.mxu0 %v3742
      %3752 = vmatmul.bf16.gmra.mxu0 %v3694
      %v3753 = vpop.f32.mrf.mxu0
      %v3754 = vadd.f32 0.0, %v3753
      %v3755 = vpop.f32.mrf.mxu0
      %v3756 = vadd.f32 0.0, %v3755
      %3757 = vmatmul.bf16.gmra.mxu0 %v3697
      %v3758 = vpop.f32.mrf.mxu0
      %v3759 = vadd.f32 0.0, %v3758
      %v3760 = vpop.f32.mrf.mxu0
      %v3761 = vadd.f32 0.0, %v3760
      %3762 = vmatmul.bf16.gmra.mxu0 %v3700
      %v3763 = vpop.f32.mrf.mxu0
      %v3764 = vadd.f32 0.0, %v3763
      %v3765 = vpop.f32.mrf.mxu0
      %v3766 = vadd.f32 0.0, %v3765
      %3767 = vmatmul.bf16.gmra.mxu0 %v3703
      %v3768 = vpop.f32.mrf.mxu0
      %v3769 = vadd.f32 0.0, %v3768
      %v3770 = vpop.f32.mrf.mxu0
      %v3771 = vadd.f32 0.0, %v3770
      %3772 = vmatmul.bf16.gmra.mxu0 %v3706
      %v3773 = vpop.f32.mrf.mxu0
      %v3774 = vadd.f32 0.0, %v3773
      %v3775 = vpop.f32.mrf.mxu0
      %v3776 = vadd.f32 0.0, %v3775
      %3777 = vmatmul.bf16.gmra.mxu0 %v3709
      %v3778 = vpop.f32.mrf.mxu0
      %v3779 = vadd.f32 0.0, %v3778
      %v3780 = vpop.f32.mrf.mxu0
      %v3781 = vadd.f32 0.0, %v3780
      %3782 = vmatmul.bf16.gmra.mxu0 %v3712
      %v3783 = vpop.f32.mrf.mxu0
      %v3784 = vadd.f32 0.0, %v3783
      %v3785 = vpop.f32.mrf.mxu0
      %v3786 = vadd.f32 0.0, %v3785
      %3787 = vmatmul.bf16.gmra.mxu0 %v3715
      %v3788 = vpop.f32.mrf.mxu0
      %v3789 = vadd.f32 0.0, %v3788
      %v3790 = vpop.f32.mrf.mxu0
      %v3791 = vadd.f32 0.0, %v3790
      %3792 = vmatmul.bf16.gmra.mxu0 %v3718
      %v3793 = vpop.f32.mrf.mxu0
      %v3794 = vadd.f32 0.0, %v3793
      %v3795 = vpop.f32.mrf.mxu0
      %v3796 = vadd.f32 0.0, %v3795
      %3797 = vmatmul.bf16.gmra.mxu0 %v3721
      %v3798 = vpop.f32.mrf.mxu0
      %v3799 = vadd.f32 0.0, %v3798
      %v3800 = vpop.f32.mrf.mxu0
      %v3801 = vadd.f32 0.0, %v3800
      %3802 = vmatmul.bf16.gmra.mxu0 %v3724
      %v3803 = vpop.f32.mrf.mxu0
      %v3804 = vadd.f32 0.0, %v3803
      %v3805 = vpop.f32.mrf.mxu0
      %v3806 = vadd.f32 0.0, %v3805
      %3807 = vmatmul.bf16.gmra.mxu0 %v3727
      %v3808 = vpop.f32.mrf.mxu0
      %v3809 = vadd.f32 0.0, %v3808
      %v3810 = vpop.f32.mrf.mxu0
      %v3811 = vadd.f32 0.0, %v3810
      %3812 = vmatmul.bf16.gmra.mxu0 %v3730
      %v3813 = vpop.f32.mrf.mxu0
      %v3814 = vadd.f32 0.0, %v3813
      %v3815 = vpop.f32.mrf.mxu0
      %v3816 = vadd.f32 0.0, %v3815
      %3817 = vmatmul.bf16.gmra.mxu0 %v3733
      %v3818 = vpop.f32.mrf.mxu0
      %v3819 = vadd.f32 0.0, %v3818
      %v3820 = vpop.f32.mrf.mxu0
      %v3821 = vadd.f32 0.0, %v3820
      %3822 = vmatmul.bf16.gmra.mxu0 %v3736
      %v3823 = vpop.f32.mrf.mxu0
      %v3824 = vadd.f32 0.0, %v3823
      %v3825 = vpop.f32.mrf.mxu0
      %v3826 = vadd.f32 0.0, %v3825
      %3827 = vmatmul.bf16.gmra.mxu0 %v3739
      %v3828 = vpop.f32.mrf.mxu0
      %v3829 = vadd.f32 0.0, %v3828
      %v3830 = vpop.f32.mrf.mxu0
      %v3831 = vadd.f32 0.0, %v3830
      %3832 = vdwg.mxu0
      %v3833 = vadd.f32 %v2672, %v3754
      %v3834 = vadd.f32 %v2674, %v3756
      %v3835 = vadd.f32 %v2677, %v3759
      %v3836 = vadd.f32 %v2679, %v3761
      %v3837 = vadd.f32 %v2682, %v3764
      %v3838 = vadd.f32 %v2684, %v3766
      %v3839 = vadd.f32 %v2687, %v3769
      %v3840 = vadd.f32 %v2689, %v3771
      %v3841 = vadd.f32 %v2692, %v3774
      %v3842 = vadd.f32 %v2694, %v3776
      %v3843 = vadd.f32 %v2697, %v3779
      %v3844 = vadd.f32 %v2699, %v3781
      %v3845 = vadd.f32 %v2702, %v3784
      %v3846 = vadd.f32 %v2704, %v3786
      %v3847 = vadd.f32 %v2707, %v3789
      %v3848 = vadd.f32 %v2709, %v3791
      %v3849 = vadd.f32 %v2712, %v3794
      %v3850 = vadd.f32 %v2714, %v3796
      %v3851 = vadd.f32 %v2717, %v3799
      %v3852 = vadd.f32 %v2719, %v3801
      %v3853 = vadd.f32 %v2722, %v3804
      %v3854 = vadd.f32 %v2724, %v3806
      %v3855 = vadd.f32 %v2727, %v3809
      %v3856 = vadd.f32 %v2729, %v3811
      %v3857 = vadd.f32 %v2732, %v3814
      %v3858 = vadd.f32 %v2734, %v3816
      %v3859 = vadd.f32 %v2737, %v3819
      %v3860 = vadd.f32 %v2739, %v3821
      %v3861 = vadd.f32 %v2742, %v3824
      %v3862 = vadd.f32 %v2744, %v3826
      %v3863 = vadd.f32 %v2747, %v3829
      %v3864 = vadd.f32 %v2749, %v3831
      %3865 = vst.msk [vmem:[#allocation2] sm:$0xff] %vm1527, %v3643
      %3866 = vst.msk [vmem:[#allocation2 + $0x8] sm:$0xff] %vm1527, %v3644
      %3867 = vst.msk [vmem:[#allocation2 + $0x10] sm:$0xff] %vm1527, %v3645
      %3868 = vst.msk [vmem:[#allocation2 + $0x18] sm:$0xff] %vm1527, %v3646
      %3869 = vst.msk [vmem:[#allocation2 + $0x20] sm:$0xff] %vm1527, %v3647
      %3870 = vst.msk [vmem:[#allocation2 + $0x28] sm:$0xff] %vm1527, %v3648
      %3871 = vst.msk [vmem:[#allocation2 + $0x30] sm:$0xff] %vm1527, %v3649
      %3872 = vst.msk [vmem:[#allocation2 + $0x38] sm:$0xff] %vm1527, %v3650
      %3873 = vst.msk [vmem:[#allocation2 + $0x40] sm:$0xff] %vm1527, %v3651
      %3874 = vst.msk [vmem:[#allocation2 + $0x48] sm:$0xff] %vm1527, %v3652
      %3875 = vst.msk [vmem:[#allocation2 + $0x50] sm:$0xff] %vm1527, %v3653
      %3876 = vst.msk [vmem:[#allocation2 + $0x58] sm:$0xff] %vm1527, %v3654
      %3877 = vst.msk [vmem:[#allocation2 + $0x60] sm:$0xff] %vm1527, %v3655
      %3878 = vst.msk [vmem:[#allocation2 + $0x68] sm:$0xff] %vm1527, %v3656
      %3879 = vst.msk [vmem:[#allocation2 + $0x70] sm:$0xff] %vm1527, %v3657
      %3880 = vst.msk [vmem:[#allocation2 + $0x78] sm:$0xff] %vm1527, %v3658
      %3881 = vst.msk [vmem:[#allocation2 + $0x80] sm:$0xff] %vm1527, %v3659
      %3882 = vst.msk [vmem:[#allocation2 + $0x88] sm:$0xff] %vm1527, %v3660
      %3883 = vst.msk [vmem:[#allocation2 + $0x90] sm:$0xff] %vm1527, %v3661
      %3884 = vst.msk [vmem:[#allocation2 + $0x98] sm:$0xff] %vm1527, %v3662
      %3885 = vst.msk [vmem:[#allocation2 + $0xa0] sm:$0xff] %vm1527, %v3663
      %3886 = vst.msk [vmem:[#allocation2 + $0xa8] sm:$0xff] %vm1527, %v3664
      %3887 = vst.msk [vmem:[#allocation2 + $0xb0] sm:$0xff] %vm1527, %v3665
      %3888 = vst.msk [vmem:[#allocation2 + $0xb8] sm:$0xff] %vm1527, %v3666
      %3889 = vst.msk [vmem:[#allocation2 + $0xc0] sm:$0xff] %vm1527, %v3667
      %3890 = vst.msk [vmem:[#allocation2 + $0xc8] sm:$0xff] %vm1527, %v3668
      %3891 = vst.msk [vmem:[#allocation2 + $0xd0] sm:$0xff] %vm1527, %v3669
      %3892 = vst.msk [vmem:[#allocation2 + $0xd8] sm:$0xff] %vm1527, %v3670
      %3893 = vst.msk [vmem:[#allocation2 + $0xe0] sm:$0xff] %vm1527, %v3671
      %3894 = vst.msk [vmem:[#allocation2 + $0xe8] sm:$0xff] %vm1527, %v3672
      %3895 = vst.msk [vmem:[#allocation2 + $0xf0] sm:$0xff] %vm1527, %v3673
      %3896 = vst.msk [vmem:[#allocation2 + $0xf8] sm:$0xff] %vm1527, %v3674
      %v3897 = vld [vmem:[#allocation2] sm:$0xff]
      %v3898 = vld [vmem:[#allocation2 + $0x8] sm:$0xff]
      %v3899 = vld [vmem:[#allocation2 + $0x10] sm:$0xff]
      %v3900 = vld [vmem:[#allocation2 + $0x18] sm:$0xff]
      %v3901 = vld [vmem:[#allocation2 + $0x20] sm:$0xff]
      %v3902 = vld [vmem:[#allocation2 + $0x28] sm:$0xff]
      %v3903 = vld [vmem:[#allocation2 + $0x30] sm:$0xff]
      %v3904 = vld [vmem:[#allocation2 + $0x38] sm:$0xff]
      %v3905 = vld [vmem:[#allocation2 + $0x40] sm:$0xff]
      %v3906 = vld [vmem:[#allocation2 + $0x48] sm:$0xff]
      %v3907 = vld [vmem:[#allocation2 + $0x50] sm:$0xff]
      %v3908 = vld [vmem:[#allocation2 + $0x58] sm:$0xff]
      %v3909 = vld [vmem:[#allocation2 + $0x60] sm:$0xff]
      %v3910 = vld [vmem:[#allocation2 + $0x68] sm:$0xff]
      %v3911 = vld [vmem:[#allocation2 + $0x70] sm:$0xff]
      %v3912 = vld [vmem:[#allocation2 + $0x78] sm:$0xff]
      %v3913 = vld [vmem:[#allocation2 + $0x80] sm:$0xff]
      %v3914 = vld [vmem:[#allocation2 + $0x88] sm:$0xff]
      %v3915 = vld [vmem:[#allocation2 + $0x90] sm:$0xff]
      %v3916 = vld [vmem:[#allocation2 + $0x98] sm:$0xff]
      %v3917 = vld [vmem:[#allocation2 + $0xa0] sm:$0xff]
      %v3918 = vld [vmem:[#allocation2 + $0xa8] sm:$0xff]
      %v3919 = vld [vmem:[#allocation2 + $0xb0] sm:$0xff]
      %v3920 = vld [vmem:[#allocation2 + $0xb8] sm:$0xff]
      %v3921 = vld [vmem:[#allocation2 + $0xc0] sm:$0xff]
      %v3922 = vld [vmem:[#allocation2 + $0xc8] sm:$0xff]
      %v3923 = vld [vmem:[#allocation2 + $0xd0] sm:$0xff]
      %v3924 = vld [vmem:[#allocation2 + $0xd8] sm:$0xff]
      %v3925 = vld [vmem:[#allocation2 + $0xe0] sm:$0xff]
      %v3926 = vld [vmem:[#allocation2 + $0xe8] sm:$0xff]
      %v3927 = vmax.f32 %v3897, %v3645
      %v3928 = vmax.f32 %v3898, %v3646
      %v3929 = vmax.f32 %v3899, %v3647
      %v3930 = vmax.f32 %v3900, %v3648
      %v3931 = vmax.f32 %v3901, %v3649
      %v3932 = vmax.f32 %v3902, %v3650
      %v3933 = vmax.f32 %v3903, %v3651
      %v3934 = vmax.f32 %v3904, %v3652
      %v3935 = vmax.f32 %v3905, %v3653
      %v3936 = vmax.f32 %v3906, %v3654
      %v3937 = vmax.f32 %v3907, %v3655
      %v3938 = vmax.f32 %v3908, %v3656
      %v3939 = vmax.f32 %v3909, %v3657
      %v3940 = vmax.f32 %v3910, %v3658
      %v3941 = vmax.f32 %v3911, %v3659
      %v3942 = vmax.f32 %v3912, %v3660
      %v3943 = vmax.f32 %v3913, %v3661
      %v3944 = vmax.f32 %v3914, %v3662
      %v3945 = vmax.f32 %v3915, %v3663
      %v3946 = vmax.f32 %v3916, %v3664
      %v3947 = vmax.f32 %v3917, %v3665
      %v3948 = vmax.f32 %v3918, %v3666
      %v3949 = vmax.f32 %v3919, %v3667
      %v3950 = vmax.f32 %v3920, %v3668
      %v3951 = vmax.f32 %v3921, %v3669
      %v3952 = vmax.f32 %v3922, %v3670
      %v3953 = vmax.f32 %v3923, %v3671
      %v3954 = vmax.f32 %v3924, %v3672
      %v3955 = vmax.f32 %v3925, %v3673
      %v3956 = vmax.f32 %v3926, %v3674
      %3957 = vst.msk [vmem:[#allocation2] sm:$0xff] %vm1527, %v3927
      %3958 = vst.msk [vmem:[#allocation2 + $0x8] sm:$0xff] %vm1527, %v3928
      %3959 = vst.msk [vmem:[#allocation2 + $0x10] sm:$0xff] %vm1527, %v3929
      %3960 = vst.msk [vmem:[#allocation2 + $0x18] sm:$0xff] %vm1527, %v3930
      %3961 = vst.msk [vmem:[#allocation2 + $0x20] sm:$0xff] %vm1527, %v3931
      %3962 = vst.msk [vmem:[#allocation2 + $0x28] sm:$0xff] %vm1527, %v3932
      %3963 = vst.msk [vmem:[#allocation2 + $0x30] sm:$0xff] %vm1527, %v3933
      %3964 = vst.msk [vmem:[#allocation2 + $0x38] sm:$0xff] %vm1527, %v3934
      %3965 = vst.msk [vmem:[#allocation2 + $0x40] sm:$0xff] %vm1527, %v3935
      %3966 = vst.msk [vmem:[#allocation2 + $0x48] sm:$0xff] %vm1527, %v3936
      %3967 = vst.msk [vmem:[#allocation2 + $0x50] sm:$0xff] %vm1527, %v3937
      %3968 = vst.msk [vmem:[#allocation2 + $0x58] sm:$0xff] %vm1527, %v3938
      %3969 = vst.msk [vmem:[#allocation2 + $0x60] sm:$0xff] %vm1527, %v3939
      %3970 = vst.msk [vmem:[#allocation2 + $0x68] sm:$0xff] %vm1527, %v3940
      %3971 = vst.msk [vmem:[#allocation2 + $0x70] sm:$0xff] %vm1527, %v3941
      %3972 = vst.msk [vmem:[#allocation2 + $0x78] sm:$0xff] %vm1527, %v3942
      %3973 = vst.msk [vmem:[#allocation2 + $0x80] sm:$0xff] %vm1527, %v3943
      %3974 = vst.msk [vmem:[#allocation2 + $0x88] sm:$0xff] %vm1527, %v3944
      %3975 = vst.msk [vmem:[#allocation2 + $0x90] sm:$0xff] %vm1527, %v3945
      %3976 = vst.msk [vmem:[#allocation2 + $0x98] sm:$0xff] %vm1527, %v3946
      %3977 = vst.msk [vmem:[#allocation2 + $0xa0] sm:$0xff] %vm1527, %v3947
      %3978 = vst.msk [vmem:[#allocation2 + $0xa8] sm:$0xff] %vm1527, %v3948
      %3979 = vst.msk [vmem:[#allocation2 + $0xb0] sm:$0xff] %vm1527, %v3949
      %3980 = vst.msk [vmem:[#allocation2 + $0xb8] sm:$0xff] %vm1527, %v3950
      %3981 = vst.msk [vmem:[#allocation2 + $0xc0] sm:$0xff] %vm1527, %v3951
      %3982 = vst.msk [vmem:[#allocation2 + $0xc8] sm:$0xff] %vm1527, %v3952
      %3983 = vst.msk [vmem:[#allocation2 + $0xd0] sm:$0xff] %vm1527, %v3953
      %3984 = vst.msk [vmem:[#allocation2 + $0xd8] sm:$0xff] %vm1527, %v3954
      %3985 = vst.msk [vmem:[#allocation2 + $0xe0] sm:$0xff] %vm1527, %v3955
      %3986 = vst.msk [vmem:[#allocation2 + $0xe8] sm:$0xff] %vm1527, %v3956
      %v3987 = vld [vmem:[#allocation2 + $0x10] sm:$0xff]
      %v3988 = vld [vmem:[#allocation2 + $0x18] sm:$0xff]
      %v3989 = vld [vmem:[#allocation2 + $0x20] sm:$0xff]
      %v3990 = vld [vmem:[#allocation2 + $0x28] sm:$0xff]
      %v3991 = vld [vmem:[#allocation2 + $0x30] sm:$0xff]
      %v3992 = vld [vmem:[#allocation2 + $0x38] sm:$0xff]
      %v3993 = vld [vmem:[#allocation2 + $0x40] sm:$0xff]
      %v3994 = vld [vmem:[#allocation2 + $0x48] sm:$0xff]
      %v3995 = vld [vmem:[#allocation2 + $0x50] sm:$0xff]
      %v3996 = vld [vmem:[#allocation2 + $0x58] sm:$0xff]
      %v3997 = vld [vmem:[#allocation2 + $0x60] sm:$0xff]
      %v3998 = vld [vmem:[#allocation2 + $0x68] sm:$0xff]
      %v3999 = vld [vmem:[#allocation2 + $0x70] sm:$0xff]
      %v4000 = vld [vmem:[#allocation2 + $0x78] sm:$0xff]
      %v4001 = vld [vmem:[#allocation2 + $0x80] sm:$0xff]
      %v4002 = vld [vmem:[#allocation2 + $0x88] sm:$0xff]
      %v4003 = vld [vmem:[#allocation2 + $0x90] sm:$0xff]
      %v4004 = vld [vmem:[#allocation2 + $0x98] sm:$0xff]
      %v4005 = vld [vmem:[#allocation2 + $0xa0] sm:$0xff]
      %v4006 = vld [vmem:[#allocation2 + $0xa8] sm:$0xff]
      %v4007 = vld [vmem:[#allocation2 + $0xb0] sm:$0xff]
      %v4008 = vld [vmem:[#allocation2 + $0xb8] sm:$0xff]
      %v4009 = vld [vmem:[#allocation2 + $0xc0] sm:$0xff]
      %v4010 = vld [vmem:[#allocation2 + $0xc8] sm:$0xff]
      %v4011 = vld [vmem:[#allocation2 + $0xd0] sm:$0xff]
      %v4012 = vld [vmem:[#allocation2 + $0xd8] sm:$0xff]
      %v4013 = vld [vmem:[#allocation2 + $0xe0] sm:$0xff]
      %v4014 = vld [vmem:[#allocation2 + $0xe8] sm:$0xff]
      %v4015 = vld [vmem:[#allocation2 + $0xf0] sm:$0xff]
      %v4016 = vld [vmem:[#allocation2 + $0xf8] sm:$0xff]
      %v4017 = vmax.f32 %v3987, %v3643
      %v4018 = vmax.f32 %v3988, %v3644
      %v4019 = vmax.f32 %v3989, %v3645
      %v4020 = vmax.f32 %v3990, %v3646
      %v4021 = vmax.f32 %v3991, %v3647
      %v4022 = vmax.f32 %v3992, %v3648
      %v4023 = vmax.f32 %v3993, %v3649
      %v4024 = vmax.f32 %v3994, %v3650
      %v4025 = vmax.f32 %v3995, %v3651
      %v4026 = vmax.f32 %v3996, %v3652
      %v4027 = vmax.f32 %v3997, %v3653
      %v4028 = vmax.f32 %v3998, %v3654
      %v4029 = vmax.f32 %v3999, %v3655
      %v4030 = vmax.f32 %v4000, %v3656
      %v4031 = vmax.f32 %v4001, %v3657
      %v4032 = vmax.f32 %v4002, %v3658
      %v4033 = vmax.f32 %v4003, %v3659
      %v4034 = vmax.f32 %v4004, %v3660
      %v4035 = vmax.f32 %v4005, %v3661
      %v4036 = vmax.f32 %v4006, %v3662
      %v4037 = vmax.f32 %v4007, %v3663
      %v4038 = vmax.f32 %v4008, %v3664
      %v4039 = vmax.f32 %v4009, %v3665
      %v4040 = vmax.f32 %v4010, %v3666
      %v4041 = vmax.f32 %v4011, %v3667
      %v4042 = vmax.f32 %v4012, %v3668
      %v4043 = vmax.f32 %v4013, %v3669
      %v4044 = vmax.f32 %v4014, %v3670
      %v4045 = vmax.f32 %v4015, %v3671
      %v4046 = vmax.f32 %v4016, %v3672
      %4047 = vst.msk [vmem:[#allocation2 + $0x10] sm:$0xff] %vm1527, %v4017
      %4048 = vst.msk [vmem:[#allocation2 + $0x18] sm:$0xff] %vm1527, %v4018
      %4049 = vst.msk [vmem:[#allocation2 + $0x20] sm:$0xff] %vm1527, %v4019
      %4050 = vst.msk [vmem:[#allocation2 + $0x28] sm:$0xff] %vm1527, %v4020
      %4051 = vst.msk [vmem:[#allocation2 + $0x30] sm:$0xff] %vm1527, %v4021
      %4052 = vst.msk [vmem:[#allocation2 + $0x38] sm:$0xff] %vm1527, %v4022
      %4053 = vst.msk [vmem:[#allocation2 + $0x40] sm:$0xff] %vm1527, %v4023
      %4054 = vst.msk [vmem:[#allocation2 + $0x48] sm:$0xff] %vm1527, %v4024
      %4055 = vst.msk [vmem:[#allocation2 + $0x50] sm:$0xff] %vm1527, %v4025
      %4056 = vst.msk [vmem:[#allocation2 + $0x58] sm:$0xff] %vm1527, %v4026
      %4057 = vst.msk [vmem:[#allocation2 + $0x60] sm:$0xff] %vm1527, %v4027
      %4058 = vst.msk [vmem:[#allocation2 + $0x68] sm:$0xff] %vm1527, %v4028
      %4059 = vst.msk [vmem:[#allocation2 + $0x70] sm:$0xff] %vm1527, %v4029
      %4060 = vst.msk [vmem:[#allocation2 + $0x78] sm:$0xff] %vm1527, %v4030
      %4061 = vst.msk [vmem:[#allocation2 + $0x80] sm:$0xff] %vm1527, %v4031
      %4062 = vst.msk [vmem:[#allocation2 + $0x88] sm:$0xff] %vm1527, %v4032
      %4063 = vst.msk [vmem:[#allocation2 + $0x90] sm:$0xff] %vm1527, %v4033
      %4064 = vst.msk [vmem:[#allocation2 + $0x98] sm:$0xff] %vm1527, %v4034
      %4065 = vst.msk [vmem:[#allocation2 + $0xa0] sm:$0xff] %vm1527, %v4035
      %4066 = vst.msk [vmem:[#allocation2 + $0xa8] sm:$0xff] %vm1527, %v4036
      %4067 = vst.msk [vmem:[#allocation2 + $0xb0] sm:$0xff] %vm1527, %v4037
      %4068 = vst.msk [vmem:[#allocation2 + $0xb8] sm:$0xff] %vm1527, %v4038
      %4069 = vst.msk [vmem:[#allocation2 + $0xc0] sm:$0xff] %vm1527, %v4039
      %4070 = vst.msk [vmem:[#allocation2 + $0xc8] sm:$0xff] %vm1527, %v4040
      %4071 = vst.msk [vmem:[#allocation2 + $0xd0] sm:$0xff] %vm1527, %v4041
      %4072 = vst.msk [vmem:[#allocation2 + $0xd8] sm:$0xff] %vm1527, %v4042
      %4073 = vst.msk [vmem:[#allocation2 + $0xe0] sm:$0xff] %vm1527, %v4043
      %4074 = vst.msk [vmem:[#allocation2 + $0xe8] sm:$0xff] %vm1527, %v4044
      %4075 = vst.msk [vmem:[#allocation2 + $0xf0] sm:$0xff] %vm1527, %v4045
      %4076 = vst.msk [vmem:[#allocation2 + $0xf8] sm:$0xff] %vm1527, %v4046
      %v4077 = vld [vmem:[#allocation2] sm:$0xff]
      %v4078 = vld [vmem:[#allocation2 + $0x8] sm:$0xff]
      %v4079 = vld [vmem:[#allocation2 + $0x10] sm:$0xff]
      %v4080 = vld [vmem:[#allocation2 + $0x18] sm:$0xff]
      %v4081 = vld [vmem:[#allocation2 + $0x20] sm:$0xff]
      %v4082 = vld [vmem:[#allocation2 + $0x28] sm:$0xff]
      %v4083 = vld [vmem:[#allocation2 + $0x30] sm:$0xff]
      %v4084 = vld [vmem:[#allocation2 + $0x38] sm:$0xff]
      %v4085 = vld [vmem:[#allocation2 + $0x40] sm:$0xff]
      %v4086 = vld [vmem:[#allocation2 + $0x48] sm:$0xff]
      %v4087 = vld [vmem:[#allocation2 + $0x50] sm:$0xff]
      %v4088 = vld [vmem:[#allocation2 + $0x58] sm:$0xff]
      %v4089 = vld [vmem:[#allocation2 + $0x60] sm:$0xff]
      %v4090 = vld [vmem:[#allocation2 + $0x68] sm:$0xff]
      %v4091 = vld [vmem:[#allocation2 + $0x70] sm:$0xff]
      %v4092 = vld [vmem:[#allocation2 + $0x78] sm:$0xff]
      %v4093 = vld [vmem:[#allocation2 + $0x80] sm:$0xff]
      %v4094 = vld [vmem:[#allocation2 + $0x88] sm:$0xff]
      %v4095 = vld [vmem:[#allocation2 + $0x90] sm:$0xff]
      %v4096 = vld [vmem:[#allocation2 + $0x98] sm:$0xff]
      %v4097 = vld [vmem:[#allocation2 + $0xa0] sm:$0xff]
      %v4098 = vld [vmem:[#allocation2 + $0xa8] sm:$0xff]
      %v4099 = vld [vmem:[#allocation2 + $0xb0] sm:$0xff]
      %v4100 = vld [vmem:[#allocation2 + $0xb8] sm:$0xff]
      %v4101 = vld [vmem:[#allocation2 + $0xc0] sm:$0xff]
      %v4102 = vld [vmem:[#allocation2 + $0xc8] sm:$0xff]
      %v4103 = vld [vmem:[#allocation2 + $0xd0] sm:$0xff]
      %v4104 = vld [vmem:[#allocation2 + $0xd8] sm:$0xff]
      %v4105 = vmax.f32 %v4077, %v3647
      %v4106 = vmax.f32 %v4078, %v3648
      %v4107 = vmax.f32 %v4079, %v3649
      %v4108 = vmax.f32 %v4080, %v3650
      %v4109 = vmax.f32 %v4081, %v3651
      %v4110 = vmax.f32 %v4082, %v3652
      %v4111 = vmax.f32 %v4083, %v3653
      %v4112 = vmax.f32 %v4084, %v3654
      %v4113 = vmax.f32 %v4085, %v3655
      %v4114 = vmax.f32 %v4086, %v3656
      %v4115 = vmax.f32 %v4087, %v3657
      %v4116 = vmax.f32 %v4088, %v3658
      %v4117 = vmax.f32 %v4089, %v3659
      %v4118 = vmax.f32 %v4090, %v3660
      %v4119 = vmax.f32 %v4091, %v3661
      %v4120 = vmax.f32 %v4092, %v3662
      %v4121 = vmax.f32 %v4093, %v3663
      %v4122 = vmax.f32 %v4094, %v3664
      %v4123 = vmax.f32 %v4095, %v3665
      %v4124 = vmax.f32 %v4096, %v3666
      %v4125 = vmax.f32 %v4097, %v3667
      %v4126 = vmax.f32 %v4098, %v3668
      %v4127 = vmax.f32 %v4099, %v3669
      %v4128 = vmax.f32 %v4100, %v3670
      %v4129 = vmax.f32 %v4101, %v3671
      %v4130 = vmax.f32 %v4102, %v3672
      %v4131 = vmax.f32 %v4103, %v3673
      %v4132 = vmax.f32 %v4104, %v3674
      %4133 = vst.msk [vmem:[#allocation2] sm:$0xff] %vm1527, %v4105
      %4134 = vst.msk [vmem:[#allocation2 + $0x8] sm:$0xff] %vm1527, %v4106
      %4135 = vst.msk [vmem:[#allocation2 + $0x10] sm:$0xff] %vm1527, %v4107
      %4136 = vst.msk [vmem:[#allocation2 + $0x18] sm:$0xff] %vm1527, %v4108
      %4137 = vst.msk [vmem:[#allocation2 + $0x20] sm:$0xff] %vm1527, %v4109
      %4138 = vst.msk [vmem:[#allocation2 + $0x28] sm:$0xff] %vm1527, %v4110
      %4139 = vst.msk [vmem:[#allocation2 + $0x30] sm:$0xff] %vm1527, %v4111
      %4140 = vst.msk [vmem:[#allocation2 + $0x38] sm:$0xff] %vm1527, %v4112
      %4141 = vst.msk [vmem:[#allocation2 + $0x40] sm:$0xff] %vm1527, %v4113
      %4142 = vst.msk [vmem:[#allocation2 + $0x48] sm:$0xff] %vm1527, %v4114
      %4143 = vst.msk [vmem:[#allocation2 + $0x50] sm:$0xff] %vm1527, %v4115
      %4144 = vst.msk [vmem:[#allocation2 + $0x58] sm:$0xff] %vm1527, %v4116
      %4145 = vst.msk [vmem:[#allocation2 + $0x60] sm:$0xff] %vm1527, %v4117
      %4146 = vst.msk [vmem:[#allocation2 + $0x68] sm:$0xff] %vm1527, %v4118
      %4147 = vst.msk [vmem:[#allocation2 + $0x70] sm:$0xff] %vm1527, %v4119
      %4148 = vst.msk [vmem:[#allocation2 + $0x78] sm:$0xff] %vm1527, %v4120
      %4149 = vst.msk [vmem:[#allocation2 + $0x80] sm:$0xff] %vm1527, %v4121
      %4150 = vst.msk [vmem:[#allocation2 + $0x88] sm:$0xff] %vm1527, %v4122
      %4151 = vst.msk [vmem:[#allocation2 + $0x90] sm:$0xff] %vm1527, %v4123
      %4152 = vst.msk [vmem:[#allocation2 + $0x98] sm:$0xff] %vm1527, %v4124
      %4153 = vst.msk [vmem:[#allocation2 + $0xa0] sm:$0xff] %vm1527, %v4125
      %4154 = vst.msk [vmem:[#allocation2 + $0xa8] sm:$0xff] %vm1527, %v4126
      %4155 = vst.msk [vmem:[#allocation2 + $0xb0] sm:$0xff] %vm1527, %v4127
      %4156 = vst.msk [vmem:[#allocation2 + $0xb8] sm:$0xff] %vm1527, %v4128
      %4157 = vst.msk [vmem:[#allocation2 + $0xc0] sm:$0xff] %vm1527, %v4129
      %4158 = vst.msk [vmem:[#allocation2 + $0xc8] sm:$0xff] %vm1527, %v4130
      %4159 = vst.msk [vmem:[#allocation2 + $0xd0] sm:$0xff] %vm1527, %v4131
      %4160 = vst.msk [vmem:[#allocation2 + $0xd8] sm:$0xff] %vm1527, %v4132
      %v4161 = vld [vmem:[#allocation2 + $0x20] sm:$0xff]
      %v4162 = vld [vmem:[#allocation2 + $0x28] sm:$0xff]
      %v4163 = vld [vmem:[#allocation2 + $0x30] sm:$0xff]
      %v4164 = vld [vmem:[#allocation2 + $0x38] sm:$0xff]
      %v4165 = vld [vmem:[#allocation2 + $0x40] sm:$0xff]
      %v4166 = vld [vmem:[#allocation2 + $0x48] sm:$0xff]
      %v4167 = vld [vmem:[#allocation2 + $0x50] sm:$0xff]
      %v4168 = vld [vmem:[#allocation2 + $0x58] sm:$0xff]
      %v4169 = vld [vmem:[#allocation2 + $0x60] sm:$0xff]
      %v4170 = vld [vmem:[#allocation2 + $0x68] sm:$0xff]
      %v4171 = vld [vmem:[#allocation2 + $0x70] sm:$0xff]
      %v4172 = vld [vmem:[#allocation2 + $0x78] sm:$0xff]
      %v4173 = vld [vmem:[#allocation2 + $0x80] sm:$0xff]
      %v4174 = vld [vmem:[#allocation2 + $0x88] sm:$0xff]
      %v4175 = vld [vmem:[#allocation2 + $0x90] sm:$0xff]
      %v4176 = vld [vmem:[#allocation2 + $0x98] sm:$0xff]
      %v4177 = vld [vmem:[#allocation2 + $0xa0] sm:$0xff]
      %v4178 = vld [vmem:[#allocation2 + $0xa8] sm:$0xff]
      %v4179 = vld [vmem:[#allocation2 + $0xb0] sm:$0xff]
      %v4180 = vld [vmem:[#allocation2 + $0xb8] sm:$0xff]
      %v4181 = vld [vmem:[#allocation2 + $0xc0] sm:$0xff]
      %v4182 = vld [vmem:[#allocation2 + $0xc8] sm:$0xff]
      %v4183 = vld [vmem:[#allocation2 + $0xd0] sm:$0xff]
      %v4184 = vld [vmem:[#allocation2 + $0xd8] sm:$0xff]
      %v4185 = vld [vmem:[#allocation2 + $0xe0] sm:$0xff]
      %v4186 = vld [vmem:[#allocation2 + $0xe8] sm:$0xff]
      %v4187 = vld [vmem:[#allocation2 + $0xf0] sm:$0xff]
      %v4188 = vld [vmem:[#allocation2 + $0xf8] sm:$0xff]
      %v4189 = vmax.f32 %v4161, %v3643
      %v4190 = vmax.f32 %v4162, %v3644
      %v4191 = vmax.f32 %v4163, %v3645
      %v4192 = vmax.f32 %v4164, %v3646
      %v4193 = vmax.f32 %v4165, %v3647
      %v4194 = vmax.f32 %v4166, %v3648
      %v4195 = vmax.f32 %v4167, %v3649
      %v4196 = vmax.f32 %v4168, %v3650
      %v4197 = vmax.f32 %v4169, %v3651
      %v4198 = vmax.f32 %v4170, %v3652
      %v4199 = vmax.f32 %v4171, %v3653
      %v4200 = vmax.f32 %v4172, %v3654
      %v4201 = vmax.f32 %v4173, %v3655
      %v4202 = vmax.f32 %v4174, %v3656
      %v4203 = vmax.f32 %v4175, %v3657
      %v4204 = vmax.f32 %v4176, %v3658
      %v4205 = vmax.f32 %v4177, %v3659
      %v4206 = vmax.f32 %v4178, %v3660
      %v4207 = vmax.f32 %v4179, %v3661
      %v4208 = vmax.f32 %v4180, %v3662
      %v4209 = vmax.f32 %v4181, %v3663
      %v4210 = vmax.f32 %v4182, %v3664
      %v4211 = vmax.f32 %v4183, %v3665
      %v4212 = vmax.f32 %v4184, %v3666
      %v4213 = vmax.f32 %v4185, %v3667
      %v4214 = vmax.f32 %v4186, %v3668
      %v4215 = vmax.f32 %v4187, %v3669
      %v4216 = vmax.f32 %v4188, %v3670
      %4217 = vst.msk [vmem:[#allocation2 + $0x20] sm:$0xff] %vm1527, %v4189
      %4218 = vst.msk [vmem:[#allocation2 + $0x28] sm:$0xff] %vm1527, %v4190
      %4219 = vst.msk [vmem:[#allocation2 + $0x30] sm:$0xff] %vm1527, %v4191
      %4220 = vst.msk [vmem:[#allocation2 + $0x38] sm:$0xff] %vm1527, %v4192
      %4221 = vst.msk [vmem:[#allocation2 + $0x40] sm:$0xff] %vm1527, %v4193
      %4222 = vst.msk [vmem:[#allocation2 + $0x48] sm:$0xff] %vm1527, %v4194
      %4223 = vst.msk [vmem:[#allocation2 + $0x50] sm:$0xff] %vm1527, %v4195
      %4224 = vst.msk [vmem:[#allocation2 + $0x58] sm:$0xff] %vm1527, %v4196
      %4225 = vst.msk [vmem:[#allocation2 + $0x60] sm:$0xff] %vm1527, %v4197
      %4226 = vst.msk [vmem:[#allocation2 + $0x68] sm:$0xff] %vm1527, %v4198
      %4227 = vst.msk [vmem:[#allocation2 + $0x70] sm:$0xff] %vm1527, %v4199
      %4228 = vst.msk [vmem:[#allocation2 + $0x78] sm:$0xff] %vm1527, %v4200
      %4229 = vst.msk [vmem:[#allocation2 + $0x80] sm:$0xff] %vm1527, %v4201
      %4230 = vst.msk [vmem:[#allocation2 + $0x88] sm:$0xff] %vm1527, %v4202
      %4231 = vst.msk [vmem:[#allocation2 + $0x90] sm:$0xff] %vm1527, %v4203
      %4232 = vst.msk [vmem:[#allocation2 + $0x98] sm:$0xff] %vm1527, %v4204
      %4233 = vst.msk [vmem:[#allocation2 + $0xa0] sm:$0xff] %vm1527, %v4205
      %4234 = vst.msk [vmem:[#allocation2 + $0xa8] sm:$0xff] %vm1527, %v4206
      %4235 = vst.msk [vmem:[#allocation2 + $0xb0] sm:$0xff] %vm1527, %v4207
      %4236 = vst.msk [vmem:[#allocation2 + $0xb8] sm:$0xff] %vm1527, %v4208
      %4237 = vst.msk [vmem:[#allocation2 + $0xc0] sm:$0xff] %vm1527, %v4209
      %4238 = vst.msk [vmem:[#allocation2 + $0xc8] sm:$0xff] %vm1527, %v4210
      %4239 = vst.msk [vmem:[#allocation2 + $0xd0] sm:$0xff] %vm1527, %v4211
      %4240 = vst.msk [vmem:[#allocation2 + $0xd8] sm:$0xff] %vm1527, %v4212
      %4241 = vst.msk [vmem:[#allocation2 + $0xe0] sm:$0xff] %vm1527, %v4213
      %4242 = vst.msk [vmem:[#allocation2 + $0xe8] sm:$0xff] %vm1527, %v4214
      %4243 = vst.msk [vmem:[#allocation2 + $0xf0] sm:$0xff] %vm1527, %v4215
      %4244 = vst.msk [vmem:[#allocation2 + $0xf8] sm:$0xff] %vm1527, %v4216
      %v4245 = vld [vmem:[#allocation2] sm:$0xff]
      %v4246 = vld [vmem:[#allocation2 + $0x8] sm:$0xff]
      %v4247 = vld [vmem:[#allocation2 + $0x10] sm:$0xff]
      %v4248 = vld [vmem:[#allocation2 + $0x18] sm:$0xff]
      %v4249 = vld [vmem:[#allocation2 + $0x20] sm:$0xff]
      %v4250 = vld [vmem:[#allocation2 + $0x28] sm:$0xff]
      %v4251 = vld [vmem:[#allocation2 + $0x30] sm:$0xff]
      %v4252 = vld [vmem:[#allocation2 + $0x38] sm:$0xff]
      %v4253 = vld [vmem:[#allocation2 + $0x40] sm:$0xff]
      %v4254 = vld [vmem:[#allocation2 + $0x48] sm:$0xff]
      %v4255 = vld [vmem:[#allocation2 + $0x50] sm:$0xff]
      %v4256 = vld [vmem:[#allocation2 + $0x58] sm:$0xff]
      %v4257 = vld [vmem:[#allocation2 + $0x60] sm:$0xff]
      %v4258 = vld [vmem:[#allocation2 + $0x68] sm:$0xff]
      %v4259 = vld [vmem:[#allocation2 + $0x70] sm:$0xff]
      %v4260 = vld [vmem:[#allocation2 + $0x78] sm:$0xff]
      %v4261 = vld [vmem:[#allocation2 + $0x80] sm:$0xff]
      %v4262 = vld [vmem:[#allocation2 + $0x88] sm:$0xff]
      %v4263 = vld [vmem:[#allocation2 + $0x90] sm:$0xff]
      %v4264 = vld [vmem:[#allocation2 + $0x98] sm:$0xff]
      %v4265 = vld [vmem:[#allocation2 + $0xa0] sm:$0xff]
      %v4266 = vld [vmem:[#allocation2 + $0xa8] sm:$0xff]
      %v4267 = vld [vmem:[#allocation2 + $0xb0] sm:$0xff]
      %v4268 = vld [vmem:[#allocation2 + $0xb8] sm:$0xff]
      %v4269 = vld [vmem:[#allocation2 + $0xc0] sm:$0xff]
      %v4270 = vld [vmem:[#allocation2 + $0xc8] sm:$0xff]
      %v4271 = vld [vmem:[#allocation2 + $0xd0] sm:$0xff]
      %v4272 = vld [vmem:[#allocation2 + $0xd8] sm:$0xff]
      %v4273 = vld [vmem:[#allocation2 + $0xe0] sm:$0xff]
      %v4274 = vld [vmem:[#allocation2 + $0xe8] sm:$0xff]
      %v4275 = vld [vmem:[#allocation2 + $0xf0] sm:$0xff]
      %v4276 = vld [vmem:[#allocation2 + $0xf8] sm:$0xff]
      %v4277 = vrot.slane %v4245, 7
      %v4278 = vrot.slane %v4246, 7
      %v4279 = vrot.slane %v4247, 7
      %v4280 = vrot.slane %v4248, 7
      %v4281 = vrot.slane %v4249, 7
      %v4282 = vrot.slane %v4250, 7
      %v4283 = vrot.slane %v4251, 7
      %v4284 = vrot.slane %v4252, 7
      %v4285 = vrot.slane %v4253, 7
      %v4286 = vrot.slane %v4254, 7
      %v4287 = vrot.slane %v4255, 7
      %v4288 = vrot.slane %v4256, 7
      %v4289 = vrot.slane %v4257, 7
      %v4290 = vrot.slane %v4258, 7
      %v4291 = vrot.slane %v4259, 7
      %v4292 = vrot.slane %v4260, 7
      %v4293 = vrot.slane %v4261, 7
      %v4294 = vrot.slane %v4262, 7
      %v4295 = vrot.slane %v4263, 7
      %v4296 = vrot.slane %v4264, 7
      %v4297 = vrot.slane %v4265, 7
      %v4298 = vrot.slane %v4266, 7
      %v4299 = vrot.slane %v4267, 7
      %v4300 = vrot.slane %v4268, 7
      %v4301 = vrot.slane %v4269, 7
      %v4302 = vrot.slane %v4270, 7
      %v4303 = vrot.slane %v4271, 7
      %v4304 = vrot.slane %v4272, 7
      %v4305 = vrot.slane %v4273, 7
      %v4306 = vrot.slane %v4274, 7
      %v4307 = vrot.slane %v4275, 7
      %v4308 = vrot.slane %v4276, 7
      %v4309 = vsel %vm1154, %v4307, %v4308
      %v4310 = vsel %vm1154, %v4306, %v4307
      %v4311 = vsel %vm1154, %v4305, %v4306
      %v4312 = vsel %vm1154, %v4304, %v4305
      %v4313 = vsel %vm1154, %v4303, %v4304
      %v4314 = vsel %vm1154, %v4302, %v4303
      %v4315 = vsel %vm1154, %v4301, %v4302
      %v4316 = vsel %vm1154, %v4300, %v4301
      %v4317 = vsel %vm1154, %v4299, %v4300
      %v4318 = vsel %vm1154, %v4298, %v4299
      %v4319 = vsel %vm1154, %v4297, %v4298
      %v4320 = vsel %vm1154, %v4296, %v4297
      %v4321 = vsel %vm1154, %v4295, %v4296
      %v4322 = vsel %vm1154, %v4294, %v4295
      %v4323 = vsel %vm1154, %v4293, %v4294
      %v4324 = vsel %vm1154, %v4292, %v4293
      %v4325 = vsel %vm1154, %v4291, %v4292
      %v4326 = vsel %vm1154, %v4290, %v4291
      %v4327 = vsel %vm1154, %v4289, %v4290
      %v4328 = vsel %vm1154, %v4288, %v4289
      %v4329 = vsel %vm1154, %v4287, %v4288
      %v4330 = vsel %vm1154, %v4286, %v4287
      %v4331 = vsel %vm1154, %v4285, %v4286
      %v4332 = vsel %vm1154, %v4284, %v4285
      %v4333 = vsel %vm1154, %v4283, %v4284
      %v4334 = vsel %vm1154, %v4282, %v4283
      %v4335 = vsel %vm1154, %v4281, %v4282
      %v4336 = vsel %vm1154, %v4280, %v4281
      %v4337 = vsel %vm1154, %v4279, %v4280
      %v4338 = vsel %vm1154, %v4278, %v4279
      %v4339 = vsel %vm1154, %v4277, %v4278
      %v4340 = vsel %vm1154, %v4308, %v4277
      %v4341 = vsel %vm1187, %v4340, -inf
      %v4342 = vsel %vm1188, %v4339, -inf
      %v4343 = vsel %vm1189, %v4338, -inf
      %v4344 = vsel %vm1190, %v4337, -inf
      %v4345 = vsel %vm1191, %v4336, -inf
      %v4346 = vsel %vm1192, %v4335, -inf
      %v4347 = vsel %vm1193, %v4334, -inf
      %v4348 = vsel %vm1194, %v4333, -inf
      %v4349 = vsel %vm1195, %v4332, -inf
      %v4350 = vsel %vm1196, %v4331, -inf
      %v4351 = vsel %vm1197, %v4330, -inf
      %v4352 = vsel %vm1198, %v4329, -inf
      %v4353 = vsel %vm1199, %v4328, -inf
      %v4354 = vsel %vm1200, %v4327, -inf
      %v4355 = vsel %vm1201, %v4326, -inf
      %v4356 = vsel %vm1202, %v4325, -inf
      %v4357 = vsel %vm1203, %v4324, -inf
      %v4358 = vsel %vm1204, %v4323, -inf
      %v4359 = vsel %vm1205, %v4322, -inf
      %v4360 = vsel %vm1206, %v4321, -inf
      %v4361 = vsel %vm1207, %v4320, -inf
      %v4362 = vsel %vm1208, %v4319, -inf
      %v4363 = vsel %vm1209, %v4318, -inf
      %v4364 = vsel %vm1210, %v4317, -inf
      %v4365 = vsel %vm1211, %v4316, -inf
      %v4366 = vsel %vm1212, %v4315, -inf
      %v4367 = vsel %vm1213, %v4314, -inf
      %v4368 = vsel %vm1214, %v4313, -inf
      %v4369 = vsel %vm1215, %v4312, -inf
      %v4370 = vsel %vm1216, %v4311, -inf
      %v4371 = vsel %vm1217, %v4310, -inf
      %v4372 = vsel %vm1218, %v4309, -inf
      %v4373 = vmax.f32 %v4245, %v4341
      %v4374 = vmax.f32 %v4246, %v4342
      %v4375 = vmax.f32 %v4247, %v4343
      %v4376 = vmax.f32 %v4248, %v4344
      %v4377 = vmax.f32 %v4249, %v4345
      %v4378 = vmax.f32 %v4250, %v4346
      %v4379 = vmax.f32 %v4251, %v4347
      %v4380 = vmax.f32 %v4252, %v4348
      %v4381 = vmax.f32 %v4253, %v4349
      %v4382 = vmax.f32 %v4254, %v4350
      %v4383 = vmax.f32 %v4255, %v4351
      %v4384 = vmax.f32 %v4256, %v4352
      %v4385 = vmax.f32 %v4257, %v4353
      %v4386 = vmax.f32 %v4258, %v4354
      %v4387 = vmax.f32 %v4259, %v4355
      %v4388 = vmax.f32 %v4260, %v4356
      %v4389 = vmax.f32 %v4261, %v4357
      %v4390 = vmax.f32 %v4262, %v4358
      %v4391 = vmax.f32 %v4263, %v4359
      %v4392 = vmax.f32 %v4264, %v4360
      %v4393 = vmax.f32 %v4265, %v4361
      %v4394 = vmax.f32 %v4266, %v4362
      %v4395 = vmax.f32 %v4267, %v4363
      %v4396 = vmax.f32 %v4268, %v4364
      %v4397 = vmax.f32 %v4269, %v4365
      %v4398 = vmax.f32 %v4270, %v4366
      %v4399 = vmax.f32 %v4271, %v4367
      %v4400 = vmax.f32 %v4272, %v4368
      %v4401 = vmax.f32 %v4273, %v4369
      %v4402 = vmax.f32 %v4274, %v4370
      %v4403 = vmax.f32 %v4275, %v4371
      %v4404 = vmax.f32 %v4276, %v4372
      %v4405 = vrot.slane %v4245, 6
      %v4406 = vrot.slane %v4246, 6
      %v4407 = vrot.slane %v4247, 6
      %v4408 = vrot.slane %v4248, 6
      %v4409 = vrot.slane %v4249, 6
      %v4410 = vrot.slane %v4250, 6
      %v4411 = vrot.slane %v4251, 6
      %v4412 = vrot.slane %v4252, 6
      %v4413 = vrot.slane %v4253, 6
      %v4414 = vrot.slane %v4254, 6
      %v4415 = vrot.slane %v4255, 6
      %v4416 = vrot.slane %v4256, 6
      %v4417 = vrot.slane %v4257, 6
      %v4418 = vrot.slane %v4258, 6
      %v4419 = vrot.slane %v4259, 6
      %v4420 = vrot.slane %v4260, 6
      %v4421 = vrot.slane %v4261, 6
      %v4422 = vrot.slane %v4262, 6
      %v4423 = vrot.slane %v4263, 6
      %v4424 = vrot.slane %v4264, 6
      %v4425 = vrot.slane %v4265, 6
      %v4426 = vrot.slane %v4266, 6
      %v4427 = vrot.slane %v4267, 6
      %v4428 = vrot.slane %v4268, 6
      %v4429 = vrot.slane %v4269, 6
      %v4430 = vrot.slane %v4270, 6
      %v4431 = vrot.slane %v4271, 6
      %v4432 = vrot.slane %v4272, 6
      %v4433 = vrot.slane %v4273, 6
      %v4434 = vrot.slane %v4274, 6
      %v4435 = vrot.slane %v4275, 6
      %v4436 = vrot.slane %v4276, 6
      %v4437 = vsel %vm1251, %v4435, %v4436
      %v4438 = vsel %vm1251, %v4434, %v4435
      %v4439 = vsel %vm1251, %v4433, %v4434
      %v4440 = vsel %vm1251, %v4432, %v4433
      %v4441 = vsel %vm1251, %v4431, %v4432
      %v4442 = vsel %vm1251, %v4430, %v4431
      %v4443 = vsel %vm1251, %v4429, %v4430
      %v4444 = vsel %vm1251, %v4428, %v4429
      %v4445 = vsel %vm1251, %v4427, %v4428
      %v4446 = vsel %vm1251, %v4426, %v4427
      %v4447 = vsel %vm1251, %v4425, %v4426
      %v4448 = vsel %vm1251, %v4424, %v4425
      %v4449 = vsel %vm1251, %v4423, %v4424
      %v4450 = vsel %vm1251, %v4422, %v4423
      %v4451 = vsel %vm1251, %v4421, %v4422
      %v4452 = vsel %vm1251, %v4420, %v4421
      %v4453 = vsel %vm1251, %v4419, %v4420
      %v4454 = vsel %vm1251, %v4418, %v4419
      %v4455 = vsel %vm1251, %v4417, %v4418
      %v4456 = vsel %vm1251, %v4416, %v4417
      %v4457 = vsel %vm1251, %v4415, %v4416
      %v4458 = vsel %vm1251, %v4414, %v4415
      %v4459 = vsel %vm1251, %v4413, %v4414
      %v4460 = vsel %vm1251, %v4412, %v4413
      %v4461 = vsel %vm1251, %v4411, %v4412
      %v4462 = vsel %vm1251, %v4410, %v4411
      %v4463 = vsel %vm1251, %v4409, %v4410
      %v4464 = vsel %vm1251, %v4408, %v4409
      %v4465 = vsel %vm1251, %v4407, %v4408
      %v4466 = vsel %vm1251, %v4406, %v4407
      %v4467 = vsel %vm1251, %v4405, %v4406
      %v4468 = vsel %vm1251, %v4436, %v4405
      %v4469 = vsel %vm1284, %v4468, -inf
      %v4470 = vsel %vm1285, %v4467, -inf
      %v4471 = vsel %vm1286, %v4466, -inf
      %v4472 = vsel %vm1287, %v4465, -inf
      %v4473 = vsel %vm1288, %v4464, -inf
      %v4474 = vsel %vm1289, %v4463, -inf
      %v4475 = vsel %vm1290, %v4462, -inf
      %v4476 = vsel %vm1291, %v4461, -inf
      %v4477 = vsel %vm1292, %v4460, -inf
      %v4478 = vsel %vm1293, %v4459, -inf
      %v4479 = vsel %vm1294, %v4458, -inf
      %v4480 = vsel %vm1295, %v4457, -inf
      %v4481 = vsel %vm1296, %v4456, -inf
      %v4482 = vsel %vm1297, %v4455, -inf
      %v4483 = vsel %vm1298, %v4454, -inf
      %v4484 = vsel %vm1299, %v4453, -inf
      %v4485 = vsel %vm1300, %v4452, -inf
      %v4486 = vsel %vm1301, %v4451, -inf
      %v4487 = vsel %vm1302, %v4450, -inf
      %v4488 = vsel %vm1303, %v4449, -inf
      %v4489 = vsel %vm1304, %v4448, -inf
      %v4490 = vsel %vm1305, %v4447, -inf
      %v4491 = vsel %vm1306, %v4446, -inf
      %v4492 = vsel %vm1307, %v4445, -inf
      %v4493 = vsel %vm1308, %v4444, -inf
      %v4494 = vsel %vm1309, %v4443, -inf
      %v4495 = vsel %vm1310, %v4442, -inf
      %v4496 = vsel %vm1311, %v4441, -inf
      %v4497 = vsel %vm1312, %v4440, -inf
      %v4498 = vsel %vm1313, %v4439, -inf
      %v4499 = vsel %vm1314, %v4438, -inf
      %v4500 = vsel %vm1315, %v4437, -inf
      %v4501 = vmax.f32 %v4373, %v4469
      %v4502 = vmax.f32 %v4374, %v4470
      %v4503 = vmax.f32 %v4375, %v4471
      %v4504 = vmax.f32 %v4376, %v4472
      %v4505 = vmax.f32 %v4377, %v4473
      %v4506 = vmax.f32 %v4378, %v4474
      %v4507 = vmax.f32 %v4379, %v4475
      %v4508 = vmax.f32 %v4380, %v4476
      %v4509 = vmax.f32 %v4381, %v4477
      %v4510 = vmax.f32 %v4382, %v4478
      %v4511 = vmax.f32 %v4383, %v4479
      %v4512 = vmax.f32 %v4384, %v4480
      %v4513 = vmax.f32 %v4385, %v4481
      %v4514 = vmax.f32 %v4386, %v4482
      %v4515 = vmax.f32 %v4387, %v4483
      %v4516 = vmax.f32 %v4388, %v4484
      %v4517 = vmax.f32 %v4389, %v4485
      %v4518 = vmax.f32 %v4390, %v4486
      %v4519 = vmax.f32 %v4391, %v4487
      %v4520 = vmax.f32 %v4392, %v4488
      %v4521 = vmax.f32 %v4393, %v4489
      %v4522 = vmax.f32 %v4394, %v4490
      %v4523 = vmax.f32 %v4395, %v4491
      %v4524 = vmax.f32 %v4396, %v4492
      %v4525 = vmax.f32 %v4397, %v4493
      %v4526 = vmax.f32 %v4398, %v4494
      %v4527 = vmax.f32 %v4399, %v4495
      %v4528 = vmax.f32 %v4400, %v4496
      %v4529 = vmax.f32 %v4401, %v4497
      %v4530 = vmax.f32 %v4402, %v4498
      %v4531 = vmax.f32 %v4403, %v4499
      %v4532 = vmax.f32 %v4404, %v4500
      %v4533 = vrot.slane %v4245, 1
      %v4534 = vrot.slane %v4246, 1
      %v4535 = vrot.slane %v4247, 1
      %v4536 = vrot.slane %v4248, 1
      %v4537 = vrot.slane %v4249, 1
      %v4538 = vrot.slane %v4250, 1
      %v4539 = vrot.slane %v4251, 1
      %v4540 = vrot.slane %v4252, 1
      %v4541 = vrot.slane %v4253, 1
      %v4542 = vrot.slane %v4254, 1
      %v4543 = vrot.slane %v4255, 1
      %v4544 = vrot.slane %v4256, 1
      %v4545 = vrot.slane %v4257, 1
      %v4546 = vrot.slane %v4258, 1
      %v4547 = vrot.slane %v4259, 1
      %v4548 = vrot.slane %v4260, 1
      %v4549 = vrot.slane %v4261, 1
      %v4550 = vrot.slane %v4262, 1
      %v4551 = vrot.slane %v4263, 1
      %v4552 = vrot.slane %v4264, 1
      %v4553 = vrot.slane %v4265, 1
      %v4554 = vrot.slane %v4266, 1
      %v4555 = vrot.slane %v4267, 1
      %v4556 = vrot.slane %v4268, 1
      %v4557 = vrot.slane %v4269, 1
      %v4558 = vrot.slane %v4270, 1
      %v4559 = vrot.slane %v4271, 1
      %v4560 = vrot.slane %v4272, 1
      %v4561 = vrot.slane %v4273, 1
      %v4562 = vrot.slane %v4274, 1
      %v4563 = vrot.slane %v4275, 1
      %v4564 = vrot.slane %v4276, 1
      %v4565 = vsel %vm1348, %v4563, %v4564
      %v4566 = vsel %vm1348, %v4562, %v4563
      %v4567 = vsel %vm1348, %v4561, %v4562
      %v4568 = vsel %vm1348, %v4560, %v4561
      %v4569 = vsel %vm1348, %v4559, %v4560
      %v4570 = vsel %vm1348, %v4558, %v4559
      %v4571 = vsel %vm1348, %v4557, %v4558
      %v4572 = vsel %vm1348, %v4556, %v4557
      %v4573 = vsel %vm1348, %v4555, %v4556
      %v4574 = vsel %vm1348, %v4554, %v4555
      %v4575 = vsel %vm1348, %v4553, %v4554
      %v4576 = vsel %vm1348, %v4552, %v4553
      %v4577 = vsel %vm1348, %v4551, %v4552
      %v4578 = vsel %vm1348, %v4550, %v4551
      %v4579 = vsel %vm1348, %v4549, %v4550
      %v4580 = vsel %vm1348, %v4548, %v4549
      %v4581 = vsel %vm1348, %v4547, %v4548
      %v4582 = vsel %vm1348, %v4546, %v4547
      %v4583 = vsel %vm1348, %v4545, %v4546
      %v4584 = vsel %vm1348, %v4544, %v4545
      %v4585 = vsel %vm1348, %v4543, %v4544
      %v4586 = vsel %vm1348, %v4542, %v4543
      %v4587 = vsel %vm1348, %v4541, %v4542
      %v4588 = vsel %vm1348, %v4540, %v4541
      %v4589 = vsel %vm1348, %v4539, %v4540
      %v4590 = vsel %vm1348, %v4538, %v4539
      %v4591 = vsel %vm1348, %v4537, %v4538
      %v4592 = vsel %vm1348, %v4536, %v4537
      %v4593 = vsel %vm1348, %v4535, %v4536
      %v4594 = vsel %vm1348, %v4534, %v4535
      %v4595 = vsel %vm1348, %v4533, %v4534
      %v4596 = vsel %vm1348, %v4564, %v4533
      %v4597 = vsel %vm1381, %v4595, -inf
      %v4598 = vsel %vm1382, %v4594, -inf
      %v4599 = vsel %vm1383, %v4593, -inf
      %v4600 = vsel %vm1384, %v4592, -inf
      %v4601 = vsel %vm1385, %v4591, -inf
      %v4602 = vsel %vm1386, %v4590, -inf
      %v4603 = vsel %vm1387, %v4589, -inf
      %v4604 = vsel %vm1388, %v4588, -inf
      %v4605 = vsel %vm1389, %v4587, -inf
      %v4606 = vsel %vm1390, %v4586, -inf
      %v4607 = vsel %vm1391, %v4585, -inf
      %v4608 = vsel %vm1392, %v4584, -inf
      %v4609 = vsel %vm1393, %v4583, -inf
      %v4610 = vsel %vm1394, %v4582, -inf
      %v4611 = vsel %vm1395, %v4581, -inf
      %v4612 = vsel %vm1396, %v4580, -inf
      %v4613 = vsel %vm1397, %v4579, -inf
      %v4614 = vsel %vm1398, %v4578, -inf
      %v4615 = vsel %vm1399, %v4577, -inf
      %v4616 = vsel %vm1400, %v4576, -inf
      %v4617 = vsel %vm1401, %v4575, -inf
      %v4618 = vsel %vm1402, %v4574, -inf
      %v4619 = vsel %vm1403, %v4573, -inf
      %v4620 = vsel %vm1404, %v4572, -inf
      %v4621 = vsel %vm1405, %v4571, -inf
      %v4622 = vsel %vm1406, %v4570, -inf
      %v4623 = vsel %vm1407, %v4569, -inf
      %v4624 = vsel %vm1408, %v4568, -inf
      %v4625 = vsel %vm1409, %v4567, -inf
      %v4626 = vsel %vm1410, %v4566, -inf
      %v4627 = vsel %vm1411, %v4565, -inf
      %v4628 = vsel %vm1412, %v4596, -inf
      %v4629 = vmax.f32 %v4501, %v4597
      %v4630 = vmax.f32 %v4502, %v4598
      %v4631 = vmax.f32 %v4503, %v4599
      %v4632 = vmax.f32 %v4504, %v4600
      %v4633 = vmax.f32 %v4505, %v4601
      %v4634 = vmax.f32 %v4506, %v4602
      %v4635 = vmax.f32 %v4507, %v4603
      %v4636 = vmax.f32 %v4508, %v4604
      %v4637 = vmax.f32 %v4509, %v4605
      %v4638 = vmax.f32 %v4510, %v4606
      %v4639 = vmax.f32 %v4511, %v4607
      %v4640 = vmax.f32 %v4512, %v4608
      %v4641 = vmax.f32 %v4513, %v4609
      %v4642 = vmax.f32 %v4514, %v4610
      %v4643 = vmax.f32 %v4515, %v4611
      %v4644 = vmax.f32 %v4516, %v4612
      %v4645 = vmax.f32 %v4517, %v4613
      %v4646 = vmax.f32 %v4518, %v4614
      %v4647 = vmax.f32 %v4519, %v4615
      %v4648 = vmax.f32 %v4520, %v4616
      %v4649 = vmax.f32 %v4521, %v4617
      %v4650 = vmax.f32 %v4522, %v4618
      %v4651 = vmax.f32 %v4523, %v4619
      %v4652 = vmax.f32 %v4524, %v4620
      %v4653 = vmax.f32 %v4525, %v4621
      %v4654 = vmax.f32 %v4526, %v4622
      %v4655 = vmax.f32 %v4527, %v4623
      %v4656 = vmax.f32 %v4528, %v4624
      %v4657 = vmax.f32 %v4529, %v4625
      %v4658 = vmax.f32 %v4530, %v4626
      %v4659 = vmax.f32 %v4531, %v4627
      %v4660 = vmax.f32 %v4532, %v4628
      %v4661 = vrot.slane %v4245, 2
      %v4662 = vrot.slane %v4246, 2
      %v4663 = vrot.slane %v4247, 2
      %v4664 = vrot.slane %v4248, 2
      %v4665 = vrot.slane %v4249, 2
      %v4666 = vrot.slane %v4250, 2
      %v4667 = vrot.slane %v4251, 2
      %v4668 = vrot.slane %v4252, 2
      %v4669 = vrot.slane %v4253, 2
      %v4670 = vrot.slane %v4254, 2
      %v4671 = vrot.slane %v4255, 2
      %v4672 = vrot.slane %v4256, 2
      %v4673 = vrot.slane %v4257, 2
      %v4674 = vrot.slane %v4258, 2
      %v4675 = vrot.slane %v4259, 2
      %v4676 = vrot.slane %v4260, 2
      %v4677 = vrot.slane %v4261, 2
      %v4678 = vrot.slane %v4262, 2
      %v4679 = vrot.slane %v4263, 2
      %v4680 = vrot.slane %v4264, 2
      %v4681 = vrot.slane %v4265, 2
      %v4682 = vrot.slane %v4266, 2
      %v4683 = vrot.slane %v4267, 2
      %v4684 = vrot.slane %v4268, 2
      %v4685 = vrot.slane %v4269, 2
      %v4686 = vrot.slane %v4270, 2
      %v4687 = vrot.slane %v4271, 2
      %v4688 = vrot.slane %v4272, 2
      %v4689 = vrot.slane %v4273, 2
      %v4690 = vrot.slane %v4274, 2
      %v4691 = vrot.slane %v4275, 2
      %v4692 = vrot.slane %v4276, 2
      %v4693 = vsel %vm1445, %v4691, %v4692
      %v4694 = vsel %vm1445, %v4690, %v4691
      %v4695 = vsel %vm1445, %v4689, %v4690
      %v4696 = vsel %vm1445, %v4688, %v4689
      %v4697 = vsel %vm1445, %v4687, %v4688
      %v4698 = vsel %vm1445, %v4686, %v4687
      %v4699 = vsel %vm1445, %v4685, %v4686
      %v4700 = vsel %vm1445, %v4684, %v4685
      %v4701 = vsel %vm1445, %v4683, %v4684
      %v4702 = vsel %vm1445, %v4682, %v4683
      %v4703 = vsel %vm1445, %v4681, %v4682
      %v4704 = vsel %vm1445, %v4680, %v4681
      %v4705 = vsel %vm1445, %v4679, %v4680
      %v4706 = vsel %vm1445, %v4678, %v4679
      %v4707 = vsel %vm1445, %v4677, %v4678
      %v4708 = vsel %vm1445, %v4676, %v4677
      %v4709 = vsel %vm1445, %v4675, %v4676
      %v4710 = vsel %vm1445, %v4674, %v4675
      %v4711 = vsel %vm1445, %v4673, %v4674
      %v4712 = vsel %vm1445, %v4672, %v4673
      %v4713 = vsel %vm1445, %v4671, %v4672
      %v4714 = vsel %vm1445, %v4670, %v4671
      %v4715 = vsel %vm1445, %v4669, %v4670
      %v4716 = vsel %vm1445, %v4668, %v4669
      %v4717 = vsel %vm1445, %v4667, %v4668
      %v4718 = vsel %vm1445, %v4666, %v4667
      %v4719 = vsel %vm1445, %v4665, %v4666
      %v4720 = vsel %vm1445, %v4664, %v4665
      %v4721 = vsel %vm1445, %v4663, %v4664
      %v4722 = vsel %vm1445, %v4662, %v4663
      %v4723 = vsel %vm1445, %v4661, %v4662
      %v4724 = vsel %vm1445, %v4692, %v4661
      %v4725 = vsel %vm1478, %v4723, -inf
      %v4726 = vsel %vm1479, %v4722, -inf
      %v4727 = vsel %vm1480, %v4721, -inf
      %v4728 = vsel %vm1481, %v4720, -inf
      %v4729 = vsel %vm1482, %v4719, -inf
      %v4730 = vsel %vm1483, %v4718, -inf
      %v4731 = vsel %vm1484, %v4717, -inf
      %v4732 = vsel %vm1485, %v4716, -inf
      %v4733 = vsel %vm1486, %v4715, -inf
      %v4734 = vsel %vm1487, %v4714, -inf
      %v4735 = vsel %vm1488, %v4713, -inf
      %v4736 = vsel %vm1489, %v4712, -inf
      %v4737 = vsel %vm1490, %v4711, -inf
      %v4738 = vsel %vm1491, %v4710, -inf
      %v4739 = vsel %vm1492, %v4709, -inf
      %v4740 = vsel %vm1493, %v4708, -inf
      %v4741 = vsel %vm1494, %v4707, -inf
      %v4742 = vsel %vm1495, %v4706, -inf
      %v4743 = vsel %vm1496, %v4705, -inf
      %v4744 = vsel %vm1497, %v4704, -inf
      %v4745 = vsel %vm1498, %v4703, -inf
      %v4746 = vsel %vm1499, %v4702, -inf
      %v4747 = vsel %vm1500, %v4701, -inf
      %v4748 = vsel %vm1501, %v4700, -inf
      %v4749 = vsel %vm1502, %v4699, -inf
      %v4750 = vsel %vm1503, %v4698, -inf
      %v4751 = vsel %vm1504, %v4697, -inf
      %v4752 = vsel %vm1505, %v4696, -inf
      %v4753 = vsel %vm1506, %v4695, -inf
      %v4754 = vsel %vm1507, %v4694, -inf
      %v4755 = vsel %vm1508, %v4693, -inf
      %v4756 = vsel %vm1509, %v4724, -inf
      %v4757 = vmax.f32 %v4629, %v4725
      %v4758 = vmax.f32 %v4630, %v4726
      %v4759 = vmax.f32 %v4631, %v4727
      %v4760 = vmax.f32 %v4632, %v4728
      %v4761 = vmax.f32 %v4633, %v4729
      %v4762 = vmax.f32 %v4634, %v4730
      %v4763 = vmax.f32 %v4635, %v4731
      %v4764 = vmax.f32 %v4636, %v4732
      %v4765 = vmax.f32 %v4637, %v4733
      %v4766 = vmax.f32 %v4638, %v4734
      %v4767 = vmax.f32 %v4639, %v4735
      %v4768 = vmax.f32 %v4640, %v4736
      %v4769 = vmax.f32 %v4641, %v4737
      %v4770 = vmax.f32 %v4642, %v4738
      %v4771 = vmax.f32 %v4643, %v4739
      %v4772 = vmax.f32 %v4644, %v4740
      %v4773 = vmax.f32 %v4645, %v4741
      %v4774 = vmax.f32 %v4646, %v4742
      %v4775 = vmax.f32 %v4647, %v4743
      %v4776 = vmax.f32 %v4648, %v4744
      %v4777 = vmax.f32 %v4649, %v4745
      %v4778 = vmax.f32 %v4650, %v4746
      %v4779 = vmax.f32 %v4651, %v4747
      %v4780 = vmax.f32 %v4652, %v4748
      %v4781 = vmax.f32 %v4653, %v4749
      %v4782 = vmax.f32 %v4654, %v4750
      %v4783 = vmax.f32 %v4655, %v4751
      %v4784 = vmax.f32 %v4656, %v4752
      %v4785 = vmax.f32 %v4657, %v4753
      %v4786 = vmax.f32 %v4658, %v4754
      %v4787 = vmax.f32 %v4659, %v4755
      %v4788 = vmax.f32 %v4660, %v4756
      %v4789 = vpack.c.bf16 %v4758, %v4757
      %v4790 = vpack.c.bf16 %v4760, %v4759
      %v4791 = vpack.c.bf16 %v4762, %v4761
      %v4792 = vpack.c.bf16 %v4764, %v4763
      %v4793 = vpack.c.bf16 %v4766, %v4765
      %v4794 = vpack.c.bf16 %v4768, %v4767
      %v4795 = vpack.c.bf16 %v4770, %v4769
      %v4796 = vpack.c.bf16 %v4772, %v4771
      %v4797 = vpack.c.bf16 %v4774, %v4773
      %v4798 = vpack.c.bf16 %v4776, %v4775
      %v4799 = vpack.c.bf16 %v4778, %v4777
      %v4800 = vpack.c.bf16 %v4780, %v4779
      %v4801 = vpack.c.bf16 %v4782, %v4781
      %v4802 = vpack.c.bf16 %v4784, %v4783
      %v4803 = vpack.c.bf16 %v4786, %v4785
      %v4804 = vpack.c.bf16 %v4788, %v4787
      %s4805 = scalar_lea.vmem %s3, 6
      %v4806 = vld [vmem:[%s4805] sm:$0x3]
      %v4808 = vsel %vm1527, %v4789, 0
      %v4811 = vsel %vm1527, %v4790, 0
      %v4814 = vsel %vm1527, %v4791, 0
      %v4817 = vsel %vm1527, %v4792, 0
      %v4820 = vsel %vm1527, %v4793, 0
      %v4823 = vsel %vm1527, %v4794, 0
      %v4826 = vsel %vm1527, %v4795, 0
      %v4829 = vsel %vm1527, %v4796, 0
      %v4832 = vsel %vm1527, %v4797, 0
      %v4835 = vsel %vm1527, %v4798, 0
      %v4838 = vsel %vm1527, %v4799, 0
      %v4841 = vsel %vm1527, %v4800, 0
      %v4844 = vsel %vm1527, %v4801, 0
      %v4847 = vsel %vm1527, %v4802, 0
      %v4850 = vsel %vm1527, %v4803, 0
      %v4853 = vsel %vm1527, %v4804, 0
      %v4856 = vsel %vm2518, %v4806, 0
      %4858 = vmatpush.bf16.msra.mxu0 0
      %4859 = vmatpush.bf16.msra.mxu0 0
      %4860 = vmatpush.bf16.msra.mxu0 0
      %4861 = vmatpush.bf16.msra.mxu0 0
      %4862 = vmatpush.bf16.msra.mxu0 0
      %4863 = vmatpush.bf16.msra.mxu0 0
      %4864 = vmatpush.bf16.msra.mxu0 0
      %4865 = vmatpush.bf16.msra.mxu0 %v4856
      %4866 = vmatmul.bf16.gmra.mxu0 %v4808
      %v4867 = vpop.f32.mrf.mxu0
      %v4868 = vadd.f32 0.0, %v4867
      %v4869 = vpop.f32.mrf.mxu0
      %v4870 = vadd.f32 0.0, %v4869
      %4871 = vmatmul.bf16.gmra.mxu0 %v4811
      %v4872 = vpop.f32.mrf.mxu0
      %v4873 = vadd.f32 0.0, %v4872
      %v4874 = vpop.f32.mrf.mxu0
      %v4875 = vadd.f32 0.0, %v4874
      %4876 = vmatmul.bf16.gmra.mxu0 %v4814
      %v4877 = vpop.f32.mrf.mxu0
      %v4878 = vadd.f32 0.0, %v4877
      %v4879 = vpop.f32.mrf.mxu0
      %v4880 = vadd.f32 0.0, %v4879
      %4881 = vmatmul.bf16.gmra.mxu0 %v4817
      %v4882 = vpop.f32.mrf.mxu0
      %v4883 = vadd.f32 0.0, %v4882
      %v4884 = vpop.f32.mrf.mxu0
      %v4885 = vadd.f32 0.0, %v4884
      %4886 = vmatmul.bf16.gmra.mxu0 %v4820
      %v4887 = vpop.f32.mrf.mxu0
      %v4888 = vadd.f32 0.0, %v4887
      %v4889 = vpop.f32.mrf.mxu0
      %v4890 = vadd.f32 0.0, %v4889
      %4891 = vmatmul.bf16.gmra.mxu0 %v4823
      %v4892 = vpop.f32.mrf.mxu0
      %v4893 = vadd.f32 0.0, %v4892
      %v4894 = vpop.f32.mrf.mxu0
      %v4895 = vadd.f32 0.0, %v4894
      %4896 = vmatmul.bf16.gmra.mxu0 %v4826
      %v4897 = vpop.f32.mrf.mxu0
      %v4898 = vadd.f32 0.0, %v4897
      %v4899 = vpop.f32.mrf.mxu0
      %v4900 = vadd.f32 0.0, %v4899
      %4901 = vmatmul.bf16.gmra.mxu0 %v4829
      %v4902 = vpop.f32.mrf.mxu0
      %v4903 = vadd.f32 0.0, %v4902
      %v4904 = vpop.f32.mrf.mxu0
      %v4905 = vadd.f32 0.0, %v4904
      %4906 = vmatmul.bf16.gmra.mxu0 %v4832
      %v4907 = vpop.f32.mrf.mxu0
      %v4908 = vadd.f32 0.0, %v4907
      %v4909 = vpop.f32.mrf.mxu0
      %v4910 = vadd.f32 0.0, %v4909
      %4911 = vmatmul.bf16.gmra.mxu0 %v4835
      %v4912 = vpop.f32.mrf.mxu0
      %v4913 = vadd.f32 0.0, %v4912
      %v4914 = vpop.f32.mrf.mxu0
      %v4915 = vadd.f32 0.0, %v4914
      %4916 = vmatmul.bf16.gmra.mxu0 %v4838
      %v4917 = vpop.f32.mrf.mxu0
      %v4918 = vadd.f32 0.0, %v4917
      %v4919 = vpop.f32.mrf.mxu0
      %v4920 = vadd.f32 0.0, %v4919
      %4921 = vmatmul.bf16.gmra.mxu0 %v4841
      %v4922 = vpop.f32.mrf.mxu0
      %v4923 = vadd.f32 0.0, %v4922
      %v4924 = vpop.f32.mrf.mxu0
      %v4925 = vadd.f32 0.0, %v4924
      %4926 = vmatmul.bf16.gmra.mxu0 %v4844
      %v4927 = vpop.f32.mrf.mxu0
      %v4928 = vadd.f32 0.0, %v4927
      %v4929 = vpop.f32.mrf.mxu0
      %v4930 = vadd.f32 0.0, %v4929
      %4931 = vmatmul.bf16.gmra.mxu0 %v4847
      %v4932 = vpop.f32.mrf.mxu0
      %v4933 = vadd.f32 0.0, %v4932
      %v4934 = vpop.f32.mrf.mxu0
      %v4935 = vadd.f32 0.0, %v4934
      %4936 = vmatmul.bf16.gmra.mxu0 %v4850
      %v4937 = vpop.f32.mrf.mxu0
      %v4938 = vadd.f32 0.0, %v4937
      %v4939 = vpop.f32.mrf.mxu0
      %v4940 = vadd.f32 0.0, %v4939
      %4941 = vmatmul.bf16.gmra.mxu0 %v4853
      %v4942 = vpop.f32.mrf.mxu0
      %v4943 = vadd.f32 0.0, %v4942
      %v4944 = vpop.f32.mrf.mxu0
      %v4945 = vadd.f32 0.0, %v4944
      %4946 = vdwg.mxu0
      %v4947 = vadd.f32 %v3833, %v4868
      %v4948 = vadd.f32 %v3834, %v4870
      %v4949 = vadd.f32 %v3835, %v4873
      %v4950 = vadd.f32 %v3836, %v4875
      %v4951 = vadd.f32 %v3837, %v4878
      %v4952 = vadd.f32 %v3838, %v4880
      %v4953 = vadd.f32 %v3839, %v4883
      %v4954 = vadd.f32 %v3840, %v4885
      %v4955 = vadd.f32 %v3841, %v4888
      %v4956 = vadd.f32 %v3842, %v4890
      %v4957 = vadd.f32 %v3843, %v4893
      %v4958 = vadd.f32 %v3844, %v4895
      %v4959 = vadd.f32 %v3845, %v4898
      %v4960 = vadd.f32 %v3846, %v4900
      %v4961 = vadd.f32 %v3847, %v4903
      %v4962 = vadd.f32 %v3848, %v4905
      %v4963 = vadd.f32 %v3849, %v4908
      %v4964 = vadd.f32 %v3850, %v4910
      %v4965 = vadd.f32 %v3851, %v4913
      %v4966 = vadd.f32 %v3852, %v4915
      %v4967 = vadd.f32 %v3853, %v4918
      %v4968 = vadd.f32 %v3854, %v4920
      %v4969 = vadd.f32 %v3855, %v4923
      %v4970 = vadd.f32 %v3856, %v4925
      %v4971 = vadd.f32 %v3857, %v4928
      %v4972 = vadd.f32 %v3858, %v4930
      %v4973 = vadd.f32 %v3859, %v4933
      %v4974 = vadd.f32 %v3860, %v4935
      %v4975 = vadd.f32 %v3861, %v4938
      %v4976 = vadd.f32 %v3862, %v4940
      %v4977 = vadd.f32 %v3863, %v4943
      %v4978 = vadd.f32 %v3864, %v4945
      %v4979 = vld [vmem:[%s4] sm:$0x1]
      %v4981 = vperm.slane %v4979, 0
      %v4983 = vadd.f32 %v4947, %v4981
      %v4984 = vadd.f32 %v4948, %v4981
      %v4985 = vadd.f32 %v4949, %v4981
      %v4986 = vadd.f32 %v4950, %v4981
      %v4987 = vadd.f32 %v4951, %v4981
      %v4988 = vadd.f32 %v4952, %v4981
      %v4989 = vadd.f32 %v4953, %v4981
      %v4990 = vadd.f32 %v4954, %v4981
      %v4991 = vadd.f32 %v4955, %v4981
      %v4992 = vadd.f32 %v4956, %v4981
      %v4993 = vadd.f32 %v4957, %v4981
      %v4994 = vadd.f32 %v4958, %v4981
      %v4995 = vadd.f32 %v4959, %v4981
      %v4996 = vadd.f32 %v4960, %v4981
      %v4997 = vadd.f32 %v4961, %v4981
      %v4998 = vadd.f32 %v4962, %v4981
      %v4999 = vadd.f32 %v4963, %v4981
      %v5000 = vadd.f32 %v4964, %v4981
      %v5001 = vadd.f32 %v4965, %v4981
      %v5002 = vadd.f32 %v4966, %v4981
      %v5003 = vadd.f32 %v4967, %v4981
      %v5004 = vadd.f32 %v4968, %v4981
      %v5005 = vadd.f32 %v4969, %v4981
      %v5006 = vadd.f32 %v4970, %v4981
      %v5007 = vadd.f32 %v4971, %v4981
      %v5008 = vadd.f32 %v4972, %v4981
      %v5009 = vadd.f32 %v4973, %v4981
      %v5010 = vadd.f32 %v4974, %v4981
      %v5011 = vadd.f32 %v4975, %v4981
      %v5012 = vadd.f32 %v4976, %v4981
      %v5013 = vadd.f32 %v4977, %v4981
      %v5014 = vadd.f32 %v4978, %v4981
      %v5015 = vxor.u32 %v4983, 2147483648
      %v5016 = vxor.u32 %v4984, 2147483648
      %v5017 = vxor.u32 %v4985, 2147483648
      %v5018 = vxor.u32 %v4986, 2147483648
      %v5019 = vxor.u32 %v4987, 2147483648
      %v5020 = vxor.u32 %v4988, 2147483648
      %v5021 = vxor.u32 %v4989, 2147483648
      %v5022 = vxor.u32 %v4990, 2147483648
      %v5023 = vxor.u32 %v4991, 2147483648
      %v5024 = vxor.u32 %v4992, 2147483648
      %v5025 = vxor.u32 %v4993, 2147483648
      %v5026 = vxor.u32 %v4994, 2147483648
      %v5027 = vxor.u32 %v4995, 2147483648
      %v5028 = vxor.u32 %v4996, 2147483648
      %v5029 = vxor.u32 %v4997, 2147483648
      %v5030 = vxor.u32 %v4998, 2147483648
      %v5031 = vxor.u32 %v4999, 2147483648
      %v5032 = vxor.u32 %v5000, 2147483648
      %v5033 = vxor.u32 %v5001, 2147483648
      %v5034 = vxor.u32 %v5002, 2147483648
      %v5035 = vxor.u32 %v5003, 2147483648
      %v5036 = vxor.u32 %v5004, 2147483648
      %v5037 = vxor.u32 %v5005, 2147483648
      %v5038 = vxor.u32 %v5006, 2147483648
      %v5039 = vxor.u32 %v5007, 2147483648
      %v5040 = vxor.u32 %v5008, 2147483648
      %v5041 = vxor.u32 %v5009, 2147483648
      %v5042 = vxor.u32 %v5010, 2147483648
      %v5043 = vxor.u32 %v5011, 2147483648
      %v5044 = vxor.u32 %v5012, 2147483648
      %v5045 = vxor.u32 %v5013, 2147483648
      %v5046 = vxor.u32 %v5014, 2147483648
      %v5047 = vmul.f32 %v5015, 1.442695
      %v5048 = vpow.pop %v5047
      %v5049 = vmul.f32 %v5016, 1.442695
      %v5050 = vpow.pop %v5049
      %v5051 = vmul.f32 %v5017, 1.442695
      %v5052 = vpow.pop %v5051
      %v5053 = vmul.f32 %v5018, 1.442695
      %v5054 = vpow.pop %v5053
      %v5055 = vmul.f32 %v5019, 1.442695
      %v5056 = vpow.pop %v5055
      %v5057 = vmul.f32 %v5020, 1.442695
      %v5058 = vpow.pop %v5057
      %v5059 = vmul.f32 %v5021, 1.442695
      %v5060 = vpow.pop %v5059
      %v5061 = vmul.f32 %v5022, 1.442695
      %v5062 = vpow.pop %v5061
      %v5063 = vmul.f32 %v5023, 1.442695
      %v5064 = vpow.pop %v5063
      %v5065 = vmul.f32 %v5024, 1.442695
      %v5066 = vpow.pop %v5065
      %v5067 = vmul.f32 %v5025, 1.442695
      %v5068 = vpow.pop %v5067
      %v5069 = vmul.f32 %v5026, 1.442695
      %v5070 = vpow.pop %v5069
      %v5071 = vmul.f32 %v5027, 1.442695
      %v5072 = vpow.pop %v5071
      %v5073 = vmul.f32 %v5028, 1.442695
      %v5074 = vpow.pop %v5073
      %v5075 = vmul.f32 %v5029, 1.442695
      %v5076 = vpow.pop %v5075
      %v5077 = vmul.f32 %v5030, 1.442695
      %v5078 = vpow.pop %v5077
      %v5079 = vmul.f32 %v5031, 1.442695
      %v5080 = vpow.pop %v5079
      %v5081 = vmul.f32 %v5032, 1.442695
      %v5082 = vpow.pop %v5081
      %v5083 = vmul.f32 %v5033, 1.442695
      %v5084 = vpow.pop %v5083
      %v5085 = vmul.f32 %v5034, 1.442695
      %v5086 = vpow.pop %v5085
      %v5087 = vmul.f32 %v5035, 1.442695
      %v5088 = vpow.pop %v5087
      %v5089 = vmul.f32 %v5036, 1.442695
      %v5090 = vpow.pop %v5089
      %v5091 = vmul.f32 %v5037, 1.442695
      %v5092 = vpow.pop %v5091
      %v5093 = vmul.f32 %v5038, 1.442695
      %v5094 = vpow.pop %v5093
      %v5095 = vmul.f32 %v5039, 1.442695
      %v5096 = vpow.pop %v5095
      %v5097 = vmul.f32 %v5040, 1.442695
      %v5098 = vpow.pop %v5097
      %v5099 = vmul.f32 %v5041, 1.442695
      %v5100 = vpow.pop %v5099
      %v5101 = vmul.f32 %v5042, 1.442695
      %v5102 = vpow.pop %v5101
      %v5103 = vmul.f32 %v5043, 1.442695
      %v5104 = vpow.pop %v5103
      %v5105 = vmul.f32 %v5044, 1.442695
      %v5106 = vpow.pop %v5105
      %v5107 = vmul.f32 %v5045, 1.442695
      %v5108 = vpow.pop %v5107
      %v5109 = vmul.f32 %v5046, 1.442695
      %v5110 = vpow.pop %v5109
      %v5111 = vadd.f32 %v5048, 1.0
      %v5112 = vadd.f32 %v5050, 1.0
      %v5113 = vadd.f32 %v5052, 1.0
      %v5114 = vadd.f32 %v5054, 1.0
      %v5115 = vadd.f32 %v5056, 1.0
      %v5116 = vadd.f32 %v5058, 1.0
      %v5117 = vadd.f32 %v5060, 1.0
      %v5118 = vadd.f32 %v5062, 1.0
      %v5119 = vadd.f32 %v5064, 1.0
      %v5120 = vadd.f32 %v5066, 1.0
      %v5121 = vadd.f32 %v5068, 1.0
      %v5122 = vadd.f32 %v5070, 1.0
      %v5123 = vadd.f32 %v5072, 1.0
      %v5124 = vadd.f32 %v5074, 1.0
      %v5125 = vadd.f32 %v5076, 1.0
      %v5126 = vadd.f32 %v5078, 1.0
      %v5127 = vadd.f32 %v5080, 1.0
      %v5128 = vadd.f32 %v5082, 1.0
      %v5129 = vadd.f32 %v5084, 1.0
      %v5130 = vadd.f32 %v5086, 1.0
      %v5131 = vadd.f32 %v5088, 1.0
      %v5132 = vadd.f32 %v5090, 1.0
      %v5133 = vadd.f32 %v5092, 1.0
      %v5134 = vadd.f32 %v5094, 1.0
      %v5135 = vadd.f32 %v5096, 1.0
      %v5136 = vadd.f32 %v5098, 1.0
      %v5137 = vadd.f32 %v5100, 1.0
      %v5138 = vadd.f32 %v5102, 1.0
      %v5139 = vadd.f32 %v5104, 1.0
      %v5140 = vadd.f32 %v5106, 1.0
      %v5141 = vadd.f32 %v5108, 1.0
      %v5142 = vadd.f32 %v5110, 1.0
      %v5143 = vrcp.pop %v5111
      %v5144 = vmul.f32 %v5111, %v5143
      %v5145 = vsub.f32 1.0, %v5144
      %v5146 = vmul.f32 %v5143, %v5145
      %v5147 = vadd.f32 %v5143, %v5146
      %vm5148 = vweird.f32 %v5111
      %vm5149 = vweird.f32 %v5143
      %vm5150 = vmor %vm5148, %vm5149
      %v5151 = vsel %vm5150, %v5143, %v5147
      %v5152 = vand.u32 2147483647, %v5111
      %vm5153 = vcmp.eq.f32.partialorder %v5152, 8.507059e+37
      %v5154 = vand.u32 %v5111, 2147483648
      %v5155 = vor.u32 1.1754944e-38, %v5154
      %v5156 = vsel %vm5153, %v5155, %v5151
      %v5157 = vmul.f32 1.0, %v5156
      %v5158 = vrcp.pop %v5112
      %v5159 = vmul.f32 %v5112, %v5158
      %v5160 = vsub.f32 1.0, %v5159
      %v5161 = vmul.f32 %v5158, %v5160
      %v5162 = vadd.f32 %v5158, %v5161
      %vm5163 = vweird.f32 %v5112
      %vm5164 = vweird.f32 %v5158
      %vm5165 = vmor %vm5163, %vm5164
      %v5166 = vsel %vm5165, %v5158, %v5162
      %v5167 = vand.u32 2147483647, %v5112
      %vm5168 = vcmp.eq.f32.partialorder %v5167, 8.507059e+37
      %v5169 = vand.u32 %v5112, 2147483648
      %v5170 = vor.u32 1.1754944e-38, %v5169
      %v5171 = vsel %vm5168, %v5170, %v5166
      %v5172 = vmul.f32 1.0, %v5171
      %v5173 = vrcp.pop %v5113
      %v5174 = vmul.f32 %v5113, %v5173
      %v5175 = vsub.f32 1.0, %v5174
      %v5176 = vmul.f32 %v5173, %v5175
      %v5177 = vadd.f32 %v5173, %v5176
      %vm5178 = vweird.f32 %v5113
      %vm5179 = vweird.f32 %v5173
      %vm5180 = vmor %vm5178, %vm5179
      %v5181 = vsel %vm5180, %v5173, %v5177
      %v5182 = vand.u32 2147483647, %v5113
      %vm5183 = vcmp.eq.f32.partialorder %v5182, 8.507059e+37
      %v5184 = vand.u32 %v5113, 2147483648
      %v5185 = vor.u32 1.1754944e-38, %v5184
      %v5186 = vsel %vm5183, %v5185, %v5181
      %v5187 = vmul.f32 1.0, %v5186
      %v5188 = vrcp.pop %v5114
      %v5189 = vmul.f32 %v5114, %v5188
      %v5190 = vsub.f32 1.0, %v5189
      %v5191 = vmul.f32 %v5188, %v5190
      %v5192 = vadd.f32 %v5188, %v5191
      %vm5193 = vweird.f32 %v5114
      %vm5194 = vweird.f32 %v5188
      %vm5195 = vmor %vm5193, %vm5194
      %v5196 = vsel %vm5195, %v5188, %v5192
      %v5197 = vand.u32 2147483647, %v5114
      %vm5198 = vcmp.eq.f32.partialorder %v5197, 8.507059e+37
      %v5199 = vand.u32 %v5114, 2147483648
      %v5200 = vor.u32 1.1754944e-38, %v5199
      %v5201 = vsel %vm5198, %v5200, %v5196
      %v5202 = vmul.f32 1.0, %v5201
      %v5203 = vrcp.pop %v5115
      %v5204 = vmul.f32 %v5115, %v5203
      %v5205 = vsub.f32 1.0, %v5204
      %v5206 = vmul.f32 %v5203, %v5205
      %v5207 = vadd.f32 %v5203, %v5206
      %vm5208 = vweird.f32 %v5115
      %vm5209 = vweird.f32 %v5203
      %vm5210 = vmor %vm5208, %vm5209
      %v5211 = vsel %vm5210, %v5203, %v5207
      %v5212 = vand.u32 2147483647, %v5115
      %vm5213 = vcmp.eq.f32.partialorder %v5212, 8.507059e+37
      %v5214 = vand.u32 %v5115, 2147483648
      %v5215 = vor.u32 1.1754944e-38, %v5214
      %v5216 = vsel %vm5213, %v5215, %v5211
      %v5217 = vmul.f32 1.0, %v5216
      %v5218 = vrcp.pop %v5116
      %v5219 = vmul.f32 %v5116, %v5218
      %v5220 = vsub.f32 1.0, %v5219
      %v5221 = vmul.f32 %v5218, %v5220
      %v5222 = vadd.f32 %v5218, %v5221
      %vm5223 = vweird.f32 %v5116
      %vm5224 = vweird.f32 %v5218
      %vm5225 = vmor %vm5223, %vm5224
      %v5226 = vsel %vm5225, %v5218, %v5222
      %v5227 = vand.u32 2147483647, %v5116
      %vm5228 = vcmp.eq.f32.partialorder %v5227, 8.507059e+37
      %v5229 = vand.u32 %v5116, 2147483648
      %v5230 = vor.u32 1.1754944e-38, %v5229
      %v5231 = vsel %vm5228, %v5230, %v5226
      %v5232 = vmul.f32 1.0, %v5231
      %v5233 = vrcp.pop %v5117
      %v5234 = vmul.f32 %v5117, %v5233
      %v5235 = vsub.f32 1.0, %v5234
      %v5236 = vmul.f32 %v5233, %v5235
      %v5237 = vadd.f32 %v5233, %v5236
      %vm5238 = vweird.f32 %v5117
      %vm5239 = vweird.f32 %v5233
      %vm5240 = vmor %vm5238, %vm5239
      %v5241 = vsel %vm5240, %v5233, %v5237
      %v5242 = vand.u32 2147483647, %v5117
      %vm5243 = vcmp.eq.f32.partialorder %v5242, 8.507059e+37
      %v5244 = vand.u32 %v5117, 2147483648
      %v5245 = vor.u32 1.1754944e-38, %v5244
      %v5246 = vsel %vm5243, %v5245, %v5241
      %v5247 = vmul.f32 1.0, %v5246
      %v5248 = vrcp.pop %v5118
      %v5249 = vmul.f32 %v5118, %v5248
      %v5250 = vsub.f32 1.0, %v5249
      %v5251 = vmul.f32 %v5248, %v5250
      %v5252 = vadd.f32 %v5248, %v5251
      %vm5253 = vweird.f32 %v5118
      %vm5254 = vweird.f32 %v5248
      %vm5255 = vmor %vm5253, %vm5254
      %v5256 = vsel %vm5255, %v5248, %v5252
      %v5257 = vand.u32 2147483647, %v5118
      %vm5258 = vcmp.eq.f32.partialorder %v5257, 8.507059e+37
      %v5259 = vand.u32 %v5118, 2147483648
      %v5260 = vor.u32 1.1754944e-38, %v5259
      %v5261 = vsel %vm5258, %v5260, %v5256
      %v5262 = vmul.f32 1.0, %v5261
      %v5263 = vrcp.pop %v5119
      %v5264 = vmul.f32 %v5119, %v5263
      %v5265 = vsub.f32 1.0, %v5264
      %v5266 = vmul.f32 %v5263, %v5265
      %v5267 = vadd.f32 %v5263, %v5266
      %vm5268 = vweird.f32 %v5119
      %vm5269 = vweird.f32 %v5263
      %vm5270 = vmor %vm5268, %vm5269
      %v5271 = vsel %vm5270, %v5263, %v5267
      %v5272 = vand.u32 2147483647, %v5119
      %vm5273 = vcmp.eq.f32.partialorder %v5272, 8.507059e+37
      %v5274 = vand.u32 %v5119, 2147483648
      %v5275 = vor.u32 1.1754944e-38, %v5274
      %v5276 = vsel %vm5273, %v5275, %v5271
      %v5277 = vmul.f32 1.0, %v5276
      %v5278 = vrcp.pop %v5120
      %v5279 = vmul.f32 %v5120, %v5278
      %v5280 = vsub.f32 1.0, %v5279
      %v5281 = vmul.f32 %v5278, %v5280
      %v5282 = vadd.f32 %v5278, %v5281
      %vm5283 = vweird.f32 %v5120
      %vm5284 = vweird.f32 %v5278
      %vm5285 = vmor %vm5283, %vm5284
      %v5286 = vsel %vm5285, %v5278, %v5282
      %v5287 = vand.u32 2147483647, %v5120
      %vm5288 = vcmp.eq.f32.partialorder %v5287, 8.507059e+37
      %v5289 = vand.u32 %v5120, 2147483648
      %v5290 = vor.u32 1.1754944e-38, %v5289
      %v5291 = vsel %vm5288, %v5290, %v5286
      %v5292 = vmul.f32 1.0, %v5291
      %v5293 = vrcp.pop %v5121
      %v5294 = vmul.f32 %v5121, %v5293
      %v5295 = vsub.f32 1.0, %v5294
      %v5296 = vmul.f32 %v5293, %v5295
      %v5297 = vadd.f32 %v5293, %v5296
      %vm5298 = vweird.f32 %v5121
      %vm5299 = vweird.f32 %v5293
      %vm5300 = vmor %vm5298, %vm5299
      %v5301 = vsel %vm5300, %v5293, %v5297
      %v5302 = vand.u32 2147483647, %v5121
      %vm5303 = vcmp.eq.f32.partialorder %v5302, 8.507059e+37
      %v5304 = vand.u32 %v5121, 2147483648
      %v5305 = vor.u32 1.1754944e-38, %v5304
      %v5306 = vsel %vm5303, %v5305, %v5301
      %v5307 = vmul.f32 1.0, %v5306
      %v5308 = vrcp.pop %v5122
      %v5309 = vmul.f32 %v5122, %v5308
      %v5310 = vsub.f32 1.0, %v5309
      %v5311 = vmul.f32 %v5308, %v5310
      %v5312 = vadd.f32 %v5308, %v5311
      %vm5313 = vweird.f32 %v5122
      %vm5314 = vweird.f32 %v5308
      %vm5315 = vmor %vm5313, %vm5314
      %v5316 = vsel %vm5315, %v5308, %v5312
      %v5317 = vand.u32 2147483647, %v5122
      %vm5318 = vcmp.eq.f32.partialorder %v5317, 8.507059e+37
      %v5319 = vand.u32 %v5122, 2147483648
      %v5320 = vor.u32 1.1754944e-38, %v5319
      %v5321 = vsel %vm5318, %v5320, %v5316
      %v5322 = vmul.f32 1.0, %v5321
      %v5323 = vrcp.pop %v5123
      %v5324 = vmul.f32 %v5123, %v5323
      %v5325 = vsub.f32 1.0, %v5324
      %v5326 = vmul.f32 %v5323, %v5325
      %v5327 = vadd.f32 %v5323, %v5326
      %vm5328 = vweird.f32 %v5123
      %vm5329 = vweird.f32 %v5323
      %vm5330 = vmor %vm5328, %vm5329
      %v5331 = vsel %vm5330, %v5323, %v5327
      %v5332 = vand.u32 2147483647, %v5123
      %vm5333 = vcmp.eq.f32.partialorder %v5332, 8.507059e+37
      %v5334 = vand.u32 %v5123, 2147483648
      %v5335 = vor.u32 1.1754944e-38, %v5334
      %v5336 = vsel %vm5333, %v5335, %v5331
      %v5337 = vmul.f32 1.0, %v5336
      %v5338 = vrcp.pop %v5124
      %v5339 = vmul.f32 %v5124, %v5338
      %v5340 = vsub.f32 1.0, %v5339
      %v5341 = vmul.f32 %v5338, %v5340
      %v5342 = vadd.f32 %v5338, %v5341
      %vm5343 = vweird.f32 %v5124
      %vm5344 = vweird.f32 %v5338
      %vm5345 = vmor %vm5343, %vm5344
      %v5346 = vsel %vm5345, %v5338, %v5342
      %v5347 = vand.u32 2147483647, %v5124
      %vm5348 = vcmp.eq.f32.partialorder %v5347, 8.507059e+37
      %v5349 = vand.u32 %v5124, 2147483648
      %v5350 = vor.u32 1.1754944e-38, %v5349
      %v5351 = vsel %vm5348, %v5350, %v5346
      %v5352 = vmul.f32 1.0, %v5351
      %v5353 = vrcp.pop %v5125
      %v5354 = vmul.f32 %v5125, %v5353
      %v5355 = vsub.f32 1.0, %v5354
      %v5356 = vmul.f32 %v5353, %v5355
      %v5357 = vadd.f32 %v5353, %v5356
      %vm5358 = vweird.f32 %v5125
      %vm5359 = vweird.f32 %v5353
      %vm5360 = vmor %vm5358, %vm5359
      %v5361 = vsel %vm5360, %v5353, %v5357
      %v5362 = vand.u32 2147483647, %v5125
      %vm5363 = vcmp.eq.f32.partialorder %v5362, 8.507059e+37
      %v5364 = vand.u32 %v5125, 2147483648
      %v5365 = vor.u32 1.1754944e-38, %v5364
      %v5366 = vsel %vm5363, %v5365, %v5361
      %v5367 = vmul.f32 1.0, %v5366
      %v5368 = vrcp.pop %v5126
      %v5369 = vmul.f32 %v5126, %v5368
      %v5370 = vsub.f32 1.0, %v5369
      %v5371 = vmul.f32 %v5368, %v5370
      %v5372 = vadd.f32 %v5368, %v5371
      %vm5373 = vweird.f32 %v5126
      %vm5374 = vweird.f32 %v5368
      %vm5375 = vmor %vm5373, %vm5374
      %v5376 = vsel %vm5375, %v5368, %v5372
      %v5377 = vand.u32 2147483647, %v5126
      %vm5378 = vcmp.eq.f32.partialorder %v5377, 8.507059e+37
      %v5379 = vand.u32 %v5126, 2147483648
      %v5380 = vor.u32 1.1754944e-38, %v5379
      %v5381 = vsel %vm5378, %v5380, %v5376
      %v5382 = vmul.f32 1.0, %v5381
      %v5383 = vrcp.pop %v5127
      %v5384 = vmul.f32 %v5127, %v5383
      %v5385 = vsub.f32 1.0, %v5384
      %v5386 = vmul.f32 %v5383, %v5385
      %v5387 = vadd.f32 %v5383, %v5386
      %vm5388 = vweird.f32 %v5127
      %vm5389 = vweird.f32 %v5383
      %vm5390 = vmor %vm5388, %vm5389
      %v5391 = vsel %vm5390, %v5383, %v5387
      %v5392 = vand.u32 2147483647, %v5127
      %vm5393 = vcmp.eq.f32.partialorder %v5392, 8.507059e+37
      %v5394 = vand.u32 %v5127, 2147483648
      %v5395 = vor.u32 1.1754944e-38, %v5394
      %v5396 = vsel %vm5393, %v5395, %v5391
      %v5397 = vmul.f32 1.0, %v5396
      %v5398 = vrcp.pop %v5128
      %v5399 = vmul.f32 %v5128, %v5398
      %v5400 = vsub.f32 1.0, %v5399
      %v5401 = vmul.f32 %v5398, %v5400
      %v5402 = vadd.f32 %v5398, %v5401
      %vm5403 = vweird.f32 %v5128
      %vm5404 = vweird.f32 %v5398
      %vm5405 = vmor %vm5403, %vm5404
      %v5406 = vsel %vm5405, %v5398, %v5402
      %v5407 = vand.u32 2147483647, %v5128
      %vm5408 = vcmp.eq.f32.partialorder %v5407, 8.507059e+37
      %v5409 = vand.u32 %v5128, 2147483648
      %v5410 = vor.u32 1.1754944e-38, %v5409
      %v5411 = vsel %vm5408, %v5410, %v5406
      %v5412 = vmul.f32 1.0, %v5411
      %v5413 = vrcp.pop %v5129
      %v5414 = vmul.f32 %v5129, %v5413
      %v5415 = vsub.f32 1.0, %v5414
      %v5416 = vmul.f32 %v5413, %v5415
      %v5417 = vadd.f32 %v5413, %v5416
      %vm5418 = vweird.f32 %v5129
      %vm5419 = vweird.f32 %v5413
      %vm5420 = vmor %vm5418, %vm5419
      %v5421 = vsel %vm5420, %v5413, %v5417
      %v5422 = vand.u32 2147483647, %v5129
      %vm5423 = vcmp.eq.f32.partialorder %v5422, 8.507059e+37
      %v5424 = vand.u32 %v5129, 2147483648
      %v5425 = vor.u32 1.1754944e-38, %v5424
      %v5426 = vsel %vm5423, %v5425, %v5421
      %v5427 = vmul.f32 1.0, %v5426
      %v5428 = vrcp.pop %v5130
      %v5429 = vmul.f32 %v5130, %v5428
      %v5430 = vsub.f32 1.0, %v5429
      %v5431 = vmul.f32 %v5428, %v5430
      %v5432 = vadd.f32 %v5428, %v5431
      %vm5433 = vweird.f32 %v5130
      %vm5434 = vweird.f32 %v5428
      %vm5435 = vmor %vm5433, %vm5434
      %v5436 = vsel %vm5435, %v5428, %v5432
      %v5437 = vand.u32 2147483647, %v5130
      %vm5438 = vcmp.eq.f32.partialorder %v5437, 8.507059e+37
      %v5439 = vand.u32 %v5130, 2147483648
      %v5440 = vor.u32 1.1754944e-38, %v5439
      %v5441 = vsel %vm5438, %v5440, %v5436
      %v5442 = vmul.f32 1.0, %v5441
      %v5443 = vrcp.pop %v5131
      %v5444 = vmul.f32 %v5131, %v5443
      %v5445 = vsub.f32 1.0, %v5444
      %v5446 = vmul.f32 %v5443, %v5445
      %v5447 = vadd.f32 %v5443, %v5446
      %vm5448 = vweird.f32 %v5131
      %vm5449 = vweird.f32 %v5443
      %vm5450 = vmor %vm5448, %vm5449
      %v5451 = vsel %vm5450, %v5443, %v5447
      %v5452 = vand.u32 2147483647, %v5131
      %vm5453 = vcmp.eq.f32.partialorder %v5452, 8.507059e+37
      %v5454 = vand.u32 %v5131, 2147483648
      %v5455 = vor.u32 1.1754944e-38, %v5454
      %v5456 = vsel %vm5453, %v5455, %v5451
      %v5457 = vmul.f32 1.0, %v5456
      %v5458 = vrcp.pop %v5132
      %v5459 = vmul.f32 %v5132, %v5458
      %v5460 = vsub.f32 1.0, %v5459
      %v5461 = vmul.f32 %v5458, %v5460
      %v5462 = vadd.f32 %v5458, %v5461
      %vm5463 = vweird.f32 %v5132
      %vm5464 = vweird.f32 %v5458
      %vm5465 = vmor %vm5463, %vm5464
      %v5466 = vsel %vm5465, %v5458, %v5462
      %v5467 = vand.u32 2147483647, %v5132
      %vm5468 = vcmp.eq.f32.partialorder %v5467, 8.507059e+37
      %v5469 = vand.u32 %v5132, 2147483648
      %v5470 = vor.u32 1.1754944e-38, %v5469
      %v5471 = vsel %vm5468, %v5470, %v5466
      %v5472 = vmul.f32 1.0, %v5471
      %v5473 = vrcp.pop %v5133
      %v5474 = vmul.f32 %v5133, %v5473
      %v5475 = vsub.f32 1.0, %v5474
      %v5476 = vmul.f32 %v5473, %v5475
      %v5477 = vadd.f32 %v5473, %v5476
      %vm5478 = vweird.f32 %v5133
      %vm5479 = vweird.f32 %v5473
      %vm5480 = vmor %vm5478, %vm5479
      %v5481 = vsel %vm5480, %v5473, %v5477
      %v5482 = vand.u32 2147483647, %v5133
      %vm5483 = vcmp.eq.f32.partialorder %v5482, 8.507059e+37
      %v5484 = vand.u32 %v5133, 2147483648
      %v5485 = vor.u32 1.1754944e-38, %v5484
      %v5486 = vsel %vm5483, %v5485, %v5481
      %v5487 = vmul.f32 1.0, %v5486
      %v5488 = vrcp.pop %v5134
      %v5489 = vmul.f32 %v5134, %v5488
      %v5490 = vsub.f32 1.0, %v5489
      %v5491 = vmul.f32 %v5488, %v5490
      %v5492 = vadd.f32 %v5488, %v5491
      %vm5493 = vweird.f32 %v5134
      %vm5494 = vweird.f32 %v5488
      %vm5495 = vmor %vm5493, %vm5494
      %v5496 = vsel %vm5495, %v5488, %v5492
      %v5497 = vand.u32 2147483647, %v5134
      %vm5498 = vcmp.eq.f32.partialorder %v5497, 8.507059e+37
      %v5499 = vand.u32 %v5134, 2147483648
      %v5500 = vor.u32 1.1754944e-38, %v5499
      %v5501 = vsel %vm5498, %v5500, %v5496
      %v5502 = vmul.f32 1.0, %v5501
      %v5503 = vrcp.pop %v5135
      %v5504 = vmul.f32 %v5135, %v5503
      %v5505 = vsub.f32 1.0, %v5504
      %v5506 = vmul.f32 %v5503, %v5505
      %v5507 = vadd.f32 %v5503, %v5506
      %vm5508 = vweird.f32 %v5135
      %vm5509 = vweird.f32 %v5503
      %vm5510 = vmor %vm5508, %vm5509
      %v5511 = vsel %vm5510, %v5503, %v5507
      %v5512 = vand.u32 2147483647, %v5135
      %vm5513 = vcmp.eq.f32.partialorder %v5512, 8.507059e+37
      %v5514 = vand.u32 %v5135, 2147483648
      %v5515 = vor.u32 1.1754944e-38, %v5514
      %v5516 = vsel %vm5513, %v5515, %v5511
      %v5517 = vmul.f32 1.0, %v5516
      %v5518 = vrcp.pop %v5136
      %v5519 = vmul.f32 %v5136, %v5518
      %v5520 = vsub.f32 1.0, %v5519
      %v5521 = vmul.f32 %v5518, %v5520
      %v5522 = vadd.f32 %v5518, %v5521
      %vm5523 = vweird.f32 %v5136
      %vm5524 = vweird.f32 %v5518
      %vm5525 = vmor %vm5523, %vm5524
      %v5526 = vsel %vm5525, %v5518, %v5522
      %v5527 = vand.u32 2147483647, %v5136
      %vm5528 = vcmp.eq.f32.partialorder %v5527, 8.507059e+37
      %v5529 = vand.u32 %v5136, 2147483648
      %v5530 = vor.u32 1.1754944e-38, %v5529
      %v5531 = vsel %vm5528, %v5530, %v5526
      %v5532 = vmul.f32 1.0, %v5531
      %v5533 = vrcp.pop %v5137
      %v5534 = vmul.f32 %v5137, %v5533
      %v5535 = vsub.f32 1.0, %v5534
      %v5536 = vmul.f32 %v5533, %v5535
      %v5537 = vadd.f32 %v5533, %v5536
      %vm5538 = vweird.f32 %v5137
      %vm5539 = vweird.f32 %v5533
      %vm5540 = vmor %vm5538, %vm5539
      %v5541 = vsel %vm5540, %v5533, %v5537
      %v5542 = vand.u32 2147483647, %v5137
      %vm5543 = vcmp.eq.f32.partialorder %v5542, 8.507059e+37
      %v5544 = vand.u32 %v5137, 2147483648
      %v5545 = vor.u32 1.1754944e-38, %v5544
      %v5546 = vsel %vm5543, %v5545, %v5541
      %v5547 = vmul.f32 1.0, %v5546
      %v5548 = vrcp.pop %v5138
      %v5549 = vmul.f32 %v5138, %v5548
      %v5550 = vsub.f32 1.0, %v5549
      %v5551 = vmul.f32 %v5548, %v5550
      %v5552 = vadd.f32 %v5548, %v5551
      %vm5553 = vweird.f32 %v5138
      %vm5554 = vweird.f32 %v5548
      %vm5555 = vmor %vm5553, %vm5554
      %v5556 = vsel %vm5555, %v5548, %v5552
      %v5557 = vand.u32 2147483647, %v5138
      %vm5558 = vcmp.eq.f32.partialorder %v5557, 8.507059e+37
      %v5559 = vand.u32 %v5138, 2147483648
      %v5560 = vor.u32 1.1754944e-38, %v5559
      %v5561 = vsel %vm5558, %v5560, %v5556
      %v5562 = vmul.f32 1.0, %v5561
      %v5563 = vrcp.pop %v5139
      %v5564 = vmul.f32 %v5139, %v5563
      %v5565 = vsub.f32 1.0, %v5564
      %v5566 = vmul.f32 %v5563, %v5565
      %v5567 = vadd.f32 %v5563, %v5566
      %vm5568 = vweird.f32 %v5139
      %vm5569 = vweird.f32 %v5563
      %vm5570 = vmor %vm5568, %vm5569
      %v5571 = vsel %vm5570, %v5563, %v5567
      %v5572 = vand.u32 2147483647, %v5139
      %vm5573 = vcmp.eq.f32.partialorder %v5572, 8.507059e+37
      %v5574 = vand.u32 %v5139, 2147483648
      %v5575 = vor.u32 1.1754944e-38, %v5574
      %v5576 = vsel %vm5573, %v5575, %v5571
      %v5577 = vmul.f32 1.0, %v5576
      %v5578 = vrcp.pop %v5140
      %v5579 = vmul.f32 %v5140, %v5578
      %v5580 = vsub.f32 1.0, %v5579
      %v5581 = vmul.f32 %v5578, %v5580
      %v5582 = vadd.f32 %v5578, %v5581
      %vm5583 = vweird.f32 %v5140
      %vm5584 = vweird.f32 %v5578
      %vm5585 = vmor %vm5583, %vm5584
      %v5586 = vsel %vm5585, %v5578, %v5582
      %v5587 = vand.u32 2147483647, %v5140
      %vm5588 = vcmp.eq.f32.partialorder %v5587, 8.507059e+37
      %v5589 = vand.u32 %v5140, 2147483648
      %v5590 = vor.u32 1.1754944e-38, %v5589
      %v5591 = vsel %vm5588, %v5590, %v5586
      %v5592 = vmul.f32 1.0, %v5591
      %v5593 = vrcp.pop %v5141
      %v5594 = vmul.f32 %v5141, %v5593
      %v5595 = vsub.f32 1.0, %v5594
      %v5596 = vmul.f32 %v5593, %v5595
      %v5597 = vadd.f32 %v5593, %v5596
      %vm5598 = vweird.f32 %v5141
      %vm5599 = vweird.f32 %v5593
      %vm5600 = vmor %vm5598, %vm5599
      %v5601 = vsel %vm5600, %v5593, %v5597
      %v5602 = vand.u32 2147483647, %v5141
      %vm5603 = vcmp.eq.f32.partialorder %v5602, 8.507059e+37
      %v5604 = vand.u32 %v5141, 2147483648
      %v5605 = vor.u32 1.1754944e-38, %v5604
      %v5606 = vsel %vm5603, %v5605, %v5601
      %v5607 = vmul.f32 1.0, %v5606
      %v5608 = vrcp.pop %v5142
      %v5609 = vmul.f32 %v5142, %v5608
      %v5610 = vsub.f32 1.0, %v5609
      %v5611 = vmul.f32 %v5608, %v5610
      %v5612 = vadd.f32 %v5608, %v5611
      %vm5613 = vweird.f32 %v5142
      %vm5614 = vweird.f32 %v5608
      %vm5615 = vmor %vm5613, %vm5614
      %v5616 = vsel %vm5615, %v5608, %v5612
      %v5617 = vand.u32 2147483647, %v5142
      %vm5618 = vcmp.eq.f32.partialorder %v5617, 8.507059e+37
      %v5619 = vand.u32 %v5142, 2147483648
      %v5620 = vor.u32 1.1754944e-38, %v5619
      %v5621 = vsel %vm5618, %v5620, %v5616
      %v5622 = vmul.f32 1.0, %v5621
      %v5623 = vmul.f32 %v4983, %v5157
      %v5624 = vmul.f32 %v4984, %v5172
      %v5625 = vmul.f32 %v4985, %v5187
      %v5626 = vmul.f32 %v4986, %v5202
      %v5627 = vmul.f32 %v4987, %v5217
      %v5628 = vmul.f32 %v4988, %v5232
      %v5629 = vmul.f32 %v4989, %v5247
      %v5630 = vmul.f32 %v4990, %v5262
      %v5631 = vmul.f32 %v4991, %v5277
      %v5632 = vmul.f32 %v4992, %v5292
      %v5633 = vmul.f32 %v4993, %v5307
      %v5634 = vmul.f32 %v4994, %v5322
      %v5635 = vmul.f32 %v4995, %v5337
      %v5636 = vmul.f32 %v4996, %v5352
      %v5637 = vmul.f32 %v4997, %v5367
      %v5638 = vmul.f32 %v4998, %v5382
      %v5639 = vmul.f32 %v4999, %v5397
      %v5640 = vmul.f32 %v5000, %v5412
      %v5641 = vmul.f32 %v5001, %v5427
      %v5642 = vmul.f32 %v5002, %v5442
      %v5643 = vmul.f32 %v5003, %v5457
      %v5644 = vmul.f32 %v5004, %v5472
      %v5645 = vmul.f32 %v5005, %v5487
      %v5646 = vmul.f32 %v5006, %v5502
      %v5647 = vmul.f32 %v5007, %v5517
      %v5648 = vmul.f32 %v5008, %v5532
      %v5649 = vmul.f32 %v5009, %v5547
      %v5650 = vmul.f32 %v5010, %v5562
      %v5651 = vmul.f32 %v5011, %v5577
      %v5652 = vmul.f32 %v5012, %v5592
      %v5653 = vmul.f32 %v5013, %v5607
      %v5654 = vmul.f32 %v5014, %v5622
      %5655 = vst.msk [vmem:[%s251] sm:$0xff] %vm306, %v5623
      %5656 = vst.msk [vmem:[%s251 + $0x8] sm:$0xff] %vm306, %v5624
      %5657 = vst.msk [vmem:[%s251 + $0x10] sm:$0xff] %vm306, %v5625
      %5658 = vst.msk [vmem:[%s251 + $0x18] sm:$0xff] %vm306, %v5626
      %5659 = vst.msk [vmem:[%s251 + $0x20] sm:$0xff] %vm306, %v5627
      %5660 = vst.msk [vmem:[%s251 + $0x28] sm:$0xff] %vm306, %v5628
      %5661 = vst.msk [vmem:[%s251 + $0x30] sm:$0xff] %vm306, %v5629
      %5662 = vst.msk [vmem:[%s251 + $0x38] sm:$0xff] %vm306, %v5630
      %5663 = vst.msk [vmem:[%s251 + $0x40] sm:$0xff] %vm306, %v5631
      %5664 = vst.msk [vmem:[%s251 + $0x48] sm:$0xff] %vm306, %v5632
      %5665 = vst.msk [vmem:[%s251 + $0x50] sm:$0xff] %vm306, %v5633
      %5666 = vst.msk [vmem:[%s251 + $0x58] sm:$0xff] %vm306, %v5634
      %5667 = vst.msk [vmem:[%s251 + $0x60] sm:$0xff] %vm306, %v5635
      %5668 = vst.msk [vmem:[%s251 + $0x68] sm:$0xff] %vm306, %v5636
      %5669 = vst.msk [vmem:[%s251 + $0x70] sm:$0xff] %vm306, %v5637
      %5670 = vst.msk [vmem:[%s251 + $0x78] sm:$0xff] %vm306, %v5638
      %5671 = vst.msk [vmem:[%s251 + $0x80] sm:$0xff] %vm306, %v5639
      %5672 = vst.msk [vmem:[%s251 + $0x88] sm:$0xff] %vm306, %v5640
      %5673 = vst.msk [vmem:[%s251 + $0x90] sm:$0xff] %vm306, %v5641
      %5674 = vst.msk [vmem:[%s251 + $0x98] sm:$0xff] %vm306, %v5642
      %5675 = vst.msk [vmem:[%s251 + $0xa0] sm:$0xff] %vm306, %v5643
      %5676 = vst.msk [vmem:[%s251 + $0xa8] sm:$0xff] %vm306, %v5644
      %5677 = vst.msk [vmem:[%s251 + $0xb0] sm:$0xff] %vm306, %v5645
      %5678 = vst.msk [vmem:[%s251 + $0xb8] sm:$0xff] %vm306, %v5646
      %5679 = vst.msk [vmem:[%s251 + $0xc0] sm:$0xff] %vm306, %v5647
      %5680 = vst.msk [vmem:[%s251 + $0xc8] sm:$0xff] %vm306, %v5648
      %5681 = vst.msk [vmem:[%s251 + $0xd0] sm:$0xff] %vm306, %v5649
      %5682 = vst.msk [vmem:[%s251 + $0xd8] sm:$0xff] %vm306, %v5650
      %5683 = vst.msk [vmem:[%s251 + $0xe0] sm:$0xff] %vm306, %v5651
      %5684 = vst.msk [vmem:[%s251 + $0xe8] sm:$0xff] %vm306, %v5652
      %5685 = vst.msk [vmem:[%s251 + $0xf0] sm:$0xff] %vm306, %v5653
      %5686 = vst.msk [vmem:[%s251 + $0xf8] sm:$0xff] %vm306, %v5654
      %p5687 = scmp.lt.s32.totalorder %s17, 1
      %s5688 = scalar_select %p5687, %s17, 1
      %s5689 = smul.addr %s5688, 32
      %s5690 = smul.addr %s5689, 8
      %s5691 = scalar_lea.vmem %s6, %s5690
      // Predicated region
      $region45: #{tpu_custom_call.1} parent=43 // pred_check
        %p5692 = pneg %p166
      $region46: #{tpu_custom_call.1} parent=43 // pred_check_branch
        %5694 = sbr.rel (%p5692) target = $region48
      $region47: #{tpu_custom_call.1} parent=43 // pred_region
        _
      $region48: #{tpu_custom_call.1} parent=43 // pred_fallthru
        _
    $region44: #{tpu_custom_call.1} parent=5 // pred_fallthru
      _
    %p5695 = scmp.le.s32.totalorder 2, %s12
    // Predicated region
    $region49: #{tpu_custom_call.1} parent=5 // pred_check
      %p5696 = pneg %p5695
    $region50: #{tpu_custom_call.1} parent=5 // pred_check_branch
      %5698 = sbr.rel (%p5696) target = $region52
    $region51: #{tpu_custom_call.1} parent=5 // pred_region
      %s5699 = ssub.s32 %s12, 2
      // Predicated region
      $region53: #{tpu_custom_call.1} parent=51 // pred_check
        %p5700 = pneg %p172
      $region54: #{tpu_custom_call.1} parent=51 // pred_check_branch
        %5702 = sbr.rel (%p5700) target = $region56
      $region55: #{tpu_custom_call.1} parent=51 // pred_region
        %p5703 = scmp.lt.s32.totalorder %s18, 1
        %s5704 = scalar_select %p5703, %s18, 1
        %s5705 = smul.addr %s5704, 32
        %s5706 = smul.addr %s5705, 8
        %s5707 = scalar_lea.vmem %s6, %s5706
      $region56: #{tpu_custom_call.1} parent=51 // pred_fallthru
        _
    $region52: #{tpu_custom_call.1} parent=5 // pred_fallthru
      _
  $region6: #{tpu_custom_call.1} parent=0 // loop_footer
    %s16 = sadd.s32 1, %s12
  $region7: #{tpu_custom_call.1} parent=0 // loop_footer_branch
    %11 = sbr.rel target = $region3
  $region8: #{tpu_custom_call.1} parent=0 // loop_exit
    _

</llo_original>
